<compile_context>
chip_gen: v7x
topology: tpu7x:2x2x1
jax: 0.10.0
libtpu: 0.0.40
codegen_flags: <defaults>
</compile_context>

<pallas_src>
import functools
import numpy as np
import jax
import jax.numpy as jnp
from jax import lax
from jax.experimental import pallas as pl
from jax.experimental.pallas import tpu as pltpu


# ----------------------------------------------------------------------------
# Kernel A: fused pad+im2col conv (single folded bf16 MXU matmul, f32 acc),
#           channel-major lane-dense output, per-(batch,row-tile) channel
#           sum / sum-of-squares partials for the BatchNorm statistics.
# ----------------------------------------------------------------------------
def _conv_stats_kernel(x_ref, w_ref, o_ref, sum_ref, sq_ref, slab_ref,
                       *, ksize, tr, wo, c_in):
    i = pl.program_id(1)                       # row-tile index within this image
    r0 = pl.multiple_of(i * tr, tr)            # first output row of this tile
    tile = tr * wo

    # Folded im2col slab (tile, k*k*C_in), built from ref-level tap slices
    # (no materialized halo value, no per-tap accumulate passes).
    for ky in range(ksize):
        for kx in range(ksize):
            t = ky * ksize + kx
            tap = x_ref[0, pl.ds(r0 + ky, tr), kx:kx + wo, :]    # (tr, wo, c_in)
            slab_ref[:, t * c_in:(t + 1) * c_in] = tap.reshape(tile, c_in)

    # Single MXU matmul: (C_out, k*k*C_in) x (tile, k*k*C_in)^T -> (C_out, tile)
    acc = lax.dot_general(w_ref[...], slab_ref[...],
                          dimension_numbers=(((1,), (1,)), ((), ())),
                          preferred_element_type=jnp.float32)
    # TODO(synk): a channel-major (k*k*C_in, tile) slab would remove the implicit
    # RHS transpose, but requires a trailing-dim-collapse relayout whose Mosaic
    # lowering support is not guaranteed; left out to keep the kernel robust.

    y = acc.astype(o_ref.dtype)
    o_ref[0, :, :] = y                                           # lane-dense store

    # BN statistics from the bf16-rounded values actually stored (self-consistent
    # with what kernel B reads back); per-tile partials, reduced in the wrapper.
    yf = y.astype(jnp.float32)
    sum_ref[0, 0, :, :] = jnp.sum(yf, axis=1, keepdims=True)
    sq_ref[0, 0, :, :] = jnp.sum(yf * yf, axis=1, keepdims=True)


# ----------------------------------------------------------------------------
# Kernel B: fused BatchNorm (scale/shift) + LeakyReLU(0.1) epilogue on the
#           channel-major conv output.  Purely mem-bound -> large lane tiles.
# ----------------------------------------------------------------------------
def _bn_lrelu_kernel(x_ref, scale_ref, shift_ref, o_ref):
    y = x_ref[0, :, :].astype(jnp.float32) * scale_ref[...] + shift_ref[...]
    o_ref[0, :, :] = jnp.where(y >= 0, y, 0.1 * y).astype(o_ref.dtype)


# ----------------------------------------------------------------------------
# Glue helpers.
# ----------------------------------------------------------------------------
def _bilinear_matrix(in_size, out_size):
    """Bilinear interpolation matrix, align_corners=True (as in the module)."""
    if out_size == 1:
        m = np.zeros((1, in_size), np.float32)
        m[0, 0] = 1.0
        return jnp.asarray(m)
    coords = np.arange(out_size, dtype=np.float64) * (in_size - 1) / (out_size - 1)
    lo = np.minimum(np.floor(coords).astype(np.int64), in_size - 1)
    hi = np.minimum(lo + 1, in_size - 1)
    frac = np.clip(coords - lo, 0.0, 1.0).astype(np.float32)
    m = np.zeros((out_size, in_size), np.float32)
    m[np.arange(out_size), lo] += 1.0 - frac
    m[np.arange(out_size), hi] += frac
    return jnp.asarray(m)


def _vmem_budget_bytes():
    """Generation-aware scoped-VMEM budget (~0.75x physical)."""
    cap = 64 * 2 ** 20                      # conservative floor (v7x per-core)
    try:
        info = pltpu.get_tpu_info()
        cap = int(getattr(info, "vmem_capacity_bytes", cap))
    except Exception:
        pass
    return max(16 * 2 ** 20, int(0.75 * cap))


def _pick_row_tile(oh, ow, c_out):
    """Largest divisor tr of oh with tr*ow a multiple of 128 (lane-dense output
    stores), capped so the f32 (C_out, tile) accumulator stays small (v5e: 64
    vregs, single vector-store slot).  Falls back to the full image (a block
    equal to the full extent is always legal)."""
    acc_budget = 128 * 1024                                  # bytes for f32 acc
    max_lanes = max(128, min(4096, acc_budget // (4 * max(c_out, 1))))
    best = None
    for tr in range(1, oh + 1):
        if oh % tr:
            continue
        lanes = tr * ow
        if lanes % 128 == 0 and lanes <= max_lanes:
            best = tr
    return best if best is not None else oh


def _pick_lane_block(p, c_out, budget_bytes):
    """Largest multiple-of-128 divisor of p whose double-buffered epilogue blocks
    fit in `budget_bytes` (big tiles amortize per-grid-step overhead)."""
    best = None
    tb = 128
    while tb <= p:
        if p % tb == 0:
            need = c_out * tb * (2 * 2 + 2 * 4 + 8)   # dbl bf16 in + dbl f32 out + work
            if need <= budget_bytes:
                best = tb
        tb += 128
    return best if best is not None else p


def upconv_forward(x, w, b, gamma, beta, kernel_size, scale, eps=1e-5,
                   out_dtype=jnp.float32):
    """x: (N, C_in, H, W) float32 (NCHW, like PyTorch).  Returns NCHW `out_dtype`.

    `b` (the Conv2d bias) is accepted for parity with the module but unused:
    training-mode BatchNorm with batch statistics exactly cancels a per-channel
    constant added before it, so dropping the bias leaves the output unchanged
    (it would have to be re-added for eval-mode BN with running stats).
    """
    del b
    N, C_in, H, W = x.shape
    C_out = w.shape[0]
    Ho = int(np.floor(H * scale))
    Wo = int(np.floor(W * scale))

    # --- bilinear upsample, align_corners=True; einsum emits NHWC directly so
    #     no separate whole-tensor transpose is materialized (glue, XLA) ---
    Ah = _bilinear_matrix(H, Ho)           # (Ho, H)
    Aw = _bilinear_matrix(W, Wo)           # (Wo, W)
    up = jnp.einsum("Hh,Ww,nchw->nHWc", Ah, Aw, x.astype(jnp.float32))
    # TODO(synk): fuse the bilinear upsample / zero-pad into kernel A (polyphase
    # decomposition) so the scale^2-larger intermediate never touches HBM.

    # --- F.pad(p,p,p,p); bf16 operands for the MXU conv ---
    p = int(np.floor((kernel_size - 1) / 2))
    xp = jnp.pad(up, ((0, 0), (p, p), (p, p), (0, 0))).astype(jnp.bfloat16)
    Hp, Wp = Ho + 2 * p, Wo + 2 * p
    oh = Hp - kernel_size + 1
    ow = Wp - kernel_size + 1
    P = oh * ow

    # weight (C_out, C_in, kh, kw) -> (C_out, k*k*C_in) matching slab column order
    # ((ky*k + kx)*C_in + c), bf16.
    KKC = kernel_size * kernel_size * C_in
    w2 = jnp.transpose(w, (0, 2, 3, 1)).reshape(C_out, KKC).astype(jnp.bfloat16)

    # Row-tile selection: lane tile = tr*ow, multiple of 128 (or full extent).
    tr = _pick_row_tile(oh, ow, C_out)
    R = oh // tr
    TILE = tr * ow

    # Generation-aware VMEM budget.
    vmem_limit = _vmem_budget_bytes()
    # TODO(synk): for large images on v7x (64 MiB VMEM) the whole-padded-image
    # resident input block should become halo'd row-slab manual DMA
    # (memory_space=pl.ANY + pltpu.make_async_copy, double buffered).

    kernel_a = functools.partial(_conv_stats_kernel, ksize=kernel_size,
                                 tr=tr, wo=ow, c_in=C_in)

    # --- Pallas kernel A: fused pad+im2col conv (single folded matmul) + stats ---
    conv_t, ch_sum, ch_sq = pl.pallas_call(
        kernel_a,
        out_shape=(
            jax.ShapeDtypeStruct((N, C_out, P), jnp.bfloat16),
            jax.ShapeDtypeStruct((N, R, C_out, 1), jnp.float32),
            jax.ShapeDtypeStruct((N, R, C_out, 1), jnp.float32),
        ),
        grid_spec=pltpu.PrefetchScalarGridSpec(
            num_scalar_prefetch=0,
            grid=(N, R),
            in_specs=[
                # whole padded image per batch element, resident across row tiles
                pl.BlockSpec((1, Hp, Wp, C_in), lambda n, i: (n, 0, 0, 0)),
                pl.BlockSpec((C_out, KKC), lambda n, i: (0, 0)),
            ],
            out_specs=[
                pl.BlockSpec((1, C_out, TILE), lambda n, i: (n, 0, i)),
                pl.BlockSpec((1, 1, C_out, 1), lambda n, i: (n, i, 0, 0)),
                pl.BlockSpec((1, 1, C_out, 1), lambda n, i: (n, i, 0, 0)),
            ],
            scratch_shapes=[pltpu.VMEM((TILE, KKC), jnp.bfloat16)],
        ),
        compiler_params=pltpu.CompilerParams(
            dimension_semantics=("parallel", "parallel"),
            vmem_limit_bytes=vmem_limit),
    )(xp, w2)

    # --- BatchNorm (training-mode batch stats, biased variance) ---
    M = N * P
    ch_sum_t = jnp.sum(ch_sum, axis=(0, 1))                  # (C_out, 1)
    ch_sq_t = jnp.sum(ch_sq, axis=(0, 1))                    # (C_out, 1)
    mean = ch_sum_t / M
    var = ch_sq_t / M - mean * mean
    var = jnp.maximum(var, 0.0)                              # guard fp cancellation
    scale_vec = (gamma.reshape(C_out, 1).astype(jnp.float32)
                 / jnp.sqrt(var + eps))
    shift_vec = beta.reshape(C_out, 1).astype(jnp.float32) - mean * scale_vec

    # --- Pallas kernel B: scale/shift + LeakyReLU(0.1); decoupled, large tiles ---
    TB = _pick_lane_block(P, C_out, vmem_limit // 2)
    NB = P // TB
    y = pl.pallas_call(
        _bn_lrelu_kernel,
        out_shape=jax.ShapeDtypeStruct((N, C_out, P), out_dtype),
        grid_spec=pltpu.PrefetchScalarGridSpec(
            num_scalar_prefetch=0,
            grid=(N, NB),
            in_specs=[
                pl.BlockSpec((1, C_out, TB), lambda n, j: (n, 0, j)),
                pl.BlockSpec((C_out, 1), lambda n, j: (0, 0)),
                pl.BlockSpec((C_out, 1), lambda n, j: (0, 0)),
            ],
            out_specs=pl.BlockSpec((1, C_out, TB), lambda n, j: (n, 0, j)),
        ),
        compiler_params=pltpu.CompilerParams(
            dimension_semantics=("parallel", "parallel"),
            vmem_limit_bytes=vmem_limit),
    )(conv_t, scale_vec, shift_vec)

    # channel-major kernel output makes NCHW a free reshape (no transpose pass)
    return y.reshape(N, C_out, oh, ow)


if __name__ == "__main__":
    key = jax.random.PRNGKey(0)
    N, C_in, H, W = 2, 4, 16, 16
    C_out, ksz, scale = 8, 3, 2

    k1, k2, k3 = jax.random.split(key, 3)
    x = jax.random.normal(k1, (N, C_in, H, W), jnp.float32)

    # Deterministic parameter init (PyTorch Conv2d default: U(-1/sqrt(fan_in), +)).
    fan_in = C_in * ksz * ksz
    bound = 1.0 / np.sqrt(fan_in)
    w = jax.random.uniform(k2, (C_out, C_in, ksz, ksz), jnp.float32, -bound, bound)
    b = jax.random.uniform(k3, (C_out,), jnp.float32, -bound, bound)
    gamma = jnp.ones((C_out,), jnp.float32)   # BatchNorm2d weight init
    beta = jnp.zeros((C_out,), jnp.float32)   # BatchNorm2d bias init

    out = upconv_forward(x, w, b, gamma, beta, ksz, scale)
    jax.block_until_ready(out)
    assert out.shape == (N, C_out, H * scale, W * scale)
    print("KERNEL_OK")
</pallas_src>

<mosaic_0001>
module attributes {stable_mosaic.version = 11 : i64} {
  func.func @_conv_stats_kernel(%arg0: i32, %arg1: i32, %arg2: memref<1x34x34x4xbf16, #tpu.memory_space<vmem>>, %arg3: memref<8x36xbf16, #tpu.memory_space<vmem>>, %arg4: memref<1x8x1024xbf16, #tpu.memory_space<vmem>>, %arg5: memref<1x1x8x1xf32, #tpu.memory_space<vmem>>, %arg6: memref<1x1x8x1xf32, #tpu.memory_space<vmem>>, %arg7: memref<1024x36xbf16, #tpu.memory_space<vmem>>) attributes {dimension_semantics = [#tpu.dimension_semantics<parallel>, #tpu.dimension_semantics<parallel>], iteration_bounds = array<i64: 2, 1>, scalar_prefetch = 0 : i64, scratch_operands = 1 : i64, tpu.core_type = #tpu.core_type<tc>, window_params = [{transform_indices = @transform_0, window_bounds = array<i64: 1, 34, 34, 4>}, {pipeline_mode = #tpu.pipeline_mode<synchronous>, transform_indices = @transform_1, window_bounds = array<i64: 8, 36>}, {transform_indices = @transform_2, window_bounds = array<i64: 1, 8, 1024>}, {transform_indices = @transform_3, window_bounds = array<i64: 1, 1, 8, 1>}, {transform_indices = @transform_4, window_bounds = array<i64: 1, 1, 8, 1>}]} {
    %c32_i32 = arith.constant 32 : i32
    %0 = arith.muli %arg1, %c32_i32 : i32
    %1 = tpu.assume_multiple %0, 32 : i32
    %c0_i32 = arith.constant 0 : i32
    %2 = arith.addi %1, %c0_i32 : i32
    %c0 = arith.constant 0 : index
    %3 = arith.index_cast %2 : i32 to index
    %c0_0 = arith.constant 0 : index
    %c0_1 = arith.constant 0 : index
    %4 = vector.load %arg2[%c0, %3, %c0_0, %c0_1] : memref<1x34x34x4xbf16, #tpu.memory_space<vmem>>, vector<1x32x32x4xbf16>
    %5 = vector.shape_cast %4 : vector<1x32x32x4xbf16> to vector<32x32x4xbf16>
    %6 = vector.shape_cast %5 : vector<32x32x4xbf16> to vector<1024x4xbf16>
    %c0_2 = arith.constant 0 : index
    %c0_3 = arith.constant 0 : index
    %7 = vector.load %arg7[%c0_2, %c0_3] : memref<1024x36xbf16, #tpu.memory_space<vmem>>, vector<1024x4xbf16>
    tpu.vector_store %arg7[%c0_2, %c0_3], %6 {strides = array<i32>} : memref<1024x36xbf16, #tpu.memory_space<vmem>>, vector<1024x4xbf16>,
    %c0_i32_4 = arith.constant 0 : i32
    %8 = arith.addi %1, %c0_i32_4 : i32
    %c0_5 = arith.constant 0 : index
    %9 = arith.index_cast %8 : i32 to index
    %c1 = arith.constant 1 : index
    %c0_6 = arith.constant 0 : index
    %10 = vector.load %arg2[%c0_5, %9, %c1, %c0_6] : memref<1x34x34x4xbf16, #tpu.memory_space<vmem>>, vector<1x32x32x4xbf16>
    %11 = vector.shape_cast %10 : vector<1x32x32x4xbf16> to vector<32x32x4xbf16>
    %12 = vector.shape_cast %11 : vector<32x32x4xbf16> to vector<1024x4xbf16>
    %c0_7 = arith.constant 0 : index
    %c4 = arith.constant 4 : index
    %13 = vector.load %arg7[%c0_7, %c4] : memref<1024x36xbf16, #tpu.memory_space<vmem>>, vector<1024x4xbf16>
    tpu.vector_store %arg7[%c0_7, %c4], %12 {strides = array<i32>} : memref<1024x36xbf16, #tpu.memory_space<vmem>>, vector<1024x4xbf16>,
    %c0_i32_8 = arith.constant 0 : i32
    %14 = arith.addi %1, %c0_i32_8 : i32
    %c0_9 = arith.constant 0 : index
    %15 = arith.index_cast %14 : i32 to index
    %c2 = arith.constant 2 : index
    %c0_10 = arith.constant 0 : index
    %16 = vector.load %arg2[%c0_9, %15, %c2, %c0_10] : memref<1x34x34x4xbf16, #tpu.memory_space<vmem>>, vector<1x32x32x4xbf16>
    %17 = vector.shape_cast %16 : vector<1x32x32x4xbf16> to vector<32x32x4xbf16>
    %18 = vector.shape_cast %17 : vector<32x32x4xbf16> to vector<1024x4xbf16>
    %c0_11 = arith.constant 0 : index
    %c8 = arith.constant 8 : index
    %19 = vector.load %arg7[%c0_11, %c8] : memref<1024x36xbf16, #tpu.memory_space<vmem>>, vector<1024x4xbf16>
    tpu.vector_store %arg7[%c0_11, %c8], %18 {strides = array<i32>} : memref<1024x36xbf16, #tpu.memory_space<vmem>>, vector<1024x4xbf16>,
    %c1_i32 = arith.constant 1 : i32
    %20 = arith.addi %1, %c1_i32 : i32
    %c0_12 = arith.constant 0 : index
    %21 = arith.index_cast %20 : i32 to index
    %c0_13 = arith.constant 0 : index
    %c0_14 = arith.constant 0 : index
    %22 = vector.load %arg2[%c0_12, %21, %c0_13, %c0_14] : memref<1x34x34x4xbf16, #tpu.memory_space<vmem>>, vector<1x32x32x4xbf16>
    %23 = vector.shape_cast %22 : vector<1x32x32x4xbf16> to vector<32x32x4xbf16>
    %24 = vector.shape_cast %23 : vector<32x32x4xbf16> to vector<1024x4xbf16>
    %c0_15 = arith.constant 0 : index
    %c12 = arith.constant 12 : index
    %25 = vector.load %arg7[%c0_15, %c12] : memref<1024x36xbf16, #tpu.memory_space<vmem>>, vector<1024x4xbf16>
    tpu.vector_store %arg7[%c0_15, %c12], %24 {strides = array<i32>} : memref<1024x36xbf16, #tpu.memory_space<vmem>>, vector<1024x4xbf16>,
    %c1_i32_16 = arith.constant 1 : i32
    %26 = arith.addi %1, %c1_i32_16 : i32
    %c0_17 = arith.constant 0 : index
    %27 = arith.index_cast %26 : i32 to index
    %c1_18 = arith.constant 1 : index
    %c0_19 = arith.constant 0 : index
    %28 = vector.load %arg2[%c0_17, %27, %c1_18, %c0_19] : memref<1x34x34x4xbf16, #tpu.memory_space<vmem>>, vector<1x32x32x4xbf16>
    %29 = vector.shape_cast %28 : vector<1x32x32x4xbf16> to vector<32x32x4xbf16>
    %30 = vector.shape_cast %29 : vector<32x32x4xbf16> to vector<1024x4xbf16>
    %c0_20 = arith.constant 0 : index
    %c16 = arith.constant 16 : index
    %31 = vector.load %arg7[%c0_20, %c16] : memref<1024x36xbf16, #tpu.memory_space<vmem>>, vector<1024x4xbf16>
    tpu.vector_store %arg7[%c0_20, %c16], %30 {strides = array<i32>} : memref<1024x36xbf16, #tpu.memory_space<vmem>>, vector<1024x4xbf16>,
    %c1_i32_21 = arith.constant 1 : i32
    %32 = arith.addi %1, %c1_i32_21 : i32
    %c0_22 = arith.constant 0 : index
    %33 = arith.index_cast %32 : i32 to index
    %c2_23 = arith.constant 2 : index
    %c0_24 = arith.constant 0 : index
    %34 = vector.load %arg2[%c0_22, %33, %c2_23, %c0_24] : memref<1x34x34x4xbf16, #tpu.memory_space<vmem>>, vector<1x32x32x4xbf16>
    %35 = vector.shape_cast %34 : vector<1x32x32x4xbf16> to vector<32x32x4xbf16>
    %36 = vector.shape_cast %35 : vector<32x32x4xbf16> to vector<1024x4xbf16>
    %c0_25 = arith.constant 0 : index
    %c20 = arith.constant 20 : index
    %37 = vector.load %arg7[%c0_25, %c20] : memref<1024x36xbf16, #tpu.memory_space<vmem>>, vector<1024x4xbf16>
    tpu.vector_store %arg7[%c0_25, %c20], %36 {strides = array<i32>} : memref<1024x36xbf16, #tpu.memory_space<vmem>>, vector<1024x4xbf16>,
    %c2_i32 = arith.constant 2 : i32
    %38 = arith.addi %1, %c2_i32 : i32
    %c0_26 = arith.constant 0 : index
    %39 = arith.index_cast %38 : i32 to index
    %c0_27 = arith.constant 0 : index
    %c0_28 = arith.constant 0 : index
    %40 = vector.load %arg2[%c0_26, %39, %c0_27, %c0_28] : memref<1x34x34x4xbf16, #tpu.memory_space<vmem>>, vector<1x32x32x4xbf16>
    %41 = vector.shape_cast %40 : vector<1x32x32x4xbf16> to vector<32x32x4xbf16>
    %42 = vector.shape_cast %41 : vector<32x32x4xbf16> to vector<1024x4xbf16>
    %c0_29 = arith.constant 0 : index
    %c24 = arith.constant 24 : index
    %43 = vector.load %arg7[%c0_29, %c24] : memref<1024x36xbf16, #tpu.memory_space<vmem>>, vector<1024x4xbf16>
    tpu.vector_store %arg7[%c0_29, %c24], %42 {strides = array<i32>} : memref<1024x36xbf16, #tpu.memory_space<vmem>>, vector<1024x4xbf16>,
    %c2_i32_30 = arith.constant 2 : i32
    %44 = arith.addi %1, %c2_i32_30 : i32
    %c0_31 = arith.constant 0 : index
    %45 = arith.index_cast %44 : i32 to index
    %c1_32 = arith.constant 1 : index
    %c0_33 = arith.constant 0 : index
    %46 = vector.load %arg2[%c0_31, %45, %c1_32, %c0_33] : memref<1x34x34x4xbf16, #tpu.memory_space<vmem>>, vector<1x32x32x4xbf16>
    %47 = vector.shape_cast %46 : vector<1x32x32x4xbf16> to vector<32x32x4xbf16>
    %48 = vector.shape_cast %47 : vector<32x32x4xbf16> to vector<1024x4xbf16>
    %c0_34 = arith.constant 0 : index
    %c28 = arith.constant 28 : index
    %49 = vector.load %arg7[%c0_34, %c28] : memref<1024x36xbf16, #tpu.memory_space<vmem>>, vector<1024x4xbf16>
    tpu.vector_store %arg7[%c0_34, %c28], %48 {strides = array<i32>} : memref<1024x36xbf16, #tpu.memory_space<vmem>>, vector<1024x4xbf16>,
    %c2_i32_35 = arith.constant 2 : i32
    %50 = arith.addi %1, %c2_i32_35 : i32
    %c0_36 = arith.constant 0 : index
    %51 = arith.index_cast %50 : i32 to index
    %c2_37 = arith.constant 2 : index
    %c0_38 = arith.constant 0 : index
    %52 = vector.load %arg2[%c0_36, %51, %c2_37, %c0_38] : memref<1x34x34x4xbf16, #tpu.memory_space<vmem>>, vector<1x32x32x4xbf16>
    %53 = vector.shape_cast %52 : vector<1x32x32x4xbf16> to vector<32x32x4xbf16>
    %54 = vector.shape_cast %53 : vector<32x32x4xbf16> to vector<1024x4xbf16>
    %c0_39 = arith.constant 0 : index
    %c32 = arith.constant 32 : index
    %55 = vector.load %arg7[%c0_39, %c32] : memref<1024x36xbf16, #tpu.memory_space<vmem>>, vector<1024x4xbf16>
    tpu.vector_store %arg7[%c0_39, %c32], %54 {strides = array<i32>} : memref<1024x36xbf16, #tpu.memory_space<vmem>>, vector<1024x4xbf16>,
    %c0_40 = arith.constant 0 : index
    %c0_41 = arith.constant 0 : index
    %56 = vector.load %arg3[%c0_40, %c0_41] : memref<8x36xbf16, #tpu.memory_space<vmem>>, vector<8x36xbf16>
    %c0_42 = arith.constant 0 : index
    %c0_43 = arith.constant 0 : index
    %57 = vector.load %arg7[%c0_42, %c0_43] : memref<1024x36xbf16, #tpu.memory_space<vmem>>, vector<1024x36xbf16>
    %cst = arith.constant dense<0.000000e+00> : vector<8x1024xf32>
    %58 = tpu.matmul %56, %57, %cst {dimension_numbers = #tpu.dot_dimension_numbers<[1], [1], [0], [0], [0, 0, 1, 0], [], []>} : vector<8x36xbf16>, vector<1024x36xbf16>, vector<8x1024xf32> -> vector<8x1024xf32>
    %59 = arith.truncf %58 : vector<8x1024xf32> to vector<8x1024xbf16>
    %c0_44 = arith.constant 0 : index
    %c0_45 = arith.constant 0 : index
    %c0_46 = arith.constant 0 : index
    %60 = vector.load %arg4[%c0_44, %c0_45, %c0_46] : memref<1x8x1024xbf16, #tpu.memory_space<vmem>>, vector<1x8x1024xbf16>
    %61 = vector.shape_cast %60 : vector<1x8x1024xbf16> to vector<8x1024xbf16>
    %62 = vector.shape_cast %59 : vector<8x1024xbf16> to vector<1x8x1024xbf16>
    tpu.vector_store %arg4[%c0_44, %c0_45, %c0_46], %62 {strides = array<i32>} : memref<1x8x1024xbf16, #tpu.memory_space<vmem>>, vector<1x8x1024xbf16>,
    %63 = arith.extf %59 : vector<8x1024xbf16> to vector<8x1024xf32>
    %cst_47 = arith.constant dense<0.000000e+00> : vector<8xf32>
    %64 = vector.multi_reduction <add>, %63, %cst_47 [1] : vector<8x1024xf32> to vector<8xf32>
    %65 = vector.shape_cast %64 : vector<8xf32> to vector<8x1xf32>
    %c0_48 = arith.constant 0 : index
    %c0_49 = arith.constant 0 : index
    %c0_50 = arith.constant 0 : index
    %c0_51 = arith.constant 0 : index
    %66 = vector.load %arg5[%c0_48, %c0_49, %c0_50, %c0_51] : memref<1x1x8x1xf32, #tpu.memory_space<vmem>>, vector<1x1x8x1xf32>
    %67 = vector.shape_cast %66 : vector<1x1x8x1xf32> to vector<8x1xf32>
    %68 = vector.shape_cast %65 : vector<8x1xf32> to vector<1x1x8x1xf32>
    tpu.vector_store %arg5[%c0_48, %c0_49, %c0_50, %c0_51], %68 {strides = array<i32>} : memref<1x1x8x1xf32, #tpu.memory_space<vmem>>, vector<1x1x8x1xf32>,
    %69 = arith.mulf %63, %63 : vector<8x1024xf32>
    %cst_52 = arith.constant dense<0.000000e+00> : vector<8xf32>
    %70 = vector.multi_reduction <add>, %69, %cst_52 [1] : vector<8x1024xf32> to vector<8xf32>
    %71 = vector.shape_cast %70 : vector<8xf32> to vector<8x1xf32>
    %c0_53 = arith.constant 0 : index
    %c0_54 = arith.constant 0 : index
    %c0_55 = arith.constant 0 : index
    %c0_56 = arith.constant 0 : index
    %72 = vector.load %arg6[%c0_53, %c0_54, %c0_55, %c0_56] : memref<1x1x8x1xf32, #tpu.memory_space<vmem>>, vector<1x1x8x1xf32>
    %73 = vector.shape_cast %72 : vector<1x1x8x1xf32> to vector<8x1xf32>
    %74 = vector.shape_cast %71 : vector<8x1xf32> to vector<1x1x8x1xf32>
    tpu.vector_store %arg6[%c0_53, %c0_54, %c0_55, %c0_56], %74 {strides = array<i32>} : memref<1x1x8x1xf32, #tpu.memory_space<vmem>>, vector<1x1x8x1xf32>,
    return
  }
  func.func @transform_0(%arg0: i32, %arg1: i32) -> (i32, i32, i32, i32) {
    %c0_i32 = arith.constant 0 : i32
    %c0_i32_0 = arith.constant 0 : i32
    %c0_i32_1 = arith.constant 0 : i32
    %c0_i32_2 = arith.constant 0 : i32
    return %arg0, %c0_i32, %c0_i32_0, %c0_i32_1 : i32, i32, i32, i32
  }
  func.func @transform_1(%arg0: i32, %arg1: i32) -> (i32, i32) {
    %c0_i32 = arith.constant 0 : i32
    %c0_i32_0 = arith.constant 0 : i32
    %c0_i32_1 = arith.constant 0 : i32
    return %c0_i32, %c0_i32_0 : i32, i32
  }
  func.func @transform_2(%arg0: i32, %arg1: i32) -> (i32, i32, i32) {
    %c0_i32 = arith.constant 0 : i32
    %c0_i32_0 = arith.constant 0 : i32
    return %arg0, %c0_i32, %arg1 : i32, i32, i32
  }
  func.func @transform_3(%arg0: i32, %arg1: i32) -> (i32, i32, i32, i32) {
    %c0_i32 = arith.constant 0 : i32
    %c0_i32_0 = arith.constant 0 : i32
    %c0_i32_1 = arith.constant 0 : i32
    return %arg0, %arg1, %c0_i32, %c0_i32_0 : i32, i32, i32, i32
  }
  func.func @transform_4(%arg0: i32, %arg1: i32) -> (i32, i32, i32, i32) {
    %c0_i32 = arith.constant 0 : i32
    %c0_i32_0 = arith.constant 0 : i32
    %c0_i32_1 = arith.constant 0 : i32
    return %arg0, %arg1, %c0_i32, %c0_i32_0 : i32, i32, i32, i32
  }
}

</mosaic_0001>

<llo_original>
// kernel: tpu_custom_call.1
$region0: #{tpu_custom_call.1}
  #allocation0 [shape = 'u32[]', space=smem, size = 0x4, offset = 0x4, fixed_abs, tag = 'smem constant byte address 0x4 - core index']
  #allocation1 [shape = 'u32[144,128]{1,0:T(1,128)}', space=vmem, size = 0x12000, scoped, tag = 'internal scratch']
  #allocation2 [shape = 'bf16[1024,36]{1,0:T(16,128)(2,1)}', space=vmem, size = 0x40000, scoped, tag = 'scratch operand']
  %s0 = inlined_call_operand.vmem [shape: bf16[2,34,34,4], index: 0, kind: input, shape index: {}]
  %s1 = inlined_call_operand.vmem [shape: bf16[8,36], index: 1, kind: input, shape index: {}]
  %s2 = inlined_call_operand.hbm [shape: bf16[2,8,1024], index: 2, kind: output, shape index: {0}]
  %s3 = inlined_call_operand.vmem [shape: f32[2,1,8,1], index: 3, kind: output, shape index: {1}]
  %s4 = inlined_call_operand.vmem [shape: f32[2,1,8,1], index: 4, kind: output, shape index: {2}]
  %5 = xla_tuple %s2, %s3, %s4
  %s6 = sld [smem:[#allocation0]]
  $region57: #{tpu_custom_call.1} parent=0
    _
  %s8 = ssub.s32 1, %s6
  %s9 = scalar_select 0, %s8, %s6
  $region1: #{tpu_custom_call.1} parent=0
    #allocation3 [shape = 'u8[32768]{0}', space=vmem, size = 0x8000, scoped, tag = 'output window, operand 0']
    #allocation4 [shape = 's32[2]{0}', space=sflag, size = 0x8, scoped, tag = 'scoped memory for tpu_custom_call.1']
    %10 = vsyncpa [#allocation4], 0
    %s11 = scalar_lea.sflag [#allocation4], 1
    %12 = vsyncpa %s11, 0
    loop: start=0, step=1, limit=4
    $region2: #{tpu_custom_call.1} parent=1 // loop_pre_header
      _
    $region3: #{tpu_custom_call.1} parent=1 // loop_header
      %s14 = sphi 0, %s18
      %p15 = scmp.ge.s32.totalorder %s14, 4
      %s21 = sphi 0, %s33
      %s22 = sphi 0, %s29
      %s23 = sphi 0, %s21
      %s24 = sphi 0, %s22
      %s25 = sphi 0, %s23
      %s26 = sphi 0, %s24
      %s36 = sphi 0, %s38
      %s39 = sphi 0, %s36
      %s40 = sphi 0, %s39
      %s56 = sphi 0, %s40
      %s60 = sphi 0, %s60
      %s62 = sphi 0, %s60
      %s63 = sphi 0, %s62
      %s77 = sphi 0, %s63
      %s85 = sphi 0, %s87
      %s88 = sphi 0, %s85
      %s89 = sphi 0, %s88
      %s105 = sphi 0, %s89
      %s113 = sphi 0, %s115
      %s116 = sphi 0, %s113
      %s117 = sphi 0, %s116
      %s133 = sphi 0, %s117
      %s141 = sphi 0, %s143
      %s144 = sphi 0, %s141
      %s145 = sphi 0, %s144
      %s161 = sphi 0, %s145
    $region4: #{tpu_custom_call.1} parent=1 // loop_header_branch
      %17 = sbr.rel (%p15) target = $region8
    $region5: #{tpu_custom_call.1} parent=1 // loop_body
      %s19 = ssub.s32 %s14, 1
      %s20 = ssub.s32 %s14, 2
      %s27 = sadd.s32 1, %s22
      %p28 = scmp.ge.s32.totalorder %s27, 1
      %s29 = scalar_select %p28, 0, %s27
      %s30 = sadd.s32 1, %s21
      %s31 = scalar_select %p28, %s30, %s21
      %p32 = scmp.ge.s32.totalorder %s31, 2
      %s33 = scalar_select %p32, 0, %s31
      %s34 = ssub.s32 %s21, %s33
      %p35 = scmp.eq.s32.totalorder %s34, 0
      %s37 = sadd.s32 %s36, 1
      %s38 = scalar_select %p35, %s36, %s37
      %p41 = pneg %p35
      %p42 = scmp.eq.s32.totalorder %s14, 1
      %p43 = por %p41, %p42
      %p44 = scmp.ne.s32.totalorder %s36, %s39
      %p45 = scmp.eq.s32.totalorder %s14, 0
      %p46 = por %p44, %p45
      %p47 = scmp.ne.s32.totalorder %s36, %s39
      %p48 = scmp.eq.s32.totalorder %s19, 1
      %p49 = por %p47, %p48
      %p50 = scmp.ne.s32.totalorder %s39, %s40
      %p51 = scmp.eq.s32.totalorder %s19, 0
      %p52 = por %p50, %p51
      %p53 = scmp.ne.s32.totalorder %s39, %s40
      %p54 = scmp.eq.s32.totalorder %s20, 1
      %p55 = por %p53, %p54
      %p57 = scmp.ne.s32.totalorder %s40, %s56
      %p58 = scmp.eq.s32.totalorder %s20, 0
      %p59 = por %p57, %p58
      %s61 = sadd.s32 %s60, 1
      %p64 = scmp.eq.s32.totalorder %s14, 1
      %p65 = scmp.ne.s32.totalorder %s60, %s62
      %p66 = scmp.eq.s32.totalorder %s14, 0
      %p67 = por %p65, %p66
      %p68 = scmp.ne.s32.totalorder %s60, %s62
      %p69 = scmp.eq.s32.totalorder %s19, 1
      %p70 = por %p68, %p69
      %p71 = scmp.ne.s32.totalorder %s62, %s63
      %p72 = scmp.eq.s32.totalorder %s19, 0
      %p73 = por %p71, %p72
      %p74 = scmp.ne.s32.totalorder %s62, %s63
      %p75 = scmp.eq.s32.totalorder %s20, 1
      %p76 = por %p74, %p75
      %p78 = scmp.ne.s32.totalorder %s63, %s77
      %p79 = scmp.eq.s32.totalorder %s20, 0
      %p80 = por %p78, %p79
      %s81 = ssub.s32 %s21, %s33
      %s82 = ssub.s32 %s22, %s29
      %s83 = sor.u32 %s81, %s82
      %p84 = scmp.eq.s32.totalorder %s83, 0
      %s86 = sadd.s32 %s85, 1
      %s87 = scalar_select %p84, %s85, %s86
      %p90 = pneg %p84
      %p91 = scmp.eq.s32.totalorder %s14, 1
      %p92 = por %p90, %p91
      %p93 = scmp.ne.s32.totalorder %s85, %s88
      %p94 = scmp.eq.s32.totalorder %s14, 0
      %p95 = por %p93, %p94
      %p96 = scmp.ne.s32.totalorder %s85, %s88
      %p97 = scmp.eq.s32.totalorder %s19, 1
      %p98 = por %p96, %p97
      %p99 = scmp.ne.s32.totalorder %s88, %s89
      %p100 = scmp.eq.s32.totalorder %s19, 0
      %p101 = por %p99, %p100
      %p102 = scmp.ne.s32.totalorder %s88, %s89
      %p103 = scmp.eq.s32.totalorder %s20, 1
      %p104 = por %p102, %p103
      %p106 = scmp.ne.s32.totalorder %s89, %s105
      %p107 = scmp.eq.s32.totalorder %s20, 0
      %p108 = por %p106, %p107
      %s109 = ssub.s32 %s21, %s33
      %s110 = ssub.s32 %s22, %s29
      %s111 = sor.u32 %s109, %s110
      %p112 = scmp.eq.s32.totalorder %s111, 0
      %s114 = sadd.s32 %s113, 1
      %s115 = scalar_select %p112, %s113, %s114
      %p118 = pneg %p112
      %p119 = scmp.eq.s32.totalorder %s14, 1
      %p120 = por %p118, %p119
      %p121 = scmp.ne.s32.totalorder %s113, %s116
      %p122 = scmp.eq.s32.totalorder %s14, 0
      %p123 = por %p121, %p122
      %p124 = scmp.ne.s32.totalorder %s113, %s116
      %p125 = scmp.eq.s32.totalorder %s19, 1
      %p126 = por %p124, %p125
      %p127 = scmp.ne.s32.totalorder %s116, %s117
      %p128 = scmp.eq.s32.totalorder %s19, 0
      %p129 = por %p127, %p128
      %p130 = scmp.ne.s32.totalorder %s116, %s117
      %p131 = scmp.eq.s32.totalorder %s20, 1
      %p132 = por %p130, %p131
      %p134 = scmp.ne.s32.totalorder %s117, %s133
      %p135 = scmp.eq.s32.totalorder %s20, 0
      %p136 = por %p134, %p135
      %s137 = ssub.s32 %s21, %s33
      %s138 = ssub.s32 %s22, %s29
      %s139 = sor.u32 %s137, %s138
      %p140 = scmp.eq.s32.totalorder %s139, 0
      %s142 = sadd.s32 %s141, 1
      %s143 = scalar_select %p140, %s141, %s142
      %p146 = pneg %p140
      %p147 = scmp.eq.s32.totalorder %s14, 1
      %p148 = por %p146, %p147
      %p149 = scmp.ne.s32.totalorder %s141, %s144
      %p150 = scmp.eq.s32.totalorder %s14, 0
      %p151 = por %p149, %p150
      %p152 = scmp.ne.s32.totalorder %s141, %s144
      %p153 = scmp.eq.s32.totalorder %s19, 1
      %p154 = por %p152, %p153
      %p155 = scmp.ne.s32.totalorder %s144, %s145
      %p156 = scmp.eq.s32.totalorder %s19, 0
      %p157 = por %p155, %p156
      %p158 = scmp.ne.s32.totalorder %s144, %s145
      %p159 = scmp.eq.s32.totalorder %s20, 1
      %p160 = por %p158, %p159
      %p162 = scmp.ne.s32.totalorder %s145, %s161
      %p163 = scmp.eq.s32.totalorder %s20, 0
      %p164 = por %p162, %p163
      %p165 = scmp.le.s32.totalorder 1, %s14
      %p166 = scmp.lt.s32.totalorder %s14, 3
      %p167 = pnand %p165, %p166
      %p168 = pneg %p167
      // Predicated region
      $region9: #{tpu_custom_call.1} parent=5 // pred_check
        _
      $region10: #{tpu_custom_call.1} parent=5 // pred_check_branch
        %170 = sbr.rel (%p167) target = $region12
      $region11: #{tpu_custom_call.1} parent=5 // pred_region
        %s171 = ssub.s32 %s14, 1
        // Predicated region
        $region13: #{tpu_custom_call.1} parent=11 // pred_check
          %p172 = pneg %p73
        $region14: #{tpu_custom_call.1} parent=11 // pred_check_branch
          %174 = sbr.rel (%p172) target = $region16
        $region15: #{tpu_custom_call.1} parent=11 // pred_region
          _
        $region16: #{tpu_custom_call.1} parent=11 // pred_fallthru
          _
      $region12: #{tpu_custom_call.1} parent=5 // pred_fallthru
        _
      %p175 = scmp.lt.s32.totalorder %s14, 2
      // Predicated region
      $region17: #{tpu_custom_call.1} parent=5 // pred_check
        %p176 = pneg %p175
      $region18: #{tpu_custom_call.1} parent=5 // pred_check_branch
        %178 = sbr.rel (%p176) target = $region20
      $region19: #{tpu_custom_call.1} parent=5 // pred_region
        // Predicated region
        $region21: #{tpu_custom_call.1} parent=19 // pred_check
          %p179 = pneg %p46
        $region22: #{tpu_custom_call.1} parent=19 // pred_check_branch
          %181 = sbr.rel (%p179) target = $region24
        $region23: #{tpu_custom_call.1} parent=19 // pred_region
          %p182 = scmp.lt.s32.totalorder %s21, 1
          %s183 = scalar_select %p182, %s21, 1
          %s184 = smul.addr %s183, 170
          %s185 = smul.addr %s184, 4
          %s186 = scalar_lea.vmem %s0, %s185
        $region24: #{tpu_custom_call.1} parent=19 // pred_fallthru
          _
      $region20: #{tpu_custom_call.1} parent=5 // pred_fallthru
        _
      %p187 = scmp.le.s32.totalorder 1, %s14
      %p188 = scmp.lt.s32.totalorder %s14, 3
      %p189 = pnand %p187, %p188
      %p190 = pneg %p189
      // Predicated region
      $region25: #{tpu_custom_call.1} parent=5 // pred_check
        _
      $region26: #{tpu_custom_call.1} parent=5 // pred_check_branch
        %192 = sbr.rel (%p189) target = $region28
      $region27: #{tpu_custom_call.1} parent=5 // pred_region
        %s193 = ssub.s32 %s14, 1
        %p194 = scmp.lt.s32.totalorder %s23, 1
        %s195 = scalar_select %p194, %s23, 1
        %s196 = smul.addr %s195, 170
        %s197 = smul.addr %s196, 4
        %s198 = scalar_lea.vmem %s0, %s197
        %p199 = pneg %p52
        %p200 = pneg %p49
        %p201 = pneg %p73
        %p202 = pneg %p70
        %p203 = pneg %p101
        %p204 = pneg %p98
        %s205 = sand.u32 %s88, 1
        %s206 = scalar_lea.sflag [#allocation4], %s205
        %s207 = sand.u32 %s88, 1
        %s208 = smul.addr %s207, 32
        %s209 = scalar_lea.vmem [#allocation3], %s208
        %p210 = pneg %p129
        %p211 = pneg %p126
        %p212 = scmp.lt.s32.totalorder %s23, 1
        %s213 = scalar_select %p212, %s23, 1
        %p214 = scmp.lt.s32.totalorder %s24, 0
        %s215 = scalar_select %p214, %s24, 0
        %s216 = sadd.s32 %s215, %s213
        %s217 = smul.addr %s216, 8
        %s218 = scalar_lea.vmem %s3, %s217
        %p219 = pneg %p157
        %p220 = pneg %p154
        %p221 = scmp.lt.s32.totalorder %s23, 1
        %s222 = scalar_select %p221, %s23, 1
        %p223 = scmp.lt.s32.totalorder %s24, 0
        %s224 = scalar_select %p223, %s24, 0
        %s225 = sadd.s32 %s224, %s222
        %s226 = smul.addr %s225, 8
        %s227 = scalar_lea.vmem %s4, %s226
        %p228 = scmp.lt.s32.totalorder %s23, 1
        %s229 = scalar_select %p228, %s23, 1
        %s230 = smul.addr %s229, 170
        %s231 = smul.addr %s230, 4
        %s232 = scalar_lea.vmem %s0, %s231
        %s233 = smul.u32 8, %s24
        %p234 = scmp.lt.s32.totalorder %s23, 1
        %s235 = scalar_select %p234, %s23, 1
        %p236 = scmp.lt.s32.totalorder %s24, 0
        %s237 = scalar_select %p236, %s24, 0
        %s238 = sadd.s32 %s237, %s235
        %s239 = smul.addr %s238, 8
        %s240 = scalar_lea.vmem %s3, %s239
        %p241 = scmp.lt.s32.totalorder %s23, 1
        %s242 = scalar_select %p241, %s23, 1
        %p243 = scmp.lt.s32.totalorder %s24, 0
        %s244 = scalar_select %p243, %s24, 0
        %s245 = sadd.s32 %s244, %s242
        %s246 = smul.addr %s245, 8
        %s247 = scalar_lea.vmem %s4, %s246
        %s249 = smul.u32 %s24, 32
        %s250 = smul.u32 %s249, 5
        %s251 = smul.addr %s250, 4
        %s252 = scalar_lea.vmem %s232, %s251
        %v253 = vld [vmem:[%s252] sm:$0xf]
        %v254 = vld [vmem:[%s252 + $0x4] sm:$0xf]
        %v255 = vld [vmem:[%s252 + $0x8] sm:$0xf]
        %v256 = vld [vmem:[%s252 + $0xc] sm:$0xf]
        %v257 = vld [vmem:[%s252 + $0x14] sm:$0xf]
        %v258 = vld [vmem:[%s252 + $0x18] sm:$0xf]
        %v259 = vld [vmem:[%s252 + $0x1c] sm:$0xf]
        %v260 = vld [vmem:[%s252 + $0x20] sm:$0xf]
        %v261 = vld [vmem:[%s252 + $0x28] sm:$0xf]
        %v262 = vld [vmem:[%s252 + $0x2c] sm:$0xf]
        %v263 = vld [vmem:[%s252 + $0x30] sm:$0xf]
        %v264 = vld [vmem:[%s252 + $0x34] sm:$0xf]
        %v265 = vld [vmem:[%s252 + $0x3c] sm:$0xf]
        %v266 = vld [vmem:[%s252 + $0x40] sm:$0xf]
        %v267 = vld [vmem:[%s252 + $0x44] sm:$0xf]
        %v268 = vld [vmem:[%s252 + $0x48] sm:$0xf]
        %v269 = vld [vmem:[%s252 + $0x50] sm:$0xf]
        %v270 = vld [vmem:[%s252 + $0x54] sm:$0xf]
        %v271 = vld [vmem:[%s252 + $0x58] sm:$0xf]
        %v272 = vld [vmem:[%s252 + $0x5c] sm:$0xf]
        %v273 = vld [vmem:[%s252 + $0x64] sm:$0xf]
        %v274 = vld [vmem:[%s252 + $0x68] sm:$0xf]
        %v275 = vld [vmem:[%s252 + $0x6c] sm:$0xf]
        %v276 = vld [vmem:[%s252 + $0x70] sm:$0xf]
        %v277 = vld [vmem:[%s252 + $0x78] sm:$0xf]
        %v278 = vld [vmem:[%s252 + $0x7c] sm:$0xf]
        %v279 = vld [vmem:[%s252 + $0x80] sm:$0xf]
        %v280 = vld [vmem:[%s252 + $0x84] sm:$0xf]
        %v281 = vld [vmem:[%s252 + $0x8c] sm:$0xf]
        %v282 = vld [vmem:[%s252 + $0x90] sm:$0xf]
        %v283 = vld [vmem:[%s252 + $0x94] sm:$0xf]
        %v284 = vld [vmem:[%s252 + $0x98] sm:$0xf]
        %v285 = vld [vmem:[%s252 + $0xa0] sm:$0xf]
        %v286 = vld [vmem:[%s252 + $0xa4] sm:$0xf]
        %v287 = vld [vmem:[%s252 + $0xa8] sm:$0xf]
        %v288 = vld [vmem:[%s252 + $0xac] sm:$0xf]
        %v289 = vld [vmem:[%s252 + $0xb4] sm:$0xf]
        %v290 = vld [vmem:[%s252 + $0xb8] sm:$0xf]
        %v291 = vld [vmem:[%s252 + $0xbc] sm:$0xf]
        %v292 = vld [vmem:[%s252 + $0xc0] sm:$0xf]
        %v293 = vld [vmem:[%s252 + $0xc8] sm:$0xf]
        %v294 = vld [vmem:[%s252 + $0xcc] sm:$0xf]
        %v295 = vld [vmem:[%s252 + $0xd0] sm:$0xf]
        %v296 = vld [vmem:[%s252 + $0xd4] sm:$0xf]
        %v297 = vld [vmem:[%s252 + $0xdc] sm:$0xf]
        %v298 = vld [vmem:[%s252 + $0xe0] sm:$0xf]
        %v299 = vld [vmem:[%s252 + $0xe4] sm:$0xf]
        %v300 = vld [vmem:[%s252 + $0xe8] sm:$0xf]
        %v301 = vld [vmem:[%s252 + $0xf0] sm:$0xf]
        %v302 = vld [vmem:[%s252 + $0xf4] sm:$0xf]
        %v303 = vld [vmem:[%s252 + $0xf8] sm:$0xf]
        %v304 = vld [vmem:[%s252 + $0xfc] sm:$0xf]
        %v305 = vld [vmem:[%s252 + $0x104] sm:$0xf]
        %v306 = vld [vmem:[%s252 + $0x108] sm:$0xf]
        %v307 = vld [vmem:[%s252 + $0x10c] sm:$0xf]
        %v308 = vld [vmem:[%s252 + $0x110] sm:$0xf]
        %v309 = vld [vmem:[%s252 + $0x118] sm:$0xf]
        %v310 = vld [vmem:[%s252 + $0x11c] sm:$0xf]
        %v311 = vld [vmem:[%s252 + $0x120] sm:$0xf]
        %v312 = vld [vmem:[%s252 + $0x124] sm:$0xf]
        %v313 = vld [vmem:[%s252 + $0x12c] sm:$0xf]
        %v314 = vld [vmem:[%s252 + $0x130] sm:$0xf]
        %v315 = vld [vmem:[%s252 + $0x134] sm:$0xf]
        %v316 = vld [vmem:[%s252 + $0x138] sm:$0xf]
        %v317 = vld [vmem:[%s252 + $0x140] sm:$0xf]
        %v318 = vld [vmem:[%s252 + $0x144] sm:$0xf]
        %v319 = vld [vmem:[%s252 + $0x148] sm:$0xf]
        %v320 = vld [vmem:[%s252 + $0x14c] sm:$0xf]
        %v321 = vld [vmem:[%s252 + $0x154] sm:$0xf]
        %v322 = vld [vmem:[%s252 + $0x158] sm:$0xf]
        %v323 = vld [vmem:[%s252 + $0x15c] sm:$0xf]
        %v324 = vld [vmem:[%s252 + $0x160] sm:$0xf]
        %v325 = vld [vmem:[%s252 + $0x168] sm:$0xf]
        %v326 = vld [vmem:[%s252 + $0x16c] sm:$0xf]
        %v327 = vld [vmem:[%s252 + $0x170] sm:$0xf]
        %v328 = vld [vmem:[%s252 + $0x174] sm:$0xf]
        %v329 = vld [vmem:[%s252 + $0x17c] sm:$0xf]
        %v330 = vld [vmem:[%s252 + $0x180] sm:$0xf]
        %v331 = vld [vmem:[%s252 + $0x184] sm:$0xf]
        %v332 = vld [vmem:[%s252 + $0x188] sm:$0xf]
        %v333 = vld [vmem:[%s252 + $0x190] sm:$0xf]
        %v334 = vld [vmem:[%s252 + $0x194] sm:$0xf]
        %v335 = vld [vmem:[%s252 + $0x198] sm:$0xf]
        %v336 = vld [vmem:[%s252 + $0x19c] sm:$0xf]
        %v337 = vld [vmem:[%s252 + $0x1a4] sm:$0xf]
        %v338 = vld [vmem:[%s252 + $0x1a8] sm:$0xf]
        %v339 = vld [vmem:[%s252 + $0x1ac] sm:$0xf]
        %v340 = vld [vmem:[%s252 + $0x1b0] sm:$0xf]
        %v341 = vld [vmem:[%s252 + $0x1b8] sm:$0xf]
        %v342 = vld [vmem:[%s252 + $0x1bc] sm:$0xf]
        %v343 = vld [vmem:[%s252 + $0x1c0] sm:$0xf]
        %v344 = vld [vmem:[%s252 + $0x1c4] sm:$0xf]
        %v345 = vld [vmem:[%s252 + $0x1cc] sm:$0xf]
        %v346 = vld [vmem:[%s252 + $0x1d0] sm:$0xf]
        %v347 = vld [vmem:[%s252 + $0x1d4] sm:$0xf]
        %v348 = vld [vmem:[%s252 + $0x1d8] sm:$0xf]
        %v349 = vld [vmem:[%s252 + $0x1e0] sm:$0xf]
        %v350 = vld [vmem:[%s252 + $0x1e4] sm:$0xf]
        %v351 = vld [vmem:[%s252 + $0x1e8] sm:$0xf]
        %v352 = vld [vmem:[%s252 + $0x1ec] sm:$0xf]
        %v353 = vld [vmem:[%s252 + $0x1f4] sm:$0xf]
        %v354 = vld [vmem:[%s252 + $0x1f8] sm:$0xf]
        %v355 = vld [vmem:[%s252 + $0x1fc] sm:$0xf]
        %v356 = vld [vmem:[%s252 + $0x200] sm:$0xf]
        %v357 = vld [vmem:[%s252 + $0x208] sm:$0xf]
        %v358 = vld [vmem:[%s252 + $0x20c] sm:$0xf]
        %v359 = vld [vmem:[%s252 + $0x210] sm:$0xf]
        %v360 = vld [vmem:[%s252 + $0x214] sm:$0xf]
        %v361 = vld [vmem:[%s252 + $0x21c] sm:$0xf]
        %v362 = vld [vmem:[%s252 + $0x220] sm:$0xf]
        %v363 = vld [vmem:[%s252 + $0x224] sm:$0xf]
        %v364 = vld [vmem:[%s252 + $0x228] sm:$0xf]
        %v365 = vld [vmem:[%s252 + $0x230] sm:$0xf]
        %v366 = vld [vmem:[%s252 + $0x234] sm:$0xf]
        %v367 = vld [vmem:[%s252 + $0x238] sm:$0xf]
        %v368 = vld [vmem:[%s252 + $0x23c] sm:$0xf]
        %v369 = vld [vmem:[%s252 + $0x244] sm:$0xf]
        %v370 = vld [vmem:[%s252 + $0x248] sm:$0xf]
        %v371 = vld [vmem:[%s252 + $0x24c] sm:$0xf]
        %v372 = vld [vmem:[%s252 + $0x250] sm:$0xf]
        %v373 = vld [vmem:[%s252 + $0x258] sm:$0xf]
        %v374 = vld [vmem:[%s252 + $0x25c] sm:$0xf]
        %v375 = vld [vmem:[%s252 + $0x260] sm:$0xf]
        %v376 = vld [vmem:[%s252 + $0x264] sm:$0xf]
        %v377 = vld [vmem:[%s252 + $0x26c] sm:$0xf]
        %v378 = vld [vmem:[%s252 + $0x270] sm:$0xf]
        %v379 = vld [vmem:[%s252 + $0x274] sm:$0xf]
        %v380 = vld [vmem:[%s252 + $0x278] sm:$0xf]
        %v509 = vunpack.c.l.b16 %v253
        %v510 = vunpack.c.l.b16 %v254
        %v511 = vunpack.c.l.b16 %v255
        %v512 = vunpack.c.l.b16 %v256
        %v513 = vunpack.c.l.b16 %v257
        %v514 = vunpack.c.l.b16 %v258
        %v515 = vunpack.c.l.b16 %v259
        %v516 = vunpack.c.l.b16 %v260
        %v517 = vunpack.c.l.b16 %v261
        %v518 = vunpack.c.l.b16 %v262
        %v519 = vunpack.c.l.b16 %v263
        %v520 = vunpack.c.l.b16 %v264
        %v521 = vunpack.c.l.b16 %v265
        %v522 = vunpack.c.l.b16 %v266
        %v523 = vunpack.c.l.b16 %v267
        %v524 = vunpack.c.l.b16 %v268
        %v525 = vunpack.c.l.b16 %v269
        %v526 = vunpack.c.l.b16 %v270
        %v527 = vunpack.c.l.b16 %v271
        %v528 = vunpack.c.l.b16 %v272
        %v529 = vunpack.c.l.b16 %v273
        %v530 = vunpack.c.l.b16 %v274
        %v531 = vunpack.c.l.b16 %v275
        %v532 = vunpack.c.l.b16 %v276
        %v533 = vunpack.c.l.b16 %v277
        %v534 = vunpack.c.l.b16 %v278
        %v535 = vunpack.c.l.b16 %v279
        %v536 = vunpack.c.l.b16 %v280
        %v537 = vunpack.c.l.b16 %v281
        %v538 = vunpack.c.l.b16 %v282
        %v539 = vunpack.c.l.b16 %v283
        %v540 = vunpack.c.l.b16 %v284
        %v541 = vunpack.c.l.b16 %v285
        %v542 = vunpack.c.l.b16 %v286
        %v543 = vunpack.c.l.b16 %v287
        %v544 = vunpack.c.l.b16 %v288
        %v545 = vunpack.c.l.b16 %v289
        %v546 = vunpack.c.l.b16 %v290
        %v547 = vunpack.c.l.b16 %v291
        %v548 = vunpack.c.l.b16 %v292
        %v549 = vunpack.c.l.b16 %v293
        %v550 = vunpack.c.l.b16 %v294
        %v551 = vunpack.c.l.b16 %v295
        %v552 = vunpack.c.l.b16 %v296
        %v553 = vunpack.c.l.b16 %v297
        %v554 = vunpack.c.l.b16 %v298
        %v555 = vunpack.c.l.b16 %v299
        %v556 = vunpack.c.l.b16 %v300
        %v557 = vunpack.c.l.b16 %v301
        %v558 = vunpack.c.l.b16 %v302
        %v559 = vunpack.c.l.b16 %v303
        %v560 = vunpack.c.l.b16 %v304
        %v561 = vunpack.c.l.b16 %v305
        %v562 = vunpack.c.l.b16 %v306
        %v563 = vunpack.c.l.b16 %v307
        %v564 = vunpack.c.l.b16 %v308
        %v565 = vunpack.c.l.b16 %v309
        %v566 = vunpack.c.l.b16 %v310
        %v567 = vunpack.c.l.b16 %v311
        %v568 = vunpack.c.l.b16 %v312
        %v569 = vunpack.c.l.b16 %v313
        %v570 = vunpack.c.l.b16 %v314
        %v571 = vunpack.c.l.b16 %v315
        %v572 = vunpack.c.l.b16 %v316
        %v573 = vunpack.c.l.b16 %v317
        %v574 = vunpack.c.l.b16 %v318
        %v575 = vunpack.c.l.b16 %v319
        %v576 = vunpack.c.l.b16 %v320
        %v577 = vunpack.c.l.b16 %v321
        %v578 = vunpack.c.l.b16 %v322
        %v579 = vunpack.c.l.b16 %v323
        %v580 = vunpack.c.l.b16 %v324
        %v581 = vunpack.c.l.b16 %v325
        %v582 = vunpack.c.l.b16 %v326
        %v583 = vunpack.c.l.b16 %v327
        %v584 = vunpack.c.l.b16 %v328
        %v585 = vunpack.c.l.b16 %v329
        %v586 = vunpack.c.l.b16 %v330
        %v587 = vunpack.c.l.b16 %v331
        %v588 = vunpack.c.l.b16 %v332
        %v589 = vunpack.c.l.b16 %v333
        %v590 = vunpack.c.l.b16 %v334
        %v591 = vunpack.c.l.b16 %v335
        %v592 = vunpack.c.l.b16 %v336
        %v593 = vunpack.c.l.b16 %v337
        %v594 = vunpack.c.l.b16 %v338
        %v595 = vunpack.c.l.b16 %v339
        %v596 = vunpack.c.l.b16 %v340
        %v597 = vunpack.c.l.b16 %v341
        %v598 = vunpack.c.l.b16 %v342
        %v599 = vunpack.c.l.b16 %v343
        %v600 = vunpack.c.l.b16 %v344
        %v601 = vunpack.c.l.b16 %v345
        %v602 = vunpack.c.l.b16 %v346
        %v603 = vunpack.c.l.b16 %v347
        %v604 = vunpack.c.l.b16 %v348
        %v605 = vunpack.c.l.b16 %v349
        %v606 = vunpack.c.l.b16 %v350
        %v607 = vunpack.c.l.b16 %v351
        %v608 = vunpack.c.l.b16 %v352
        %v609 = vunpack.c.l.b16 %v353
        %v610 = vunpack.c.l.b16 %v354
        %v611 = vunpack.c.l.b16 %v355
        %v612 = vunpack.c.l.b16 %v356
        %v613 = vunpack.c.l.b16 %v357
        %v614 = vunpack.c.l.b16 %v358
        %v615 = vunpack.c.l.b16 %v359
        %v616 = vunpack.c.l.b16 %v360
        %v617 = vunpack.c.l.b16 %v361
        %v618 = vunpack.c.l.b16 %v362
        %v619 = vunpack.c.l.b16 %v363
        %v620 = vunpack.c.l.b16 %v364
        %v621 = vunpack.c.l.b16 %v365
        %v622 = vunpack.c.l.b16 %v366
        %v623 = vunpack.c.l.b16 %v367
        %v624 = vunpack.c.l.b16 %v368
        %v625 = vunpack.c.l.b16 %v369
        %v626 = vunpack.c.l.b16 %v370
        %v627 = vunpack.c.l.b16 %v371
        %v628 = vunpack.c.l.b16 %v372
        %v629 = vunpack.c.l.b16 %v373
        %v630 = vunpack.c.l.b16 %v374
        %v631 = vunpack.c.l.b16 %v375
        %v632 = vunpack.c.l.b16 %v376
        %v633 = vunpack.c.l.b16 %v377
        %v634 = vunpack.c.l.b16 %v378
        %v635 = vunpack.c.l.b16 %v379
        %v636 = vunpack.c.l.b16 %v380
        %v637 = vpack.c.b16 %v510, %v509
        %v638 = vpack.c.b16 %v512, %v511
        %v639 = vpack.c.b16 %v514, %v513
        %v640 = vpack.c.b16 %v516, %v515
        %v641 = vpack.c.b16 %v518, %v517
        %v642 = vpack.c.b16 %v520, %v519
        %v643 = vpack.c.b16 %v522, %v521
        %v644 = vpack.c.b16 %v524, %v523
        %v645 = vpack.c.b16 %v526, %v525
        %v646 = vpack.c.b16 %v528, %v527
        %v647 = vpack.c.b16 %v530, %v529
        %v648 = vpack.c.b16 %v532, %v531
        %v649 = vpack.c.b16 %v534, %v533
        %v650 = vpack.c.b16 %v536, %v535
        %v651 = vpack.c.b16 %v538, %v537
        %v652 = vpack.c.b16 %v540, %v539
        %v653 = vpack.c.b16 %v542, %v541
        %v654 = vpack.c.b16 %v544, %v543
        %v655 = vpack.c.b16 %v546, %v545
        %v656 = vpack.c.b16 %v548, %v547
        %v657 = vpack.c.b16 %v550, %v549
        %v658 = vpack.c.b16 %v552, %v551
        %v659 = vpack.c.b16 %v554, %v553
        %v660 = vpack.c.b16 %v556, %v555
        %v661 = vpack.c.b16 %v558, %v557
        %v662 = vpack.c.b16 %v560, %v559
        %v663 = vpack.c.b16 %v562, %v561
        %v664 = vpack.c.b16 %v564, %v563
        %v665 = vpack.c.b16 %v566, %v565
        %v666 = vpack.c.b16 %v568, %v567
        %v667 = vpack.c.b16 %v570, %v569
        %v668 = vpack.c.b16 %v572, %v571
        %v669 = vpack.c.b16 %v574, %v573
        %v670 = vpack.c.b16 %v576, %v575
        %v671 = vpack.c.b16 %v578, %v577
        %v672 = vpack.c.b16 %v580, %v579
        %v673 = vpack.c.b16 %v582, %v581
        %v674 = vpack.c.b16 %v584, %v583
        %v675 = vpack.c.b16 %v586, %v585
        %v676 = vpack.c.b16 %v588, %v587
        %v677 = vpack.c.b16 %v590, %v589
        %v678 = vpack.c.b16 %v592, %v591
        %v679 = vpack.c.b16 %v594, %v593
        %v680 = vpack.c.b16 %v596, %v595
        %v681 = vpack.c.b16 %v598, %v597
        %v682 = vpack.c.b16 %v600, %v599
        %v683 = vpack.c.b16 %v602, %v601
        %v684 = vpack.c.b16 %v604, %v603
        %v685 = vpack.c.b16 %v606, %v605
        %v686 = vpack.c.b16 %v608, %v607
        %v687 = vpack.c.b16 %v610, %v609
        %v688 = vpack.c.b16 %v612, %v611
        %v689 = vpack.c.b16 %v614, %v613
        %v690 = vpack.c.b16 %v616, %v615
        %v691 = vpack.c.b16 %v618, %v617
        %v692 = vpack.c.b16 %v620, %v619
        %v693 = vpack.c.b16 %v622, %v621
        %v694 = vpack.c.b16 %v624, %v623
        %v695 = vpack.c.b16 %v626, %v625
        %v696 = vpack.c.b16 %v628, %v627
        %v697 = vpack.c.b16 %v630, %v629
        %v698 = vpack.c.b16 %v632, %v631
        %v699 = vpack.c.b16 %v634, %v633
        %v700 = vpack.c.b16 %v636, %v635
        %vm765 = vcmask 31744
        %766 = vst.msk [vmem:[#allocation2] sm:$0xff] %vm765, %v637
        %767 = vst.msk [vmem:[#allocation2 + $0x8] sm:$0xff] %vm765, %v638
        %768 = vst.msk [vmem:[#allocation2 + $0x10] sm:$0xff] %vm765, %v639
        %769 = vst.msk [vmem:[#allocation2 + $0x18] sm:$0xff] %vm765, %v640
        %770 = vst.msk [vmem:[#allocation2 + $0x20] sm:$0xff] %vm765, %v641
        %771 = vst.msk [vmem:[#allocation2 + $0x28] sm:$0xff] %vm765, %v642
        %772 = vst.msk [vmem:[#allocation2 + $0x30] sm:$0xff] %vm765, %v643
        %773 = vst.msk [vmem:[#allocation2 + $0x38] sm:$0xff] %vm765, %v644
        %774 = vst.msk [vmem:[#allocation2 + $0x40] sm:$0xff] %vm765, %v645
        %775 = vst.msk [vmem:[#allocation2 + $0x48] sm:$0xff] %vm765, %v646
        %776 = vst.msk [vmem:[#allocation2 + $0x50] sm:$0xff] %vm765, %v647
        %777 = vst.msk [vmem:[#allocation2 + $0x58] sm:$0xff] %vm765, %v648
        %778 = vst.msk [vmem:[#allocation2 + $0x60] sm:$0xff] %vm765, %v649
        %779 = vst.msk [vmem:[#allocation2 + $0x68] sm:$0xff] %vm765, %v650
        %780 = vst.msk [vmem:[#allocation2 + $0x70] sm:$0xff] %vm765, %v651
        %781 = vst.msk [vmem:[#allocation2 + $0x78] sm:$0xff] %vm765, %v652
        %782 = vst.msk [vmem:[#allocation2 + $0x80] sm:$0xff] %vm765, %v653
        %783 = vst.msk [vmem:[#allocation2 + $0x88] sm:$0xff] %vm765, %v654
        %784 = vst.msk [vmem:[#allocation2 + $0x90] sm:$0xff] %vm765, %v655
        %785 = vst.msk [vmem:[#allocation2 + $0x98] sm:$0xff] %vm765, %v656
        %786 = vst.msk [vmem:[#allocation2 + $0xa0] sm:$0xff] %vm765, %v657
        %787 = vst.msk [vmem:[#allocation2 + $0xa8] sm:$0xff] %vm765, %v658
        %788 = vst.msk [vmem:[#allocation2 + $0xb0] sm:$0xff] %vm765, %v659
        %789 = vst.msk [vmem:[#allocation2 + $0xb8] sm:$0xff] %vm765, %v660
        %790 = vst.msk [vmem:[#allocation2 + $0xc0] sm:$0xff] %vm765, %v661
        %791 = vst.msk [vmem:[#allocation2 + $0xc8] sm:$0xff] %vm765, %v662
        %792 = vst.msk [vmem:[#allocation2 + $0xd0] sm:$0xff] %vm765, %v663
        %793 = vst.msk [vmem:[#allocation2 + $0xd8] sm:$0xff] %vm765, %v664
        %794 = vst.msk [vmem:[#allocation2 + $0xe0] sm:$0xff] %vm765, %v665
        %795 = vst.msk [vmem:[#allocation2 + $0xe8] sm:$0xff] %vm765, %v666
        %796 = vst.msk [vmem:[#allocation2 + $0xf0] sm:$0xff] %vm765, %v667
        %797 = vst.msk [vmem:[#allocation2 + $0xf8] sm:$0xff] %vm765, %v668
        %798 = vst.msk [vmem:[#allocation2 + $0x100] sm:$0xff] %vm765, %v669
        %799 = vst.msk [vmem:[#allocation2 + $0x108] sm:$0xff] %vm765, %v670
        %800 = vst.msk [vmem:[#allocation2 + $0x110] sm:$0xff] %vm765, %v671
        %801 = vst.msk [vmem:[#allocation2 + $0x118] sm:$0xff] %vm765, %v672
        %802 = vst.msk [vmem:[#allocation2 + $0x120] sm:$0xff] %vm765, %v673
        %803 = vst.msk [vmem:[#allocation2 + $0x128] sm:$0xff] %vm765, %v674
        %804 = vst.msk [vmem:[#allocation2 + $0x130] sm:$0xff] %vm765, %v675
        %805 = vst.msk [vmem:[#allocation2 + $0x138] sm:$0xff] %vm765, %v676
        %806 = vst.msk [vmem:[#allocation2 + $0x140] sm:$0xff] %vm765, %v677
        %807 = vst.msk [vmem:[#allocation2 + $0x148] sm:$0xff] %vm765, %v678
        %808 = vst.msk [vmem:[#allocation2 + $0x150] sm:$0xff] %vm765, %v679
        %809 = vst.msk [vmem:[#allocation2 + $0x158] sm:$0xff] %vm765, %v680
        %810 = vst.msk [vmem:[#allocation2 + $0x160] sm:$0xff] %vm765, %v681
        %811 = vst.msk [vmem:[#allocation2 + $0x168] sm:$0xff] %vm765, %v682
        %812 = vst.msk [vmem:[#allocation2 + $0x170] sm:$0xff] %vm765, %v683
        %813 = vst.msk [vmem:[#allocation2 + $0x178] sm:$0xff] %vm765, %v684
        %814 = vst.msk [vmem:[#allocation2 + $0x180] sm:$0xff] %vm765, %v685
        %815 = vst.msk [vmem:[#allocation2 + $0x188] sm:$0xff] %vm765, %v686
        %816 = vst.msk [vmem:[#allocation2 + $0x190] sm:$0xff] %vm765, %v687
        %817 = vst.msk [vmem:[#allocation2 + $0x198] sm:$0xff] %vm765, %v688
        %818 = vst.msk [vmem:[#allocation2 + $0x1a0] sm:$0xff] %vm765, %v689
        %819 = vst.msk [vmem:[#allocation2 + $0x1a8] sm:$0xff] %vm765, %v690
        %820 = vst.msk [vmem:[#allocation2 + $0x1b0] sm:$0xff] %vm765, %v691
        %821 = vst.msk [vmem:[#allocation2 + $0x1b8] sm:$0xff] %vm765, %v692
        %822 = vst.msk [vmem:[#allocation2 + $0x1c0] sm:$0xff] %vm765, %v693
        %823 = vst.msk [vmem:[#allocation2 + $0x1c8] sm:$0xff] %vm765, %v694
        %824 = vst.msk [vmem:[#allocation2 + $0x1d0] sm:$0xff] %vm765, %v695
        %825 = vst.msk [vmem:[#allocation2 + $0x1d8] sm:$0xff] %vm765, %v696
        %826 = vst.msk [vmem:[#allocation2 + $0x1e0] sm:$0xff] %vm765, %v697
        %827 = vst.msk [vmem:[#allocation2 + $0x1e8] sm:$0xff] %vm765, %v698
        %828 = vst.msk [vmem:[#allocation2 + $0x1f0] sm:$0xff] %vm765, %v699
        %829 = vst.msk [vmem:[#allocation2 + $0x1f8] sm:$0xff] %vm765, %v700
        %v830 = vld [vmem:[%s252] sm:$0xf]
        %v831 = vld [vmem:[%s252 + $0x4] sm:$0xf]
        %v832 = vld [vmem:[%s252 + $0x8] sm:$0xf]
        %v833 = vld [vmem:[%s252 + $0xc] sm:$0xf]
        %v834 = vld [vmem:[%s252 + $0x10] sm:$0x1]
        %v835 = vld [vmem:[%s252 + $0x14] sm:$0xf]
        %v836 = vld [vmem:[%s252 + $0x18] sm:$0xf]
        %v837 = vld [vmem:[%s252 + $0x1c] sm:$0xf]
        %v838 = vld [vmem:[%s252 + $0x20] sm:$0xf]
        %v839 = vld [vmem:[%s252 + $0x24] sm:$0x1]
        %v840 = vld [vmem:[%s252 + $0x28] sm:$0xf]
        %v841 = vld [vmem:[%s252 + $0x2c] sm:$0xf]
        %v842 = vld [vmem:[%s252 + $0x30] sm:$0xf]
        %v843 = vld [vmem:[%s252 + $0x34] sm:$0xf]
        %v844 = vld [vmem:[%s252 + $0x38] sm:$0x1]
        %v845 = vld [vmem:[%s252 + $0x3c] sm:$0xf]
        %v846 = vld [vmem:[%s252 + $0x40] sm:$0xf]
        %v847 = vld [vmem:[%s252 + $0x44] sm:$0xf]
        %v848 = vld [vmem:[%s252 + $0x48] sm:$0xf]
        %v849 = vld [vmem:[%s252 + $0x4c] sm:$0x1]
        %v850 = vld [vmem:[%s252 + $0x50] sm:$0xf]
        %v851 = vld [vmem:[%s252 + $0x54] sm:$0xf]
        %v852 = vld [vmem:[%s252 + $0x58] sm:$0xf]
        %v853 = vld [vmem:[%s252 + $0x5c] sm:$0xf]
        %v854 = vld [vmem:[%s252 + $0x60] sm:$0x1]
        %v855 = vld [vmem:[%s252 + $0x64] sm:$0xf]
        %v856 = vld [vmem:[%s252 + $0x68] sm:$0xf]
        %v857 = vld [vmem:[%s252 + $0x6c] sm:$0xf]
        %v858 = vld [vmem:[%s252 + $0x70] sm:$0xf]
        %v859 = vld [vmem:[%s252 + $0x74] sm:$0x1]
        %v860 = vld [vmem:[%s252 + $0x78] sm:$0xf]
        %v861 = vld [vmem:[%s252 + $0x7c] sm:$0xf]
        %v862 = vld [vmem:[%s252 + $0x80] sm:$0xf]
        %v863 = vld [vmem:[%s252 + $0x84] sm:$0xf]
        %v864 = vld [vmem:[%s252 + $0x88] sm:$0x1]
        %v865 = vld [vmem:[%s252 + $0x8c] sm:$0xf]
        %v866 = vld [vmem:[%s252 + $0x90] sm:$0xf]
        %v867 = vld [vmem:[%s252 + $0x94] sm:$0xf]
        %v868 = vld [vmem:[%s252 + $0x98] sm:$0xf]
        %v869 = vld [vmem:[%s252 + $0x9c] sm:$0x1]
        %v870 = vld [vmem:[%s252 + $0xa0] sm:$0xf]
        %v871 = vld [vmem:[%s252 + $0xa4] sm:$0xf]
        %v872 = vld [vmem:[%s252 + $0xa8] sm:$0xf]
        %v873 = vld [vmem:[%s252 + $0xac] sm:$0xf]
        %v874 = vld [vmem:[%s252 + $0xb0] sm:$0x1]
        %v875 = vld [vmem:[%s252 + $0xb4] sm:$0xf]
        %v876 = vld [vmem:[%s252 + $0xb8] sm:$0xf]
        %v877 = vld [vmem:[%s252 + $0xbc] sm:$0xf]
        %v878 = vld [vmem:[%s252 + $0xc0] sm:$0xf]
        %v879 = vld [vmem:[%s252 + $0xc4] sm:$0x1]
        %v880 = vld [vmem:[%s252 + $0xc8] sm:$0xf]
        %v881 = vld [vmem:[%s252 + $0xcc] sm:$0xf]
        %v882 = vld [vmem:[%s252 + $0xd0] sm:$0xf]
        %v883 = vld [vmem:[%s252 + $0xd4] sm:$0xf]
        %v884 = vld [vmem:[%s252 + $0xd8] sm:$0x1]
        %v885 = vld [vmem:[%s252 + $0xdc] sm:$0xf]
        %v886 = vld [vmem:[%s252 + $0xe0] sm:$0xf]
        %v887 = vld [vmem:[%s252 + $0xe4] sm:$0xf]
        %v888 = vld [vmem:[%s252 + $0xe8] sm:$0xf]
        %v889 = vld [vmem:[%s252 + $0xec] sm:$0x1]
        %v890 = vld [vmem:[%s252 + $0xf0] sm:$0xf]
        %v891 = vld [vmem:[%s252 + $0xf4] sm:$0xf]
        %v892 = vld [vmem:[%s252 + $0xf8] sm:$0xf]
        %v893 = vld [vmem:[%s252 + $0xfc] sm:$0xf]
        %v894 = vld [vmem:[%s252 + $0x100] sm:$0x1]
        %v895 = vld [vmem:[%s252 + $0x104] sm:$0xf]
        %v896 = vld [vmem:[%s252 + $0x108] sm:$0xf]
        %v897 = vld [vmem:[%s252 + $0x10c] sm:$0xf]
        %v898 = vld [vmem:[%s252 + $0x110] sm:$0xf]
        %v899 = vld [vmem:[%s252 + $0x114] sm:$0x1]
        %v900 = vld [vmem:[%s252 + $0x118] sm:$0xf]
        %v901 = vld [vmem:[%s252 + $0x11c] sm:$0xf]
        %v902 = vld [vmem:[%s252 + $0x120] sm:$0xf]
        %v903 = vld [vmem:[%s252 + $0x124] sm:$0xf]
        %v904 = vld [vmem:[%s252 + $0x128] sm:$0x1]
        %v905 = vld [vmem:[%s252 + $0x12c] sm:$0xf]
        %v906 = vld [vmem:[%s252 + $0x130] sm:$0xf]
        %v907 = vld [vmem:[%s252 + $0x134] sm:$0xf]
        %v908 = vld [vmem:[%s252 + $0x138] sm:$0xf]
        %v909 = vld [vmem:[%s252 + $0x13c] sm:$0x1]
        %v910 = vld [vmem:[%s252 + $0x140] sm:$0xf]
        %v911 = vld [vmem:[%s252 + $0x144] sm:$0xf]
        %v912 = vld [vmem:[%s252 + $0x148] sm:$0xf]
        %v913 = vld [vmem:[%s252 + $0x14c] sm:$0xf]
        %v914 = vld [vmem:[%s252 + $0x150] sm:$0x1]
        %v915 = vld [vmem:[%s252 + $0x154] sm:$0xf]
        %v916 = vld [vmem:[%s252 + $0x158] sm:$0xf]
        %v917 = vld [vmem:[%s252 + $0x15c] sm:$0xf]
        %v918 = vld [vmem:[%s252 + $0x160] sm:$0xf]
        %v919 = vld [vmem:[%s252 + $0x164] sm:$0x1]
        %v920 = vld [vmem:[%s252 + $0x168] sm:$0xf]
        %v921 = vld [vmem:[%s252 + $0x16c] sm:$0xf]
        %v922 = vld [vmem:[%s252 + $0x170] sm:$0xf]
        %v923 = vld [vmem:[%s252 + $0x174] sm:$0xf]
        %v924 = vld [vmem:[%s252 + $0x178] sm:$0x1]
        %v925 = vld [vmem:[%s252 + $0x17c] sm:$0xf]
        %v926 = vld [vmem:[%s252 + $0x180] sm:$0xf]
        %v927 = vld [vmem:[%s252 + $0x184] sm:$0xf]
        %v928 = vld [vmem:[%s252 + $0x188] sm:$0xf]
        %v929 = vld [vmem:[%s252 + $0x18c] sm:$0x1]
        %v930 = vld [vmem:[%s252 + $0x190] sm:$0xf]
        %v931 = vld [vmem:[%s252 + $0x194] sm:$0xf]
        %v932 = vld [vmem:[%s252 + $0x198] sm:$0xf]
        %v933 = vld [vmem:[%s252 + $0x19c] sm:$0xf]
        %v934 = vld [vmem:[%s252 + $0x1a0] sm:$0x1]
        %v935 = vld [vmem:[%s252 + $0x1a4] sm:$0xf]
        %v936 = vld [vmem:[%s252 + $0x1a8] sm:$0xf]
        %v937 = vld [vmem:[%s252 + $0x1ac] sm:$0xf]
        %v938 = vld [vmem:[%s252 + $0x1b0] sm:$0xf]
        %v939 = vld [vmem:[%s252 + $0x1b4] sm:$0x1]
        %v940 = vld [vmem:[%s252 + $0x1b8] sm:$0xf]
        %v941 = vld [vmem:[%s252 + $0x1bc] sm:$0xf]
        %v942 = vld [vmem:[%s252 + $0x1c0] sm:$0xf]
        %v943 = vld [vmem:[%s252 + $0x1c4] sm:$0xf]
        %v944 = vld [vmem:[%s252 + $0x1c8] sm:$0x1]
        %v945 = vld [vmem:[%s252 + $0x1cc] sm:$0xf]
        %v946 = vld [vmem:[%s252 + $0x1d0] sm:$0xf]
        %v947 = vld [vmem:[%s252 + $0x1d4] sm:$0xf]
        %v948 = vld [vmem:[%s252 + $0x1d8] sm:$0xf]
        %v949 = vld [vmem:[%s252 + $0x1dc] sm:$0x1]
        %v950 = vld [vmem:[%s252 + $0x1e0] sm:$0xf]
        %v951 = vld [vmem:[%s252 + $0x1e4] sm:$0xf]
        %v952 = vld [vmem:[%s252 + $0x1e8] sm:$0xf]
        %v953 = vld [vmem:[%s252 + $0x1ec] sm:$0xf]
        %v954 = vld [vmem:[%s252 + $0x1f0] sm:$0x1]
        %v955 = vld [vmem:[%s252 + $0x1f4] sm:$0xf]
        %v956 = vld [vmem:[%s252 + $0x1f8] sm:$0xf]
        %v957 = vld [vmem:[%s252 + $0x1fc] sm:$0xf]
        %v958 = vld [vmem:[%s252 + $0x200] sm:$0xf]
        %v959 = vld [vmem:[%s252 + $0x204] sm:$0x1]
        %v960 = vld [vmem:[%s252 + $0x208] sm:$0xf]
        %v961 = vld [vmem:[%s252 + $0x20c] sm:$0xf]
        %v962 = vld [vmem:[%s252 + $0x210] sm:$0xf]
        %v963 = vld [vmem:[%s252 + $0x214] sm:$0xf]
        %v964 = vld [vmem:[%s252 + $0x218] sm:$0x1]
        %v965 = vld [vmem:[%s252 + $0x21c] sm:$0xf]
        %v966 = vld [vmem:[%s252 + $0x220] sm:$0xf]
        %v967 = vld [vmem:[%s252 + $0x224] sm:$0xf]
        %v968 = vld [vmem:[%s252 + $0x228] sm:$0xf]
        %v969 = vld [vmem:[%s252 + $0x22c] sm:$0x1]
        %v970 = vld [vmem:[%s252 + $0x230] sm:$0xf]
        %v971 = vld [vmem:[%s252 + $0x234] sm:$0xf]
        %v972 = vld [vmem:[%s252 + $0x238] sm:$0xf]
        %v973 = vld [vmem:[%s252 + $0x23c] sm:$0xf]
        %v974 = vld [vmem:[%s252 + $0x240] sm:$0x1]
        %v975 = vld [vmem:[%s252 + $0x244] sm:$0xf]
        %v976 = vld [vmem:[%s252 + $0x248] sm:$0xf]
        %v977 = vld [vmem:[%s252 + $0x24c] sm:$0xf]
        %v978 = vld [vmem:[%s252 + $0x250] sm:$0xf]
        %v979 = vld [vmem:[%s252 + $0x254] sm:$0x1]
        %v980 = vld [vmem:[%s252 + $0x258] sm:$0xf]
        %v981 = vld [vmem:[%s252 + $0x25c] sm:$0xf]
        %v982 = vld [vmem:[%s252 + $0x260] sm:$0xf]
        %v983 = vld [vmem:[%s252 + $0x264] sm:$0xf]
        %v984 = vld [vmem:[%s252 + $0x268] sm:$0x1]
        %v985 = vld [vmem:[%s252 + $0x26c] sm:$0xf]
        %v986 = vld [vmem:[%s252 + $0x270] sm:$0xf]
        %v987 = vld [vmem:[%s252 + $0x274] sm:$0xf]
        %v988 = vld [vmem:[%s252 + $0x278] sm:$0xf]
        %v989 = vld [vmem:[%s252 + $0x27c] sm:$0x1]
        %vm990 = vsmask.f32 3328
        %vm991 = vsmask.f32 7440
        %vm992 = vmor %vm990, %vm991
        %v994 = vshrl.u32 %v830, 16
        %v996 = vrot.slane %v994, 4
        %v997 = vshll.u32 %v830, 16
        %v999 = vrot.slane %v997, 5
        %v1000 = vor.u32 %v996, %v999
        %v1001 = vrot.slane %v1000, 4
        %v1003 = vshll.u32 %v831, 16
        %v1005 = vrot.slane %v1003, 5
        %v1006 = vsel %vm992, %v1001, %v1005
        %v1007 = vshrl.u32 %v831, 16
        %v1009 = vrot.slane %v1007, 4
        %v1010 = vor.u32 %v1009, %v1005
        %v1011 = vrot.slane %v1010, 4
        %v1013 = vshll.u32 %v832, 16
        %v1015 = vrot.slane %v1013, 5
        %v1016 = vsel %vm992, %v1011, %v1015
        %v1017 = vshrl.u32 %v832, 16
        %v1019 = vrot.slane %v1017, 4
        %v1020 = vor.u32 %v1019, %v1015
        %v1021 = vrot.slane %v1020, 4
        %v1023 = vshll.u32 %v833, 16
        %v1025 = vrot.slane %v1023, 5
        %v1026 = vsel %vm992, %v1021, %v1025
        %v1027 = vshrl.u32 %v833, 16
        %v1029 = vrot.slane %v1027, 4
        %v1030 = vor.u32 %v1029, %v1025
        %v1031 = vrot.slane %v1030, 4
        %v1033 = vshll.u32 %v834, 16
        %v1035 = vrot.slane %v1033, 5
        %v1036 = vsel %vm992, %v1031, %v1035
        %v1038 = vshrl.u32 %v835, 16
        %v1040 = vrot.slane %v1038, 4
        %v1041 = vshll.u32 %v835, 16
        %v1043 = vrot.slane %v1041, 5
        %v1044 = vor.u32 %v1040, %v1043
        %v1045 = vrot.slane %v1044, 4
        %v1047 = vshll.u32 %v836, 16
        %v1049 = vrot.slane %v1047, 5
        %v1050 = vsel %vm992, %v1045, %v1049
        %v1051 = vshrl.u32 %v836, 16
        %v1053 = vrot.slane %v1051, 4
        %v1054 = vor.u32 %v1053, %v1049
        %v1055 = vrot.slane %v1054, 4
        %v1057 = vshll.u32 %v837, 16
        %v1059 = vrot.slane %v1057, 5
        %v1060 = vsel %vm992, %v1055, %v1059
        %v1061 = vshrl.u32 %v837, 16
        %v1063 = vrot.slane %v1061, 4
        %v1064 = vor.u32 %v1063, %v1059
        %v1065 = vrot.slane %v1064, 4
        %v1067 = vshll.u32 %v838, 16
        %v1069 = vrot.slane %v1067, 5
        %v1070 = vsel %vm992, %v1065, %v1069
        %v1071 = vshrl.u32 %v838, 16
        %v1073 = vrot.slane %v1071, 4
        %v1074 = vor.u32 %v1073, %v1069
        %v1075 = vrot.slane %v1074, 4
        %v1077 = vshll.u32 %v839, 16
        %v1079 = vrot.slane %v1077, 5
        %v1080 = vsel %vm992, %v1075, %v1079
        %v1082 = vshrl.u32 %v840, 16
        %v1084 = vrot.slane %v1082, 4
        %v1085 = vshll.u32 %v840, 16
        %v1087 = vrot.slane %v1085, 5
        %v1088 = vor.u32 %v1084, %v1087
        %v1089 = vrot.slane %v1088, 4
        %v1091 = vshll.u32 %v841, 16
        %v1093 = vrot.slane %v1091, 5
        %v1094 = vsel %vm992, %v1089, %v1093
        %v1095 = vshrl.u32 %v841, 16
        %v1097 = vrot.slane %v1095, 4
        %v1098 = vor.u32 %v1097, %v1093
        %v1099 = vrot.slane %v1098, 4
        %v1101 = vshll.u32 %v842, 16
        %v1103 = vrot.slane %v1101, 5
        %v1104 = vsel %vm992, %v1099, %v1103
        %v1105 = vshrl.u32 %v842, 16
        %v1107 = vrot.slane %v1105, 4
        %v1108 = vor.u32 %v1107, %v1103
        %v1109 = vrot.slane %v1108, 4
        %v1111 = vshll.u32 %v843, 16
        %v1113 = vrot.slane %v1111, 5
        %v1114 = vsel %vm992, %v1109, %v1113
        %v1115 = vshrl.u32 %v843, 16
        %v1117 = vrot.slane %v1115, 4
        %v1118 = vor.u32 %v1117, %v1113
        %v1119 = vrot.slane %v1118, 4
        %v1121 = vshll.u32 %v844, 16
        %v1123 = vrot.slane %v1121, 5
        %v1124 = vsel %vm992, %v1119, %v1123
        %v1126 = vshrl.u32 %v845, 16
        %v1128 = vrot.slane %v1126, 4
        %v1129 = vshll.u32 %v845, 16
        %v1131 = vrot.slane %v1129, 5
        %v1132 = vor.u32 %v1128, %v1131
        %v1133 = vrot.slane %v1132, 4
        %v1135 = vshll.u32 %v846, 16
        %v1137 = vrot.slane %v1135, 5
        %v1138 = vsel %vm992, %v1133, %v1137
        %v1139 = vshrl.u32 %v846, 16
        %v1141 = vrot.slane %v1139, 4
        %v1142 = vor.u32 %v1141, %v1137
        %v1143 = vrot.slane %v1142, 4
        %v1145 = vshll.u32 %v847, 16
        %v1147 = vrot.slane %v1145, 5
        %v1148 = vsel %vm992, %v1143, %v1147
        %v1149 = vshrl.u32 %v847, 16
        %v1151 = vrot.slane %v1149, 4
        %v1152 = vor.u32 %v1151, %v1147
        %v1153 = vrot.slane %v1152, 4
        %v1155 = vshll.u32 %v848, 16
        %v1157 = vrot.slane %v1155, 5
        %v1158 = vsel %vm992, %v1153, %v1157
        %v1159 = vshrl.u32 %v848, 16
        %v1161 = vrot.slane %v1159, 4
        %v1162 = vor.u32 %v1161, %v1157
        %v1163 = vrot.slane %v1162, 4
        %v1165 = vshll.u32 %v849, 16
        %v1167 = vrot.slane %v1165, 5
        %v1168 = vsel %vm992, %v1163, %v1167
        %v1170 = vshrl.u32 %v850, 16
        %v1172 = vrot.slane %v1170, 4
        %v1173 = vshll.u32 %v850, 16
        %v1175 = vrot.slane %v1173, 5
        %v1176 = vor.u32 %v1172, %v1175
        %v1177 = vrot.slane %v1176, 4
        %v1179 = vshll.u32 %v851, 16
        %v1181 = vrot.slane %v1179, 5
        %v1182 = vsel %vm992, %v1177, %v1181
        %v1183 = vshrl.u32 %v851, 16
        %v1185 = vrot.slane %v1183, 4
        %v1186 = vor.u32 %v1185, %v1181
        %v1187 = vrot.slane %v1186, 4
        %v1189 = vshll.u32 %v852, 16
        %v1191 = vrot.slane %v1189, 5
        %v1192 = vsel %vm992, %v1187, %v1191
        %v1193 = vshrl.u32 %v852, 16
        %v1195 = vrot.slane %v1193, 4
        %v1196 = vor.u32 %v1195, %v1191
        %v1197 = vrot.slane %v1196, 4
        %v1199 = vshll.u32 %v853, 16
        %v1201 = vrot.slane %v1199, 5
        %v1202 = vsel %vm992, %v1197, %v1201
        %v1203 = vshrl.u32 %v853, 16
        %v1205 = vrot.slane %v1203, 4
        %v1206 = vor.u32 %v1205, %v1201
        %v1207 = vrot.slane %v1206, 4
        %v1209 = vshll.u32 %v854, 16
        %v1211 = vrot.slane %v1209, 5
        %v1212 = vsel %vm992, %v1207, %v1211
        %v1214 = vshrl.u32 %v855, 16
        %v1216 = vrot.slane %v1214, 4
        %v1217 = vshll.u32 %v855, 16
        %v1219 = vrot.slane %v1217, 5
        %v1220 = vor.u32 %v1216, %v1219
        %v1221 = vrot.slane %v1220, 4
        %v1223 = vshll.u32 %v856, 16
        %v1225 = vrot.slane %v1223, 5
        %v1226 = vsel %vm992, %v1221, %v1225
        %v1227 = vshrl.u32 %v856, 16
        %v1229 = vrot.slane %v1227, 4
        %v1230 = vor.u32 %v1229, %v1225
        %v1231 = vrot.slane %v1230, 4
        %v1233 = vshll.u32 %v857, 16
        %v1235 = vrot.slane %v1233, 5
        %v1236 = vsel %vm992, %v1231, %v1235
        %v1237 = vshrl.u32 %v857, 16
        %v1239 = vrot.slane %v1237, 4
        %v1240 = vor.u32 %v1239, %v1235
        %v1241 = vrot.slane %v1240, 4
        %v1243 = vshll.u32 %v858, 16
        %v1245 = vrot.slane %v1243, 5
        %v1246 = vsel %vm992, %v1241, %v1245
        %v1247 = vshrl.u32 %v858, 16
        %v1249 = vrot.slane %v1247, 4
        %v1250 = vor.u32 %v1249, %v1245
        %v1251 = vrot.slane %v1250, 4
        %v1253 = vshll.u32 %v859, 16
        %v1255 = vrot.slane %v1253, 5
        %v1256 = vsel %vm992, %v1251, %v1255
        %v1258 = vshrl.u32 %v860, 16
        %v1260 = vrot.slane %v1258, 4
        %v1261 = vshll.u32 %v860, 16
        %v1263 = vrot.slane %v1261, 5
        %v1264 = vor.u32 %v1260, %v1263
        %v1265 = vrot.slane %v1264, 4
        %v1267 = vshll.u32 %v861, 16
        %v1269 = vrot.slane %v1267, 5
        %v1270 = vsel %vm992, %v1265, %v1269
        %v1271 = vshrl.u32 %v861, 16
        %v1273 = vrot.slane %v1271, 4
        %v1274 = vor.u32 %v1273, %v1269
        %v1275 = vrot.slane %v1274, 4
        %v1277 = vshll.u32 %v862, 16
        %v1279 = vrot.slane %v1277, 5
        %v1280 = vsel %vm992, %v1275, %v1279
        %v1281 = vshrl.u32 %v862, 16
        %v1283 = vrot.slane %v1281, 4
        %v1284 = vor.u32 %v1283, %v1279
        %v1285 = vrot.slane %v1284, 4
        %v1287 = vshll.u32 %v863, 16
        %v1289 = vrot.slane %v1287, 5
        %v1290 = vsel %vm992, %v1285, %v1289
        %v1291 = vshrl.u32 %v863, 16
        %v1293 = vrot.slane %v1291, 4
        %v1294 = vor.u32 %v1293, %v1289
        %v1295 = vrot.slane %v1294, 4
        %v1297 = vshll.u32 %v864, 16
        %v1299 = vrot.slane %v1297, 5
        %v1300 = vsel %vm992, %v1295, %v1299
        %v1302 = vshrl.u32 %v865, 16
        %v1304 = vrot.slane %v1302, 4
        %v1305 = vshll.u32 %v865, 16
        %v1307 = vrot.slane %v1305, 5
        %v1308 = vor.u32 %v1304, %v1307
        %v1309 = vrot.slane %v1308, 4
        %v1311 = vshll.u32 %v866, 16
        %v1313 = vrot.slane %v1311, 5
        %v1314 = vsel %vm992, %v1309, %v1313
        %v1315 = vshrl.u32 %v866, 16
        %v1317 = vrot.slane %v1315, 4
        %v1318 = vor.u32 %v1317, %v1313
        %v1319 = vrot.slane %v1318, 4
        %v1321 = vshll.u32 %v867, 16
        %v1323 = vrot.slane %v1321, 5
        %v1324 = vsel %vm992, %v1319, %v1323
        %v1325 = vshrl.u32 %v867, 16
        %v1327 = vrot.slane %v1325, 4
        %v1328 = vor.u32 %v1327, %v1323
        %v1329 = vrot.slane %v1328, 4
        %v1331 = vshll.u32 %v868, 16
        %v1333 = vrot.slane %v1331, 5
        %v1334 = vsel %vm992, %v1329, %v1333
        %v1335 = vshrl.u32 %v868, 16
        %v1337 = vrot.slane %v1335, 4
        %v1338 = vor.u32 %v1337, %v1333
        %v1339 = vrot.slane %v1338, 4
        %v1341 = vshll.u32 %v869, 16
        %v1343 = vrot.slane %v1341, 5
        %v1344 = vsel %vm992, %v1339, %v1343
        %v1346 = vshrl.u32 %v870, 16
        %v1348 = vrot.slane %v1346, 4
        %v1349 = vshll.u32 %v870, 16
        %v1351 = vrot.slane %v1349, 5
        %v1352 = vor.u32 %v1348, %v1351
        %v1353 = vrot.slane %v1352, 4
        %v1355 = vshll.u32 %v871, 16
        %v1357 = vrot.slane %v1355, 5
        %v1358 = vsel %vm992, %v1353, %v1357
        %v1359 = vshrl.u32 %v871, 16
        %v1361 = vrot.slane %v1359, 4
        %v1362 = vor.u32 %v1361, %v1357
        %v1363 = vrot.slane %v1362, 4
        %v1365 = vshll.u32 %v872, 16
        %v1367 = vrot.slane %v1365, 5
        %v1368 = vsel %vm992, %v1363, %v1367
        %v1369 = vshrl.u32 %v872, 16
        %v1371 = vrot.slane %v1369, 4
        %v1372 = vor.u32 %v1371, %v1367
        %v1373 = vrot.slane %v1372, 4
        %v1375 = vshll.u32 %v873, 16
        %v1377 = vrot.slane %v1375, 5
        %v1378 = vsel %vm992, %v1373, %v1377
        %v1379 = vshrl.u32 %v873, 16
        %v1381 = vrot.slane %v1379, 4
        %v1382 = vor.u32 %v1381, %v1377
        %v1383 = vrot.slane %v1382, 4
        %v1385 = vshll.u32 %v874, 16
        %v1387 = vrot.slane %v1385, 5
        %v1388 = vsel %vm992, %v1383, %v1387
        %v1390 = vshrl.u32 %v875, 16
        %v1392 = vrot.slane %v1390, 4
        %v1393 = vshll.u32 %v875, 16
        %v1395 = vrot.slane %v1393, 5
        %v1396 = vor.u32 %v1392, %v1395
        %v1397 = vrot.slane %v1396, 4
        %v1399 = vshll.u32 %v876, 16
        %v1401 = vrot.slane %v1399, 5
        %v1402 = vsel %vm992, %v1397, %v1401
        %v1403 = vshrl.u32 %v876, 16
        %v1405 = vrot.slane %v1403, 4
        %v1406 = vor.u32 %v1405, %v1401
        %v1407 = vrot.slane %v1406, 4
        %v1409 = vshll.u32 %v877, 16
        %v1411 = vrot.slane %v1409, 5
        %v1412 = vsel %vm992, %v1407, %v1411
        %v1413 = vshrl.u32 %v877, 16
        %v1415 = vrot.slane %v1413, 4
        %v1416 = vor.u32 %v1415, %v1411
        %v1417 = vrot.slane %v1416, 4
        %v1419 = vshll.u32 %v878, 16
        %v1421 = vrot.slane %v1419, 5
        %v1422 = vsel %vm992, %v1417, %v1421
        %v1423 = vshrl.u32 %v878, 16
        %v1425 = vrot.slane %v1423, 4
        %v1426 = vor.u32 %v1425, %v1421
        %v1427 = vrot.slane %v1426, 4
        %v1429 = vshll.u32 %v879, 16
        %v1431 = vrot.slane %v1429, 5
        %v1432 = vsel %vm992, %v1427, %v1431
        %v1434 = vshrl.u32 %v880, 16
        %v1436 = vrot.slane %v1434, 4
        %v1437 = vshll.u32 %v880, 16
        %v1439 = vrot.slane %v1437, 5
        %v1440 = vor.u32 %v1436, %v1439
        %v1441 = vrot.slane %v1440, 4
        %v1443 = vshll.u32 %v881, 16
        %v1445 = vrot.slane %v1443, 5
        %v1446 = vsel %vm992, %v1441, %v1445
        %v1447 = vshrl.u32 %v881, 16
        %v1449 = vrot.slane %v1447, 4
        %v1450 = vor.u32 %v1449, %v1445
        %v1451 = vrot.slane %v1450, 4
        %v1453 = vshll.u32 %v882, 16
        %v1455 = vrot.slane %v1453, 5
        %v1456 = vsel %vm992, %v1451, %v1455
        %v1457 = vshrl.u32 %v882, 16
        %v1459 = vrot.slane %v1457, 4
        %v1460 = vor.u32 %v1459, %v1455
        %v1461 = vrot.slane %v1460, 4
        %v1463 = vshll.u32 %v883, 16
        %v1465 = vrot.slane %v1463, 5
        %v1466 = vsel %vm992, %v1461, %v1465
        %v1467 = vshrl.u32 %v883, 16
        %v1469 = vrot.slane %v1467, 4
        %v1470 = vor.u32 %v1469, %v1465
        %v1471 = vrot.slane %v1470, 4
        %v1473 = vshll.u32 %v884, 16
        %v1475 = vrot.slane %v1473, 5
        %v1476 = vsel %vm992, %v1471, %v1475
        %v1478 = vshrl.u32 %v885, 16
        %v1480 = vrot.slane %v1478, 4
        %v1481 = vshll.u32 %v885, 16
        %v1483 = vrot.slane %v1481, 5
        %v1484 = vor.u32 %v1480, %v1483
        %v1485 = vrot.slane %v1484, 4
        %v1487 = vshll.u32 %v886, 16
        %v1489 = vrot.slane %v1487, 5
        %v1490 = vsel %vm992, %v1485, %v1489
        %v1491 = vshrl.u32 %v886, 16
        %v1493 = vrot.slane %v1491, 4
        %v1494 = vor.u32 %v1493, %v1489
        %v1495 = vrot.slane %v1494, 4
        %v1497 = vshll.u32 %v887, 16
        %v1499 = vrot.slane %v1497, 5
        %v1500 = vsel %vm992, %v1495, %v1499
        %v1501 = vshrl.u32 %v887, 16
        %v1503 = vrot.slane %v1501, 4
        %v1504 = vor.u32 %v1503, %v1499
        %v1505 = vrot.slane %v1504, 4
        %v1507 = vshll.u32 %v888, 16
        %v1509 = vrot.slane %v1507, 5
        %v1510 = vsel %vm992, %v1505, %v1509
        %v1511 = vshrl.u32 %v888, 16
        %v1513 = vrot.slane %v1511, 4
        %v1514 = vor.u32 %v1513, %v1509
        %v1515 = vrot.slane %v1514, 4
        %v1517 = vshll.u32 %v889, 16
        %v1519 = vrot.slane %v1517, 5
        %v1520 = vsel %vm992, %v1515, %v1519
        %v1522 = vshrl.u32 %v890, 16
        %v1524 = vrot.slane %v1522, 4
        %v1525 = vshll.u32 %v890, 16
        %v1527 = vrot.slane %v1525, 5
        %v1528 = vor.u32 %v1524, %v1527
        %v1529 = vrot.slane %v1528, 4
        %v1531 = vshll.u32 %v891, 16
        %v1533 = vrot.slane %v1531, 5
        %v1534 = vsel %vm992, %v1529, %v1533
        %v1535 = vshrl.u32 %v891, 16
        %v1537 = vrot.slane %v1535, 4
        %v1538 = vor.u32 %v1537, %v1533
        %v1539 = vrot.slane %v1538, 4
        %v1541 = vshll.u32 %v892, 16
        %v1543 = vrot.slane %v1541, 5
        %v1544 = vsel %vm992, %v1539, %v1543
        %v1545 = vshrl.u32 %v892, 16
        %v1547 = vrot.slane %v1545, 4
        %v1548 = vor.u32 %v1547, %v1543
        %v1549 = vrot.slane %v1548, 4
        %v1551 = vshll.u32 %v893, 16
        %v1553 = vrot.slane %v1551, 5
        %v1554 = vsel %vm992, %v1549, %v1553
        %v1555 = vshrl.u32 %v893, 16
        %v1557 = vrot.slane %v1555, 4
        %v1558 = vor.u32 %v1557, %v1553
        %v1559 = vrot.slane %v1558, 4
        %v1561 = vshll.u32 %v894, 16
        %v1563 = vrot.slane %v1561, 5
        %v1564 = vsel %vm992, %v1559, %v1563
        %v1566 = vshrl.u32 %v895, 16
        %v1568 = vrot.slane %v1566, 4
        %v1569 = vshll.u32 %v895, 16
        %v1571 = vrot.slane %v1569, 5
        %v1572 = vor.u32 %v1568, %v1571
        %v1573 = vrot.slane %v1572, 4
        %v1575 = vshll.u32 %v896, 16
        %v1577 = vrot.slane %v1575, 5
        %v1578 = vsel %vm992, %v1573, %v1577
        %v1579 = vshrl.u32 %v896, 16
        %v1581 = vrot.slane %v1579, 4
        %v1582 = vor.u32 %v1581, %v1577
        %v1583 = vrot.slane %v1582, 4
        %v1585 = vshll.u32 %v897, 16
        %v1587 = vrot.slane %v1585, 5
        %v1588 = vsel %vm992, %v1583, %v1587
        %v1589 = vshrl.u32 %v897, 16
        %v1591 = vrot.slane %v1589, 4
        %v1592 = vor.u32 %v1591, %v1587
        %v1593 = vrot.slane %v1592, 4
        %v1595 = vshll.u32 %v898, 16
        %v1597 = vrot.slane %v1595, 5
        %v1598 = vsel %vm992, %v1593, %v1597
        %v1599 = vshrl.u32 %v898, 16
        %v1601 = vrot.slane %v1599, 4
        %v1602 = vor.u32 %v1601, %v1597
        %v1603 = vrot.slane %v1602, 4
        %v1605 = vshll.u32 %v899, 16
        %v1607 = vrot.slane %v1605, 5
        %v1608 = vsel %vm992, %v1603, %v1607
        %v1610 = vshrl.u32 %v900, 16
        %v1612 = vrot.slane %v1610, 4
        %v1613 = vshll.u32 %v900, 16
        %v1615 = vrot.slane %v1613, 5
        %v1616 = vor.u32 %v1612, %v1615
        %v1617 = vrot.slane %v1616, 4
        %v1619 = vshll.u32 %v901, 16
        %v1621 = vrot.slane %v1619, 5
        %v1622 = vsel %vm992, %v1617, %v1621
        %v1623 = vshrl.u32 %v901, 16
        %v1625 = vrot.slane %v1623, 4
        %v1626 = vor.u32 %v1625, %v1621
        %v1627 = vrot.slane %v1626, 4
        %v1629 = vshll.u32 %v902, 16
        %v1631 = vrot.slane %v1629, 5
        %v1632 = vsel %vm992, %v1627, %v1631
        %v1633 = vshrl.u32 %v902, 16
        %v1635 = vrot.slane %v1633, 4
        %v1636 = vor.u32 %v1635, %v1631
        %v1637 = vrot.slane %v1636, 4
        %v1639 = vshll.u32 %v903, 16
        %v1641 = vrot.slane %v1639, 5
        %v1642 = vsel %vm992, %v1637, %v1641
        %v1643 = vshrl.u32 %v903, 16
        %v1645 = vrot.slane %v1643, 4
        %v1646 = vor.u32 %v1645, %v1641
        %v1647 = vrot.slane %v1646, 4
        %v1649 = vshll.u32 %v904, 16
        %v1651 = vrot.slane %v1649, 5
        %v1652 = vsel %vm992, %v1647, %v1651
        %v1654 = vshrl.u32 %v905, 16
        %v1656 = vrot.slane %v1654, 4
        %v1657 = vshll.u32 %v905, 16
        %v1659 = vrot.slane %v1657, 5
        %v1660 = vor.u32 %v1656, %v1659
        %v1661 = vrot.slane %v1660, 4
        %v1663 = vshll.u32 %v906, 16
        %v1665 = vrot.slane %v1663, 5
        %v1666 = vsel %vm992, %v1661, %v1665
        %v1667 = vshrl.u32 %v906, 16
        %v1669 = vrot.slane %v1667, 4
        %v1670 = vor.u32 %v1669, %v1665
        %v1671 = vrot.slane %v1670, 4
        %v1673 = vshll.u32 %v907, 16
        %v1675 = vrot.slane %v1673, 5
        %v1676 = vsel %vm992, %v1671, %v1675
        %v1677 = vshrl.u32 %v907, 16
        %v1679 = vrot.slane %v1677, 4
        %v1680 = vor.u32 %v1679, %v1675
        %v1681 = vrot.slane %v1680, 4
        %v1683 = vshll.u32 %v908, 16
        %v1685 = vrot.slane %v1683, 5
        %v1686 = vsel %vm992, %v1681, %v1685
        %v1687 = vshrl.u32 %v908, 16
        %v1689 = vrot.slane %v1687, 4
        %v1690 = vor.u32 %v1689, %v1685
        %v1691 = vrot.slane %v1690, 4
        %v1693 = vshll.u32 %v909, 16
        %v1695 = vrot.slane %v1693, 5
        %v1696 = vsel %vm992, %v1691, %v1695
        %v1698 = vshrl.u32 %v910, 16
        %v1700 = vrot.slane %v1698, 4
        %v1701 = vshll.u32 %v910, 16
        %v1703 = vrot.slane %v1701, 5
        %v1704 = vor.u32 %v1700, %v1703
        %v1705 = vrot.slane %v1704, 4
        %v1707 = vshll.u32 %v911, 16
        %v1709 = vrot.slane %v1707, 5
        %v1710 = vsel %vm992, %v1705, %v1709
        %v1711 = vshrl.u32 %v911, 16
        %v1713 = vrot.slane %v1711, 4
        %v1714 = vor.u32 %v1713, %v1709
        %v1715 = vrot.slane %v1714, 4
        %v1717 = vshll.u32 %v912, 16
        %v1719 = vrot.slane %v1717, 5
        %v1720 = vsel %vm992, %v1715, %v1719
        %v1721 = vshrl.u32 %v912, 16
        %v1723 = vrot.slane %v1721, 4
        %v1724 = vor.u32 %v1723, %v1719
        %v1725 = vrot.slane %v1724, 4
        %v1727 = vshll.u32 %v913, 16
        %v1729 = vrot.slane %v1727, 5
        %v1730 = vsel %vm992, %v1725, %v1729
        %v1731 = vshrl.u32 %v913, 16
        %v1733 = vrot.slane %v1731, 4
        %v1734 = vor.u32 %v1733, %v1729
        %v1735 = vrot.slane %v1734, 4
        %v1737 = vshll.u32 %v914, 16
        %v1739 = vrot.slane %v1737, 5
        %v1740 = vsel %vm992, %v1735, %v1739
        %v1742 = vshrl.u32 %v915, 16
        %v1744 = vrot.slane %v1742, 4
        %v1745 = vshll.u32 %v915, 16
        %v1747 = vrot.slane %v1745, 5
        %v1748 = vor.u32 %v1744, %v1747
        %v1749 = vrot.slane %v1748, 4
        %v1751 = vshll.u32 %v916, 16
        %v1753 = vrot.slane %v1751, 5
        %v1754 = vsel %vm992, %v1749, %v1753
        %v1755 = vshrl.u32 %v916, 16
        %v1757 = vrot.slane %v1755, 4
        %v1758 = vor.u32 %v1757, %v1753
        %v1759 = vrot.slane %v1758, 4
        %v1761 = vshll.u32 %v917, 16
        %v1763 = vrot.slane %v1761, 5
        %v1764 = vsel %vm992, %v1759, %v1763
        %v1765 = vshrl.u32 %v917, 16
        %v1767 = vrot.slane %v1765, 4
        %v1768 = vor.u32 %v1767, %v1763
        %v1769 = vrot.slane %v1768, 4
        %v1771 = vshll.u32 %v918, 16
        %v1773 = vrot.slane %v1771, 5
        %v1774 = vsel %vm992, %v1769, %v1773
        %v1775 = vshrl.u32 %v918, 16
        %v1777 = vrot.slane %v1775, 4
        %v1778 = vor.u32 %v1777, %v1773
        %v1779 = vrot.slane %v1778, 4
        %v1781 = vshll.u32 %v919, 16
        %v1783 = vrot.slane %v1781, 5
        %v1784 = vsel %vm992, %v1779, %v1783
        %v1786 = vshrl.u32 %v920, 16
        %v1788 = vrot.slane %v1786, 4
        %v1789 = vshll.u32 %v920, 16
        %v1791 = vrot.slane %v1789, 5
        %v1792 = vor.u32 %v1788, %v1791
        %v1793 = vrot.slane %v1792, 4
        %v1795 = vshll.u32 %v921, 16
        %v1797 = vrot.slane %v1795, 5
        %v1798 = vsel %vm992, %v1793, %v1797
        %v1799 = vshrl.u32 %v921, 16
        %v1801 = vrot.slane %v1799, 4
        %v1802 = vor.u32 %v1801, %v1797
        %v1803 = vrot.slane %v1802, 4
        %v1805 = vshll.u32 %v922, 16
        %v1807 = vrot.slane %v1805, 5
        %v1808 = vsel %vm992, %v1803, %v1807
        %v1809 = vshrl.u32 %v922, 16
        %v1811 = vrot.slane %v1809, 4
        %v1812 = vor.u32 %v1811, %v1807
        %v1813 = vrot.slane %v1812, 4
        %v1815 = vshll.u32 %v923, 16
        %v1817 = vrot.slane %v1815, 5
        %v1818 = vsel %vm992, %v1813, %v1817
        %v1819 = vshrl.u32 %v923, 16
        %v1821 = vrot.slane %v1819, 4
        %v1822 = vor.u32 %v1821, %v1817
        %v1823 = vrot.slane %v1822, 4
        %v1825 = vshll.u32 %v924, 16
        %v1827 = vrot.slane %v1825, 5
        %v1828 = vsel %vm992, %v1823, %v1827
        %v1830 = vshrl.u32 %v925, 16
        %v1832 = vrot.slane %v1830, 4
        %v1833 = vshll.u32 %v925, 16
        %v1835 = vrot.slane %v1833, 5
        %v1836 = vor.u32 %v1832, %v1835
        %v1837 = vrot.slane %v1836, 4
        %v1839 = vshll.u32 %v926, 16
        %v1841 = vrot.slane %v1839, 5
        %v1842 = vsel %vm992, %v1837, %v1841
        %v1843 = vshrl.u32 %v926, 16
        %v1845 = vrot.slane %v1843, 4
        %v1846 = vor.u32 %v1845, %v1841
        %v1847 = vrot.slane %v1846, 4
        %v1849 = vshll.u32 %v927, 16
        %v1851 = vrot.slane %v1849, 5
        %v1852 = vsel %vm992, %v1847, %v1851
        %v1853 = vshrl.u32 %v927, 16
        %v1855 = vrot.slane %v1853, 4
        %v1856 = vor.u32 %v1855, %v1851
        %v1857 = vrot.slane %v1856, 4
        %v1859 = vshll.u32 %v928, 16
        %v1861 = vrot.slane %v1859, 5
        %v1862 = vsel %vm992, %v1857, %v1861
        %v1863 = vshrl.u32 %v928, 16
        %v1865 = vrot.slane %v1863, 4
        %v1866 = vor.u32 %v1865, %v1861
        %v1867 = vrot.slane %v1866, 4
        %v1869 = vshll.u32 %v929, 16
        %v1871 = vrot.slane %v1869, 5
        %v1872 = vsel %vm992, %v1867, %v1871
        %v1874 = vshrl.u32 %v930, 16
        %v1876 = vrot.slane %v1874, 4
        %v1877 = vshll.u32 %v930, 16
        %v1879 = vrot.slane %v1877, 5
        %v1880 = vor.u32 %v1876, %v1879
        %v1881 = vrot.slane %v1880, 4
        %v1883 = vshll.u32 %v931, 16
        %v1885 = vrot.slane %v1883, 5
        %v1886 = vsel %vm992, %v1881, %v1885
        %v1887 = vshrl.u32 %v931, 16
        %v1889 = vrot.slane %v1887, 4
        %v1890 = vor.u32 %v1889, %v1885
        %v1891 = vrot.slane %v1890, 4
        %v1893 = vshll.u32 %v932, 16
        %v1895 = vrot.slane %v1893, 5
        %v1896 = vsel %vm992, %v1891, %v1895
        %v1897 = vshrl.u32 %v932, 16
        %v1899 = vrot.slane %v1897, 4
        %v1900 = vor.u32 %v1899, %v1895
        %v1901 = vrot.slane %v1900, 4
        %v1903 = vshll.u32 %v933, 16
        %v1905 = vrot.slane %v1903, 5
        %v1906 = vsel %vm992, %v1901, %v1905
        %v1907 = vshrl.u32 %v933, 16
        %v1909 = vrot.slane %v1907, 4
        %v1910 = vor.u32 %v1909, %v1905
        %v1911 = vrot.slane %v1910, 4
        %v1913 = vshll.u32 %v934, 16
        %v1915 = vrot.slane %v1913, 5
        %v1916 = vsel %vm992, %v1911, %v1915
        %v1918 = vshrl.u32 %v935, 16
        %v1920 = vrot.slane %v1918, 4
        %v1921 = vshll.u32 %v935, 16
        %v1923 = vrot.slane %v1921, 5
        %v1924 = vor.u32 %v1920, %v1923
        %v1925 = vrot.slane %v1924, 4
        %v1927 = vshll.u32 %v936, 16
        %v1929 = vrot.slane %v1927, 5
        %v1930 = vsel %vm992, %v1925, %v1929
        %v1931 = vshrl.u32 %v936, 16
        %v1933 = vrot.slane %v1931, 4
        %v1934 = vor.u32 %v1933, %v1929
        %v1935 = vrot.slane %v1934, 4
        %v1937 = vshll.u32 %v937, 16
        %v1939 = vrot.slane %v1937, 5
        %v1940 = vsel %vm992, %v1935, %v1939
        %v1941 = vshrl.u32 %v937, 16
        %v1943 = vrot.slane %v1941, 4
        %v1944 = vor.u32 %v1943, %v1939
        %v1945 = vrot.slane %v1944, 4
        %v1947 = vshll.u32 %v938, 16
        %v1949 = vrot.slane %v1947, 5
        %v1950 = vsel %vm992, %v1945, %v1949
        %v1951 = vshrl.u32 %v938, 16
        %v1953 = vrot.slane %v1951, 4
        %v1954 = vor.u32 %v1953, %v1949
        %v1955 = vrot.slane %v1954, 4
        %v1957 = vshll.u32 %v939, 16
        %v1959 = vrot.slane %v1957, 5
        %v1960 = vsel %vm992, %v1955, %v1959
        %v1962 = vshrl.u32 %v940, 16
        %v1964 = vrot.slane %v1962, 4
        %v1965 = vshll.u32 %v940, 16
        %v1967 = vrot.slane %v1965, 5
        %v1968 = vor.u32 %v1964, %v1967
        %v1969 = vrot.slane %v1968, 4
        %v1971 = vshll.u32 %v941, 16
        %v1973 = vrot.slane %v1971, 5
        %v1974 = vsel %vm992, %v1969, %v1973
        %v1975 = vshrl.u32 %v941, 16
        %v1977 = vrot.slane %v1975, 4
        %v1978 = vor.u32 %v1977, %v1973
        %v1979 = vrot.slane %v1978, 4
        %v1981 = vshll.u32 %v942, 16
        %v1983 = vrot.slane %v1981, 5
        %v1984 = vsel %vm992, %v1979, %v1983
        %v1985 = vshrl.u32 %v942, 16
        %v1987 = vrot.slane %v1985, 4
        %v1988 = vor.u32 %v1987, %v1983
        %v1989 = vrot.slane %v1988, 4
        %v1991 = vshll.u32 %v943, 16
        %v1993 = vrot.slane %v1991, 5
        %v1994 = vsel %vm992, %v1989, %v1993
        %v1995 = vshrl.u32 %v943, 16
        %v1997 = vrot.slane %v1995, 4
        %v1998 = vor.u32 %v1997, %v1993
        %v1999 = vrot.slane %v1998, 4
        %v2001 = vshll.u32 %v944, 16
        %v2003 = vrot.slane %v2001, 5
        %v2004 = vsel %vm992, %v1999, %v2003
        %v2006 = vshrl.u32 %v945, 16
        %v2008 = vrot.slane %v2006, 4
        %v2009 = vshll.u32 %v945, 16
        %v2011 = vrot.slane %v2009, 5
        %v2012 = vor.u32 %v2008, %v2011
        %v2013 = vrot.slane %v2012, 4
        %v2015 = vshll.u32 %v946, 16
        %v2017 = vrot.slane %v2015, 5
        %v2018 = vsel %vm992, %v2013, %v2017
        %v2019 = vshrl.u32 %v946, 16
        %v2021 = vrot.slane %v2019, 4
        %v2022 = vor.u32 %v2021, %v2017
        %v2023 = vrot.slane %v2022, 4
        %v2025 = vshll.u32 %v947, 16
        %v2027 = vrot.slane %v2025, 5
        %v2028 = vsel %vm992, %v2023, %v2027
        %v2029 = vshrl.u32 %v947, 16
        %v2031 = vrot.slane %v2029, 4
        %v2032 = vor.u32 %v2031, %v2027
        %v2033 = vrot.slane %v2032, 4
        %v2035 = vshll.u32 %v948, 16
        %v2037 = vrot.slane %v2035, 5
        %v2038 = vsel %vm992, %v2033, %v2037
        %v2039 = vshrl.u32 %v948, 16
        %v2041 = vrot.slane %v2039, 4
        %v2042 = vor.u32 %v2041, %v2037
        %v2043 = vrot.slane %v2042, 4
        %v2045 = vshll.u32 %v949, 16
        %v2047 = vrot.slane %v2045, 5
        %v2048 = vsel %vm992, %v2043, %v2047
        %v2050 = vshrl.u32 %v950, 16
        %v2052 = vrot.slane %v2050, 4
        %v2053 = vshll.u32 %v950, 16
        %v2055 = vrot.slane %v2053, 5
        %v2056 = vor.u32 %v2052, %v2055
        %v2057 = vrot.slane %v2056, 4
        %v2059 = vshll.u32 %v951, 16
        %v2061 = vrot.slane %v2059, 5
        %v2062 = vsel %vm992, %v2057, %v2061
        %v2063 = vshrl.u32 %v951, 16
        %v2065 = vrot.slane %v2063, 4
        %v2066 = vor.u32 %v2065, %v2061
        %v2067 = vrot.slane %v2066, 4
        %v2069 = vshll.u32 %v952, 16
        %v2071 = vrot.slane %v2069, 5
        %v2072 = vsel %vm992, %v2067, %v2071
        %v2073 = vshrl.u32 %v952, 16
        %v2075 = vrot.slane %v2073, 4
        %v2076 = vor.u32 %v2075, %v2071
        %v2077 = vrot.slane %v2076, 4
        %v2079 = vshll.u32 %v953, 16
        %v2081 = vrot.slane %v2079, 5
        %v2082 = vsel %vm992, %v2077, %v2081
        %v2083 = vshrl.u32 %v953, 16
        %v2085 = vrot.slane %v2083, 4
        %v2086 = vor.u32 %v2085, %v2081
        %v2087 = vrot.slane %v2086, 4
        %v2089 = vshll.u32 %v954, 16
        %v2091 = vrot.slane %v2089, 5
        %v2092 = vsel %vm992, %v2087, %v2091
        %v2094 = vshrl.u32 %v955, 16
        %v2096 = vrot.slane %v2094, 4
        %v2097 = vshll.u32 %v955, 16
        %v2099 = vrot.slane %v2097, 5
        %v2100 = vor.u32 %v2096, %v2099
        %v2101 = vrot.slane %v2100, 4
        %v2103 = vshll.u32 %v956, 16
        %v2105 = vrot.slane %v2103, 5
        %v2106 = vsel %vm992, %v2101, %v2105
        %v2107 = vshrl.u32 %v956, 16
        %v2109 = vrot.slane %v2107, 4
        %v2110 = vor.u32 %v2109, %v2105
        %v2111 = vrot.slane %v2110, 4
        %v2113 = vshll.u32 %v957, 16
        %v2115 = vrot.slane %v2113, 5
        %v2116 = vsel %vm992, %v2111, %v2115
        %v2117 = vshrl.u32 %v957, 16
        %v2119 = vrot.slane %v2117, 4
        %v2120 = vor.u32 %v2119, %v2115
        %v2121 = vrot.slane %v2120, 4
        %v2123 = vshll.u32 %v958, 16
        %v2125 = vrot.slane %v2123, 5
        %v2126 = vsel %vm992, %v2121, %v2125
        %v2127 = vshrl.u32 %v958, 16
        %v2129 = vrot.slane %v2127, 4
        %v2130 = vor.u32 %v2129, %v2125
        %v2131 = vrot.slane %v2130, 4
        %v2133 = vshll.u32 %v959, 16
        %v2135 = vrot.slane %v2133, 5
        %v2136 = vsel %vm992, %v2131, %v2135
        %v2138 = vshrl.u32 %v960, 16
        %v2140 = vrot.slane %v2138, 4
        %v2141 = vshll.u32 %v960, 16
        %v2143 = vrot.slane %v2141, 5
        %v2144 = vor.u32 %v2140, %v2143
        %v2145 = vrot.slane %v2144, 4
        %v2147 = vshll.u32 %v961, 16
        %v2149 = vrot.slane %v2147, 5
        %v2150 = vsel %vm992, %v2145, %v2149
        %v2151 = vshrl.u32 %v961, 16
        %v2153 = vrot.slane %v2151, 4
        %v2154 = vor.u32 %v2153, %v2149
        %v2155 = vrot.slane %v2154, 4
        %v2157 = vshll.u32 %v962, 16
        %v2159 = vrot.slane %v2157, 5
        %v2160 = vsel %vm992, %v2155, %v2159
        %v2161 = vshrl.u32 %v962, 16
        %v2163 = vrot.slane %v2161, 4
        %v2164 = vor.u32 %v2163, %v2159
        %v2165 = vrot.slane %v2164, 4
        %v2167 = vshll.u32 %v963, 16
        %v2169 = vrot.slane %v2167, 5
        %v2170 = vsel %vm992, %v2165, %v2169
        %v2171 = vshrl.u32 %v963, 16
        %v2173 = vrot.slane %v2171, 4
        %v2174 = vor.u32 %v2173, %v2169
        %v2175 = vrot.slane %v2174, 4
        %v2177 = vshll.u32 %v964, 16
        %v2179 = vrot.slane %v2177, 5
        %v2180 = vsel %vm992, %v2175, %v2179
        %v2182 = vshrl.u32 %v965, 16
        %v2184 = vrot.slane %v2182, 4
        %v2185 = vshll.u32 %v965, 16
        %v2187 = vrot.slane %v2185, 5
        %v2188 = vor.u32 %v2184, %v2187
        %v2189 = vrot.slane %v2188, 4
        %v2191 = vshll.u32 %v966, 16
        %v2193 = vrot.slane %v2191, 5
        %v2194 = vsel %vm992, %v2189, %v2193
        %v2195 = vshrl.u32 %v966, 16
        %v2197 = vrot.slane %v2195, 4
        %v2198 = vor.u32 %v2197, %v2193
        %v2199 = vrot.slane %v2198, 4
        %v2201 = vshll.u32 %v967, 16
        %v2203 = vrot.slane %v2201, 5
        %v2204 = vsel %vm992, %v2199, %v2203
        %v2205 = vshrl.u32 %v967, 16
        %v2207 = vrot.slane %v2205, 4
        %v2208 = vor.u32 %v2207, %v2203
        %v2209 = vrot.slane %v2208, 4
        %v2211 = vshll.u32 %v968, 16
        %v2213 = vrot.slane %v2211, 5
        %v2214 = vsel %vm992, %v2209, %v2213
        %v2215 = vshrl.u32 %v968, 16
        %v2217 = vrot.slane %v2215, 4
        %v2218 = vor.u32 %v2217, %v2213
        %v2219 = vrot.slane %v2218, 4
        %v2221 = vshll.u32 %v969, 16
        %v2223 = vrot.slane %v2221, 5
        %v2224 = vsel %vm992, %v2219, %v2223
        %v2226 = vshrl.u32 %v970, 16
        %v2228 = vrot.slane %v2226, 4
        %v2229 = vshll.u32 %v970, 16
        %v2231 = vrot.slane %v2229, 5
        %v2232 = vor.u32 %v2228, %v2231
        %v2233 = vrot.slane %v2232, 4
        %v2235 = vshll.u32 %v971, 16
        %v2237 = vrot.slane %v2235, 5
        %v2238 = vsel %vm992, %v2233, %v2237
        %v2239 = vshrl.u32 %v971, 16
        %v2241 = vrot.slane %v2239, 4
        %v2242 = vor.u32 %v2241, %v2237
        %v2243 = vrot.slane %v2242, 4
        %v2245 = vshll.u32 %v972, 16
        %v2247 = vrot.slane %v2245, 5
        %v2248 = vsel %vm992, %v2243, %v2247
        %v2249 = vshrl.u32 %v972, 16
        %v2251 = vrot.slane %v2249, 4
        %v2252 = vor.u32 %v2251, %v2247
        %v2253 = vrot.slane %v2252, 4
        %v2255 = vshll.u32 %v973, 16
        %v2257 = vrot.slane %v2255, 5
        %v2258 = vsel %vm992, %v2253, %v2257
        %v2259 = vshrl.u32 %v973, 16
        %v2261 = vrot.slane %v2259, 4
        %v2262 = vor.u32 %v2261, %v2257
        %v2263 = vrot.slane %v2262, 4
        %v2265 = vshll.u32 %v974, 16
        %v2267 = vrot.slane %v2265, 5
        %v2268 = vsel %vm992, %v2263, %v2267
        %v2270 = vshrl.u32 %v975, 16
        %v2272 = vrot.slane %v2270, 4
        %v2273 = vshll.u32 %v975, 16
        %v2275 = vrot.slane %v2273, 5
        %v2276 = vor.u32 %v2272, %v2275
        %v2277 = vrot.slane %v2276, 4
        %v2279 = vshll.u32 %v976, 16
        %v2281 = vrot.slane %v2279, 5
        %v2282 = vsel %vm992, %v2277, %v2281
        %v2283 = vshrl.u32 %v976, 16
        %v2285 = vrot.slane %v2283, 4
        %v2286 = vor.u32 %v2285, %v2281
        %v2287 = vrot.slane %v2286, 4
        %v2289 = vshll.u32 %v977, 16
        %v2291 = vrot.slane %v2289, 5
        %v2292 = vsel %vm992, %v2287, %v2291
        %v2293 = vshrl.u32 %v977, 16
        %v2295 = vrot.slane %v2293, 4
        %v2296 = vor.u32 %v2295, %v2291
        %v2297 = vrot.slane %v2296, 4
        %v2299 = vshll.u32 %v978, 16
        %v2301 = vrot.slane %v2299, 5
        %v2302 = vsel %vm992, %v2297, %v2301
        %v2303 = vshrl.u32 %v978, 16
        %v2305 = vrot.slane %v2303, 4
        %v2306 = vor.u32 %v2305, %v2301
        %v2307 = vrot.slane %v2306, 4
        %v2309 = vshll.u32 %v979, 16
        %v2311 = vrot.slane %v2309, 5
        %v2312 = vsel %vm992, %v2307, %v2311
        %v2314 = vshrl.u32 %v980, 16
        %v2316 = vrot.slane %v2314, 4
        %v2317 = vshll.u32 %v980, 16
        %v2319 = vrot.slane %v2317, 5
        %v2320 = vor.u32 %v2316, %v2319
        %v2321 = vrot.slane %v2320, 4
        %v2323 = vshll.u32 %v981, 16
        %v2325 = vrot.slane %v2323, 5
        %v2326 = vsel %vm992, %v2321, %v2325
        %v2327 = vshrl.u32 %v981, 16
        %v2329 = vrot.slane %v2327, 4
        %v2330 = vor.u32 %v2329, %v2325
        %v2331 = vrot.slane %v2330, 4
        %v2333 = vshll.u32 %v982, 16
        %v2335 = vrot.slane %v2333, 5
        %v2336 = vsel %vm992, %v2331, %v2335
        %v2337 = vshrl.u32 %v982, 16
        %v2339 = vrot.slane %v2337, 4
        %v2340 = vor.u32 %v2339, %v2335
        %v2341 = vrot.slane %v2340, 4
        %v2343 = vshll.u32 %v983, 16
        %v2345 = vrot.slane %v2343, 5
        %v2346 = vsel %vm992, %v2341, %v2345
        %v2347 = vshrl.u32 %v983, 16
        %v2349 = vrot.slane %v2347, 4
        %v2350 = vor.u32 %v2349, %v2345
        %v2351 = vrot.slane %v2350, 4
        %v2353 = vshll.u32 %v984, 16
        %v2355 = vrot.slane %v2353, 5
        %v2356 = vsel %vm992, %v2351, %v2355
        %v2358 = vshrl.u32 %v985, 16
        %v2360 = vrot.slane %v2358, 4
        %v2361 = vshll.u32 %v985, 16
        %v2363 = vrot.slane %v2361, 5
        %v2364 = vor.u32 %v2360, %v2363
        %v2365 = vrot.slane %v2364, 4
        %v2367 = vshll.u32 %v986, 16
        %v2369 = vrot.slane %v2367, 5
        %v2370 = vsel %vm992, %v2365, %v2369
        %v2371 = vshrl.u32 %v986, 16
        %v2373 = vrot.slane %v2371, 4
        %v2374 = vor.u32 %v2373, %v2369
        %v2375 = vrot.slane %v2374, 4
        %v2377 = vshll.u32 %v987, 16
        %v2379 = vrot.slane %v2377, 5
        %v2380 = vsel %vm992, %v2375, %v2379
        %v2381 = vshrl.u32 %v987, 16
        %v2383 = vrot.slane %v2381, 4
        %v2384 = vor.u32 %v2383, %v2379
        %v2385 = vrot.slane %v2384, 4
        %v2387 = vshll.u32 %v988, 16
        %v2389 = vrot.slane %v2387, 5
        %v2390 = vsel %vm992, %v2385, %v2389
        %v2391 = vshrl.u32 %v988, 16
        %v2393 = vrot.slane %v2391, 4
        %v2394 = vor.u32 %v2393, %v2389
        %v2395 = vrot.slane %v2394, 4
        %v2397 = vshll.u32 %v989, 16
        %v2399 = vrot.slane %v2397, 5
        %v2400 = vsel %vm992, %v2395, %v2399
        %v2401 = vunpack.c.l.b16 %v1006
        %v2402 = vunpack.c.l.b16 %v1016
        %v2403 = vunpack.c.l.b16 %v1026
        %v2404 = vunpack.c.l.b16 %v1036
        %v2405 = vunpack.c.l.b16 %v1050
        %v2406 = vunpack.c.l.b16 %v1060
        %v2407 = vunpack.c.l.b16 %v1070
        %v2408 = vunpack.c.l.b16 %v1080
        %v2409 = vunpack.c.l.b16 %v1094
        %v2410 = vunpack.c.l.b16 %v1104
        %v2411 = vunpack.c.l.b16 %v1114
        %v2412 = vunpack.c.l.b16 %v1124
        %v2413 = vunpack.c.l.b16 %v1138
        %v2414 = vunpack.c.l.b16 %v1148
        %v2415 = vunpack.c.l.b16 %v1158
        %v2416 = vunpack.c.l.b16 %v1168
        %v2417 = vunpack.c.l.b16 %v1182
        %v2418 = vunpack.c.l.b16 %v1192
        %v2419 = vunpack.c.l.b16 %v1202
        %v2420 = vunpack.c.l.b16 %v1212
        %v2421 = vunpack.c.l.b16 %v1226
        %v2422 = vunpack.c.l.b16 %v1236
        %v2423 = vunpack.c.l.b16 %v1246
        %v2424 = vunpack.c.l.b16 %v1256
        %v2425 = vunpack.c.l.b16 %v1270
        %v2426 = vunpack.c.l.b16 %v1280
        %v2427 = vunpack.c.l.b16 %v1290
        %v2428 = vunpack.c.l.b16 %v1300
        %v2429 = vunpack.c.l.b16 %v1314
        %v2430 = vunpack.c.l.b16 %v1324
        %v2431 = vunpack.c.l.b16 %v1334
        %v2432 = vunpack.c.l.b16 %v1344
        %v2433 = vunpack.c.l.b16 %v1358
        %v2434 = vunpack.c.l.b16 %v1368
        %v2435 = vunpack.c.l.b16 %v1378
        %v2436 = vunpack.c.l.b16 %v1388
        %v2437 = vunpack.c.l.b16 %v1402
        %v2438 = vunpack.c.l.b16 %v1412
        %v2439 = vunpack.c.l.b16 %v1422
        %v2440 = vunpack.c.l.b16 %v1432
        %v2441 = vunpack.c.l.b16 %v1446
        %v2442 = vunpack.c.l.b16 %v1456
        %v2443 = vunpack.c.l.b16 %v1466
        %v2444 = vunpack.c.l.b16 %v1476
        %v2445 = vunpack.c.l.b16 %v1490
        %v2446 = vunpack.c.l.b16 %v1500
        %v2447 = vunpack.c.l.b16 %v1510
        %v2448 = vunpack.c.l.b16 %v1520
        %v2449 = vunpack.c.l.b16 %v1534
        %v2450 = vunpack.c.l.b16 %v1544
        %v2451 = vunpack.c.l.b16 %v1554
        %v2452 = vunpack.c.l.b16 %v1564
        %v2453 = vunpack.c.l.b16 %v1578
        %v2454 = vunpack.c.l.b16 %v1588
        %v2455 = vunpack.c.l.b16 %v1598
        %v2456 = vunpack.c.l.b16 %v1608
        %v2457 = vunpack.c.l.b16 %v1622
        %v2458 = vunpack.c.l.b16 %v1632
        %v2459 = vunpack.c.l.b16 %v1642
        %v2460 = vunpack.c.l.b16 %v1652
        %v2461 = vunpack.c.l.b16 %v1666
        %v2462 = vunpack.c.l.b16 %v1676
        %v2463 = vunpack.c.l.b16 %v1686
        %v2464 = vunpack.c.l.b16 %v1696
        %v2465 = vunpack.c.l.b16 %v1710
        %v2466 = vunpack.c.l.b16 %v1720
        %v2467 = vunpack.c.l.b16 %v1730
        %v2468 = vunpack.c.l.b16 %v1740
        %v2469 = vunpack.c.l.b16 %v1754
        %v2470 = vunpack.c.l.b16 %v1764
        %v2471 = vunpack.c.l.b16 %v1774
        %v2472 = vunpack.c.l.b16 %v1784
        %v2473 = vunpack.c.l.b16 %v1798
        %v2474 = vunpack.c.l.b16 %v1808
        %v2475 = vunpack.c.l.b16 %v1818
        %v2476 = vunpack.c.l.b16 %v1828
        %v2477 = vunpack.c.l.b16 %v1842
        %v2478 = vunpack.c.l.b16 %v1852
        %v2479 = vunpack.c.l.b16 %v1862
        %v2480 = vunpack.c.l.b16 %v1872
        %v2481 = vunpack.c.l.b16 %v1886
        %v2482 = vunpack.c.l.b16 %v1896
        %v2483 = vunpack.c.l.b16 %v1906
        %v2484 = vunpack.c.l.b16 %v1916
        %v2485 = vunpack.c.l.b16 %v1930
        %v2486 = vunpack.c.l.b16 %v1940
        %v2487 = vunpack.c.l.b16 %v1950
        %v2488 = vunpack.c.l.b16 %v1960
        %v2489 = vunpack.c.l.b16 %v1974
        %v2490 = vunpack.c.l.b16 %v1984
        %v2491 = vunpack.c.l.b16 %v1994
        %v2492 = vunpack.c.l.b16 %v2004
        %v2493 = vunpack.c.l.b16 %v2018
        %v2494 = vunpack.c.l.b16 %v2028
        %v2495 = vunpack.c.l.b16 %v2038
        %v2496 = vunpack.c.l.b16 %v2048
        %v2497 = vunpack.c.l.b16 %v2062
        %v2498 = vunpack.c.l.b16 %v2072
        %v2499 = vunpack.c.l.b16 %v2082
        %v2500 = vunpack.c.l.b16 %v2092
        %v2501 = vunpack.c.l.b16 %v2106
        %v2502 = vunpack.c.l.b16 %v2116
        %v2503 = vunpack.c.l.b16 %v2126
        %v2504 = vunpack.c.l.b16 %v2136
        %v2505 = vunpack.c.l.b16 %v2150
        %v2506 = vunpack.c.l.b16 %v2160
        %v2507 = vunpack.c.l.b16 %v2170
        %v2508 = vunpack.c.l.b16 %v2180
        %v2509 = vunpack.c.l.b16 %v2194
        %v2510 = vunpack.c.l.b16 %v2204
        %v2511 = vunpack.c.l.b16 %v2214
        %v2512 = vunpack.c.l.b16 %v2224
        %v2513 = vunpack.c.l.b16 %v2238
        %v2514 = vunpack.c.l.b16 %v2248
        %v2515 = vunpack.c.l.b16 %v2258
        %v2516 = vunpack.c.l.b16 %v2268
        %v2517 = vunpack.c.l.b16 %v2282
        %v2518 = vunpack.c.l.b16 %v2292
        %v2519 = vunpack.c.l.b16 %v2302
        %v2520 = vunpack.c.l.b16 %v2312
        %v2521 = vunpack.c.l.b16 %v2326
        %v2522 = vunpack.c.l.b16 %v2336
        %v2523 = vunpack.c.l.b16 %v2346
        %v2524 = vunpack.c.l.b16 %v2356
        %v2525 = vunpack.c.l.b16 %v2370
        %v2526 = vunpack.c.l.b16 %v2380
        %v2527 = vunpack.c.l.b16 %v2390
        %v2528 = vunpack.c.l.b16 %v2400
        %v2529 = vpack.c.b16 %v2402, %v2401
        %v2530 = vpack.c.b16 %v2404, %v2403
        %v2531 = vpack.c.b16 %v2406, %v2405
        %v2532 = vpack.c.b16 %v2408, %v2407
        %v2533 = vpack.c.b16 %v2410, %v2409
        %v2534 = vpack.c.b16 %v2412, %v2411
        %v2535 = vpack.c.b16 %v2414, %v2413
        %v2536 = vpack.c.b16 %v2416, %v2415
        %v2537 = vpack.c.b16 %v2418, %v2417
        %v2538 = vpack.c.b16 %v2420, %v2419
        %v2539 = vpack.c.b16 %v2422, %v2421
        %v2540 = vpack.c.b16 %v2424, %v2423
        %v2541 = vpack.c.b16 %v2426, %v2425
        %v2542 = vpack.c.b16 %v2428, %v2427
        %v2543 = vpack.c.b16 %v2430, %v2429
        %v2544 = vpack.c.b16 %v2432, %v2431
        %v2545 = vpack.c.b16 %v2434, %v2433
        %v2546 = vpack.c.b16 %v2436, %v2435
        %v2547 = vpack.c.b16 %v2438, %v2437
        %v2548 = vpack.c.b16 %v2440, %v2439
        %v2549 = vpack.c.b16 %v2442, %v2441
        %v2550 = vpack.c.b16 %v2444, %v2443
        %v2551 = vpack.c.b16 %v2446, %v2445
        %v2552 = vpack.c.b16 %v2448, %v2447
        %v2553 = vpack.c.b16 %v2450, %v2449
        %v2554 = vpack.c.b16 %v2452, %v2451
        %v2555 = vpack.c.b16 %v2454, %v2453
        %v2556 = vpack.c.b16 %v2456, %v2455
        %v2557 = vpack.c.b16 %v2458, %v2457
        %v2558 = vpack.c.b16 %v2460, %v2459
        %v2559 = vpack.c.b16 %v2462, %v2461
        %v2560 = vpack.c.b16 %v2464, %v2463
        %v2561 = vpack.c.b16 %v2466, %v2465
        %v2562 = vpack.c.b16 %v2468, %v2467
        %v2563 = vpack.c.b16 %v2470, %v2469
        %v2564 = vpack.c.b16 %v2472, %v2471
        %v2565 = vpack.c.b16 %v2474, %v2473
        %v2566 = vpack.c.b16 %v2476, %v2475
        %v2567 = vpack.c.b16 %v2478, %v2477
        %v2568 = vpack.c.b16 %v2480, %v2479
        %v2569 = vpack.c.b16 %v2482, %v2481
        %v2570 = vpack.c.b16 %v2484, %v2483
        %v2571 = vpack.c.b16 %v2486, %v2485
        %v2572 = vpack.c.b16 %v2488, %v2487
        %v2573 = vpack.c.b16 %v2490, %v2489
        %v2574 = vpack.c.b16 %v2492, %v2491
        %v2575 = vpack.c.b16 %v2494, %v2493
        %v2576 = vpack.c.b16 %v2496, %v2495
        %v2577 = vpack.c.b16 %v2498, %v2497
        %v2578 = vpack.c.b16 %v2500, %v2499
        %v2579 = vpack.c.b16 %v2502, %v2501
        %v2580 = vpack.c.b16 %v2504, %v2503
        %v2581 = vpack.c.b16 %v2506, %v2505
        %v2582 = vpack.c.b16 %v2508, %v2507
        %v2583 = vpack.c.b16 %v2510, %v2509
        %v2584 = vpack.c.b16 %v2512, %v2511
        %v2585 = vpack.c.b16 %v2514, %v2513
        %v2586 = vpack.c.b16 %v2516, %v2515
        %v2587 = vpack.c.b16 %v2518, %v2517
        %v2588 = vpack.c.b16 %v2520, %v2519
        %v2589 = vpack.c.b16 %v2522, %v2521
        %v2590 = vpack.c.b16 %v2524, %v2523
        %v2591 = vpack.c.b16 %v2526, %v2525
        %v2592 = vpack.c.b16 %v2528, %v2527
        %2593 = vrot.lane.b32.xlu0 %v2529, 4
        %v2594 = vpop.permute.xlu0 %2593
        %2595 = vrot.lane.b32.xlu0 %v2530, 4
        %v2596 = vpop.permute.xlu0 %2595
        %2597 = vrot.lane.b32.xlu0 %v2531, 4
        %v2598 = vpop.permute.xlu0 %2597
        %2599 = vrot.lane.b32.xlu0 %v2532, 4
        %v2600 = vpop.permute.xlu0 %2599
        %2601 = vrot.lane.b32.xlu0 %v2533, 4
        %v2602 = vpop.permute.xlu0 %2601
        %2603 = vrot.lane.b32.xlu0 %v2534, 4
        %v2604 = vpop.permute.xlu0 %2603
        %2605 = vrot.lane.b32.xlu0 %v2535, 4
        %v2606 = vpop.permute.xlu0 %2605
        %2607 = vrot.lane.b32.xlu0 %v2536, 4
        %v2608 = vpop.permute.xlu0 %2607
        %2609 = vrot.lane.b32.xlu0 %v2537, 4
        %v2610 = vpop.permute.xlu0 %2609
        %2611 = vrot.lane.b32.xlu0 %v2538, 4
        %v2612 = vpop.permute.xlu0 %2611
        %2613 = vrot.lane.b32.xlu0 %v2539, 4
        %v2614 = vpop.permute.xlu0 %2613
        %2615 = vrot.lane.b32.xlu0 %v2540, 4
        %v2616 = vpop.permute.xlu0 %2615
        %2617 = vrot.lane.b32.xlu0 %v2541, 4
        %v2618 = vpop.permute.xlu0 %2617
        %2619 = vrot.lane.b32.xlu0 %v2542, 4
        %v2620 = vpop.permute.xlu0 %2619
        %2621 = vrot.lane.b32.xlu0 %v2543, 4
        %v2622 = vpop.permute.xlu0 %2621
        %2623 = vrot.lane.b32.xlu0 %v2544, 4
        %v2624 = vpop.permute.xlu0 %2623
        %2625 = vrot.lane.b32.xlu0 %v2545, 4
        %v2626 = vpop.permute.xlu0 %2625
        %2627 = vrot.lane.b32.xlu0 %v2546, 4
        %v2628 = vpop.permute.xlu0 %2627
        %2629 = vrot.lane.b32.xlu0 %v2547, 4
        %v2630 = vpop.permute.xlu0 %2629
        %2631 = vrot.lane.b32.xlu0 %v2548, 4
        %v2632 = vpop.permute.xlu0 %2631
        %2633 = vrot.lane.b32.xlu0 %v2549, 4
        %v2634 = vpop.permute.xlu0 %2633
        %2635 = vrot.lane.b32.xlu0 %v2550, 4
        %v2636 = vpop.permute.xlu0 %2635
        %2637 = vrot.lane.b32.xlu0 %v2551, 4
        %v2638 = vpop.permute.xlu0 %2637
        %2639 = vrot.lane.b32.xlu0 %v2552, 4
        %v2640 = vpop.permute.xlu0 %2639
        %2641 = vrot.lane.b32.xlu0 %v2553, 4
        %v2642 = vpop.permute.xlu0 %2641
        %2643 = vrot.lane.b32.xlu0 %v2554, 4
        %v2644 = vpop.permute.xlu0 %2643
        %2645 = vrot.lane.b32.xlu0 %v2555, 4
        %v2646 = vpop.permute.xlu0 %2645
        %2647 = vrot.lane.b32.xlu0 %v2556, 4
        %v2648 = vpop.permute.xlu0 %2647
        %2649 = vrot.lane.b32.xlu0 %v2557, 4
        %v2650 = vpop.permute.xlu0 %2649
        %2651 = vrot.lane.b32.xlu0 %v2558, 4
        %v2652 = vpop.permute.xlu0 %2651
        %2653 = vrot.lane.b32.xlu0 %v2559, 4
        %v2654 = vpop.permute.xlu0 %2653
        %2655 = vrot.lane.b32.xlu0 %v2560, 4
        %v2656 = vpop.permute.xlu0 %2655
        %2657 = vrot.lane.b32.xlu0 %v2561, 4
        %v2658 = vpop.permute.xlu0 %2657
        %2659 = vrot.lane.b32.xlu0 %v2562, 4
        %v2660 = vpop.permute.xlu0 %2659
        %2661 = vrot.lane.b32.xlu0 %v2563, 4
        %v2662 = vpop.permute.xlu0 %2661
        %2663 = vrot.lane.b32.xlu0 %v2564, 4
        %v2664 = vpop.permute.xlu0 %2663
        %2665 = vrot.lane.b32.xlu0 %v2565, 4
        %v2666 = vpop.permute.xlu0 %2665
        %2667 = vrot.lane.b32.xlu0 %v2566, 4
        %v2668 = vpop.permute.xlu0 %2667
        %2669 = vrot.lane.b32.xlu0 %v2567, 4
        %v2670 = vpop.permute.xlu0 %2669
        %2671 = vrot.lane.b32.xlu0 %v2568, 4
        %v2672 = vpop.permute.xlu0 %2671
        %2673 = vrot.lane.b32.xlu0 %v2569, 4
        %v2674 = vpop.permute.xlu0 %2673
        %2675 = vrot.lane.b32.xlu0 %v2570, 4
        %v2676 = vpop.permute.xlu0 %2675
        %2677 = vrot.lane.b32.xlu0 %v2571, 4
        %v2678 = vpop.permute.xlu0 %2677
        %2679 = vrot.lane.b32.xlu0 %v2572, 4
        %v2680 = vpop.permute.xlu0 %2679
        %2681 = vrot.lane.b32.xlu0 %v2573, 4
        %v2682 = vpop.permute.xlu0 %2681
        %2683 = vrot.lane.b32.xlu0 %v2574, 4
        %v2684 = vpop.permute.xlu0 %2683
        %2685 = vrot.lane.b32.xlu0 %v2575, 4
        %v2686 = vpop.permute.xlu0 %2685
        %2687 = vrot.lane.b32.xlu0 %v2576, 4
        %v2688 = vpop.permute.xlu0 %2687
        %2689 = vrot.lane.b32.xlu0 %v2577, 4
        %v2690 = vpop.permute.xlu0 %2689
        %2691 = vrot.lane.b32.xlu0 %v2578, 4
        %v2692 = vpop.permute.xlu0 %2691
        %2693 = vrot.lane.b32.xlu0 %v2579, 4
        %v2694 = vpop.permute.xlu0 %2693
        %2695 = vrot.lane.b32.xlu0 %v2580, 4
        %v2696 = vpop.permute.xlu0 %2695
        %2697 = vrot.lane.b32.xlu0 %v2581, 4
        %v2698 = vpop.permute.xlu0 %2697
        %2699 = vrot.lane.b32.xlu0 %v2582, 4
        %v2700 = vpop.permute.xlu0 %2699
        %2701 = vrot.lane.b32.xlu0 %v2583, 4
        %v2702 = vpop.permute.xlu0 %2701
        %2703 = vrot.lane.b32.xlu0 %v2584, 4
        %v2704 = vpop.permute.xlu0 %2703
        %2705 = vrot.lane.b32.xlu0 %v2585, 4
        %v2706 = vpop.permute.xlu0 %2705
        %2707 = vrot.lane.b32.xlu0 %v2586, 4
        %v2708 = vpop.permute.xlu0 %2707
        %2709 = vrot.lane.b32.xlu0 %v2587, 4
        %v2710 = vpop.permute.xlu0 %2709
        %2711 = vrot.lane.b32.xlu0 %v2588, 4
        %v2712 = vpop.permute.xlu0 %2711
        %2713 = vrot.lane.b32.xlu0 %v2589, 4
        %v2714 = vpop.permute.xlu0 %2713
        %2715 = vrot.lane.b32.xlu0 %v2590, 4
        %v2716 = vpop.permute.xlu0 %2715
        %2717 = vrot.lane.b32.xlu0 %v2591, 4
        %v2718 = vpop.permute.xlu0 %2717
        %2719 = vrot.lane.b32.xlu0 %v2592, 4
        %v2720 = vpop.permute.xlu0 %2719
        %vm2785 = vcmask 64544
        %2786 = vst.msk [vmem:[#allocation2] sm:$0xff] %vm2785, %v2594
        %2787 = vst.msk [vmem:[#allocation2 + $0x8] sm:$0xff] %vm2785, %v2596
        %2788 = vst.msk [vmem:[#allocation2 + $0x10] sm:$0xff] %vm2785, %v2598
        %2789 = vst.msk [vmem:[#allocation2 + $0x18] sm:$0xff] %vm2785, %v2600
        %2790 = vst.msk [vmem:[#allocation2 + $0x20] sm:$0xff] %vm2785, %v2602
        %2791 = vst.msk [vmem:[#allocation2 + $0x28] sm:$0xff] %vm2785, %v2604
        %2792 = vst.msk [vmem:[#allocation2 + $0x30] sm:$0xff] %vm2785, %v2606
        %2793 = vst.msk [vmem:[#allocation2 + $0x38] sm:$0xff] %vm2785, %v2608
        %2794 = vst.msk [vmem:[#allocation2 + $0x40] sm:$0xff] %vm2785, %v2610
        %2795 = vst.msk [vmem:[#allocation2 + $0x48] sm:$0xff] %vm2785, %v2612
        %2796 = vst.msk [vmem:[#allocation2 + $0x50] sm:$0xff] %vm2785, %v2614
        %2797 = vst.msk [vmem:[#allocation2 + $0x58] sm:$0xff] %vm2785, %v2616
        %2798 = vst.msk [vmem:[#allocation2 + $0x60] sm:$0xff] %vm2785, %v2618
        %2799 = vst.msk [vmem:[#allocation2 + $0x68] sm:$0xff] %vm2785, %v2620
        %2800 = vst.msk [vmem:[#allocation2 + $0x70] sm:$0xff] %vm2785, %v2622
        %2801 = vst.msk [vmem:[#allocation2 + $0x78] sm:$0xff] %vm2785, %v2624
        %2802 = vst.msk [vmem:[#allocation2 + $0x80] sm:$0xff] %vm2785, %v2626
        %2803 = vst.msk [vmem:[#allocation2 + $0x88] sm:$0xff] %vm2785, %v2628
        %2804 = vst.msk [vmem:[#allocation2 + $0x90] sm:$0xff] %vm2785, %v2630
        %2805 = vst.msk [vmem:[#allocation2 + $0x98] sm:$0xff] %vm2785, %v2632
        %2806 = vst.msk [vmem:[#allocation2 + $0xa0] sm:$0xff] %vm2785, %v2634
        %2807 = vst.msk [vmem:[#allocation2 + $0xa8] sm:$0xff] %vm2785, %v2636
        %2808 = vst.msk [vmem:[#allocation2 + $0xb0] sm:$0xff] %vm2785, %v2638
        %2809 = vst.msk [vmem:[#allocation2 + $0xb8] sm:$0xff] %vm2785, %v2640
        %2810 = vst.msk [vmem:[#allocation2 + $0xc0] sm:$0xff] %vm2785, %v2642
        %2811 = vst.msk [vmem:[#allocation2 + $0xc8] sm:$0xff] %vm2785, %v2644
        %2812 = vst.msk [vmem:[#allocation2 + $0xd0] sm:$0xff] %vm2785, %v2646
        %2813 = vst.msk [vmem:[#allocation2 + $0xd8] sm:$0xff] %vm2785, %v2648
        %2814 = vst.msk [vmem:[#allocation2 + $0xe0] sm:$0xff] %vm2785, %v2650
        %2815 = vst.msk [vmem:[#allocation2 + $0xe8] sm:$0xff] %vm2785, %v2652
        %2816 = vst.msk [vmem:[#allocation2 + $0xf0] sm:$0xff] %vm2785, %v2654
        %2817 = vst.msk [vmem:[#allocation2 + $0xf8] sm:$0xff] %vm2785, %v2656
        %2818 = vst.msk [vmem:[#allocation2 + $0x100] sm:$0xff] %vm2785, %v2658
        %2819 = vst.msk [vmem:[#allocation2 + $0x108] sm:$0xff] %vm2785, %v2660
        %2820 = vst.msk [vmem:[#allocation2 + $0x110] sm:$0xff] %vm2785, %v2662
        %2821 = vst.msk [vmem:[#allocation2 + $0x118] sm:$0xff] %vm2785, %v2664
        %2822 = vst.msk [vmem:[#allocation2 + $0x120] sm:$0xff] %vm2785, %v2666
        %2823 = vst.msk [vmem:[#allocation2 + $0x128] sm:$0xff] %vm2785, %v2668
        %2824 = vst.msk [vmem:[#allocation2 + $0x130] sm:$0xff] %vm2785, %v2670
        %2825 = vst.msk [vmem:[#allocation2 + $0x138] sm:$0xff] %vm2785, %v2672
        %2826 = vst.msk [vmem:[#allocation2 + $0x140] sm:$0xff] %vm2785, %v2674
        %2827 = vst.msk [vmem:[#allocation2 + $0x148] sm:$0xff] %vm2785, %v2676
        %2828 = vst.msk [vmem:[#allocation2 + $0x150] sm:$0xff] %vm2785, %v2678
        %2829 = vst.msk [vmem:[#allocation2 + $0x158] sm:$0xff] %vm2785, %v2680
        %2830 = vst.msk [vmem:[#allocation2 + $0x160] sm:$0xff] %vm2785, %v2682
        %2831 = vst.msk [vmem:[#allocation2 + $0x168] sm:$0xff] %vm2785, %v2684
        %2832 = vst.msk [vmem:[#allocation2 + $0x170] sm:$0xff] %vm2785, %v2686
        %2833 = vst.msk [vmem:[#allocation2 + $0x178] sm:$0xff] %vm2785, %v2688
        %2834 = vst.msk [vmem:[#allocation2 + $0x180] sm:$0xff] %vm2785, %v2690
        %2835 = vst.msk [vmem:[#allocation2 + $0x188] sm:$0xff] %vm2785, %v2692
        %2836 = vst.msk [vmem:[#allocation2 + $0x190] sm:$0xff] %vm2785, %v2694
        %2837 = vst.msk [vmem:[#allocation2 + $0x198] sm:$0xff] %vm2785, %v2696
        %2838 = vst.msk [vmem:[#allocation2 + $0x1a0] sm:$0xff] %vm2785, %v2698
        %2839 = vst.msk [vmem:[#allocation2 + $0x1a8] sm:$0xff] %vm2785, %v2700
        %2840 = vst.msk [vmem:[#allocation2 + $0x1b0] sm:$0xff] %vm2785, %v2702
        %2841 = vst.msk [vmem:[#allocation2 + $0x1b8] sm:$0xff] %vm2785, %v2704
        %2842 = vst.msk [vmem:[#allocation2 + $0x1c0] sm:$0xff] %vm2785, %v2706
        %2843 = vst.msk [vmem:[#allocation2 + $0x1c8] sm:$0xff] %vm2785, %v2708
        %2844 = vst.msk [vmem:[#allocation2 + $0x1d0] sm:$0xff] %vm2785, %v2710
        %2845 = vst.msk [vmem:[#allocation2 + $0x1d8] sm:$0xff] %vm2785, %v2712
        %2846 = vst.msk [vmem:[#allocation2 + $0x1e0] sm:$0xff] %vm2785, %v2714
        %2847 = vst.msk [vmem:[#allocation2 + $0x1e8] sm:$0xff] %vm2785, %v2716
        %2848 = vst.msk [vmem:[#allocation2 + $0x1f0] sm:$0xff] %vm2785, %v2718
        %2849 = vst.msk [vmem:[#allocation2 + $0x1f8] sm:$0xff] %vm2785, %v2720
        %v2850 = vld [vmem:[%s252] sm:$0xe]
        %v2851 = vld [vmem:[%s252 + $0x4] sm:$0xf]
        %v2852 = vld [vmem:[%s252 + $0x8] sm:$0xf]
        %v2853 = vld [vmem:[%s252 + $0xc] sm:$0xf]
        %v2854 = vld [vmem:[%s252 + $0x10] sm:$0x1]
        %v2855 = vld [vmem:[%s252 + $0x14] sm:$0xe]
        %v2856 = vld [vmem:[%s252 + $0x18] sm:$0xf]
        %v2857 = vld [vmem:[%s252 + $0x1c] sm:$0xf]
        %v2858 = vld [vmem:[%s252 + $0x20] sm:$0xf]
        %v2859 = vld [vmem:[%s252 + $0x24] sm:$0x1]
        %v2860 = vld [vmem:[%s252 + $0x28] sm:$0xe]
        %v2861 = vld [vmem:[%s252 + $0x2c] sm:$0xf]
        %v2862 = vld [vmem:[%s252 + $0x30] sm:$0xf]
        %v2863 = vld [vmem:[%s252 + $0x34] sm:$0xf]
        %v2864 = vld [vmem:[%s252 + $0x38] sm:$0x1]
        %v2865 = vld [vmem:[%s252 + $0x3c] sm:$0xe]
        %v2866 = vld [vmem:[%s252 + $0x40] sm:$0xf]
        %v2867 = vld [vmem:[%s252 + $0x44] sm:$0xf]
        %v2868 = vld [vmem:[%s252 + $0x48] sm:$0xf]
        %v2869 = vld [vmem:[%s252 + $0x4c] sm:$0x1]
        %v2870 = vld [vmem:[%s252 + $0x50] sm:$0xe]
        %v2871 = vld [vmem:[%s252 + $0x54] sm:$0xf]
        %v2872 = vld [vmem:[%s252 + $0x58] sm:$0xf]
        %v2873 = vld [vmem:[%s252 + $0x5c] sm:$0xf]
        %v2874 = vld [vmem:[%s252 + $0x60] sm:$0x1]
        %v2875 = vld [vmem:[%s252 + $0x64] sm:$0xe]
        %v2876 = vld [vmem:[%s252 + $0x68] sm:$0xf]
        %v2877 = vld [vmem:[%s252 + $0x6c] sm:$0xf]
        %v2878 = vld [vmem:[%s252 + $0x70] sm:$0xf]
        %v2879 = vld [vmem:[%s252 + $0x74] sm:$0x1]
        %v2880 = vld [vmem:[%s252 + $0x78] sm:$0xe]
        %v2881 = vld [vmem:[%s252 + $0x7c] sm:$0xf]
        %v2882 = vld [vmem:[%s252 + $0x80] sm:$0xf]
        %v2883 = vld [vmem:[%s252 + $0x84] sm:$0xf]
        %v2884 = vld [vmem:[%s252 + $0x88] sm:$0x1]
        %v2885 = vld [vmem:[%s252 + $0x8c] sm:$0xe]
        %v2886 = vld [vmem:[%s252 + $0x90] sm:$0xf]
        %v2887 = vld [vmem:[%s252 + $0x94] sm:$0xf]
        %v2888 = vld [vmem:[%s252 + $0x98] sm:$0xf]
        %v2889 = vld [vmem:[%s252 + $0x9c] sm:$0x1]
        %v2890 = vld [vmem:[%s252 + $0xa0] sm:$0xe]
        %v2891 = vld [vmem:[%s252 + $0xa4] sm:$0xf]
        %v2892 = vld [vmem:[%s252 + $0xa8] sm:$0xf]
        %v2893 = vld [vmem:[%s252 + $0xac] sm:$0xf]
        %v2894 = vld [vmem:[%s252 + $0xb0] sm:$0x1]
        %v2895 = vld [vmem:[%s252 + $0xb4] sm:$0xe]
        %v2896 = vld [vmem:[%s252 + $0xb8] sm:$0xf]
        %v2897 = vld [vmem:[%s252 + $0xbc] sm:$0xf]
        %v2898 = vld [vmem:[%s252 + $0xc0] sm:$0xf]
        %v2899 = vld [vmem:[%s252 + $0xc4] sm:$0x1]
        %v2900 = vld [vmem:[%s252 + $0xc8] sm:$0xe]
        %v2901 = vld [vmem:[%s252 + $0xcc] sm:$0xf]
        %v2902 = vld [vmem:[%s252 + $0xd0] sm:$0xf]
        %v2903 = vld [vmem:[%s252 + $0xd4] sm:$0xf]
        %v2904 = vld [vmem:[%s252 + $0xd8] sm:$0x1]
        %v2905 = vld [vmem:[%s252 + $0xdc] sm:$0xe]
        %v2906 = vld [vmem:[%s252 + $0xe0] sm:$0xf]
        %v2907 = vld [vmem:[%s252 + $0xe4] sm:$0xf]
        %v2908 = vld [vmem:[%s252 + $0xe8] sm:$0xf]
        %v2909 = vld [vmem:[%s252 + $0xec] sm:$0x1]
        %v2910 = vld [vmem:[%s252 + $0xf0] sm:$0xe]
        %v2911 = vld [vmem:[%s252 + $0xf4] sm:$0xf]
        %v2912 = vld [vmem:[%s252 + $0xf8] sm:$0xf]
        %v2913 = vld [vmem:[%s252 + $0xfc] sm:$0xf]
        %v2914 = vld [vmem:[%s252 + $0x100] sm:$0x1]
        %v2915 = vld [vmem:[%s252 + $0x104] sm:$0xe]
        %v2916 = vld [vmem:[%s252 + $0x108] sm:$0xf]
        %v2917 = vld [vmem:[%s252 + $0x10c] sm:$0xf]
        %v2918 = vld [vmem:[%s252 + $0x110] sm:$0xf]
        %v2919 = vld [vmem:[%s252 + $0x114] sm:$0x1]
        %v2920 = vld [vmem:[%s252 + $0x118] sm:$0xe]
        %v2921 = vld [vmem:[%s252 + $0x11c] sm:$0xf]
        %v2922 = vld [vmem:[%s252 + $0x120] sm:$0xf]
        %v2923 = vld [vmem:[%s252 + $0x124] sm:$0xf]
        %v2924 = vld [vmem:[%s252 + $0x128] sm:$0x1]
        %v2925 = vld [vmem:[%s252 + $0x12c] sm:$0xe]
        %v2926 = vld [vmem:[%s252 + $0x130] sm:$0xf]
        %v2927 = vld [vmem:[%s252 + $0x134] sm:$0xf]
        %v2928 = vld [vmem:[%s252 + $0x138] sm:$0xf]
        %v2929 = vld [vmem:[%s252 + $0x13c] sm:$0x1]
        %v2930 = vld [vmem:[%s252 + $0x140] sm:$0xe]
        %v2931 = vld [vmem:[%s252 + $0x144] sm:$0xf]
        %v2932 = vld [vmem:[%s252 + $0x148] sm:$0xf]
        %v2933 = vld [vmem:[%s252 + $0x14c] sm:$0xf]
        %v2934 = vld [vmem:[%s252 + $0x150] sm:$0x1]
        %v2935 = vld [vmem:[%s252 + $0x154] sm:$0xe]
        %v2936 = vld [vmem:[%s252 + $0x158] sm:$0xf]
        %v2937 = vld [vmem:[%s252 + $0x15c] sm:$0xf]
        %v2938 = vld [vmem:[%s252 + $0x160] sm:$0xf]
        %v2939 = vld [vmem:[%s252 + $0x164] sm:$0x1]
        %v2940 = vld [vmem:[%s252 + $0x168] sm:$0xe]
        %v2941 = vld [vmem:[%s252 + $0x16c] sm:$0xf]
        %v2942 = vld [vmem:[%s252 + $0x170] sm:$0xf]
        %v2943 = vld [vmem:[%s252 + $0x174] sm:$0xf]
        %v2944 = vld [vmem:[%s252 + $0x178] sm:$0x1]
        %v2945 = vld [vmem:[%s252 + $0x17c] sm:$0xe]
        %v2946 = vld [vmem:[%s252 + $0x180] sm:$0xf]
        %v2947 = vld [vmem:[%s252 + $0x184] sm:$0xf]
        %v2948 = vld [vmem:[%s252 + $0x188] sm:$0xf]
        %v2949 = vld [vmem:[%s252 + $0x18c] sm:$0x1]
        %v2950 = vld [vmem:[%s252 + $0x190] sm:$0xe]
        %v2951 = vld [vmem:[%s252 + $0x194] sm:$0xf]
        %v2952 = vld [vmem:[%s252 + $0x198] sm:$0xf]
        %v2953 = vld [vmem:[%s252 + $0x19c] sm:$0xf]
        %v2954 = vld [vmem:[%s252 + $0x1a0] sm:$0x1]
        %v2955 = vld [vmem:[%s252 + $0x1a4] sm:$0xe]
        %v2956 = vld [vmem:[%s252 + $0x1a8] sm:$0xf]
        %v2957 = vld [vmem:[%s252 + $0x1ac] sm:$0xf]
        %v2958 = vld [vmem:[%s252 + $0x1b0] sm:$0xf]
        %v2959 = vld [vmem:[%s252 + $0x1b4] sm:$0x1]
        %v2960 = vld [vmem:[%s252 + $0x1b8] sm:$0xe]
        %v2961 = vld [vmem:[%s252 + $0x1bc] sm:$0xf]
        %v2962 = vld [vmem:[%s252 + $0x1c0] sm:$0xf]
        %v2963 = vld [vmem:[%s252 + $0x1c4] sm:$0xf]
        %v2964 = vld [vmem:[%s252 + $0x1c8] sm:$0x1]
        %v2965 = vld [vmem:[%s252 + $0x1cc] sm:$0xe]
        %v2966 = vld [vmem:[%s252 + $0x1d0] sm:$0xf]
        %v2967 = vld [vmem:[%s252 + $0x1d4] sm:$0xf]
        %v2968 = vld [vmem:[%s252 + $0x1d8] sm:$0xf]
        %v2969 = vld [vmem:[%s252 + $0x1dc] sm:$0x1]
        %v2970 = vld [vmem:[%s252 + $0x1e0] sm:$0xe]
        %v2971 = vld [vmem:[%s252 + $0x1e4] sm:$0xf]
        %v2972 = vld [vmem:[%s252 + $0x1e8] sm:$0xf]
        %v2973 = vld [vmem:[%s252 + $0x1ec] sm:$0xf]
        %v2974 = vld [vmem:[%s252 + $0x1f0] sm:$0x1]
        %v2975 = vld [vmem:[%s252 + $0x1f4] sm:$0xe]
        %v2976 = vld [vmem:[%s252 + $0x1f8] sm:$0xf]
        %v2977 = vld [vmem:[%s252 + $0x1fc] sm:$0xf]
        %v2978 = vld [vmem:[%s252 + $0x200] sm:$0xf]
        %v2979 = vld [vmem:[%s252 + $0x204] sm:$0x1]
        %v2980 = vld [vmem:[%s252 + $0x208] sm:$0xe]
        %v2981 = vld [vmem:[%s252 + $0x20c] sm:$0xf]
        %v2982 = vld [vmem:[%s252 + $0x210] sm:$0xf]
        %v2983 = vld [vmem:[%s252 + $0x214] sm:$0xf]
        %v2984 = vld [vmem:[%s252 + $0x218] sm:$0x1]
        %v2985 = vld [vmem:[%s252 + $0x21c] sm:$0xe]
        %v2986 = vld [vmem:[%s252 + $0x220] sm:$0xf]
        %v2987 = vld [vmem:[%s252 + $0x224] sm:$0xf]
        %v2988 = vld [vmem:[%s252 + $0x228] sm:$0xf]
        %v2989 = vld [vmem:[%s252 + $0x22c] sm:$0x1]
        %v2990 = vld [vmem:[%s252 + $0x230] sm:$0xe]
        %v2991 = vld [vmem:[%s252 + $0x234] sm:$0xf]
        %v2992 = vld [vmem:[%s252 + $0x238] sm:$0xf]
        %v2993 = vld [vmem:[%s252 + $0x23c] sm:$0xf]
        %v2994 = vld [vmem:[%s252 + $0x240] sm:$0x1]
        %v2995 = vld [vmem:[%s252 + $0x244] sm:$0xe]
        %v2996 = vld [vmem:[%s252 + $0x248] sm:$0xf]
        %v2997 = vld [vmem:[%s252 + $0x24c] sm:$0xf]
        %v2998 = vld [vmem:[%s252 + $0x250] sm:$0xf]
        %v2999 = vld [vmem:[%s252 + $0x254] sm:$0x1]
        %v3000 = vld [vmem:[%s252 + $0x258] sm:$0xe]
        %v3001 = vld [vmem:[%s252 + $0x25c] sm:$0xf]
        %v3002 = vld [vmem:[%s252 + $0x260] sm:$0xf]
        %v3003 = vld [vmem:[%s252 + $0x264] sm:$0xf]
        %v3004 = vld [vmem:[%s252 + $0x268] sm:$0x1]
        %v3005 = vld [vmem:[%s252 + $0x26c] sm:$0xe]
        %v3006 = vld [vmem:[%s252 + $0x270] sm:$0xf]
        %v3007 = vld [vmem:[%s252 + $0x274] sm:$0xf]
        %v3008 = vld [vmem:[%s252 + $0x278] sm:$0xf]
        %v3009 = vld [vmem:[%s252 + $0x27c] sm:$0x1]
        %vm3170 = vcmask 1042432
        %vm3171 = vcmask 1046532
        %vm3172 = vmor %vm3170, %vm3171
        %v3173 = vrot.slane %v2850, 5
        %v3174 = vrot.slane %v3173, 4
        %v3175 = vrot.slane %v2851, 5
        %v3176 = vsel %vm3172, %v3174, %v3175
        %v3177 = vrot.slane %v3175, 4
        %v3178 = vrot.slane %v2852, 5
        %v3179 = vsel %vm3172, %v3177, %v3178
        %v3180 = vrot.slane %v3178, 4
        %v3181 = vrot.slane %v2853, 5
        %v3182 = vsel %vm3172, %v3180, %v3181
        %v3183 = vrot.slane %v3181, 4
        %v3184 = vrot.slane %v2854, 5
        %v3185 = vsel %vm3172, %v3183, %v3184
        %v3186 = vrot.slane %v2855, 5
        %v3187 = vrot.slane %v3186, 4
        %v3188 = vrot.slane %v2856, 5
        %v3189 = vsel %vm3172, %v3187, %v3188
        %v3190 = vrot.slane %v3188, 4
        %v3191 = vrot.slane %v2857, 5
        %v3192 = vsel %vm3172, %v3190, %v3191
        %v3193 = vrot.slane %v3191, 4
        %v3194 = vrot.slane %v2858, 5
        %v3195 = vsel %vm3172, %v3193, %v3194
        %v3196 = vrot.slane %v3194, 4
        %v3197 = vrot.slane %v2859, 5
        %v3198 = vsel %vm3172, %v3196, %v3197
        %v3199 = vrot.slane %v2860, 5
        %v3200 = vrot.slane %v3199, 4
        %v3201 = vrot.slane %v2861, 5
        %v3202 = vsel %vm3172, %v3200, %v3201
        %v3203 = vrot.slane %v3201, 4
        %v3204 = vrot.slane %v2862, 5
        %v3205 = vsel %vm3172, %v3203, %v3204
        %v3206 = vrot.slane %v3204, 4
        %v3207 = vrot.slane %v2863, 5
        %v3208 = vsel %vm3172, %v3206, %v3207
        %v3209 = vrot.slane %v3207, 4
        %v3210 = vrot.slane %v2864, 5
        %v3211 = vsel %vm3172, %v3209, %v3210
        %v3212 = vrot.slane %v2865, 5
        %v3213 = vrot.slane %v3212, 4
        %v3214 = vrot.slane %v2866, 5
        %v3215 = vsel %vm3172, %v3213, %v3214
        %v3216 = vrot.slane %v3214, 4
        %v3217 = vrot.slane %v2867, 5
        %v3218 = vsel %vm3172, %v3216, %v3217
        %v3219 = vrot.slane %v3217, 4
        %v3220 = vrot.slane %v2868, 5
        %v3221 = vsel %vm3172, %v3219, %v3220
        %v3222 = vrot.slane %v3220, 4
        %v3223 = vrot.slane %v2869, 5
        %v3224 = vsel %vm3172, %v3222, %v3223
        %v3225 = vrot.slane %v2870, 5
        %v3226 = vrot.slane %v3225, 4
        %v3227 = vrot.slane %v2871, 5
        %v3228 = vsel %vm3172, %v3226, %v3227
        %v3229 = vrot.slane %v3227, 4
        %v3230 = vrot.slane %v2872, 5
        %v3231 = vsel %vm3172, %v3229, %v3230
        %v3232 = vrot.slane %v3230, 4
        %v3233 = vrot.slane %v2873, 5
        %v3234 = vsel %vm3172, %v3232, %v3233
        %v3235 = vrot.slane %v3233, 4
        %v3236 = vrot.slane %v2874, 5
        %v3237 = vsel %vm3172, %v3235, %v3236
        %v3238 = vrot.slane %v2875, 5
        %v3239 = vrot.slane %v3238, 4
        %v3240 = vrot.slane %v2876, 5
        %v3241 = vsel %vm3172, %v3239, %v3240
        %v3242 = vrot.slane %v3240, 4
        %v3243 = vrot.slane %v2877, 5
        %v3244 = vsel %vm3172, %v3242, %v3243
        %v3245 = vrot.slane %v3243, 4
        %v3246 = vrot.slane %v2878, 5
        %v3247 = vsel %vm3172, %v3245, %v3246
        %v3248 = vrot.slane %v3246, 4
        %v3249 = vrot.slane %v2879, 5
        %v3250 = vsel %vm3172, %v3248, %v3249
        %v3251 = vrot.slane %v2880, 5
        %v3252 = vrot.slane %v3251, 4
        %v3253 = vrot.slane %v2881, 5
        %v3254 = vsel %vm3172, %v3252, %v3253
        %v3255 = vrot.slane %v3253, 4
        %v3256 = vrot.slane %v2882, 5
        %v3257 = vsel %vm3172, %v3255, %v3256
        %v3258 = vrot.slane %v3256, 4
        %v3259 = vrot.slane %v2883, 5
        %v3260 = vsel %vm3172, %v3258, %v3259
        %v3261 = vrot.slane %v3259, 4
        %v3262 = vrot.slane %v2884, 5
        %v3263 = vsel %vm3172, %v3261, %v3262
        %v3264 = vrot.slane %v2885, 5
        %v3265 = vrot.slane %v3264, 4
        %v3266 = vrot.slane %v2886, 5
        %v3267 = vsel %vm3172, %v3265, %v3266
        %v3268 = vrot.slane %v3266, 4
        %v3269 = vrot.slane %v2887, 5
        %v3270 = vsel %vm3172, %v3268, %v3269
        %v3271 = vrot.slane %v3269, 4
        %v3272 = vrot.slane %v2888, 5
        %v3273 = vsel %vm3172, %v3271, %v3272
        %v3274 = vrot.slane %v3272, 4
        %v3275 = vrot.slane %v2889, 5
        %v3276 = vsel %vm3172, %v3274, %v3275
        %v3277 = vrot.slane %v2890, 5
        %v3278 = vrot.slane %v3277, 4
        %v3279 = vrot.slane %v2891, 5
        %v3280 = vsel %vm3172, %v3278, %v3279
        %v3281 = vrot.slane %v3279, 4
        %v3282 = vrot.slane %v2892, 5
        %v3283 = vsel %vm3172, %v3281, %v3282
        %v3284 = vrot.slane %v3282, 4
        %v3285 = vrot.slane %v2893, 5
        %v3286 = vsel %vm3172, %v3284, %v3285
        %v3287 = vrot.slane %v3285, 4
        %v3288 = vrot.slane %v2894, 5
        %v3289 = vsel %vm3172, %v3287, %v3288
        %v3290 = vrot.slane %v2895, 5
        %v3291 = vrot.slane %v3290, 4
        %v3292 = vrot.slane %v2896, 5
        %v3293 = vsel %vm3172, %v3291, %v3292
        %v3294 = vrot.slane %v3292, 4
        %v3295 = vrot.slane %v2897, 5
        %v3296 = vsel %vm3172, %v3294, %v3295
        %v3297 = vrot.slane %v3295, 4
        %v3298 = vrot.slane %v2898, 5
        %v3299 = vsel %vm3172, %v3297, %v3298
        %v3300 = vrot.slane %v3298, 4
        %v3301 = vrot.slane %v2899, 5
        %v3302 = vsel %vm3172, %v3300, %v3301
        %v3303 = vrot.slane %v2900, 5
        %v3304 = vrot.slane %v3303, 4
        %v3305 = vrot.slane %v2901, 5
        %v3306 = vsel %vm3172, %v3304, %v3305
        %v3307 = vrot.slane %v3305, 4
        %v3308 = vrot.slane %v2902, 5
        %v3309 = vsel %vm3172, %v3307, %v3308
        %v3310 = vrot.slane %v3308, 4
        %v3311 = vrot.slane %v2903, 5
        %v3312 = vsel %vm3172, %v3310, %v3311
        %v3313 = vrot.slane %v3311, 4
        %v3314 = vrot.slane %v2904, 5
        %v3315 = vsel %vm3172, %v3313, %v3314
        %v3316 = vrot.slane %v2905, 5
        %v3317 = vrot.slane %v3316, 4
        %v3318 = vrot.slane %v2906, 5
        %v3319 = vsel %vm3172, %v3317, %v3318
        %v3320 = vrot.slane %v3318, 4
        %v3321 = vrot.slane %v2907, 5
        %v3322 = vsel %vm3172, %v3320, %v3321
        %v3323 = vrot.slane %v3321, 4
        %v3324 = vrot.slane %v2908, 5
        %v3325 = vsel %vm3172, %v3323, %v3324
        %v3326 = vrot.slane %v3324, 4
        %v3327 = vrot.slane %v2909, 5
        %v3328 = vsel %vm3172, %v3326, %v3327
        %v3329 = vrot.slane %v2910, 5
        %v3330 = vrot.slane %v3329, 4
        %v3331 = vrot.slane %v2911, 5
        %v3332 = vsel %vm3172, %v3330, %v3331
        %v3333 = vrot.slane %v3331, 4
        %v3334 = vrot.slane %v2912, 5
        %v3335 = vsel %vm3172, %v3333, %v3334
        %v3336 = vrot.slane %v3334, 4
        %v3337 = vrot.slane %v2913, 5
        %v3338 = vsel %vm3172, %v3336, %v3337
        %v3339 = vrot.slane %v3337, 4
        %v3340 = vrot.slane %v2914, 5
        %v3341 = vsel %vm3172, %v3339, %v3340
        %v3342 = vrot.slane %v2915, 5
        %v3343 = vrot.slane %v3342, 4
        %v3344 = vrot.slane %v2916, 5
        %v3345 = vsel %vm3172, %v3343, %v3344
        %v3346 = vrot.slane %v3344, 4
        %v3347 = vrot.slane %v2917, 5
        %v3348 = vsel %vm3172, %v3346, %v3347
        %v3349 = vrot.slane %v3347, 4
        %v3350 = vrot.slane %v2918, 5
        %v3351 = vsel %vm3172, %v3349, %v3350
        %v3352 = vrot.slane %v3350, 4
        %v3353 = vrot.slane %v2919, 5
        %v3354 = vsel %vm3172, %v3352, %v3353
        %v3355 = vrot.slane %v2920, 5
        %v3356 = vrot.slane %v3355, 4
        %v3357 = vrot.slane %v2921, 5
        %v3358 = vsel %vm3172, %v3356, %v3357
        %v3359 = vrot.slane %v3357, 4
        %v3360 = vrot.slane %v2922, 5
        %v3361 = vsel %vm3172, %v3359, %v3360
        %v3362 = vrot.slane %v3360, 4
        %v3363 = vrot.slane %v2923, 5
        %v3364 = vsel %vm3172, %v3362, %v3363
        %v3365 = vrot.slane %v3363, 4
        %v3366 = vrot.slane %v2924, 5
        %v3367 = vsel %vm3172, %v3365, %v3366
        %v3368 = vrot.slane %v2925, 5
        %v3369 = vrot.slane %v3368, 4
        %v3370 = vrot.slane %v2926, 5
        %v3371 = vsel %vm3172, %v3369, %v3370
        %v3372 = vrot.slane %v3370, 4
        %v3373 = vrot.slane %v2927, 5
        %v3374 = vsel %vm3172, %v3372, %v3373
        %v3375 = vrot.slane %v3373, 4
        %v3376 = vrot.slane %v2928, 5
        %v3377 = vsel %vm3172, %v3375, %v3376
        %v3378 = vrot.slane %v3376, 4
        %v3379 = vrot.slane %v2929, 5
        %v3380 = vsel %vm3172, %v3378, %v3379
        %v3381 = vrot.slane %v2930, 5
        %v3382 = vrot.slane %v3381, 4
        %v3383 = vrot.slane %v2931, 5
        %v3384 = vsel %vm3172, %v3382, %v3383
        %v3385 = vrot.slane %v3383, 4
        %v3386 = vrot.slane %v2932, 5
        %v3387 = vsel %vm3172, %v3385, %v3386
        %v3388 = vrot.slane %v3386, 4
        %v3389 = vrot.slane %v2933, 5
        %v3390 = vsel %vm3172, %v3388, %v3389
        %v3391 = vrot.slane %v3389, 4
        %v3392 = vrot.slane %v2934, 5
        %v3393 = vsel %vm3172, %v3391, %v3392
        %v3394 = vrot.slane %v2935, 5
        %v3395 = vrot.slane %v3394, 4
        %v3396 = vrot.slane %v2936, 5
        %v3397 = vsel %vm3172, %v3395, %v3396
        %v3398 = vrot.slane %v3396, 4
        %v3399 = vrot.slane %v2937, 5
        %v3400 = vsel %vm3172, %v3398, %v3399
        %v3401 = vrot.slane %v3399, 4
        %v3402 = vrot.slane %v2938, 5
        %v3403 = vsel %vm3172, %v3401, %v3402
        %v3404 = vrot.slane %v3402, 4
        %v3405 = vrot.slane %v2939, 5
        %v3406 = vsel %vm3172, %v3404, %v3405
        %v3407 = vrot.slane %v2940, 5
        %v3408 = vrot.slane %v3407, 4
        %v3409 = vrot.slane %v2941, 5
        %v3410 = vsel %vm3172, %v3408, %v3409
        %v3411 = vrot.slane %v3409, 4
        %v3412 = vrot.slane %v2942, 5
        %v3413 = vsel %vm3172, %v3411, %v3412
        %v3414 = vrot.slane %v3412, 4
        %v3415 = vrot.slane %v2943, 5
        %v3416 = vsel %vm3172, %v3414, %v3415
        %v3417 = vrot.slane %v3415, 4
        %v3418 = vrot.slane %v2944, 5
        %v3419 = vsel %vm3172, %v3417, %v3418
        %v3420 = vrot.slane %v2945, 5
        %v3421 = vrot.slane %v3420, 4
        %v3422 = vrot.slane %v2946, 5
        %v3423 = vsel %vm3172, %v3421, %v3422
        %v3424 = vrot.slane %v3422, 4
        %v3425 = vrot.slane %v2947, 5
        %v3426 = vsel %vm3172, %v3424, %v3425
        %v3427 = vrot.slane %v3425, 4
        %v3428 = vrot.slane %v2948, 5
        %v3429 = vsel %vm3172, %v3427, %v3428
        %v3430 = vrot.slane %v3428, 4
        %v3431 = vrot.slane %v2949, 5
        %v3432 = vsel %vm3172, %v3430, %v3431
        %v3433 = vrot.slane %v2950, 5
        %v3434 = vrot.slane %v3433, 4
        %v3435 = vrot.slane %v2951, 5
        %v3436 = vsel %vm3172, %v3434, %v3435
        %v3437 = vrot.slane %v3435, 4
        %v3438 = vrot.slane %v2952, 5
        %v3439 = vsel %vm3172, %v3437, %v3438
        %v3440 = vrot.slane %v3438, 4
        %v3441 = vrot.slane %v2953, 5
        %v3442 = vsel %vm3172, %v3440, %v3441
        %v3443 = vrot.slane %v3441, 4
        %v3444 = vrot.slane %v2954, 5
        %v3445 = vsel %vm3172, %v3443, %v3444
        %v3446 = vrot.slane %v2955, 5
        %v3447 = vrot.slane %v3446, 4
        %v3448 = vrot.slane %v2956, 5
        %v3449 = vsel %vm3172, %v3447, %v3448
        %v3450 = vrot.slane %v3448, 4
        %v3451 = vrot.slane %v2957, 5
        %v3452 = vsel %vm3172, %v3450, %v3451
        %v3453 = vrot.slane %v3451, 4
        %v3454 = vrot.slane %v2958, 5
        %v3455 = vsel %vm3172, %v3453, %v3454
        %v3456 = vrot.slane %v3454, 4
        %v3457 = vrot.slane %v2959, 5
        %v3458 = vsel %vm3172, %v3456, %v3457
        %v3459 = vrot.slane %v2960, 5
        %v3460 = vrot.slane %v3459, 4
        %v3461 = vrot.slane %v2961, 5
        %v3462 = vsel %vm3172, %v3460, %v3461
        %v3463 = vrot.slane %v3461, 4
        %v3464 = vrot.slane %v2962, 5
        %v3465 = vsel %vm3172, %v3463, %v3464
        %v3466 = vrot.slane %v3464, 4
        %v3467 = vrot.slane %v2963, 5
        %v3468 = vsel %vm3172, %v3466, %v3467
        %v3469 = vrot.slane %v3467, 4
        %v3470 = vrot.slane %v2964, 5
        %v3471 = vsel %vm3172, %v3469, %v3470
        %v3472 = vrot.slane %v2965, 5
        %v3473 = vrot.slane %v3472, 4
        %v3474 = vrot.slane %v2966, 5
        %v3475 = vsel %vm3172, %v3473, %v3474
        %v3476 = vrot.slane %v3474, 4
        %v3477 = vrot.slane %v2967, 5
        %v3478 = vsel %vm3172, %v3476, %v3477
        %v3479 = vrot.slane %v3477, 4
        %v3480 = vrot.slane %v2968, 5
        %v3481 = vsel %vm3172, %v3479, %v3480
        %v3482 = vrot.slane %v3480, 4
        %v3483 = vrot.slane %v2969, 5
        %v3484 = vsel %vm3172, %v3482, %v3483
        %v3485 = vrot.slane %v2970, 5
        %v3486 = vrot.slane %v3485, 4
        %v3487 = vrot.slane %v2971, 5
        %v3488 = vsel %vm3172, %v3486, %v3487
        %v3489 = vrot.slane %v3487, 4
        %v3490 = vrot.slane %v2972, 5
        %v3491 = vsel %vm3172, %v3489, %v3490
        %v3492 = vrot.slane %v3490, 4
        %v3493 = vrot.slane %v2973, 5
        %v3494 = vsel %vm3172, %v3492, %v3493
        %v3495 = vrot.slane %v3493, 4
        %v3496 = vrot.slane %v2974, 5
        %v3497 = vsel %vm3172, %v3495, %v3496
        %v3498 = vrot.slane %v2975, 5
        %v3499 = vrot.slane %v3498, 4
        %v3500 = vrot.slane %v2976, 5
        %v3501 = vsel %vm3172, %v3499, %v3500
        %v3502 = vrot.slane %v3500, 4
        %v3503 = vrot.slane %v2977, 5
        %v3504 = vsel %vm3172, %v3502, %v3503
        %v3505 = vrot.slane %v3503, 4
        %v3506 = vrot.slane %v2978, 5
        %v3507 = vsel %vm3172, %v3505, %v3506
        %v3508 = vrot.slane %v3506, 4
        %v3509 = vrot.slane %v2979, 5
        %v3510 = vsel %vm3172, %v3508, %v3509
        %v3511 = vrot.slane %v2980, 5
        %v3512 = vrot.slane %v3511, 4
        %v3513 = vrot.slane %v2981, 5
        %v3514 = vsel %vm3172, %v3512, %v3513
        %v3515 = vrot.slane %v3513, 4
        %v3516 = vrot.slane %v2982, 5
        %v3517 = vsel %vm3172, %v3515, %v3516
        %v3518 = vrot.slane %v3516, 4
        %v3519 = vrot.slane %v2983, 5
        %v3520 = vsel %vm3172, %v3518, %v3519
        %v3521 = vrot.slane %v3519, 4
        %v3522 = vrot.slane %v2984, 5
        %v3523 = vsel %vm3172, %v3521, %v3522
        %v3524 = vrot.slane %v2985, 5
        %v3525 = vrot.slane %v3524, 4
        %v3526 = vrot.slane %v2986, 5
        %v3527 = vsel %vm3172, %v3525, %v3526
        %v3528 = vrot.slane %v3526, 4
        %v3529 = vrot.slane %v2987, 5
        %v3530 = vsel %vm3172, %v3528, %v3529
        %v3531 = vrot.slane %v3529, 4
        %v3532 = vrot.slane %v2988, 5
        %v3533 = vsel %vm3172, %v3531, %v3532
        %v3534 = vrot.slane %v3532, 4
        %v3535 = vrot.slane %v2989, 5
        %v3536 = vsel %vm3172, %v3534, %v3535
        %v3537 = vrot.slane %v2990, 5
        %v3538 = vrot.slane %v3537, 4
        %v3539 = vrot.slane %v2991, 5
        %v3540 = vsel %vm3172, %v3538, %v3539
        %v3541 = vrot.slane %v3539, 4
        %v3542 = vrot.slane %v2992, 5
        %v3543 = vsel %vm3172, %v3541, %v3542
        %v3544 = vrot.slane %v3542, 4
        %v3545 = vrot.slane %v2993, 5
        %v3546 = vsel %vm3172, %v3544, %v3545
        %v3547 = vrot.slane %v3545, 4
        %v3548 = vrot.slane %v2994, 5
        %v3549 = vsel %vm3172, %v3547, %v3548
        %v3550 = vrot.slane %v2995, 5
        %v3551 = vrot.slane %v3550, 4
        %v3552 = vrot.slane %v2996, 5
        %v3553 = vsel %vm3172, %v3551, %v3552
        %v3554 = vrot.slane %v3552, 4
        %v3555 = vrot.slane %v2997, 5
        %v3556 = vsel %vm3172, %v3554, %v3555
        %v3557 = vrot.slane %v3555, 4
        %v3558 = vrot.slane %v2998, 5
        %v3559 = vsel %vm3172, %v3557, %v3558
        %v3560 = vrot.slane %v3558, 4
        %v3561 = vrot.slane %v2999, 5
        %v3562 = vsel %vm3172, %v3560, %v3561
        %v3563 = vrot.slane %v3000, 5
        %v3564 = vrot.slane %v3563, 4
        %v3565 = vrot.slane %v3001, 5
        %v3566 = vsel %vm3172, %v3564, %v3565
        %v3567 = vrot.slane %v3565, 4
        %v3568 = vrot.slane %v3002, 5
        %v3569 = vsel %vm3172, %v3567, %v3568
        %v3570 = vrot.slane %v3568, 4
        %v3571 = vrot.slane %v3003, 5
        %v3572 = vsel %vm3172, %v3570, %v3571
        %v3573 = vrot.slane %v3571, 4
        %v3574 = vrot.slane %v3004, 5
        %v3575 = vsel %vm3172, %v3573, %v3574
        %v3576 = vrot.slane %v3005, 5
        %v3577 = vrot.slane %v3576, 4
        %v3578 = vrot.slane %v3006, 5
        %v3579 = vsel %vm3172, %v3577, %v3578
        %v3580 = vrot.slane %v3578, 4
        %v3581 = vrot.slane %v3007, 5
        %v3582 = vsel %vm3172, %v3580, %v3581
        %v3583 = vrot.slane %v3581, 4
        %v3584 = vrot.slane %v3008, 5
        %v3585 = vsel %vm3172, %v3583, %v3584
        %v3586 = vrot.slane %v3584, 4
        %v3587 = vrot.slane %v3009, 5
        %v3588 = vsel %vm3172, %v3586, %v3587
        %v3589 = vunpack.c.l.b16 %v3176
        %v3590 = vunpack.c.l.b16 %v3179
        %v3591 = vunpack.c.l.b16 %v3182
        %v3592 = vunpack.c.l.b16 %v3185
        %v3593 = vunpack.c.l.b16 %v3189
        %v3594 = vunpack.c.l.b16 %v3192
        %v3595 = vunpack.c.l.b16 %v3195
        %v3596 = vunpack.c.l.b16 %v3198
        %v3597 = vunpack.c.l.b16 %v3202
        %v3598 = vunpack.c.l.b16 %v3205
        %v3599 = vunpack.c.l.b16 %v3208
        %v3600 = vunpack.c.l.b16 %v3211
        %v3601 = vunpack.c.l.b16 %v3215
        %v3602 = vunpack.c.l.b16 %v3218
        %v3603 = vunpack.c.l.b16 %v3221
        %v3604 = vunpack.c.l.b16 %v3224
        %v3605 = vunpack.c.l.b16 %v3228
        %v3606 = vunpack.c.l.b16 %v3231
        %v3607 = vunpack.c.l.b16 %v3234
        %v3608 = vunpack.c.l.b16 %v3237
        %v3609 = vunpack.c.l.b16 %v3241
        %v3610 = vunpack.c.l.b16 %v3244
        %v3611 = vunpack.c.l.b16 %v3247
        %v3612 = vunpack.c.l.b16 %v3250
        %v3613 = vunpack.c.l.b16 %v3254
        %v3614 = vunpack.c.l.b16 %v3257
        %v3615 = vunpack.c.l.b16 %v3260
        %v3616 = vunpack.c.l.b16 %v3263
        %v3617 = vunpack.c.l.b16 %v3267
        %v3618 = vunpack.c.l.b16 %v3270
        %v3619 = vunpack.c.l.b16 %v3273
        %v3620 = vunpack.c.l.b16 %v3276
        %v3621 = vunpack.c.l.b16 %v3280
        %v3622 = vunpack.c.l.b16 %v3283
        %v3623 = vunpack.c.l.b16 %v3286
        %v3624 = vunpack.c.l.b16 %v3289
        %v3625 = vunpack.c.l.b16 %v3293
        %v3626 = vunpack.c.l.b16 %v3296
        %v3627 = vunpack.c.l.b16 %v3299
        %v3628 = vunpack.c.l.b16 %v3302
        %v3629 = vunpack.c.l.b16 %v3306
        %v3630 = vunpack.c.l.b16 %v3309
        %v3631 = vunpack.c.l.b16 %v3312
        %v3632 = vunpack.c.l.b16 %v3315
        %v3633 = vunpack.c.l.b16 %v3319
        %v3634 = vunpack.c.l.b16 %v3322
        %v3635 = vunpack.c.l.b16 %v3325
        %v3636 = vunpack.c.l.b16 %v3328
        %v3637 = vunpack.c.l.b16 %v3332
        %v3638 = vunpack.c.l.b16 %v3335
        %v3639 = vunpack.c.l.b16 %v3338
        %v3640 = vunpack.c.l.b16 %v3341
        %v3641 = vunpack.c.l.b16 %v3345
        %v3642 = vunpack.c.l.b16 %v3348
        %v3643 = vunpack.c.l.b16 %v3351
        %v3644 = vunpack.c.l.b16 %v3354
        %v3645 = vunpack.c.l.b16 %v3358
        %v3646 = vunpack.c.l.b16 %v3361
        %v3647 = vunpack.c.l.b16 %v3364
        %v3648 = vunpack.c.l.b16 %v3367
        %v3649 = vunpack.c.l.b16 %v3371
        %v3650 = vunpack.c.l.b16 %v3374
        %v3651 = vunpack.c.l.b16 %v3377
        %v3652 = vunpack.c.l.b16 %v3380
        %v3653 = vunpack.c.l.b16 %v3384
        %v3654 = vunpack.c.l.b16 %v3387
        %v3655 = vunpack.c.l.b16 %v3390
        %v3656 = vunpack.c.l.b16 %v3393
        %v3657 = vunpack.c.l.b16 %v3397
        %v3658 = vunpack.c.l.b16 %v3400
        %v3659 = vunpack.c.l.b16 %v3403
        %v3660 = vunpack.c.l.b16 %v3406
        %v3661 = vunpack.c.l.b16 %v3410
        %v3662 = vunpack.c.l.b16 %v3413
        %v3663 = vunpack.c.l.b16 %v3416
        %v3664 = vunpack.c.l.b16 %v3419
        %v3665 = vunpack.c.l.b16 %v3423
        %v3666 = vunpack.c.l.b16 %v3426
        %v3667 = vunpack.c.l.b16 %v3429
        %v3668 = vunpack.c.l.b16 %v3432
        %v3669 = vunpack.c.l.b16 %v3436
        %v3670 = vunpack.c.l.b16 %v3439
        %v3671 = vunpack.c.l.b16 %v3442
        %v3672 = vunpack.c.l.b16 %v3445
        %v3673 = vunpack.c.l.b16 %v3449
        %v3674 = vunpack.c.l.b16 %v3452
        %v3675 = vunpack.c.l.b16 %v3455
        %v3676 = vunpack.c.l.b16 %v3458
        %v3677 = vunpack.c.l.b16 %v3462
        %v3678 = vunpack.c.l.b16 %v3465
        %v3679 = vunpack.c.l.b16 %v3468
        %v3680 = vunpack.c.l.b16 %v3471
        %v3681 = vunpack.c.l.b16 %v3475
        %v3682 = vunpack.c.l.b16 %v3478
        %v3683 = vunpack.c.l.b16 %v3481
        %v3684 = vunpack.c.l.b16 %v3484
        %v3685 = vunpack.c.l.b16 %v3488
        %v3686 = vunpack.c.l.b16 %v3491
        %v3687 = vunpack.c.l.b16 %v3494
        %v3688 = vunpack.c.l.b16 %v3497
        %v3689 = vunpack.c.l.b16 %v3501
        %v3690 = vunpack.c.l.b16 %v3504
        %v3691 = vunpack.c.l.b16 %v3507
        %v3692 = vunpack.c.l.b16 %v3510
        %v3693 = vunpack.c.l.b16 %v3514
        %v3694 = vunpack.c.l.b16 %v3517
        %v3695 = vunpack.c.l.b16 %v3520
        %v3696 = vunpack.c.l.b16 %v3523
        %v3697 = vunpack.c.l.b16 %v3527
        %v3698 = vunpack.c.l.b16 %v3530
        %v3699 = vunpack.c.l.b16 %v3533
        %v3700 = vunpack.c.l.b16 %v3536
        %v3701 = vunpack.c.l.b16 %v3540
        %v3702 = vunpack.c.l.b16 %v3543
        %v3703 = vunpack.c.l.b16 %v3546
        %v3704 = vunpack.c.l.b16 %v3549
        %v3705 = vunpack.c.l.b16 %v3553
        %v3706 = vunpack.c.l.b16 %v3556
        %v3707 = vunpack.c.l.b16 %v3559
        %v3708 = vunpack.c.l.b16 %v3562
        %v3709 = vunpack.c.l.b16 %v3566
        %v3710 = vunpack.c.l.b16 %v3569
        %v3711 = vunpack.c.l.b16 %v3572
        %v3712 = vunpack.c.l.b16 %v3575
        %v3713 = vunpack.c.l.b16 %v3579
        %v3714 = vunpack.c.l.b16 %v3582
        %v3715 = vunpack.c.l.b16 %v3585
        %v3716 = vunpack.c.l.b16 %v3588
        %v3717 = vpack.c.b16 %v3590, %v3589
        %v3718 = vpack.c.b16 %v3592, %v3591
        %v3719 = vpack.c.b16 %v3594, %v3593
        %v3720 = vpack.c.b16 %v3596, %v3595
        %v3721 = vpack.c.b16 %v3598, %v3597
        %v3722 = vpack.c.b16 %v3600, %v3599
        %v3723 = vpack.c.b16 %v3602, %v3601
        %v3724 = vpack.c.b16 %v3604, %v3603
        %v3725 = vpack.c.b16 %v3606, %v3605
        %v3726 = vpack.c.b16 %v3608, %v3607
        %v3727 = vpack.c.b16 %v3610, %v3609
        %v3728 = vpack.c.b16 %v3612, %v3611
        %v3729 = vpack.c.b16 %v3614, %v3613
        %v3730 = vpack.c.b16 %v3616, %v3615
        %v3731 = vpack.c.b16 %v3618, %v3617
        %v3732 = vpack.c.b16 %v3620, %v3619
        %v3733 = vpack.c.b16 %v3622, %v3621
        %v3734 = vpack.c.b16 %v3624, %v3623
        %v3735 = vpack.c.b16 %v3626, %v3625
        %v3736 = vpack.c.b16 %v3628, %v3627
        %v3737 = vpack.c.b16 %v3630, %v3629
        %v3738 = vpack.c.b16 %v3632, %v3631
        %v3739 = vpack.c.b16 %v3634, %v3633
        %v3740 = vpack.c.b16 %v3636, %v3635
        %v3741 = vpack.c.b16 %v3638, %v3637
        %v3742 = vpack.c.b16 %v3640, %v3639
        %v3743 = vpack.c.b16 %v3642, %v3641
        %v3744 = vpack.c.b16 %v3644, %v3643
        %v3745 = vpack.c.b16 %v3646, %v3645
        %v3746 = vpack.c.b16 %v3648, %v3647
        %v3747 = vpack.c.b16 %v3650, %v3649
        %v3748 = vpack.c.b16 %v3652, %v3651
        %v3749 = vpack.c.b16 %v3654, %v3653
        %v3750 = vpack.c.b16 %v3656, %v3655
        %v3751 = vpack.c.b16 %v3658, %v3657
        %v3752 = vpack.c.b16 %v3660, %v3659
        %v3753 = vpack.c.b16 %v3662, %v3661
        %v3754 = vpack.c.b16 %v3664, %v3663
        %v3755 = vpack.c.b16 %v3666, %v3665
        %v3756 = vpack.c.b16 %v3668, %v3667
        %v3757 = vpack.c.b16 %v3670, %v3669
        %v3758 = vpack.c.b16 %v3672, %v3671
        %v3759 = vpack.c.b16 %v3674, %v3673
        %v3760 = vpack.c.b16 %v3676, %v3675
        %v3761 = vpack.c.b16 %v3678, %v3677
        %v3762 = vpack.c.b16 %v3680, %v3679
        %v3763 = vpack.c.b16 %v3682, %v3681
        %v3764 = vpack.c.b16 %v3684, %v3683
        %v3765 = vpack.c.b16 %v3686, %v3685
        %v3766 = vpack.c.b16 %v3688, %v3687
        %v3767 = vpack.c.b16 %v3690, %v3689
        %v3768 = vpack.c.b16 %v3692, %v3691
        %v3769 = vpack.c.b16 %v3694, %v3693
        %v3770 = vpack.c.b16 %v3696, %v3695
        %v3771 = vpack.c.b16 %v3698, %v3697
        %v3772 = vpack.c.b16 %v3700, %v3699
        %v3773 = vpack.c.b16 %v3702, %v3701
        %v3774 = vpack.c.b16 %v3704, %v3703
        %v3775 = vpack.c.b16 %v3706, %v3705
        %v3776 = vpack.c.b16 %v3708, %v3707
        %v3777 = vpack.c.b16 %v3710, %v3709
        %v3778 = vpack.c.b16 %v3712, %v3711
        %v3779 = vpack.c.b16 %v3714, %v3713
        %v3780 = vpack.c.b16 %v3716, %v3715
        %3781 = vrot.lane.b32.xlu0 %v3717, 8
        %v3782 = vpop.permute.xlu0 %3781
        %3783 = vrot.lane.b32.xlu0 %v3718, 8
        %v3784 = vpop.permute.xlu0 %3783
        %3785 = vrot.lane.b32.xlu0 %v3719, 8
        %v3786 = vpop.permute.xlu0 %3785
        %3787 = vrot.lane.b32.xlu0 %v3720, 8
        %v3788 = vpop.permute.xlu0 %3787
        %3789 = vrot.lane.b32.xlu0 %v3721, 8
        %v3790 = vpop.permute.xlu0 %3789
        %3791 = vrot.lane.b32.xlu0 %v3722, 8
        %v3792 = vpop.permute.xlu0 %3791
        %3793 = vrot.lane.b32.xlu0 %v3723, 8
        %v3794 = vpop.permute.xlu0 %3793
        %3795 = vrot.lane.b32.xlu0 %v3724, 8
        %v3796 = vpop.permute.xlu0 %3795
        %3797 = vrot.lane.b32.xlu0 %v3725, 8
        %v3798 = vpop.permute.xlu0 %3797
        %3799 = vrot.lane.b32.xlu0 %v3726, 8
        %v3800 = vpop.permute.xlu0 %3799
        %3801 = vrot.lane.b32.xlu0 %v3727, 8
        %v3802 = vpop.permute.xlu0 %3801
        %3803 = vrot.lane.b32.xlu0 %v3728, 8
        %v3804 = vpop.permute.xlu0 %3803
        %3805 = vrot.lane.b32.xlu0 %v3729, 8
        %v3806 = vpop.permute.xlu0 %3805
        %3807 = vrot.lane.b32.xlu0 %v3730, 8
        %v3808 = vpop.permute.xlu0 %3807
        %3809 = vrot.lane.b32.xlu0 %v3731, 8
        %v3810 = vpop.permute.xlu0 %3809
        %3811 = vrot.lane.b32.xlu0 %v3732, 8
        %v3812 = vpop.permute.xlu0 %3811
        %3813 = vrot.lane.b32.xlu0 %v3733, 8
        %v3814 = vpop.permute.xlu0 %3813
        %3815 = vrot.lane.b32.xlu0 %v3734, 8
        %v3816 = vpop.permute.xlu0 %3815
        %3817 = vrot.lane.b32.xlu0 %v3735, 8
        %v3818 = vpop.permute.xlu0 %3817
        %3819 = vrot.lane.b32.xlu0 %v3736, 8
        %v3820 = vpop.permute.xlu0 %3819
        %3821 = vrot.lane.b32.xlu0 %v3737, 8
        %v3822 = vpop.permute.xlu0 %3821
        %3823 = vrot.lane.b32.xlu0 %v3738, 8
        %v3824 = vpop.permute.xlu0 %3823
        %3825 = vrot.lane.b32.xlu0 %v3739, 8
        %v3826 = vpop.permute.xlu0 %3825
        %3827 = vrot.lane.b32.xlu0 %v3740, 8
        %v3828 = vpop.permute.xlu0 %3827
        %3829 = vrot.lane.b32.xlu0 %v3741, 8
        %v3830 = vpop.permute.xlu0 %3829
        %3831 = vrot.lane.b32.xlu0 %v3742, 8
        %v3832 = vpop.permute.xlu0 %3831
        %3833 = vrot.lane.b32.xlu0 %v3743, 8
        %v3834 = vpop.permute.xlu0 %3833
        %3835 = vrot.lane.b32.xlu0 %v3744, 8
        %v3836 = vpop.permute.xlu0 %3835
        %3837 = vrot.lane.b32.xlu0 %v3745, 8
        %v3838 = vpop.permute.xlu0 %3837
        %3839 = vrot.lane.b32.xlu0 %v3746, 8
        %v3840 = vpop.permute.xlu0 %3839
        %3841 = vrot.lane.b32.xlu0 %v3747, 8
        %v3842 = vpop.permute.xlu0 %3841
        %3843 = vrot.lane.b32.xlu0 %v3748, 8
        %v3844 = vpop.permute.xlu0 %3843
        %3845 = vrot.lane.b32.xlu0 %v3749, 8
        %v3846 = vpop.permute.xlu0 %3845
        %3847 = vrot.lane.b32.xlu0 %v3750, 8
        %v3848 = vpop.permute.xlu0 %3847
        %3849 = vrot.lane.b32.xlu0 %v3751, 8
        %v3850 = vpop.permute.xlu0 %3849
        %3851 = vrot.lane.b32.xlu0 %v3752, 8
        %v3852 = vpop.permute.xlu0 %3851
        %3853 = vrot.lane.b32.xlu0 %v3753, 8
        %v3854 = vpop.permute.xlu0 %3853
        %3855 = vrot.lane.b32.xlu0 %v3754, 8
        %v3856 = vpop.permute.xlu0 %3855
        %3857 = vrot.lane.b32.xlu0 %v3755, 8
        %v3858 = vpop.permute.xlu0 %3857
        %3859 = vrot.lane.b32.xlu0 %v3756, 8
        %v3860 = vpop.permute.xlu0 %3859
        %3861 = vrot.lane.b32.xlu0 %v3757, 8
        %v3862 = vpop.permute.xlu0 %3861
        %3863 = vrot.lane.b32.xlu0 %v3758, 8
        %v3864 = vpop.permute.xlu0 %3863
        %3865 = vrot.lane.b32.xlu0 %v3759, 8
        %v3866 = vpop.permute.xlu0 %3865
        %3867 = vrot.lane.b32.xlu0 %v3760, 8
        %v3868 = vpop.permute.xlu0 %3867
        %3869 = vrot.lane.b32.xlu0 %v3761, 8
        %v3870 = vpop.permute.xlu0 %3869
        %3871 = vrot.lane.b32.xlu0 %v3762, 8
        %v3872 = vpop.permute.xlu0 %3871
        %3873 = vrot.lane.b32.xlu0 %v3763, 8
        %v3874 = vpop.permute.xlu0 %3873
        %3875 = vrot.lane.b32.xlu0 %v3764, 8
        %v3876 = vpop.permute.xlu0 %3875
        %3877 = vrot.lane.b32.xlu0 %v3765, 8
        %v3878 = vpop.permute.xlu0 %3877
        %3879 = vrot.lane.b32.xlu0 %v3766, 8
        %v3880 = vpop.permute.xlu0 %3879
        %3881 = vrot.lane.b32.xlu0 %v3767, 8
        %v3882 = vpop.permute.xlu0 %3881
        %3883 = vrot.lane.b32.xlu0 %v3768, 8
        %v3884 = vpop.permute.xlu0 %3883
        %3885 = vrot.lane.b32.xlu0 %v3769, 8
        %v3886 = vpop.permute.xlu0 %3885
        %3887 = vrot.lane.b32.xlu0 %v3770, 8
        %v3888 = vpop.permute.xlu0 %3887
        %3889 = vrot.lane.b32.xlu0 %v3771, 8
        %v3890 = vpop.permute.xlu0 %3889
        %3891 = vrot.lane.b32.xlu0 %v3772, 8
        %v3892 = vpop.permute.xlu0 %3891
        %3893 = vrot.lane.b32.xlu0 %v3773, 8
        %v3894 = vpop.permute.xlu0 %3893
        %3895 = vrot.lane.b32.xlu0 %v3774, 8
        %v3896 = vpop.permute.xlu0 %3895
        %3897 = vrot.lane.b32.xlu0 %v3775, 8
        %v3898 = vpop.permute.xlu0 %3897
        %3899 = vrot.lane.b32.xlu0 %v3776, 8
        %v3900 = vpop.permute.xlu0 %3899
        %3901 = vrot.lane.b32.xlu0 %v3777, 8
        %v3902 = vpop.permute.xlu0 %3901
        %3903 = vrot.lane.b32.xlu0 %v3778, 8
        %v3904 = vpop.permute.xlu0 %3903
        %3905 = vrot.lane.b32.xlu0 %v3779, 8
        %v3906 = vpop.permute.xlu0 %3905
        %3907 = vrot.lane.b32.xlu0 %v3780, 8
        %v3908 = vpop.permute.xlu0 %3907
        %vm3973 = vcmask 97344
        %3974 = vst.msk [vmem:[#allocation2] sm:$0xff] %vm3973, %v3782
        %3975 = vst.msk [vmem:[#allocation2 + $0x8] sm:$0xff] %vm3973, %v3784
        %3976 = vst.msk [vmem:[#allocation2 + $0x10] sm:$0xff] %vm3973, %v3786
        %3977 = vst.msk [vmem:[#allocation2 + $0x18] sm:$0xff] %vm3973, %v3788
        %3978 = vst.msk [vmem:[#allocation2 + $0x20] sm:$0xff] %vm3973, %v3790
        %3979 = vst.msk [vmem:[#allocation2 + $0x28] sm:$0xff] %vm3973, %v3792
        %3980 = vst.msk [vmem:[#allocation2 + $0x30] sm:$0xff] %vm3973, %v3794
        %3981 = vst.msk [vmem:[#allocation2 + $0x38] sm:$0xff] %vm3973, %v3796
        %3982 = vst.msk [vmem:[#allocation2 + $0x40] sm:$0xff] %vm3973, %v3798
        %3983 = vst.msk [vmem:[#allocation2 + $0x48] sm:$0xff] %vm3973, %v3800
        %3984 = vst.msk [vmem:[#allocation2 + $0x50] sm:$0xff] %vm3973, %v3802
        %3985 = vst.msk [vmem:[#allocation2 + $0x58] sm:$0xff] %vm3973, %v3804
        %3986 = vst.msk [vmem:[#allocation2 + $0x60] sm:$0xff] %vm3973, %v3806
        %3987 = vst.msk [vmem:[#allocation2 + $0x68] sm:$0xff] %vm3973, %v3808
        %3988 = vst.msk [vmem:[#allocation2 + $0x70] sm:$0xff] %vm3973, %v3810
        %3989 = vst.msk [vmem:[#allocation2 + $0x78] sm:$0xff] %vm3973, %v3812
        %3990 = vst.msk [vmem:[#allocation2 + $0x80] sm:$0xff] %vm3973, %v3814
        %3991 = vst.msk [vmem:[#allocation2 + $0x88] sm:$0xff] %vm3973, %v3816
        %3992 = vst.msk [vmem:[#allocation2 + $0x90] sm:$0xff] %vm3973, %v3818
        %3993 = vst.msk [vmem:[#allocation2 + $0x98] sm:$0xff] %vm3973, %v3820
        %3994 = vst.msk [vmem:[#allocation2 + $0xa0] sm:$0xff] %vm3973, %v3822
        %3995 = vst.msk [vmem:[#allocation2 + $0xa8] sm:$0xff] %vm3973, %v3824
        %3996 = vst.msk [vmem:[#allocation2 + $0xb0] sm:$0xff] %vm3973, %v3826
        %3997 = vst.msk [vmem:[#allocation2 + $0xb8] sm:$0xff] %vm3973, %v3828
        %3998 = vst.msk [vmem:[#allocation2 + $0xc0] sm:$0xff] %vm3973, %v3830
        %3999 = vst.msk [vmem:[#allocation2 + $0xc8] sm:$0xff] %vm3973, %v3832
        %4000 = vst.msk [vmem:[#allocation2 + $0xd0] sm:$0xff] %vm3973, %v3834
        %4001 = vst.msk [vmem:[#allocation2 + $0xd8] sm:$0xff] %vm3973, %v3836
        %4002 = vst.msk [vmem:[#allocation2 + $0xe0] sm:$0xff] %vm3973, %v3838
        %4003 = vst.msk [vmem:[#allocation2 + $0xe8] sm:$0xff] %vm3973, %v3840
        %4004 = vst.msk [vmem:[#allocation2 + $0xf0] sm:$0xff] %vm3973, %v3842
        %4005 = vst.msk [vmem:[#allocation2 + $0xf8] sm:$0xff] %vm3973, %v3844
        %4006 = vst.msk [vmem:[#allocation2 + $0x100] sm:$0xff] %vm3973, %v3846
        %4007 = vst.msk [vmem:[#allocation2 + $0x108] sm:$0xff] %vm3973, %v3848
        %4008 = vst.msk [vmem:[#allocation2 + $0x110] sm:$0xff] %vm3973, %v3850
        %4009 = vst.msk [vmem:[#allocation2 + $0x118] sm:$0xff] %vm3973, %v3852
        %4010 = vst.msk [vmem:[#allocation2 + $0x120] sm:$0xff] %vm3973, %v3854
        %4011 = vst.msk [vmem:[#allocation2 + $0x128] sm:$0xff] %vm3973, %v3856
        %4012 = vst.msk [vmem:[#allocation2 + $0x130] sm:$0xff] %vm3973, %v3858
        %4013 = vst.msk [vmem:[#allocation2 + $0x138] sm:$0xff] %vm3973, %v3860
        %4014 = vst.msk [vmem:[#allocation2 + $0x140] sm:$0xff] %vm3973, %v3862
        %4015 = vst.msk [vmem:[#allocation2 + $0x148] sm:$0xff] %vm3973, %v3864
        %4016 = vst.msk [vmem:[#allocation2 + $0x150] sm:$0xff] %vm3973, %v3866
        %4017 = vst.msk [vmem:[#allocation2 + $0x158] sm:$0xff] %vm3973, %v3868
        %4018 = vst.msk [vmem:[#allocation2 + $0x160] sm:$0xff] %vm3973, %v3870
        %4019 = vst.msk [vmem:[#allocation2 + $0x168] sm:$0xff] %vm3973, %v3872
        %4020 = vst.msk [vmem:[#allocation2 + $0x170] sm:$0xff] %vm3973, %v3874
        %4021 = vst.msk [vmem:[#allocation2 + $0x178] sm:$0xff] %vm3973, %v3876
        %4022 = vst.msk [vmem:[#allocation2 + $0x180] sm:$0xff] %vm3973, %v3878
        %4023 = vst.msk [vmem:[#allocation2 + $0x188] sm:$0xff] %vm3973, %v3880
        %4024 = vst.msk [vmem:[#allocation2 + $0x190] sm:$0xff] %vm3973, %v3882
        %4025 = vst.msk [vmem:[#allocation2 + $0x198] sm:$0xff] %vm3973, %v3884
        %4026 = vst.msk [vmem:[#allocation2 + $0x1a0] sm:$0xff] %vm3973, %v3886
        %4027 = vst.msk [vmem:[#allocation2 + $0x1a8] sm:$0xff] %vm3973, %v3888
        %4028 = vst.msk [vmem:[#allocation2 + $0x1b0] sm:$0xff] %vm3973, %v3890
        %4029 = vst.msk [vmem:[#allocation2 + $0x1b8] sm:$0xff] %vm3973, %v3892
        %4030 = vst.msk [vmem:[#allocation2 + $0x1c0] sm:$0xff] %vm3973, %v3894
        %4031 = vst.msk [vmem:[#allocation2 + $0x1c8] sm:$0xff] %vm3973, %v3896
        %4032 = vst.msk [vmem:[#allocation2 + $0x1d0] sm:$0xff] %vm3973, %v3898
        %4033 = vst.msk [vmem:[#allocation2 + $0x1d8] sm:$0xff] %vm3973, %v3900
        %4034 = vst.msk [vmem:[#allocation2 + $0x1e0] sm:$0xff] %vm3973, %v3902
        %4035 = vst.msk [vmem:[#allocation2 + $0x1e8] sm:$0xff] %vm3973, %v3904
        %4036 = vst.msk [vmem:[#allocation2 + $0x1f0] sm:$0xff] %vm3973, %v3906
        %4037 = vst.msk [vmem:[#allocation2 + $0x1f8] sm:$0xff] %vm3973, %v3908
        %s4038 = sadd.s32 %s249, 1
        %s4039 = smul.u32 %s4038, 5
        %s4040 = smul.addr %s4039, 4
        %s4041 = scalar_lea.vmem %s232, %s4040
        %v4042 = vld [vmem:[%s4041] sm:$0xf]
        %v4043 = vld [vmem:[%s4041 + $0x4] sm:$0xf]
        %v4044 = vld [vmem:[%s4041 + $0x8] sm:$0xf]
        %v4045 = vld [vmem:[%s4041 + $0xc] sm:$0xf]
        %v4046 = vld [vmem:[%s4041 + $0x14] sm:$0xf]
        %v4047 = vld [vmem:[%s4041 + $0x18] sm:$0xf]
        %v4048 = vld [vmem:[%s4041 + $0x1c] sm:$0xf]
        %v4049 = vld [vmem:[%s4041 + $0x20] sm:$0xf]
        %v4050 = vld [vmem:[%s4041 + $0x28] sm:$0xf]
        %v4051 = vld [vmem:[%s4041 + $0x2c] sm:$0xf]
        %v4052 = vld [vmem:[%s4041 + $0x30] sm:$0xf]
        %v4053 = vld [vmem:[%s4041 + $0x34] sm:$0xf]
        %v4054 = vld [vmem:[%s4041 + $0x3c] sm:$0xf]
        %v4055 = vld [vmem:[%s4041 + $0x40] sm:$0xf]
        %v4056 = vld [vmem:[%s4041 + $0x44] sm:$0xf]
        %v4057 = vld [vmem:[%s4041 + $0x48] sm:$0xf]
        %v4058 = vld [vmem:[%s4041 + $0x50] sm:$0xf]
        %v4059 = vld [vmem:[%s4041 + $0x54] sm:$0xf]
        %v4060 = vld [vmem:[%s4041 + $0x58] sm:$0xf]
        %v4061 = vld [vmem:[%s4041 + $0x5c] sm:$0xf]
        %v4062 = vld [vmem:[%s4041 + $0x64] sm:$0xf]
        %v4063 = vld [vmem:[%s4041 + $0x68] sm:$0xf]
        %v4064 = vld [vmem:[%s4041 + $0x6c] sm:$0xf]
        %v4065 = vld [vmem:[%s4041 + $0x70] sm:$0xf]
        %v4066 = vld [vmem:[%s4041 + $0x78] sm:$0xf]
        %v4067 = vld [vmem:[%s4041 + $0x7c] sm:$0xf]
        %v4068 = vld [vmem:[%s4041 + $0x80] sm:$0xf]
        %v4069 = vld [vmem:[%s4041 + $0x84] sm:$0xf]
        %v4070 = vld [vmem:[%s4041 + $0x8c] sm:$0xf]
        %v4071 = vld [vmem:[%s4041 + $0x90] sm:$0xf]
        %v4072 = vld [vmem:[%s4041 + $0x94] sm:$0xf]
        %v4073 = vld [vmem:[%s4041 + $0x98] sm:$0xf]
        %v4074 = vld [vmem:[%s4041 + $0xa0] sm:$0xf]
        %v4075 = vld [vmem:[%s4041 + $0xa4] sm:$0xf]
        %v4076 = vld [vmem:[%s4041 + $0xa8] sm:$0xf]
        %v4077 = vld [vmem:[%s4041 + $0xac] sm:$0xf]
        %v4078 = vld [vmem:[%s4041 + $0xb4] sm:$0xf]
        %v4079 = vld [vmem:[%s4041 + $0xb8] sm:$0xf]
        %v4080 = vld [vmem:[%s4041 + $0xbc] sm:$0xf]
        %v4081 = vld [vmem:[%s4041 + $0xc0] sm:$0xf]
        %v4082 = vld [vmem:[%s4041 + $0xc8] sm:$0xf]
        %v4083 = vld [vmem:[%s4041 + $0xcc] sm:$0xf]
        %v4084 = vld [vmem:[%s4041 + $0xd0] sm:$0xf]
        %v4085 = vld [vmem:[%s4041 + $0xd4] sm:$0xf]
        %v4086 = vld [vmem:[%s4041 + $0xdc] sm:$0xf]
        %v4087 = vld [vmem:[%s4041 + $0xe0] sm:$0xf]
        %v4088 = vld [vmem:[%s4041 + $0xe4] sm:$0xf]
        %v4089 = vld [vmem:[%s4041 + $0xe8] sm:$0xf]
        %v4090 = vld [vmem:[%s4041 + $0xf0] sm:$0xf]
        %v4091 = vld [vmem:[%s4041 + $0xf4] sm:$0xf]
        %v4092 = vld [vmem:[%s4041 + $0xf8] sm:$0xf]
        %v4093 = vld [vmem:[%s4041 + $0xfc] sm:$0xf]
        %v4094 = vld [vmem:[%s4041 + $0x104] sm:$0xf]
        %v4095 = vld [vmem:[%s4041 + $0x108] sm:$0xf]
        %v4096 = vld [vmem:[%s4041 + $0x10c] sm:$0xf]
        %v4097 = vld [vmem:[%s4041 + $0x110] sm:$0xf]
        %v4098 = vld [vmem:[%s4041 + $0x118] sm:$0xf]
        %v4099 = vld [vmem:[%s4041 + $0x11c] sm:$0xf]
        %v4100 = vld [vmem:[%s4041 + $0x120] sm:$0xf]
        %v4101 = vld [vmem:[%s4041 + $0x124] sm:$0xf]
        %v4102 = vld [vmem:[%s4041 + $0x12c] sm:$0xf]
        %v4103 = vld [vmem:[%s4041 + $0x130] sm:$0xf]
        %v4104 = vld [vmem:[%s4041 + $0x134] sm:$0xf]
        %v4105 = vld [vmem:[%s4041 + $0x138] sm:$0xf]
        %v4106 = vld [vmem:[%s4041 + $0x140] sm:$0xf]
        %v4107 = vld [vmem:[%s4041 + $0x144] sm:$0xf]
        %v4108 = vld [vmem:[%s4041 + $0x148] sm:$0xf]
        %v4109 = vld [vmem:[%s4041 + $0x14c] sm:$0xf]
        %v4110 = vld [vmem:[%s4041 + $0x154] sm:$0xf]
        %v4111 = vld [vmem:[%s4041 + $0x158] sm:$0xf]
        %v4112 = vld [vmem:[%s4041 + $0x15c] sm:$0xf]
        %v4113 = vld [vmem:[%s4041 + $0x160] sm:$0xf]
        %v4114 = vld [vmem:[%s4041 + $0x168] sm:$0xf]
        %v4115 = vld [vmem:[%s4041 + $0x16c] sm:$0xf]
        %v4116 = vld [vmem:[%s4041 + $0x170] sm:$0xf]
        %v4117 = vld [vmem:[%s4041 + $0x174] sm:$0xf]
        %v4118 = vld [vmem:[%s4041 + $0x17c] sm:$0xf]
        %v4119 = vld [vmem:[%s4041 + $0x180] sm:$0xf]
        %v4120 = vld [vmem:[%s4041 + $0x184] sm:$0xf]
        %v4121 = vld [vmem:[%s4041 + $0x188] sm:$0xf]
        %v4122 = vld [vmem:[%s4041 + $0x190] sm:$0xf]
        %v4123 = vld [vmem:[%s4041 + $0x194] sm:$0xf]
        %v4124 = vld [vmem:[%s4041 + $0x198] sm:$0xf]
        %v4125 = vld [vmem:[%s4041 + $0x19c] sm:$0xf]
        %v4126 = vld [vmem:[%s4041 + $0x1a4] sm:$0xf]
        %v4127 = vld [vmem:[%s4041 + $0x1a8] sm:$0xf]
        %v4128 = vld [vmem:[%s4041 + $0x1ac] sm:$0xf]
        %v4129 = vld [vmem:[%s4041 + $0x1b0] sm:$0xf]
        %v4130 = vld [vmem:[%s4041 + $0x1b8] sm:$0xf]
        %v4131 = vld [vmem:[%s4041 + $0x1bc] sm:$0xf]
        %v4132 = vld [vmem:[%s4041 + $0x1c0] sm:$0xf]
        %v4133 = vld [vmem:[%s4041 + $0x1c4] sm:$0xf]
        %v4134 = vld [vmem:[%s4041 + $0x1cc] sm:$0xf]
        %v4135 = vld [vmem:[%s4041 + $0x1d0] sm:$0xf]
        %v4136 = vld [vmem:[%s4041 + $0x1d4] sm:$0xf]
        %v4137 = vld [vmem:[%s4041 + $0x1d8] sm:$0xf]
        %v4138 = vld [vmem:[%s4041 + $0x1e0] sm:$0xf]
        %v4139 = vld [vmem:[%s4041 + $0x1e4] sm:$0xf]
        %v4140 = vld [vmem:[%s4041 + $0x1e8] sm:$0xf]
        %v4141 = vld [vmem:[%s4041 + $0x1ec] sm:$0xf]
        %v4142 = vld [vmem:[%s4041 + $0x1f4] sm:$0xf]
        %v4143 = vld [vmem:[%s4041 + $0x1f8] sm:$0xf]
        %v4144 = vld [vmem:[%s4041 + $0x1fc] sm:$0xf]
        %v4145 = vld [vmem:[%s4041 + $0x200] sm:$0xf]
        %v4146 = vld [vmem:[%s4041 + $0x208] sm:$0xf]
        %v4147 = vld [vmem:[%s4041 + $0x20c] sm:$0xf]
        %v4148 = vld [vmem:[%s4041 + $0x210] sm:$0xf]
        %v4149 = vld [vmem:[%s4041 + $0x214] sm:$0xf]
        %v4150 = vld [vmem:[%s4041 + $0x21c] sm:$0xf]
        %v4151 = vld [vmem:[%s4041 + $0x220] sm:$0xf]
        %v4152 = vld [vmem:[%s4041 + $0x224] sm:$0xf]
        %v4153 = vld [vmem:[%s4041 + $0x228] sm:$0xf]
        %v4154 = vld [vmem:[%s4041 + $0x230] sm:$0xf]
        %v4155 = vld [vmem:[%s4041 + $0x234] sm:$0xf]
        %v4156 = vld [vmem:[%s4041 + $0x238] sm:$0xf]
        %v4157 = vld [vmem:[%s4041 + $0x23c] sm:$0xf]
        %v4158 = vld [vmem:[%s4041 + $0x244] sm:$0xf]
        %v4159 = vld [vmem:[%s4041 + $0x248] sm:$0xf]
        %v4160 = vld [vmem:[%s4041 + $0x24c] sm:$0xf]
        %v4161 = vld [vmem:[%s4041 + $0x250] sm:$0xf]
        %v4162 = vld [vmem:[%s4041 + $0x258] sm:$0xf]
        %v4163 = vld [vmem:[%s4041 + $0x25c] sm:$0xf]
        %v4164 = vld [vmem:[%s4041 + $0x260] sm:$0xf]
        %v4165 = vld [vmem:[%s4041 + $0x264] sm:$0xf]
        %v4166 = vld [vmem:[%s4041 + $0x26c] sm:$0xf]
        %v4167 = vld [vmem:[%s4041 + $0x270] sm:$0xf]
        %v4168 = vld [vmem:[%s4041 + $0x274] sm:$0xf]
        %v4169 = vld [vmem:[%s4041 + $0x278] sm:$0xf]
        %v4298 = vunpack.c.l.b16 %v4042
        %v4299 = vunpack.c.l.b16 %v4043
        %v4300 = vunpack.c.l.b16 %v4044
        %v4301 = vunpack.c.l.b16 %v4045
        %v4302 = vunpack.c.l.b16 %v4046
        %v4303 = vunpack.c.l.b16 %v4047
        %v4304 = vunpack.c.l.b16 %v4048
        %v4305 = vunpack.c.l.b16 %v4049
        %v4306 = vunpack.c.l.b16 %v4050
        %v4307 = vunpack.c.l.b16 %v4051
        %v4308 = vunpack.c.l.b16 %v4052
        %v4309 = vunpack.c.l.b16 %v4053
        %v4310 = vunpack.c.l.b16 %v4054
        %v4311 = vunpack.c.l.b16 %v4055
        %v4312 = vunpack.c.l.b16 %v4056
        %v4313 = vunpack.c.l.b16 %v4057
        %v4314 = vunpack.c.l.b16 %v4058
        %v4315 = vunpack.c.l.b16 %v4059
        %v4316 = vunpack.c.l.b16 %v4060
        %v4317 = vunpack.c.l.b16 %v4061
        %v4318 = vunpack.c.l.b16 %v4062
        %v4319 = vunpack.c.l.b16 %v4063
        %v4320 = vunpack.c.l.b16 %v4064
        %v4321 = vunpack.c.l.b16 %v4065
        %v4322 = vunpack.c.l.b16 %v4066
        %v4323 = vunpack.c.l.b16 %v4067
        %v4324 = vunpack.c.l.b16 %v4068
        %v4325 = vunpack.c.l.b16 %v4069
        %v4326 = vunpack.c.l.b16 %v4070
        %v4327 = vunpack.c.l.b16 %v4071
        %v4328 = vunpack.c.l.b16 %v4072
        %v4329 = vunpack.c.l.b16 %v4073
        %v4330 = vunpack.c.l.b16 %v4074
        %v4331 = vunpack.c.l.b16 %v4075
        %v4332 = vunpack.c.l.b16 %v4076
        %v4333 = vunpack.c.l.b16 %v4077
        %v4334 = vunpack.c.l.b16 %v4078
        %v4335 = vunpack.c.l.b16 %v4079
        %v4336 = vunpack.c.l.b16 %v4080
        %v4337 = vunpack.c.l.b16 %v4081
        %v4338 = vunpack.c.l.b16 %v4082
        %v4339 = vunpack.c.l.b16 %v4083
        %v4340 = vunpack.c.l.b16 %v4084
        %v4341 = vunpack.c.l.b16 %v4085
        %v4342 = vunpack.c.l.b16 %v4086
        %v4343 = vunpack.c.l.b16 %v4087
        %v4344 = vunpack.c.l.b16 %v4088
        %v4345 = vunpack.c.l.b16 %v4089
        %v4346 = vunpack.c.l.b16 %v4090
        %v4347 = vunpack.c.l.b16 %v4091
        %v4348 = vunpack.c.l.b16 %v4092
        %v4349 = vunpack.c.l.b16 %v4093
        %v4350 = vunpack.c.l.b16 %v4094
        %v4351 = vunpack.c.l.b16 %v4095
        %v4352 = vunpack.c.l.b16 %v4096
        %v4353 = vunpack.c.l.b16 %v4097
        %v4354 = vunpack.c.l.b16 %v4098
        %v4355 = vunpack.c.l.b16 %v4099
        %v4356 = vunpack.c.l.b16 %v4100
        %v4357 = vunpack.c.l.b16 %v4101
        %v4358 = vunpack.c.l.b16 %v4102
        %v4359 = vunpack.c.l.b16 %v4103
        %v4360 = vunpack.c.l.b16 %v4104
        %v4361 = vunpack.c.l.b16 %v4105
        %v4362 = vunpack.c.l.b16 %v4106
        %v4363 = vunpack.c.l.b16 %v4107
        %v4364 = vunpack.c.l.b16 %v4108
        %v4365 = vunpack.c.l.b16 %v4109
        %v4366 = vunpack.c.l.b16 %v4110
        %v4367 = vunpack.c.l.b16 %v4111
        %v4368 = vunpack.c.l.b16 %v4112
        %v4369 = vunpack.c.l.b16 %v4113
        %v4370 = vunpack.c.l.b16 %v4114
        %v4371 = vunpack.c.l.b16 %v4115
        %v4372 = vunpack.c.l.b16 %v4116
        %v4373 = vunpack.c.l.b16 %v4117
        %v4374 = vunpack.c.l.b16 %v4118
        %v4375 = vunpack.c.l.b16 %v4119
        %v4376 = vunpack.c.l.b16 %v4120
        %v4377 = vunpack.c.l.b16 %v4121
        %v4378 = vunpack.c.l.b16 %v4122
        %v4379 = vunpack.c.l.b16 %v4123
        %v4380 = vunpack.c.l.b16 %v4124
        %v4381 = vunpack.c.l.b16 %v4125
        %v4382 = vunpack.c.l.b16 %v4126
        %v4383 = vunpack.c.l.b16 %v4127
        %v4384 = vunpack.c.l.b16 %v4128
        %v4385 = vunpack.c.l.b16 %v4129
        %v4386 = vunpack.c.l.b16 %v4130
        %v4387 = vunpack.c.l.b16 %v4131
        %v4388 = vunpack.c.l.b16 %v4132
        %v4389 = vunpack.c.l.b16 %v4133
        %v4390 = vunpack.c.l.b16 %v4134
        %v4391 = vunpack.c.l.b16 %v4135
        %v4392 = vunpack.c.l.b16 %v4136
        %v4393 = vunpack.c.l.b16 %v4137
        %v4394 = vunpack.c.l.b16 %v4138
        %v4395 = vunpack.c.l.b16 %v4139
        %v4396 = vunpack.c.l.b16 %v4140
        %v4397 = vunpack.c.l.b16 %v4141
        %v4398 = vunpack.c.l.b16 %v4142
        %v4399 = vunpack.c.l.b16 %v4143
        %v4400 = vunpack.c.l.b16 %v4144
        %v4401 = vunpack.c.l.b16 %v4145
        %v4402 = vunpack.c.l.b16 %v4146
        %v4403 = vunpack.c.l.b16 %v4147
        %v4404 = vunpack.c.l.b16 %v4148
        %v4405 = vunpack.c.l.b16 %v4149
        %v4406 = vunpack.c.l.b16 %v4150
        %v4407 = vunpack.c.l.b16 %v4151
        %v4408 = vunpack.c.l.b16 %v4152
        %v4409 = vunpack.c.l.b16 %v4153
        %v4410 = vunpack.c.l.b16 %v4154
        %v4411 = vunpack.c.l.b16 %v4155
        %v4412 = vunpack.c.l.b16 %v4156
        %v4413 = vunpack.c.l.b16 %v4157
        %v4414 = vunpack.c.l.b16 %v4158
        %v4415 = vunpack.c.l.b16 %v4159
        %v4416 = vunpack.c.l.b16 %v4160
        %v4417 = vunpack.c.l.b16 %v4161
        %v4418 = vunpack.c.l.b16 %v4162
        %v4419 = vunpack.c.l.b16 %v4163
        %v4420 = vunpack.c.l.b16 %v4164
        %v4421 = vunpack.c.l.b16 %v4165
        %v4422 = vunpack.c.l.b16 %v4166
        %v4423 = vunpack.c.l.b16 %v4167
        %v4424 = vunpack.c.l.b16 %v4168
        %v4425 = vunpack.c.l.b16 %v4169
        %v4426 = vpack.c.b16 %v4299, %v4298
        %v4427 = vpack.c.b16 %v4301, %v4300
        %v4428 = vpack.c.b16 %v4303, %v4302
        %v4429 = vpack.c.b16 %v4305, %v4304
        %v4430 = vpack.c.b16 %v4307, %v4306
        %v4431 = vpack.c.b16 %v4309, %v4308
        %v4432 = vpack.c.b16 %v4311, %v4310
        %v4433 = vpack.c.b16 %v4313, %v4312
        %v4434 = vpack.c.b16 %v4315, %v4314
        %v4435 = vpack.c.b16 %v4317, %v4316
        %v4436 = vpack.c.b16 %v4319, %v4318
        %v4437 = vpack.c.b16 %v4321, %v4320
        %v4438 = vpack.c.b16 %v4323, %v4322
        %v4439 = vpack.c.b16 %v4325, %v4324
        %v4440 = vpack.c.b16 %v4327, %v4326
        %v4441 = vpack.c.b16 %v4329, %v4328
        %v4442 = vpack.c.b16 %v4331, %v4330
        %v4443 = vpack.c.b16 %v4333, %v4332
        %v4444 = vpack.c.b16 %v4335, %v4334
        %v4445 = vpack.c.b16 %v4337, %v4336
        %v4446 = vpack.c.b16 %v4339, %v4338
        %v4447 = vpack.c.b16 %v4341, %v4340
        %v4448 = vpack.c.b16 %v4343, %v4342
        %v4449 = vpack.c.b16 %v4345, %v4344
        %v4450 = vpack.c.b16 %v4347, %v4346
        %v4451 = vpack.c.b16 %v4349, %v4348
        %v4452 = vpack.c.b16 %v4351, %v4350
        %v4453 = vpack.c.b16 %v4353, %v4352
        %v4454 = vpack.c.b16 %v4355, %v4354
        %v4455 = vpack.c.b16 %v4357, %v4356
        %v4456 = vpack.c.b16 %v4359, %v4358
        %v4457 = vpack.c.b16 %v4361, %v4360
        %v4458 = vpack.c.b16 %v4363, %v4362
        %v4459 = vpack.c.b16 %v4365, %v4364
        %v4460 = vpack.c.b16 %v4367, %v4366
        %v4461 = vpack.c.b16 %v4369, %v4368
        %v4462 = vpack.c.b16 %v4371, %v4370
        %v4463 = vpack.c.b16 %v4373, %v4372
        %v4464 = vpack.c.b16 %v4375, %v4374
        %v4465 = vpack.c.b16 %v4377, %v4376
        %v4466 = vpack.c.b16 %v4379, %v4378
        %v4467 = vpack.c.b16 %v4381, %v4380
        %v4468 = vpack.c.b16 %v4383, %v4382
        %v4469 = vpack.c.b16 %v4385, %v4384
        %v4470 = vpack.c.b16 %v4387, %v4386
        %v4471 = vpack.c.b16 %v4389, %v4388
        %v4472 = vpack.c.b16 %v4391, %v4390
        %v4473 = vpack.c.b16 %v4393, %v4392
        %v4474 = vpack.c.b16 %v4395, %v4394
        %v4475 = vpack.c.b16 %v4397, %v4396
        %v4476 = vpack.c.b16 %v4399, %v4398
        %v4477 = vpack.c.b16 %v4401, %v4400
        %v4478 = vpack.c.b16 %v4403, %v4402
        %v4479 = vpack.c.b16 %v4405, %v4404
        %v4480 = vpack.c.b16 %v4407, %v4406
        %v4481 = vpack.c.b16 %v4409, %v4408
        %v4482 = vpack.c.b16 %v4411, %v4410
        %v4483 = vpack.c.b16 %v4413, %v4412
        %v4484 = vpack.c.b16 %v4415, %v4414
        %v4485 = vpack.c.b16 %v4417, %v4416
        %v4486 = vpack.c.b16 %v4419, %v4418
        %v4487 = vpack.c.b16 %v4421, %v4420
        %v4488 = vpack.c.b16 %v4423, %v4422
        %v4489 = vpack.c.b16 %v4425, %v4424
        %4490 = vrot.lane.b32.xlu0 %v4426, 12
        %v4491 = vpop.permute.xlu0 %4490
        %4492 = vrot.lane.b32.xlu0 %v4427, 12
        %v4493 = vpop.permute.xlu0 %4492
        %4494 = vrot.lane.b32.xlu0 %v4428, 12
        %v4495 = vpop.permute.xlu0 %4494
        %4496 = vrot.lane.b32.xlu0 %v4429, 12
        %v4497 = vpop.permute.xlu0 %4496
        %4498 = vrot.lane.b32.xlu0 %v4430, 12
        %v4499 = vpop.permute.xlu0 %4498
        %4500 = vrot.lane.b32.xlu0 %v4431, 12
        %v4501 = vpop.permute.xlu0 %4500
        %4502 = vrot.lane.b32.xlu0 %v4432, 12
        %v4503 = vpop.permute.xlu0 %4502
        %4504 = vrot.lane.b32.xlu0 %v4433, 12
        %v4505 = vpop.permute.xlu0 %4504
        %4506 = vrot.lane.b32.xlu0 %v4434, 12
        %v4507 = vpop.permute.xlu0 %4506
        %4508 = vrot.lane.b32.xlu0 %v4435, 12
        %v4509 = vpop.permute.xlu0 %4508
        %4510 = vrot.lane.b32.xlu0 %v4436, 12
        %v4511 = vpop.permute.xlu0 %4510
        %4512 = vrot.lane.b32.xlu0 %v4437, 12
        %v4513 = vpop.permute.xlu0 %4512
        %4514 = vrot.lane.b32.xlu0 %v4438, 12
        %v4515 = vpop.permute.xlu0 %4514
        %4516 = vrot.lane.b32.xlu0 %v4439, 12
        %v4517 = vpop.permute.xlu0 %4516
        %4518 = vrot.lane.b32.xlu0 %v4440, 12
        %v4519 = vpop.permute.xlu0 %4518
        %4520 = vrot.lane.b32.xlu0 %v4441, 12
        %v4521 = vpop.permute.xlu0 %4520
        %4522 = vrot.lane.b32.xlu0 %v4442, 12
        %v4523 = vpop.permute.xlu0 %4522
        %4524 = vrot.lane.b32.xlu0 %v4443, 12
        %v4525 = vpop.permute.xlu0 %4524
        %4526 = vrot.lane.b32.xlu0 %v4444, 12
        %v4527 = vpop.permute.xlu0 %4526
        %4528 = vrot.lane.b32.xlu0 %v4445, 12
        %v4529 = vpop.permute.xlu0 %4528
        %4530 = vrot.lane.b32.xlu0 %v4446, 12
        %v4531 = vpop.permute.xlu0 %4530
        %4532 = vrot.lane.b32.xlu0 %v4447, 12
        %v4533 = vpop.permute.xlu0 %4532
        %4534 = vrot.lane.b32.xlu0 %v4448, 12
        %v4535 = vpop.permute.xlu0 %4534
        %4536 = vrot.lane.b32.xlu0 %v4449, 12
        %v4537 = vpop.permute.xlu0 %4536
        %4538 = vrot.lane.b32.xlu0 %v4450, 12
        %v4539 = vpop.permute.xlu0 %4538
        %4540 = vrot.lane.b32.xlu0 %v4451, 12
        %v4541 = vpop.permute.xlu0 %4540
        %4542 = vrot.lane.b32.xlu0 %v4452, 12
        %v4543 = vpop.permute.xlu0 %4542
        %4544 = vrot.lane.b32.xlu0 %v4453, 12
        %v4545 = vpop.permute.xlu0 %4544
        %4546 = vrot.lane.b32.xlu0 %v4454, 12
        %v4547 = vpop.permute.xlu0 %4546
        %4548 = vrot.lane.b32.xlu0 %v4455, 12
        %v4549 = vpop.permute.xlu0 %4548
        %4550 = vrot.lane.b32.xlu0 %v4456, 12
        %v4551 = vpop.permute.xlu0 %4550
        %4552 = vrot.lane.b32.xlu0 %v4457, 12
        %v4553 = vpop.permute.xlu0 %4552
        %4554 = vrot.lane.b32.xlu0 %v4458, 12
        %v4555 = vpop.permute.xlu0 %4554
        %4556 = vrot.lane.b32.xlu0 %v4459, 12
        %v4557 = vpop.permute.xlu0 %4556
        %4558 = vrot.lane.b32.xlu0 %v4460, 12
        %v4559 = vpop.permute.xlu0 %4558
        %4560 = vrot.lane.b32.xlu0 %v4461, 12
        %v4561 = vpop.permute.xlu0 %4560
        %4562 = vrot.lane.b32.xlu0 %v4462, 12
        %v4563 = vpop.permute.xlu0 %4562
        %4564 = vrot.lane.b32.xlu0 %v4463, 12
        %v4565 = vpop.permute.xlu0 %4564
        %4566 = vrot.lane.b32.xlu0 %v4464, 12
        %v4567 = vpop.permute.xlu0 %4566
        %4568 = vrot.lane.b32.xlu0 %v4465, 12
        %v4569 = vpop.permute.xlu0 %4568
        %4570 = vrot.lane.b32.xlu0 %v4466, 12
        %v4571 = vpop.permute.xlu0 %4570
        %4572 = vrot.lane.b32.xlu0 %v4467, 12
        %v4573 = vpop.permute.xlu0 %4572
        %4574 = vrot.lane.b32.xlu0 %v4468, 12
        %v4575 = vpop.permute.xlu0 %4574
        %4576 = vrot.lane.b32.xlu0 %v4469, 12
        %v4577 = vpop.permute.xlu0 %4576
        %4578 = vrot.lane.b32.xlu0 %v4470, 12
        %v4579 = vpop.permute.xlu0 %4578
        %4580 = vrot.lane.b32.xlu0 %v4471, 12
        %v4581 = vpop.permute.xlu0 %4580
        %4582 = vrot.lane.b32.xlu0 %v4472, 12
        %v4583 = vpop.permute.xlu0 %4582
        %4584 = vrot.lane.b32.xlu0 %v4473, 12
        %v4585 = vpop.permute.xlu0 %4584
        %4586 = vrot.lane.b32.xlu0 %v4474, 12
        %v4587 = vpop.permute.xlu0 %4586
        %4588 = vrot.lane.b32.xlu0 %v4475, 12
        %v4589 = vpop.permute.xlu0 %4588
        %4590 = vrot.lane.b32.xlu0 %v4476, 12
        %v4591 = vpop.permute.xlu0 %4590
        %4592 = vrot.lane.b32.xlu0 %v4477, 12
        %v4593 = vpop.permute.xlu0 %4592
        %4594 = vrot.lane.b32.xlu0 %v4478, 12
        %v4595 = vpop.permute.xlu0 %4594
        %4596 = vrot.lane.b32.xlu0 %v4479, 12
        %v4597 = vpop.permute.xlu0 %4596
        %4598 = vrot.lane.b32.xlu0 %v4480, 12
        %v4599 = vpop.permute.xlu0 %4598
        %4600 = vrot.lane.b32.xlu0 %v4481, 12
        %v4601 = vpop.permute.xlu0 %4600
        %4602 = vrot.lane.b32.xlu0 %v4482, 12
        %v4603 = vpop.permute.xlu0 %4602
        %4604 = vrot.lane.b32.xlu0 %v4483, 12
        %v4605 = vpop.permute.xlu0 %4604
        %4606 = vrot.lane.b32.xlu0 %v4484, 12
        %v4607 = vpop.permute.xlu0 %4606
        %4608 = vrot.lane.b32.xlu0 %v4485, 12
        %v4609 = vpop.permute.xlu0 %4608
        %4610 = vrot.lane.b32.xlu0 %v4486, 12
        %v4611 = vpop.permute.xlu0 %4610
        %4612 = vrot.lane.b32.xlu0 %v4487, 12
        %v4613 = vpop.permute.xlu0 %4612
        %4614 = vrot.lane.b32.xlu0 %v4488, 12
        %v4615 = vpop.permute.xlu0 %4614
        %4616 = vrot.lane.b32.xlu0 %v4489, 12
        %v4617 = vpop.permute.xlu0 %4616
        %vm4682 = vcmask 130144
        %4683 = vst.msk [vmem:[#allocation2] sm:$0xff] %vm4682, %v4491
        %4684 = vst.msk [vmem:[#allocation2 + $0x8] sm:$0xff] %vm4682, %v4493
        %4685 = vst.msk [vmem:[#allocation2 + $0x10] sm:$0xff] %vm4682, %v4495
        %4686 = vst.msk [vmem:[#allocation2 + $0x18] sm:$0xff] %vm4682, %v4497
        %4687 = vst.msk [vmem:[#allocation2 + $0x20] sm:$0xff] %vm4682, %v4499
        %4688 = vst.msk [vmem:[#allocation2 + $0x28] sm:$0xff] %vm4682, %v4501
        %4689 = vst.msk [vmem:[#allocation2 + $0x30] sm:$0xff] %vm4682, %v4503
        %4690 = vst.msk [vmem:[#allocation2 + $0x38] sm:$0xff] %vm4682, %v4505
        %4691 = vst.msk [vmem:[#allocation2 + $0x40] sm:$0xff] %vm4682, %v4507
        %4692 = vst.msk [vmem:[#allocation2 + $0x48] sm:$0xff] %vm4682, %v4509
        %4693 = vst.msk [vmem:[#allocation2 + $0x50] sm:$0xff] %vm4682, %v4511
        %4694 = vst.msk [vmem:[#allocation2 + $0x58] sm:$0xff] %vm4682, %v4513
        %4695 = vst.msk [vmem:[#allocation2 + $0x60] sm:$0xff] %vm4682, %v4515
        %4696 = vst.msk [vmem:[#allocation2 + $0x68] sm:$0xff] %vm4682, %v4517
        %4697 = vst.msk [vmem:[#allocation2 + $0x70] sm:$0xff] %vm4682, %v4519
        %4698 = vst.msk [vmem:[#allocation2 + $0x78] sm:$0xff] %vm4682, %v4521
        %4699 = vst.msk [vmem:[#allocation2 + $0x80] sm:$0xff] %vm4682, %v4523
        %4700 = vst.msk [vmem:[#allocation2 + $0x88] sm:$0xff] %vm4682, %v4525
        %4701 = vst.msk [vmem:[#allocation2 + $0x90] sm:$0xff] %vm4682, %v4527
        %4702 = vst.msk [vmem:[#allocation2 + $0x98] sm:$0xff] %vm4682, %v4529
        %4703 = vst.msk [vmem:[#allocation2 + $0xa0] sm:$0xff] %vm4682, %v4531
        %4704 = vst.msk [vmem:[#allocation2 + $0xa8] sm:$0xff] %vm4682, %v4533
        %4705 = vst.msk [vmem:[#allocation2 + $0xb0] sm:$0xff] %vm4682, %v4535
        %4706 = vst.msk [vmem:[#allocation2 + $0xb8] sm:$0xff] %vm4682, %v4537
        %4707 = vst.msk [vmem:[#allocation2 + $0xc0] sm:$0xff] %vm4682, %v4539
        %4708 = vst.msk [vmem:[#allocation2 + $0xc8] sm:$0xff] %vm4682, %v4541
        %4709 = vst.msk [vmem:[#allocation2 + $0xd0] sm:$0xff] %vm4682, %v4543
        %4710 = vst.msk [vmem:[#allocation2 + $0xd8] sm:$0xff] %vm4682, %v4545
        %4711 = vst.msk [vmem:[#allocation2 + $0xe0] sm:$0xff] %vm4682, %v4547
        %4712 = vst.msk [vmem:[#allocation2 + $0xe8] sm:$0xff] %vm4682, %v4549
        %4713 = vst.msk [vmem:[#allocation2 + $0xf0] sm:$0xff] %vm4682, %v4551
        %4714 = vst.msk [vmem:[#allocation2 + $0xf8] sm:$0xff] %vm4682, %v4553
        %4715 = vst.msk [vmem:[#allocation2 + $0x100] sm:$0xff] %vm4682, %v4555
        %4716 = vst.msk [vmem:[#allocation2 + $0x108] sm:$0xff] %vm4682, %v4557
        %4717 = vst.msk [vmem:[#allocation2 + $0x110] sm:$0xff] %vm4682, %v4559
        %4718 = vst.msk [vmem:[#allocation2 + $0x118] sm:$0xff] %vm4682, %v4561
        %4719 = vst.msk [vmem:[#allocation2 + $0x120] sm:$0xff] %vm4682, %v4563
        %4720 = vst.msk [vmem:[#allocation2 + $0x128] sm:$0xff] %vm4682, %v4565
        %4721 = vst.msk [vmem:[#allocation2 + $0x130] sm:$0xff] %vm4682, %v4567
        %4722 = vst.msk [vmem:[#allocation2 + $0x138] sm:$0xff] %vm4682, %v4569
        %4723 = vst.msk [vmem:[#allocation2 + $0x140] sm:$0xff] %vm4682, %v4571
        %4724 = vst.msk [vmem:[#allocation2 + $0x148] sm:$0xff] %vm4682, %v4573
        %4725 = vst.msk [vmem:[#allocation2 + $0x150] sm:$0xff] %vm4682, %v4575
        %4726 = vst.msk [vmem:[#allocation2 + $0x158] sm:$0xff] %vm4682, %v4577
        %4727 = vst.msk [vmem:[#allocation2 + $0x160] sm:$0xff] %vm4682, %v4579
        %4728 = vst.msk [vmem:[#allocation2 + $0x168] sm:$0xff] %vm4682, %v4581
        %4729 = vst.msk [vmem:[#allocation2 + $0x170] sm:$0xff] %vm4682, %v4583
        %4730 = vst.msk [vmem:[#allocation2 + $0x178] sm:$0xff] %vm4682, %v4585
        %4731 = vst.msk [vmem:[#allocation2 + $0x180] sm:$0xff] %vm4682, %v4587
        %4732 = vst.msk [vmem:[#allocation2 + $0x188] sm:$0xff] %vm4682, %v4589
        %4733 = vst.msk [vmem:[#allocation2 + $0x190] sm:$0xff] %vm4682, %v4591
        %4734 = vst.msk [vmem:[#allocation2 + $0x198] sm:$0xff] %vm4682, %v4593
        %4735 = vst.msk [vmem:[#allocation2 + $0x1a0] sm:$0xff] %vm4682, %v4595
        %4736 = vst.msk [vmem:[#allocation2 + $0x1a8] sm:$0xff] %vm4682, %v4597
        %4737 = vst.msk [vmem:[#allocation2 + $0x1b0] sm:$0xff] %vm4682, %v4599
        %4738 = vst.msk [vmem:[#allocation2 + $0x1b8] sm:$0xff] %vm4682, %v4601
        %4739 = vst.msk [vmem:[#allocation2 + $0x1c0] sm:$0xff] %vm4682, %v4603
        %4740 = vst.msk [vmem:[#allocation2 + $0x1c8] sm:$0xff] %vm4682, %v4605
        %4741 = vst.msk [vmem:[#allocation2 + $0x1d0] sm:$0xff] %vm4682, %v4607
        %4742 = vst.msk [vmem:[#allocation2 + $0x1d8] sm:$0xff] %vm4682, %v4609
        %4743 = vst.msk [vmem:[#allocation2 + $0x1e0] sm:$0xff] %vm4682, %v4611
        %4744 = vst.msk [vmem:[#allocation2 + $0x1e8] sm:$0xff] %vm4682, %v4613
        %4745 = vst.msk [vmem:[#allocation2 + $0x1f0] sm:$0xff] %vm4682, %v4615
        %4746 = vst.msk [vmem:[#allocation2 + $0x1f8] sm:$0xff] %vm4682, %v4617
        %v4747 = vld [vmem:[%s4041] sm:$0xf]
        %v4748 = vld [vmem:[%s4041 + $0x4] sm:$0xf]
        %v4749 = vld [vmem:[%s4041 + $0x8] sm:$0xf]
        %v4750 = vld [vmem:[%s4041 + $0xc] sm:$0xf]
        %v4751 = vld [vmem:[%s4041 + $0x10] sm:$0x1]
        %v4752 = vld [vmem:[%s4041 + $0x14] sm:$0xf]
        %v4753 = vld [vmem:[%s4041 + $0x18] sm:$0xf]
        %v4754 = vld [vmem:[%s4041 + $0x1c] sm:$0xf]
        %v4755 = vld [vmem:[%s4041 + $0x20] sm:$0xf]
        %v4756 = vld [vmem:[%s4041 + $0x24] sm:$0x1]
        %v4757 = vld [vmem:[%s4041 + $0x28] sm:$0xf]
        %v4758 = vld [vmem:[%s4041 + $0x2c] sm:$0xf]
        %v4759 = vld [vmem:[%s4041 + $0x30] sm:$0xf]
        %v4760 = vld [vmem:[%s4041 + $0x34] sm:$0xf]
        %v4761 = vld [vmem:[%s4041 + $0x38] sm:$0x1]
        %v4762 = vld [vmem:[%s4041 + $0x3c] sm:$0xf]
        %v4763 = vld [vmem:[%s4041 + $0x40] sm:$0xf]
        %v4764 = vld [vmem:[%s4041 + $0x44] sm:$0xf]
        %v4765 = vld [vmem:[%s4041 + $0x48] sm:$0xf]
        %v4766 = vld [vmem:[%s4041 + $0x4c] sm:$0x1]
        %v4767 = vld [vmem:[%s4041 + $0x50] sm:$0xf]
        %v4768 = vld [vmem:[%s4041 + $0x54] sm:$0xf]
        %v4769 = vld [vmem:[%s4041 + $0x58] sm:$0xf]
        %v4770 = vld [vmem:[%s4041 + $0x5c] sm:$0xf]
        %v4771 = vld [vmem:[%s4041 + $0x60] sm:$0x1]
        %v4772 = vld [vmem:[%s4041 + $0x64] sm:$0xf]
        %v4773 = vld [vmem:[%s4041 + $0x68] sm:$0xf]
        %v4774 = vld [vmem:[%s4041 + $0x6c] sm:$0xf]
        %v4775 = vld [vmem:[%s4041 + $0x70] sm:$0xf]
        %v4776 = vld [vmem:[%s4041 + $0x74] sm:$0x1]
        %v4777 = vld [vmem:[%s4041 + $0x78] sm:$0xf]
        %v4778 = vld [vmem:[%s4041 + $0x7c] sm:$0xf]
        %v4779 = vld [vmem:[%s4041 + $0x80] sm:$0xf]
        %v4780 = vld [vmem:[%s4041 + $0x84] sm:$0xf]
        %v4781 = vld [vmem:[%s4041 + $0x88] sm:$0x1]
        %v4782 = vld [vmem:[%s4041 + $0x8c] sm:$0xf]
        %v4783 = vld [vmem:[%s4041 + $0x90] sm:$0xf]
        %v4784 = vld [vmem:[%s4041 + $0x94] sm:$0xf]
        %v4785 = vld [vmem:[%s4041 + $0x98] sm:$0xf]
        %v4786 = vld [vmem:[%s4041 + $0x9c] sm:$0x1]
        %v4787 = vld [vmem:[%s4041 + $0xa0] sm:$0xf]
        %v4788 = vld [vmem:[%s4041 + $0xa4] sm:$0xf]
        %v4789 = vld [vmem:[%s4041 + $0xa8] sm:$0xf]
        %v4790 = vld [vmem:[%s4041 + $0xac] sm:$0xf]
        %v4791 = vld [vmem:[%s4041 + $0xb0] sm:$0x1]
        %v4792 = vld [vmem:[%s4041 + $0xb4] sm:$0xf]
        %v4793 = vld [vmem:[%s4041 + $0xb8] sm:$0xf]
        %v4794 = vld [vmem:[%s4041 + $0xbc] sm:$0xf]
        %v4795 = vld [vmem:[%s4041 + $0xc0] sm:$0xf]
        %v4796 = vld [vmem:[%s4041 + $0xc4] sm:$0x1]
        %v4797 = vld [vmem:[%s4041 + $0xc8] sm:$0xf]
        %v4798 = vld [vmem:[%s4041 + $0xcc] sm:$0xf]
        %v4799 = vld [vmem:[%s4041 + $0xd0] sm:$0xf]
        %v4800 = vld [vmem:[%s4041 + $0xd4] sm:$0xf]
        %v4801 = vld [vmem:[%s4041 + $0xd8] sm:$0x1]
        %v4802 = vld [vmem:[%s4041 + $0xdc] sm:$0xf]
        %v4803 = vld [vmem:[%s4041 + $0xe0] sm:$0xf]
        %v4804 = vld [vmem:[%s4041 + $0xe4] sm:$0xf]
        %v4805 = vld [vmem:[%s4041 + $0xe8] sm:$0xf]
        %v4806 = vld [vmem:[%s4041 + $0xec] sm:$0x1]
        %v4807 = vld [vmem:[%s4041 + $0xf0] sm:$0xf]
        %v4808 = vld [vmem:[%s4041 + $0xf4] sm:$0xf]
        %v4809 = vld [vmem:[%s4041 + $0xf8] sm:$0xf]
        %v4810 = vld [vmem:[%s4041 + $0xfc] sm:$0xf]
        %v4811 = vld [vmem:[%s4041 + $0x100] sm:$0x1]
        %v4812 = vld [vmem:[%s4041 + $0x104] sm:$0xf]
        %v4813 = vld [vmem:[%s4041 + $0x108] sm:$0xf]
        %v4814 = vld [vmem:[%s4041 + $0x10c] sm:$0xf]
        %v4815 = vld [vmem:[%s4041 + $0x110] sm:$0xf]
        %v4816 = vld [vmem:[%s4041 + $0x114] sm:$0x1]
        %v4817 = vld [vmem:[%s4041 + $0x118] sm:$0xf]
        %v4818 = vld [vmem:[%s4041 + $0x11c] sm:$0xf]
        %v4819 = vld [vmem:[%s4041 + $0x120] sm:$0xf]
        %v4820 = vld [vmem:[%s4041 + $0x124] sm:$0xf]
        %v4821 = vld [vmem:[%s4041 + $0x128] sm:$0x1]
        %v4822 = vld [vmem:[%s4041 + $0x12c] sm:$0xf]
        %v4823 = vld [vmem:[%s4041 + $0x130] sm:$0xf]
        %v4824 = vld [vmem:[%s4041 + $0x134] sm:$0xf]
        %v4825 = vld [vmem:[%s4041 + $0x138] sm:$0xf]
        %v4826 = vld [vmem:[%s4041 + $0x13c] sm:$0x1]
        %v4827 = vld [vmem:[%s4041 + $0x140] sm:$0xf]
        %v4828 = vld [vmem:[%s4041 + $0x144] sm:$0xf]
        %v4829 = vld [vmem:[%s4041 + $0x148] sm:$0xf]
        %v4830 = vld [vmem:[%s4041 + $0x14c] sm:$0xf]
        %v4831 = vld [vmem:[%s4041 + $0x150] sm:$0x1]
        %v4832 = vld [vmem:[%s4041 + $0x154] sm:$0xf]
        %v4833 = vld [vmem:[%s4041 + $0x158] sm:$0xf]
        %v4834 = vld [vmem:[%s4041 + $0x15c] sm:$0xf]
        %v4835 = vld [vmem:[%s4041 + $0x160] sm:$0xf]
        %v4836 = vld [vmem:[%s4041 + $0x164] sm:$0x1]
        %v4837 = vld [vmem:[%s4041 + $0x168] sm:$0xf]
        %v4838 = vld [vmem:[%s4041 + $0x16c] sm:$0xf]
        %v4839 = vld [vmem:[%s4041 + $0x170] sm:$0xf]
        %v4840 = vld [vmem:[%s4041 + $0x174] sm:$0xf]
        %v4841 = vld [vmem:[%s4041 + $0x178] sm:$0x1]
        %v4842 = vld [vmem:[%s4041 + $0x17c] sm:$0xf]
        %v4843 = vld [vmem:[%s4041 + $0x180] sm:$0xf]
        %v4844 = vld [vmem:[%s4041 + $0x184] sm:$0xf]
        %v4845 = vld [vmem:[%s4041 + $0x188] sm:$0xf]
        %v4846 = vld [vmem:[%s4041 + $0x18c] sm:$0x1]
        %v4847 = vld [vmem:[%s4041 + $0x190] sm:$0xf]
        %v4848 = vld [vmem:[%s4041 + $0x194] sm:$0xf]
        %v4849 = vld [vmem:[%s4041 + $0x198] sm:$0xf]
        %v4850 = vld [vmem:[%s4041 + $0x19c] sm:$0xf]
        %v4851 = vld [vmem:[%s4041 + $0x1a0] sm:$0x1]
        %v4852 = vld [vmem:[%s4041 + $0x1a4] sm:$0xf]
        %v4853 = vld [vmem:[%s4041 + $0x1a8] sm:$0xf]
        %v4854 = vld [vmem:[%s4041 + $0x1ac] sm:$0xf]
        %v4855 = vld [vmem:[%s4041 + $0x1b0] sm:$0xf]
        %v4856 = vld [vmem:[%s4041 + $0x1b4] sm:$0x1]
        %v4857 = vld [vmem:[%s4041 + $0x1b8] sm:$0xf]
        %v4858 = vld [vmem:[%s4041 + $0x1bc] sm:$0xf]
        %v4859 = vld [vmem:[%s4041 + $0x1c0] sm:$0xf]
        %v4860 = vld [vmem:[%s4041 + $0x1c4] sm:$0xf]
        %v4861 = vld [vmem:[%s4041 + $0x1c8] sm:$0x1]
        %v4862 = vld [vmem:[%s4041 + $0x1cc] sm:$0xf]
        %v4863 = vld [vmem:[%s4041 + $0x1d0] sm:$0xf]
        %v4864 = vld [vmem:[%s4041 + $0x1d4] sm:$0xf]
        %v4865 = vld [vmem:[%s4041 + $0x1d8] sm:$0xf]
        %v4866 = vld [vmem:[%s4041 + $0x1dc] sm:$0x1]
        %v4867 = vld [vmem:[%s4041 + $0x1e0] sm:$0xf]
        %v4868 = vld [vmem:[%s4041 + $0x1e4] sm:$0xf]
        %v4869 = vld [vmem:[%s4041 + $0x1e8] sm:$0xf]
        %v4870 = vld [vmem:[%s4041 + $0x1ec] sm:$0xf]
        %v4871 = vld [vmem:[%s4041 + $0x1f0] sm:$0x1]
        %v4872 = vld [vmem:[%s4041 + $0x1f4] sm:$0xf]
        %v4873 = vld [vmem:[%s4041 + $0x1f8] sm:$0xf]
        %v4874 = vld [vmem:[%s4041 + $0x1fc] sm:$0xf]
        %v4875 = vld [vmem:[%s4041 + $0x200] sm:$0xf]
        %v4876 = vld [vmem:[%s4041 + $0x204] sm:$0x1]
        %v4877 = vld [vmem:[%s4041 + $0x208] sm:$0xf]
        %v4878 = vld [vmem:[%s4041 + $0x20c] sm:$0xf]
        %v4879 = vld [vmem:[%s4041 + $0x210] sm:$0xf]
        %v4880 = vld [vmem:[%s4041 + $0x214] sm:$0xf]
        %v4881 = vld [vmem:[%s4041 + $0x218] sm:$0x1]
        %v4882 = vld [vmem:[%s4041 + $0x21c] sm:$0xf]
        %v4883 = vld [vmem:[%s4041 + $0x220] sm:$0xf]
        %v4884 = vld [vmem:[%s4041 + $0x224] sm:$0xf]
        %v4885 = vld [vmem:[%s4041 + $0x228] sm:$0xf]
        %v4886 = vld [vmem:[%s4041 + $0x22c] sm:$0x1]
        %v4887 = vld [vmem:[%s4041 + $0x230] sm:$0xf]
        %v4888 = vld [vmem:[%s4041 + $0x234] sm:$0xf]
        %v4889 = vld [vmem:[%s4041 + $0x238] sm:$0xf]
        %v4890 = vld [vmem:[%s4041 + $0x23c] sm:$0xf]
        %v4891 = vld [vmem:[%s4041 + $0x240] sm:$0x1]
        %v4892 = vld [vmem:[%s4041 + $0x244] sm:$0xf]
        %v4893 = vld [vmem:[%s4041 + $0x248] sm:$0xf]
        %v4894 = vld [vmem:[%s4041 + $0x24c] sm:$0xf]
        %v4895 = vld [vmem:[%s4041 + $0x250] sm:$0xf]
        %v4896 = vld [vmem:[%s4041 + $0x254] sm:$0x1]
        %v4897 = vld [vmem:[%s4041 + $0x258] sm:$0xf]
        %v4898 = vld [vmem:[%s4041 + $0x25c] sm:$0xf]
        %v4899 = vld [vmem:[%s4041 + $0x260] sm:$0xf]
        %v4900 = vld [vmem:[%s4041 + $0x264] sm:$0xf]
        %v4901 = vld [vmem:[%s4041 + $0x268] sm:$0x1]
        %v4902 = vld [vmem:[%s4041 + $0x26c] sm:$0xf]
        %v4903 = vld [vmem:[%s4041 + $0x270] sm:$0xf]
        %v4904 = vld [vmem:[%s4041 + $0x274] sm:$0xf]
        %v4905 = vld [vmem:[%s4041 + $0x278] sm:$0xf]
        %v4906 = vld [vmem:[%s4041 + $0x27c] sm:$0x1]
        %v4908 = vshrl.u32 %v4747, 16
        %v4910 = vrot.slane %v4908, 4
        %v4911 = vshll.u32 %v4747, 16
        %v4913 = vrot.slane %v4911, 5
        %v4914 = vor.u32 %v4910, %v4913
        %v4915 = vrot.slane %v4914, 4
        %v4917 = vshll.u32 %v4748, 16
        %v4919 = vrot.slane %v4917, 5
        %v4920 = vsel %vm992, %v4915, %v4919
        %v4921 = vshrl.u32 %v4748, 16
        %v4923 = vrot.slane %v4921, 4
        %v4924 = vor.u32 %v4923, %v4919
        %v4925 = vrot.slane %v4924, 4
        %v4927 = vshll.u32 %v4749, 16
        %v4929 = vrot.slane %v4927, 5
        %v4930 = vsel %vm992, %v4925, %v4929
        %v4931 = vshrl.u32 %v4749, 16
        %v4933 = vrot.slane %v4931, 4
        %v4934 = vor.u32 %v4933, %v4929
        %v4935 = vrot.slane %v4934, 4
        %v4937 = vshll.u32 %v4750, 16
        %v4939 = vrot.slane %v4937, 5
        %v4940 = vsel %vm992, %v4935, %v4939
        %v4941 = vshrl.u32 %v4750, 16
        %v4943 = vrot.slane %v4941, 4
        %v4944 = vor.u32 %v4943, %v4939
        %v4945 = vrot.slane %v4944, 4
        %v4947 = vshll.u32 %v4751, 16
        %v4949 = vrot.slane %v4947, 5
        %v4950 = vsel %vm992, %v4945, %v4949
        %v4952 = vshrl.u32 %v4752, 16
        %v4954 = vrot.slane %v4952, 4
        %v4955 = vshll.u32 %v4752, 16
        %v4957 = vrot.slane %v4955, 5
        %v4958 = vor.u32 %v4954, %v4957
        %v4959 = vrot.slane %v4958, 4
        %v4961 = vshll.u32 %v4753, 16
        %v4963 = vrot.slane %v4961, 5
        %v4964 = vsel %vm992, %v4959, %v4963
        %v4965 = vshrl.u32 %v4753, 16
        %v4967 = vrot.slane %v4965, 4
        %v4968 = vor.u32 %v4967, %v4963
        %v4969 = vrot.slane %v4968, 4
        %v4971 = vshll.u32 %v4754, 16
        %v4973 = vrot.slane %v4971, 5
        %v4974 = vsel %vm992, %v4969, %v4973
        %v4975 = vshrl.u32 %v4754, 16
        %v4977 = vrot.slane %v4975, 4
        %v4978 = vor.u32 %v4977, %v4973
        %v4979 = vrot.slane %v4978, 4
        %v4981 = vshll.u32 %v4755, 16
        %v4983 = vrot.slane %v4981, 5
        %v4984 = vsel %vm992, %v4979, %v4983
        %v4985 = vshrl.u32 %v4755, 16
        %v4987 = vrot.slane %v4985, 4
        %v4988 = vor.u32 %v4987, %v4983
        %v4989 = vrot.slane %v4988, 4
        %v4991 = vshll.u32 %v4756, 16
        %v4993 = vrot.slane %v4991, 5
        %v4994 = vsel %vm992, %v4989, %v4993
        %v4996 = vshrl.u32 %v4757, 16
        %v4998 = vrot.slane %v4996, 4
        %v4999 = vshll.u32 %v4757, 16
        %v5001 = vrot.slane %v4999, 5
        %v5002 = vor.u32 %v4998, %v5001
        %v5003 = vrot.slane %v5002, 4
        %v5005 = vshll.u32 %v4758, 16
        %v5007 = vrot.slane %v5005, 5
        %v5008 = vsel %vm992, %v5003, %v5007
        %v5009 = vshrl.u32 %v4758, 16
        %v5011 = vrot.slane %v5009, 4
        %v5012 = vor.u32 %v5011, %v5007
        %v5013 = vrot.slane %v5012, 4
        %v5015 = vshll.u32 %v4759, 16
        %v5017 = vrot.slane %v5015, 5
        %v5018 = vsel %vm992, %v5013, %v5017
        %v5019 = vshrl.u32 %v4759, 16
        %v5021 = vrot.slane %v5019, 4
        %v5022 = vor.u32 %v5021, %v5017
        %v5023 = vrot.slane %v5022, 4
        %v5025 = vshll.u32 %v4760, 16
        %v5027 = vrot.slane %v5025, 5
        %v5028 = vsel %vm992, %v5023, %v5027
        %v5029 = vshrl.u32 %v4760, 16
        %v5031 = vrot.slane %v5029, 4
        %v5032 = vor.u32 %v5031, %v5027
        %v5033 = vrot.slane %v5032, 4
        %v5035 = vshll.u32 %v4761, 16
        %v5037 = vrot.slane %v5035, 5
        %v5038 = vsel %vm992, %v5033, %v5037
        %v5040 = vshrl.u32 %v4762, 16
        %v5042 = vrot.slane %v5040, 4
        %v5043 = vshll.u32 %v4762, 16
        %v5045 = vrot.slane %v5043, 5
        %v5046 = vor.u32 %v5042, %v5045
        %v5047 = vrot.slane %v5046, 4
        %v5049 = vshll.u32 %v4763, 16
        %v5051 = vrot.slane %v5049, 5
        %v5052 = vsel %vm992, %v5047, %v5051
        %v5053 = vshrl.u32 %v4763, 16
        %v5055 = vrot.slane %v5053, 4
        %v5056 = vor.u32 %v5055, %v5051
        %v5057 = vrot.slane %v5056, 4
        %v5059 = vshll.u32 %v4764, 16
        %v5061 = vrot.slane %v5059, 5
        %v5062 = vsel %vm992, %v5057, %v5061
        %v5063 = vshrl.u32 %v4764, 16
        %v5065 = vrot.slane %v5063, 4
        %v5066 = vor.u32 %v5065, %v5061
        %v5067 = vrot.slane %v5066, 4
        %v5069 = vshll.u32 %v4765, 16
        %v5071 = vrot.slane %v5069, 5
        %v5072 = vsel %vm992, %v5067, %v5071
        %v5073 = vshrl.u32 %v4765, 16
        %v5075 = vrot.slane %v5073, 4
        %v5076 = vor.u32 %v5075, %v5071
        %v5077 = vrot.slane %v5076, 4
        %v5079 = vshll.u32 %v4766, 16
        %v5081 = vrot.slane %v5079, 5
        %v5082 = vsel %vm992, %v5077, %v5081
        %v5084 = vshrl.u32 %v4767, 16
        %v5086 = vrot.slane %v5084, 4
        %v5087 = vshll.u32 %v4767, 16
        %v5089 = vrot.slane %v5087, 5
        %v5090 = vor.u32 %v5086, %v5089
        %v5091 = vrot.slane %v5090, 4
        %v5093 = vshll.u32 %v4768, 16
        %v5095 = vrot.slane %v5093, 5
        %v5096 = vsel %vm992, %v5091, %v5095
        %v5097 = vshrl.u32 %v4768, 16
        %v5099 = vrot.slane %v5097, 4
        %v5100 = vor.u32 %v5099, %v5095
        %v5101 = vrot.slane %v5100, 4
        %v5103 = vshll.u32 %v4769, 16
        %v5105 = vrot.slane %v5103, 5
        %v5106 = vsel %vm992, %v5101, %v5105
        %v5107 = vshrl.u32 %v4769, 16
        %v5109 = vrot.slane %v5107, 4
        %v5110 = vor.u32 %v5109, %v5105
        %v5111 = vrot.slane %v5110, 4
        %v5113 = vshll.u32 %v4770, 16
        %v5115 = vrot.slane %v5113, 5
        %v5116 = vsel %vm992, %v5111, %v5115
        %v5117 = vshrl.u32 %v4770, 16
        %v5119 = vrot.slane %v5117, 4
        %v5120 = vor.u32 %v5119, %v5115
        %v5121 = vrot.slane %v5120, 4
        %v5123 = vshll.u32 %v4771, 16
        %v5125 = vrot.slane %v5123, 5
        %v5126 = vsel %vm992, %v5121, %v5125
        %v5128 = vshrl.u32 %v4772, 16
        %v5130 = vrot.slane %v5128, 4
        %v5131 = vshll.u32 %v4772, 16
        %v5133 = vrot.slane %v5131, 5
        %v5134 = vor.u32 %v5130, %v5133
        %v5135 = vrot.slane %v5134, 4
        %v5137 = vshll.u32 %v4773, 16
        %v5139 = vrot.slane %v5137, 5
        %v5140 = vsel %vm992, %v5135, %v5139
        %v5141 = vshrl.u32 %v4773, 16
        %v5143 = vrot.slane %v5141, 4
        %v5144 = vor.u32 %v5143, %v5139
        %v5145 = vrot.slane %v5144, 4
        %v5147 = vshll.u32 %v4774, 16
        %v5149 = vrot.slane %v5147, 5
        %v5150 = vsel %vm992, %v5145, %v5149
        %v5151 = vshrl.u32 %v4774, 16
        %v5153 = vrot.slane %v5151, 4
        %v5154 = vor.u32 %v5153, %v5149
        %v5155 = vrot.slane %v5154, 4
        %v5157 = vshll.u32 %v4775, 16
        %v5159 = vrot.slane %v5157, 5
        %v5160 = vsel %vm992, %v5155, %v5159
        %v5161 = vshrl.u32 %v4775, 16
        %v5163 = vrot.slane %v5161, 4
        %v5164 = vor.u32 %v5163, %v5159
        %v5165 = vrot.slane %v5164, 4
        %v5167 = vshll.u32 %v4776, 16
        %v5169 = vrot.slane %v5167, 5
        %v5170 = vsel %vm992, %v5165, %v5169
        %v5172 = vshrl.u32 %v4777, 16
        %v5174 = vrot.slane %v5172, 4
        %v5175 = vshll.u32 %v4777, 16
        %v5177 = vrot.slane %v5175, 5
        %v5178 = vor.u32 %v5174, %v5177
        %v5179 = vrot.slane %v5178, 4
        %v5181 = vshll.u32 %v4778, 16
        %v5183 = vrot.slane %v5181, 5
        %v5184 = vsel %vm992, %v5179, %v5183
        %v5185 = vshrl.u32 %v4778, 16
        %v5187 = vrot.slane %v5185, 4
        %v5188 = vor.u32 %v5187, %v5183
        %v5189 = vrot.slane %v5188, 4
        %v5191 = vshll.u32 %v4779, 16
        %v5193 = vrot.slane %v5191, 5
        %v5194 = vsel %vm992, %v5189, %v5193
        %v5195 = vshrl.u32 %v4779, 16
        %v5197 = vrot.slane %v5195, 4
        %v5198 = vor.u32 %v5197, %v5193
        %v5199 = vrot.slane %v5198, 4
        %v5201 = vshll.u32 %v4780, 16
        %v5203 = vrot.slane %v5201, 5
        %v5204 = vsel %vm992, %v5199, %v5203
        %v5205 = vshrl.u32 %v4780, 16
        %v5207 = vrot.slane %v5205, 4
        %v5208 = vor.u32 %v5207, %v5203
        %v5209 = vrot.slane %v5208, 4
        %v5211 = vshll.u32 %v4781, 16
        %v5213 = vrot.slane %v5211, 5
        %v5214 = vsel %vm992, %v5209, %v5213
        %v5216 = vshrl.u32 %v4782, 16
        %v5218 = vrot.slane %v5216, 4
        %v5219 = vshll.u32 %v4782, 16
        %v5221 = vrot.slane %v5219, 5
        %v5222 = vor.u32 %v5218, %v5221
        %v5223 = vrot.slane %v5222, 4
        %v5225 = vshll.u32 %v4783, 16
        %v5227 = vrot.slane %v5225, 5
        %v5228 = vsel %vm992, %v5223, %v5227
        %v5229 = vshrl.u32 %v4783, 16
        %v5231 = vrot.slane %v5229, 4
        %v5232 = vor.u32 %v5231, %v5227
        %v5233 = vrot.slane %v5232, 4
        %v5235 = vshll.u32 %v4784, 16
        %v5237 = vrot.slane %v5235, 5
        %v5238 = vsel %vm992, %v5233, %v5237
        %v5239 = vshrl.u32 %v4784, 16
        %v5241 = vrot.slane %v5239, 4
        %v5242 = vor.u32 %v5241, %v5237
        %v5243 = vrot.slane %v5242, 4
        %v5245 = vshll.u32 %v4785, 16
        %v5247 = vrot.slane %v5245, 5
        %v5248 = vsel %vm992, %v5243, %v5247
        %v5249 = vshrl.u32 %v4785, 16
        %v5251 = vrot.slane %v5249, 4
        %v5252 = vor.u32 %v5251, %v5247
        %v5253 = vrot.slane %v5252, 4
        %v5255 = vshll.u32 %v4786, 16
        %v5257 = vrot.slane %v5255, 5
        %v5258 = vsel %vm992, %v5253, %v5257
        %v5260 = vshrl.u32 %v4787, 16
        %v5262 = vrot.slane %v5260, 4
        %v5263 = vshll.u32 %v4787, 16
        %v5265 = vrot.slane %v5263, 5
        %v5266 = vor.u32 %v5262, %v5265
        %v5267 = vrot.slane %v5266, 4
        %v5269 = vshll.u32 %v4788, 16
        %v5271 = vrot.slane %v5269, 5
        %v5272 = vsel %vm992, %v5267, %v5271
        %v5273 = vshrl.u32 %v4788, 16
        %v5275 = vrot.slane %v5273, 4
        %v5276 = vor.u32 %v5275, %v5271
        %v5277 = vrot.slane %v5276, 4
        %v5279 = vshll.u32 %v4789, 16
        %v5281 = vrot.slane %v5279, 5
        %v5282 = vsel %vm992, %v5277, %v5281
        %v5283 = vshrl.u32 %v4789, 16
        %v5285 = vrot.slane %v5283, 4
        %v5286 = vor.u32 %v5285, %v5281
        %v5287 = vrot.slane %v5286, 4
        %v5289 = vshll.u32 %v4790, 16
        %v5291 = vrot.slane %v5289, 5
        %v5292 = vsel %vm992, %v5287, %v5291
        %v5293 = vshrl.u32 %v4790, 16
        %v5295 = vrot.slane %v5293, 4
        %v5296 = vor.u32 %v5295, %v5291
        %v5297 = vrot.slane %v5296, 4
        %v5299 = vshll.u32 %v4791, 16
        %v5301 = vrot.slane %v5299, 5
        %v5302 = vsel %vm992, %v5297, %v5301
        %v5304 = vshrl.u32 %v4792, 16
        %v5306 = vrot.slane %v5304, 4
        %v5307 = vshll.u32 %v4792, 16
        %v5309 = vrot.slane %v5307, 5
        %v5310 = vor.u32 %v5306, %v5309
        %v5311 = vrot.slane %v5310, 4
        %v5313 = vshll.u32 %v4793, 16
        %v5315 = vrot.slane %v5313, 5
        %v5316 = vsel %vm992, %v5311, %v5315
        %v5317 = vshrl.u32 %v4793, 16
        %v5319 = vrot.slane %v5317, 4
        %v5320 = vor.u32 %v5319, %v5315
        %v5321 = vrot.slane %v5320, 4
        %v5323 = vshll.u32 %v4794, 16
        %v5325 = vrot.slane %v5323, 5
        %v5326 = vsel %vm992, %v5321, %v5325
        %v5327 = vshrl.u32 %v4794, 16
        %v5329 = vrot.slane %v5327, 4
        %v5330 = vor.u32 %v5329, %v5325
        %v5331 = vrot.slane %v5330, 4
        %v5333 = vshll.u32 %v4795, 16
        %v5335 = vrot.slane %v5333, 5
        %v5336 = vsel %vm992, %v5331, %v5335
        %v5337 = vshrl.u32 %v4795, 16
        %v5339 = vrot.slane %v5337, 4
        %v5340 = vor.u32 %v5339, %v5335
        %v5341 = vrot.slane %v5340, 4
        %v5343 = vshll.u32 %v4796, 16
        %v5345 = vrot.slane %v5343, 5
        %v5346 = vsel %vm992, %v5341, %v5345
        %v5348 = vshrl.u32 %v4797, 16
        %v5350 = vrot.slane %v5348, 4
        %v5351 = vshll.u32 %v4797, 16
        %v5353 = vrot.slane %v5351, 5
        %v5354 = vor.u32 %v5350, %v5353
        %v5355 = vrot.slane %v5354, 4
        %v5357 = vshll.u32 %v4798, 16
        %v5359 = vrot.slane %v5357, 5
        %v5360 = vsel %vm992, %v5355, %v5359
        %v5361 = vshrl.u32 %v4798, 16
        %v5363 = vrot.slane %v5361, 4
        %v5364 = vor.u32 %v5363, %v5359
        %v5365 = vrot.slane %v5364, 4
        %v5367 = vshll.u32 %v4799, 16
        %v5369 = vrot.slane %v5367, 5
        %v5370 = vsel %vm992, %v5365, %v5369
        %v5371 = vshrl.u32 %v4799, 16
        %v5373 = vrot.slane %v5371, 4
        %v5374 = vor.u32 %v5373, %v5369
        %v5375 = vrot.slane %v5374, 4
        %v5377 = vshll.u32 %v4800, 16
        %v5379 = vrot.slane %v5377, 5
        %v5380 = vsel %vm992, %v5375, %v5379
        %v5381 = vshrl.u32 %v4800, 16
        %v5383 = vrot.slane %v5381, 4
        %v5384 = vor.u32 %v5383, %v5379
        %v5385 = vrot.slane %v5384, 4
        %v5387 = vshll.u32 %v4801, 16
        %v5389 = vrot.slane %v5387, 5
        %v5390 = vsel %vm992, %v5385, %v5389
        %v5392 = vshrl.u32 %v4802, 16
        %v5394 = vrot.slane %v5392, 4
        %v5395 = vshll.u32 %v4802, 16
        %v5397 = vrot.slane %v5395, 5
        %v5398 = vor.u32 %v5394, %v5397
        %v5399 = vrot.slane %v5398, 4
        %v5401 = vshll.u32 %v4803, 16
        %v5403 = vrot.slane %v5401, 5
        %v5404 = vsel %vm992, %v5399, %v5403
        %v5405 = vshrl.u32 %v4803, 16
        %v5407 = vrot.slane %v5405, 4
        %v5408 = vor.u32 %v5407, %v5403
        %v5409 = vrot.slane %v5408, 4
        %v5411 = vshll.u32 %v4804, 16
        %v5413 = vrot.slane %v5411, 5
        %v5414 = vsel %vm992, %v5409, %v5413
        %v5415 = vshrl.u32 %v4804, 16
        %v5417 = vrot.slane %v5415, 4
        %v5418 = vor.u32 %v5417, %v5413
        %v5419 = vrot.slane %v5418, 4
        %v5421 = vshll.u32 %v4805, 16
        %v5423 = vrot.slane %v5421, 5
        %v5424 = vsel %vm992, %v5419, %v5423
        %v5425 = vshrl.u32 %v4805, 16
        %v5427 = vrot.slane %v5425, 4
        %v5428 = vor.u32 %v5427, %v5423
        %v5429 = vrot.slane %v5428, 4
        %v5431 = vshll.u32 %v4806, 16
        %v5433 = vrot.slane %v5431, 5
        %v5434 = vsel %vm992, %v5429, %v5433
        %v5436 = vshrl.u32 %v4807, 16
        %v5438 = vrot.slane %v5436, 4
        %v5439 = vshll.u32 %v4807, 16
        %v5441 = vrot.slane %v5439, 5
        %v5442 = vor.u32 %v5438, %v5441
        %v5443 = vrot.slane %v5442, 4
        %v5445 = vshll.u32 %v4808, 16
        %v5447 = vrot.slane %v5445, 5
        %v5448 = vsel %vm992, %v5443, %v5447
        %v5449 = vshrl.u32 %v4808, 16
        %v5451 = vrot.slane %v5449, 4
        %v5452 = vor.u32 %v5451, %v5447
        %v5453 = vrot.slane %v5452, 4
        %v5455 = vshll.u32 %v4809, 16
        %v5457 = vrot.slane %v5455, 5
        %v5458 = vsel %vm992, %v5453, %v5457
        %v5459 = vshrl.u32 %v4809, 16
        %v5461 = vrot.slane %v5459, 4
        %v5462 = vor.u32 %v5461, %v5457
        %v5463 = vrot.slane %v5462, 4
        %v5465 = vshll.u32 %v4810, 16
        %v5467 = vrot.slane %v5465, 5
        %v5468 = vsel %vm992, %v5463, %v5467
        %v5469 = vshrl.u32 %v4810, 16
        %v5471 = vrot.slane %v5469, 4
        %v5472 = vor.u32 %v5471, %v5467
        %v5473 = vrot.slane %v5472, 4
        %v5475 = vshll.u32 %v4811, 16
        %v5477 = vrot.slane %v5475, 5
        %v5478 = vsel %vm992, %v5473, %v5477
        %v5480 = vshrl.u32 %v4812, 16
        %v5482 = vrot.slane %v5480, 4
        %v5483 = vshll.u32 %v4812, 16
        %v5485 = vrot.slane %v5483, 5
        %v5486 = vor.u32 %v5482, %v5485
        %v5487 = vrot.slane %v5486, 4
        %v5489 = vshll.u32 %v4813, 16
        %v5491 = vrot.slane %v5489, 5
        %v5492 = vsel %vm992, %v5487, %v5491
        %v5493 = vshrl.u32 %v4813, 16
        %v5495 = vrot.slane %v5493, 4
        %v5496 = vor.u32 %v5495, %v5491
        %v5497 = vrot.slane %v5496, 4
        %v5499 = vshll.u32 %v4814, 16
        %v5501 = vrot.slane %v5499, 5
        %v5502 = vsel %vm992, %v5497, %v5501
        %v5503 = vshrl.u32 %v4814, 16
        %v5505 = vrot.slane %v5503, 4
        %v5506 = vor.u32 %v5505, %v5501
        %v5507 = vrot.slane %v5506, 4
        %v5509 = vshll.u32 %v4815, 16
        %v5511 = vrot.slane %v5509, 5
        %v5512 = vsel %vm992, %v5507, %v5511
        %v5513 = vshrl.u32 %v4815, 16
        %v5515 = vrot.slane %v5513, 4
        %v5516 = vor.u32 %v5515, %v5511
        %v5517 = vrot.slane %v5516, 4
        %v5519 = vshll.u32 %v4816, 16
        %v5521 = vrot.slane %v5519, 5
        %v5522 = vsel %vm992, %v5517, %v5521
        %v5524 = vshrl.u32 %v4817, 16
        %v5526 = vrot.slane %v5524, 4
        %v5527 = vshll.u32 %v4817, 16
        %v5529 = vrot.slane %v5527, 5
        %v5530 = vor.u32 %v5526, %v5529
        %v5531 = vrot.slane %v5530, 4
        %v5533 = vshll.u32 %v4818, 16
        %v5535 = vrot.slane %v5533, 5
        %v5536 = vsel %vm992, %v5531, %v5535
        %v5537 = vshrl.u32 %v4818, 16
        %v5539 = vrot.slane %v5537, 4
        %v5540 = vor.u32 %v5539, %v5535
        %v5541 = vrot.slane %v5540, 4
        %v5543 = vshll.u32 %v4819, 16
        %v5545 = vrot.slane %v5543, 5
        %v5546 = vsel %vm992, %v5541, %v5545
        %v5547 = vshrl.u32 %v4819, 16
        %v5549 = vrot.slane %v5547, 4
        %v5550 = vor.u32 %v5549, %v5545
        %v5551 = vrot.slane %v5550, 4
        %v5553 = vshll.u32 %v4820, 16
        %v5555 = vrot.slane %v5553, 5
        %v5556 = vsel %vm992, %v5551, %v5555
        %v5557 = vshrl.u32 %v4820, 16
        %v5559 = vrot.slane %v5557, 4
        %v5560 = vor.u32 %v5559, %v5555
        %v5561 = vrot.slane %v5560, 4
        %v5563 = vshll.u32 %v4821, 16
        %v5565 = vrot.slane %v5563, 5
        %v5566 = vsel %vm992, %v5561, %v5565
        %v5568 = vshrl.u32 %v4822, 16
        %v5570 = vrot.slane %v5568, 4
        %v5571 = vshll.u32 %v4822, 16
        %v5573 = vrot.slane %v5571, 5
        %v5574 = vor.u32 %v5570, %v5573
        %v5575 = vrot.slane %v5574, 4
        %v5577 = vshll.u32 %v4823, 16
        %v5579 = vrot.slane %v5577, 5
        %v5580 = vsel %vm992, %v5575, %v5579
        %v5581 = vshrl.u32 %v4823, 16
        %v5583 = vrot.slane %v5581, 4
        %v5584 = vor.u32 %v5583, %v5579
        %v5585 = vrot.slane %v5584, 4
        %v5587 = vshll.u32 %v4824, 16
        %v5589 = vrot.slane %v5587, 5
        %v5590 = vsel %vm992, %v5585, %v5589
        %v5591 = vshrl.u32 %v4824, 16
        %v5593 = vrot.slane %v5591, 4
        %v5594 = vor.u32 %v5593, %v5589
        %v5595 = vrot.slane %v5594, 4
        %v5597 = vshll.u32 %v4825, 16
        %v5599 = vrot.slane %v5597, 5
        %v5600 = vsel %vm992, %v5595, %v5599
        %v5601 = vshrl.u32 %v4825, 16
        %v5603 = vrot.slane %v5601, 4
        %v5604 = vor.u32 %v5603, %v5599
        %v5605 = vrot.slane %v5604, 4
        %v5607 = vshll.u32 %v4826, 16
        %v5609 = vrot.slane %v5607, 5
        %v5610 = vsel %vm992, %v5605, %v5609
        %v5612 = vshrl.u32 %v4827, 16
        %v5614 = vrot.slane %v5612, 4
        %v5615 = vshll.u32 %v4827, 16
        %v5617 = vrot.slane %v5615, 5
        %v5618 = vor.u32 %v5614, %v5617
        %v5619 = vrot.slane %v5618, 4
        %v5621 = vshll.u32 %v4828, 16
        %v5623 = vrot.slane %v5621, 5
        %v5624 = vsel %vm992, %v5619, %v5623
        %v5625 = vshrl.u32 %v4828, 16
        %v5627 = vrot.slane %v5625, 4
        %v5628 = vor.u32 %v5627, %v5623
        %v5629 = vrot.slane %v5628, 4
        %v5631 = vshll.u32 %v4829, 16
        %v5633 = vrot.slane %v5631, 5
        %v5634 = vsel %vm992, %v5629, %v5633
        %v5635 = vshrl.u32 %v4829, 16
        %v5637 = vrot.slane %v5635, 4
        %v5638 = vor.u32 %v5637, %v5633
        %v5639 = vrot.slane %v5638, 4
        %v5641 = vshll.u32 %v4830, 16
        %v5643 = vrot.slane %v5641, 5
        %v5644 = vsel %vm992, %v5639, %v5643
        %v5645 = vshrl.u32 %v4830, 16
        %v5647 = vrot.slane %v5645, 4
        %v5648 = vor.u32 %v5647, %v5643
        %v5649 = vrot.slane %v5648, 4
        %v5651 = vshll.u32 %v4831, 16
        %v5653 = vrot.slane %v5651, 5
        %v5654 = vsel %vm992, %v5649, %v5653
        %v5656 = vshrl.u32 %v4832, 16
        %v5658 = vrot.slane %v5656, 4
        %v5659 = vshll.u32 %v4832, 16
        %v5661 = vrot.slane %v5659, 5
        %v5662 = vor.u32 %v5658, %v5661
        %v5663 = vrot.slane %v5662, 4
        %v5665 = vshll.u32 %v4833, 16
        %v5667 = vrot.slane %v5665, 5
        %v5668 = vsel %vm992, %v5663, %v5667
        %v5669 = vshrl.u32 %v4833, 16
        %v5671 = vrot.slane %v5669, 4
        %v5672 = vor.u32 %v5671, %v5667
        %v5673 = vrot.slane %v5672, 4
        %v5675 = vshll.u32 %v4834, 16
        %v5677 = vrot.slane %v5675, 5
        %v5678 = vsel %vm992, %v5673, %v5677
        %v5679 = vshrl.u32 %v4834, 16
        %v5681 = vrot.slane %v5679, 4
        %v5682 = vor.u32 %v5681, %v5677
        %v5683 = vrot.slane %v5682, 4
        %v5685 = vshll.u32 %v4835, 16
        %v5687 = vrot.slane %v5685, 5
        %v5688 = vsel %vm992, %v5683, %v5687
        %v5689 = vshrl.u32 %v4835, 16
        %v5691 = vrot.slane %v5689, 4
        %v5692 = vor.u32 %v5691, %v5687
        %v5693 = vrot.slane %v5692, 4
        %v5695 = vshll.u32 %v4836, 16
        %v5697 = vrot.slane %v5695, 5
        %v5698 = vsel %vm992, %v5693, %v5697
        %v5700 = vshrl.u32 %v4837, 16
        %v5702 = vrot.slane %v5700, 4
        %v5703 = vshll.u32 %v4837, 16
        %v5705 = vrot.slane %v5703, 5
        %v5706 = vor.u32 %v5702, %v5705
        %v5707 = vrot.slane %v5706, 4
        %v5709 = vshll.u32 %v4838, 16
        %v5711 = vrot.slane %v5709, 5
        %v5712 = vsel %vm992, %v5707, %v5711
        %v5713 = vshrl.u32 %v4838, 16
        %v5715 = vrot.slane %v5713, 4
        %v5716 = vor.u32 %v5715, %v5711
        %v5717 = vrot.slane %v5716, 4
        %v5719 = vshll.u32 %v4839, 16
        %v5721 = vrot.slane %v5719, 5
        %v5722 = vsel %vm992, %v5717, %v5721
        %v5723 = vshrl.u32 %v4839, 16
        %v5725 = vrot.slane %v5723, 4
        %v5726 = vor.u32 %v5725, %v5721
        %v5727 = vrot.slane %v5726, 4
        %v5729 = vshll.u32 %v4840, 16
        %v5731 = vrot.slane %v5729, 5
        %v5732 = vsel %vm992, %v5727, %v5731
        %v5733 = vshrl.u32 %v4840, 16
        %v5735 = vrot.slane %v5733, 4
        %v5736 = vor.u32 %v5735, %v5731
        %v5737 = vrot.slane %v5736, 4
        %v5739 = vshll.u32 %v4841, 16
        %v5741 = vrot.slane %v5739, 5
        %v5742 = vsel %vm992, %v5737, %v5741
        %v5744 = vshrl.u32 %v4842, 16
        %v5746 = vrot.slane %v5744, 4
        %v5747 = vshll.u32 %v4842, 16
        %v5749 = vrot.slane %v5747, 5
        %v5750 = vor.u32 %v5746, %v5749
        %v5751 = vrot.slane %v5750, 4
        %v5753 = vshll.u32 %v4843, 16
        %v5755 = vrot.slane %v5753, 5
        %v5756 = vsel %vm992, %v5751, %v5755
        %v5757 = vshrl.u32 %v4843, 16
        %v5759 = vrot.slane %v5757, 4
        %v5760 = vor.u32 %v5759, %v5755
        %v5761 = vrot.slane %v5760, 4
        %v5763 = vshll.u32 %v4844, 16
        %v5765 = vrot.slane %v5763, 5
        %v5766 = vsel %vm992, %v5761, %v5765
        %v5767 = vshrl.u32 %v4844, 16
        %v5769 = vrot.slane %v5767, 4
        %v5770 = vor.u32 %v5769, %v5765
        %v5771 = vrot.slane %v5770, 4
        %v5773 = vshll.u32 %v4845, 16
        %v5775 = vrot.slane %v5773, 5
        %v5776 = vsel %vm992, %v5771, %v5775
        %v5777 = vshrl.u32 %v4845, 16
        %v5779 = vrot.slane %v5777, 4
        %v5780 = vor.u32 %v5779, %v5775
        %v5781 = vrot.slane %v5780, 4
        %v5783 = vshll.u32 %v4846, 16
        %v5785 = vrot.slane %v5783, 5
        %v5786 = vsel %vm992, %v5781, %v5785
        %v5788 = vshrl.u32 %v4847, 16
        %v5790 = vrot.slane %v5788, 4
        %v5791 = vshll.u32 %v4847, 16
        %v5793 = vrot.slane %v5791, 5
        %v5794 = vor.u32 %v5790, %v5793
        %v5795 = vrot.slane %v5794, 4
        %v5797 = vshll.u32 %v4848, 16
        %v5799 = vrot.slane %v5797, 5
        %v5800 = vsel %vm992, %v5795, %v5799
        %v5801 = vshrl.u32 %v4848, 16
        %v5803 = vrot.slane %v5801, 4
        %v5804 = vor.u32 %v5803, %v5799
        %v5805 = vrot.slane %v5804, 4
        %v5807 = vshll.u32 %v4849, 16
        %v5809 = vrot.slane %v5807, 5
        %v5810 = vsel %vm992, %v5805, %v5809
        %v5811 = vshrl.u32 %v4849, 16
        %v5813 = vrot.slane %v5811, 4
        %v5814 = vor.u32 %v5813, %v5809
        %v5815 = vrot.slane %v5814, 4
        %v5817 = vshll.u32 %v4850, 16
        %v5819 = vrot.slane %v5817, 5
        %v5820 = vsel %vm992, %v5815, %v5819
        %v5821 = vshrl.u32 %v4850, 16
        %v5823 = vrot.slane %v5821, 4
        %v5824 = vor.u32 %v5823, %v5819
        %v5825 = vrot.slane %v5824, 4
        %v5827 = vshll.u32 %v4851, 16
        %v5829 = vrot.slane %v5827, 5
        %v5830 = vsel %vm992, %v5825, %v5829
        %v5832 = vshrl.u32 %v4852, 16
        %v5834 = vrot.slane %v5832, 4
        %v5835 = vshll.u32 %v4852, 16
        %v5837 = vrot.slane %v5835, 5
        %v5838 = vor.u32 %v5834, %v5837
        %v5839 = vrot.slane %v5838, 4
        %v5841 = vshll.u32 %v4853, 16
        %v5843 = vrot.slane %v5841, 5
        %v5844 = vsel %vm992, %v5839, %v5843
        %v5845 = vshrl.u32 %v4853, 16
        %v5847 = vrot.slane %v5845, 4
        %v5848 = vor.u32 %v5847, %v5843
        %v5849 = vrot.slane %v5848, 4
        %v5851 = vshll.u32 %v4854, 16
        %v5853 = vrot.slane %v5851, 5
        %v5854 = vsel %vm992, %v5849, %v5853
        %v5855 = vshrl.u32 %v4854, 16
        %v5857 = vrot.slane %v5855, 4
        %v5858 = vor.u32 %v5857, %v5853
        %v5859 = vrot.slane %v5858, 4
        %v5861 = vshll.u32 %v4855, 16
        %v5863 = vrot.slane %v5861, 5
        %v5864 = vsel %vm992, %v5859, %v5863
        %v5865 = vshrl.u32 %v4855, 16
        %v5867 = vrot.slane %v5865, 4
        %v5868 = vor.u32 %v5867, %v5863
        %v5869 = vrot.slane %v5868, 4
        %v5871 = vshll.u32 %v4856, 16
        %v5873 = vrot.slane %v5871, 5
        %v5874 = vsel %vm992, %v5869, %v5873
        %v5876 = vshrl.u32 %v4857, 16
        %v5878 = vrot.slane %v5876, 4
        %v5879 = vshll.u32 %v4857, 16
        %v5881 = vrot.slane %v5879, 5
        %v5882 = vor.u32 %v5878, %v5881
        %v5883 = vrot.slane %v5882, 4
        %v5885 = vshll.u32 %v4858, 16
        %v5887 = vrot.slane %v5885, 5
        %v5888 = vsel %vm992, %v5883, %v5887
        %v5889 = vshrl.u32 %v4858, 16
        %v5891 = vrot.slane %v5889, 4
        %v5892 = vor.u32 %v5891, %v5887
        %v5893 = vrot.slane %v5892, 4
        %v5895 = vshll.u32 %v4859, 16
        %v5897 = vrot.slane %v5895, 5
        %v5898 = vsel %vm992, %v5893, %v5897
        %v5899 = vshrl.u32 %v4859, 16
        %v5901 = vrot.slane %v5899, 4
        %v5902 = vor.u32 %v5901, %v5897
        %v5903 = vrot.slane %v5902, 4
        %v5905 = vshll.u32 %v4860, 16
        %v5907 = vrot.slane %v5905, 5
        %v5908 = vsel %vm992, %v5903, %v5907
        %v5909 = vshrl.u32 %v4860, 16
        %v5911 = vrot.slane %v5909, 4
        %v5912 = vor.u32 %v5911, %v5907
        %v5913 = vrot.slane %v5912, 4
        %v5915 = vshll.u32 %v4861, 16
        %v5917 = vrot.slane %v5915, 5
        %v5918 = vsel %vm992, %v5913, %v5917
        %v5920 = vshrl.u32 %v4862, 16
        %v5922 = vrot.slane %v5920, 4
        %v5923 = vshll.u32 %v4862, 16
        %v5925 = vrot.slane %v5923, 5
        %v5926 = vor.u32 %v5922, %v5925
        %v5927 = vrot.slane %v5926, 4
        %v5929 = vshll.u32 %v4863, 16
        %v5931 = vrot.slane %v5929, 5
        %v5932 = vsel %vm992, %v5927, %v5931
        %v5933 = vshrl.u32 %v4863, 16
        %v5935 = vrot.slane %v5933, 4
        %v5936 = vor.u32 %v5935, %v5931
        %v5937 = vrot.slane %v5936, 4
        %v5939 = vshll.u32 %v4864, 16
        %v5941 = vrot.slane %v5939, 5
        %v5942 = vsel %vm992, %v5937, %v5941
        %v5943 = vshrl.u32 %v4864, 16
        %v5945 = vrot.slane %v5943, 4
        %v5946 = vor.u32 %v5945, %v5941
        %v5947 = vrot.slane %v5946, 4
        %v5949 = vshll.u32 %v4865, 16
        %v5951 = vrot.slane %v5949, 5
        %v5952 = vsel %vm992, %v5947, %v5951
        %v5953 = vshrl.u32 %v4865, 16
        %v5955 = vrot.slane %v5953, 4
        %v5956 = vor.u32 %v5955, %v5951
        %v5957 = vrot.slane %v5956, 4
        %v5959 = vshll.u32 %v4866, 16
        %v5961 = vrot.slane %v5959, 5
        %v5962 = vsel %vm992, %v5957, %v5961
        %v5964 = vshrl.u32 %v4867, 16
        %v5966 = vrot.slane %v5964, 4
        %v5967 = vshll.u32 %v4867, 16
        %v5969 = vrot.slane %v5967, 5
        %v5970 = vor.u32 %v5966, %v5969
        %v5971 = vrot.slane %v5970, 4
        %v5973 = vshll.u32 %v4868, 16
        %v5975 = vrot.slane %v5973, 5
        %v5976 = vsel %vm992, %v5971, %v5975
        %v5977 = vshrl.u32 %v4868, 16
        %v5979 = vrot.slane %v5977, 4
        %v5980 = vor.u32 %v5979, %v5975
        %v5981 = vrot.slane %v5980, 4
        %v5983 = vshll.u32 %v4869, 16
        %v5985 = vrot.slane %v5983, 5
        %v5986 = vsel %vm992, %v5981, %v5985
        %v5987 = vshrl.u32 %v4869, 16
        %v5989 = vrot.slane %v5987, 4
        %v5990 = vor.u32 %v5989, %v5985
        %v5991 = vrot.slane %v5990, 4
        %v5993 = vshll.u32 %v4870, 16
        %v5995 = vrot.slane %v5993, 5
        %v5996 = vsel %vm992, %v5991, %v5995
        %v5997 = vshrl.u32 %v4870, 16
        %v5999 = vrot.slane %v5997, 4
        %v6000 = vor.u32 %v5999, %v5995
        %v6001 = vrot.slane %v6000, 4
        %v6003 = vshll.u32 %v4871, 16
        %v6005 = vrot.slane %v6003, 5
        %v6006 = vsel %vm992, %v6001, %v6005
        %v6008 = vshrl.u32 %v4872, 16
        %v6010 = vrot.slane %v6008, 4
        %v6011 = vshll.u32 %v4872, 16
        %v6013 = vrot.slane %v6011, 5
        %v6014 = vor.u32 %v6010, %v6013
        %v6015 = vrot.slane %v6014, 4
        %v6017 = vshll.u32 %v4873, 16
        %v6019 = vrot.slane %v6017, 5
        %v6020 = vsel %vm992, %v6015, %v6019
        %v6021 = vshrl.u32 %v4873, 16
        %v6023 = vrot.slane %v6021, 4
        %v6024 = vor.u32 %v6023, %v6019
        %v6025 = vrot.slane %v6024, 4
        %v6027 = vshll.u32 %v4874, 16
        %v6029 = vrot.slane %v6027, 5
        %v6030 = vsel %vm992, %v6025, %v6029
        %v6031 = vshrl.u32 %v4874, 16
        %v6033 = vrot.slane %v6031, 4
        %v6034 = vor.u32 %v6033, %v6029
        %v6035 = vrot.slane %v6034, 4
        %v6037 = vshll.u32 %v4875, 16
        %v6039 = vrot.slane %v6037, 5
        %v6040 = vsel %vm992, %v6035, %v6039
        %v6041 = vshrl.u32 %v4875, 16
        %v6043 = vrot.slane %v6041, 4
        %v6044 = vor.u32 %v6043, %v6039
        %v6045 = vrot.slane %v6044, 4
        %v6047 = vshll.u32 %v4876, 16
        %v6049 = vrot.slane %v6047, 5
        %v6050 = vsel %vm992, %v6045, %v6049
        %v6052 = vshrl.u32 %v4877, 16
        %v6054 = vrot.slane %v6052, 4
        %v6055 = vshll.u32 %v4877, 16
        %v6057 = vrot.slane %v6055, 5
        %v6058 = vor.u32 %v6054, %v6057
        %v6059 = vrot.slane %v6058, 4
        %v6061 = vshll.u32 %v4878, 16
        %v6063 = vrot.slane %v6061, 5
        %v6064 = vsel %vm992, %v6059, %v6063
        %v6065 = vshrl.u32 %v4878, 16
        %v6067 = vrot.slane %v6065, 4
        %v6068 = vor.u32 %v6067, %v6063
        %v6069 = vrot.slane %v6068, 4
        %v6071 = vshll.u32 %v4879, 16
        %v6073 = vrot.slane %v6071, 5
        %v6074 = vsel %vm992, %v6069, %v6073
        %v6075 = vshrl.u32 %v4879, 16
        %v6077 = vrot.slane %v6075, 4
        %v6078 = vor.u32 %v6077, %v6073
        %v6079 = vrot.slane %v6078, 4
        %v6081 = vshll.u32 %v4880, 16
        %v6083 = vrot.slane %v6081, 5
        %v6084 = vsel %vm992, %v6079, %v6083
        %v6085 = vshrl.u32 %v4880, 16
        %v6087 = vrot.slane %v6085, 4
        %v6088 = vor.u32 %v6087, %v6083
        %v6089 = vrot.slane %v6088, 4
        %v6091 = vshll.u32 %v4881, 16
        %v6093 = vrot.slane %v6091, 5
        %v6094 = vsel %vm992, %v6089, %v6093
        %v6096 = vshrl.u32 %v4882, 16
        %v6098 = vrot.slane %v6096, 4
        %v6099 = vshll.u32 %v4882, 16
        %v6101 = vrot.slane %v6099, 5
        %v6102 = vor.u32 %v6098, %v6101
        %v6103 = vrot.slane %v6102, 4
        %v6105 = vshll.u32 %v4883, 16
        %v6107 = vrot.slane %v6105, 5
        %v6108 = vsel %vm992, %v6103, %v6107
        %v6109 = vshrl.u32 %v4883, 16
        %v6111 = vrot.slane %v6109, 4
        %v6112 = vor.u32 %v6111, %v6107
        %v6113 = vrot.slane %v6112, 4
        %v6115 = vshll.u32 %v4884, 16
        %v6117 = vrot.slane %v6115, 5
        %v6118 = vsel %vm992, %v6113, %v6117
        %v6119 = vshrl.u32 %v4884, 16
        %v6121 = vrot.slane %v6119, 4
        %v6122 = vor.u32 %v6121, %v6117
        %v6123 = vrot.slane %v6122, 4
        %v6125 = vshll.u32 %v4885, 16
        %v6127 = vrot.slane %v6125, 5
        %v6128 = vsel %vm992, %v6123, %v6127
        %v6129 = vshrl.u32 %v4885, 16
        %v6131 = vrot.slane %v6129, 4
        %v6132 = vor.u32 %v6131, %v6127
        %v6133 = vrot.slane %v6132, 4
        %v6135 = vshll.u32 %v4886, 16
        %v6137 = vrot.slane %v6135, 5
        %v6138 = vsel %vm992, %v6133, %v6137
        %v6140 = vshrl.u32 %v4887, 16
        %v6142 = vrot.slane %v6140, 4
        %v6143 = vshll.u32 %v4887, 16
        %v6145 = vrot.slane %v6143, 5
        %v6146 = vor.u32 %v6142, %v6145
        %v6147 = vrot.slane %v6146, 4
        %v6149 = vshll.u32 %v4888, 16
        %v6151 = vrot.slane %v6149, 5
        %v6152 = vsel %vm992, %v6147, %v6151
        %v6153 = vshrl.u32 %v4888, 16
        %v6155 = vrot.slane %v6153, 4
        %v6156 = vor.u32 %v6155, %v6151
        %v6157 = vrot.slane %v6156, 4
        %v6159 = vshll.u32 %v4889, 16
        %v6161 = vrot.slane %v6159, 5
        %v6162 = vsel %vm992, %v6157, %v6161
        %v6163 = vshrl.u32 %v4889, 16
        %v6165 = vrot.slane %v6163, 4
        %v6166 = vor.u32 %v6165, %v6161
        %v6167 = vrot.slane %v6166, 4
        %v6169 = vshll.u32 %v4890, 16
        %v6171 = vrot.slane %v6169, 5
        %v6172 = vsel %vm992, %v6167, %v6171
        %v6173 = vshrl.u32 %v4890, 16
        %v6175 = vrot.slane %v6173, 4
        %v6176 = vor.u32 %v6175, %v6171
        %v6177 = vrot.slane %v6176, 4
        %v6179 = vshll.u32 %v4891, 16
        %v6181 = vrot.slane %v6179, 5
        %v6182 = vsel %vm992, %v6177, %v6181
        %v6184 = vshrl.u32 %v4892, 16
        %v6186 = vrot.slane %v6184, 4
        %v6187 = vshll.u32 %v4892, 16
        %v6189 = vrot.slane %v6187, 5
        %v6190 = vor.u32 %v6186, %v6189
        %v6191 = vrot.slane %v6190, 4
        %v6193 = vshll.u32 %v4893, 16
        %v6195 = vrot.slane %v6193, 5
        %v6196 = vsel %vm992, %v6191, %v6195
        %v6197 = vshrl.u32 %v4893, 16
        %v6199 = vrot.slane %v6197, 4
        %v6200 = vor.u32 %v6199, %v6195
        %v6201 = vrot.slane %v6200, 4
        %v6203 = vshll.u32 %v4894, 16
        %v6205 = vrot.slane %v6203, 5
        %v6206 = vsel %vm992, %v6201, %v6205
        %v6207 = vshrl.u32 %v4894, 16
        %v6209 = vrot.slane %v6207, 4
        %v6210 = vor.u32 %v6209, %v6205
        %v6211 = vrot.slane %v6210, 4
        %v6213 = vshll.u32 %v4895, 16
        %v6215 = vrot.slane %v6213, 5
        %v6216 = vsel %vm992, %v6211, %v6215
        %v6217 = vshrl.u32 %v4895, 16
        %v6219 = vrot.slane %v6217, 4
        %v6220 = vor.u32 %v6219, %v6215
        %v6221 = vrot.slane %v6220, 4
        %v6223 = vshll.u32 %v4896, 16
        %v6225 = vrot.slane %v6223, 5
        %v6226 = vsel %vm992, %v6221, %v6225
        %v6228 = vshrl.u32 %v4897, 16
        %v6230 = vrot.slane %v6228, 4
        %v6231 = vshll.u32 %v4897, 16
        %v6233 = vrot.slane %v6231, 5
        %v6234 = vor.u32 %v6230, %v6233
        %v6235 = vrot.slane %v6234, 4
        %v6237 = vshll.u32 %v4898, 16
        %v6239 = vrot.slane %v6237, 5
        %v6240 = vsel %vm992, %v6235, %v6239
        %v6241 = vshrl.u32 %v4898, 16
        %v6243 = vrot.slane %v6241, 4
        %v6244 = vor.u32 %v6243, %v6239
        %v6245 = vrot.slane %v6244, 4
        %v6247 = vshll.u32 %v4899, 16
        %v6249 = vrot.slane %v6247, 5
        %v6250 = vsel %vm992, %v6245, %v6249
        %v6251 = vshrl.u32 %v4899, 16
        %v6253 = vrot.slane %v6251, 4
        %v6254 = vor.u32 %v6253, %v6249
        %v6255 = vrot.slane %v6254, 4
        %v6257 = vshll.u32 %v4900, 16
        %v6259 = vrot.slane %v6257, 5
        %v6260 = vsel %vm992, %v6255, %v6259
        %v6261 = vshrl.u32 %v4900, 16
        %v6263 = vrot.slane %v6261, 4
        %v6264 = vor.u32 %v6263, %v6259
        %v6265 = vrot.slane %v6264, 4
        %v6267 = vshll.u32 %v4901, 16
        %v6269 = vrot.slane %v6267, 5
        %v6270 = vsel %vm992, %v6265, %v6269
        %v6272 = vshrl.u32 %v4902, 16
        %v6274 = vrot.slane %v6272, 4
        %v6275 = vshll.u32 %v4902, 16
        %v6277 = vrot.slane %v6275, 5
        %v6278 = vor.u32 %v6274, %v6277
        %v6279 = vrot.slane %v6278, 4
        %v6281 = vshll.u32 %v4903, 16
        %v6283 = vrot.slane %v6281, 5
        %v6284 = vsel %vm992, %v6279, %v6283
        %v6285 = vshrl.u32 %v4903, 16
        %v6287 = vrot.slane %v6285, 4
        %v6288 = vor.u32 %v6287, %v6283
        %v6289 = vrot.slane %v6288, 4
        %v6291 = vshll.u32 %v4904, 16
        %v6293 = vrot.slane %v6291, 5
        %v6294 = vsel %vm992, %v6289, %v6293
        %v6295 = vshrl.u32 %v4904, 16
        %v6297 = vrot.slane %v6295, 4
        %v6298 = vor.u32 %v6297, %v6293
        %v6299 = vrot.slane %v6298, 4
        %v6301 = vshll.u32 %v4905, 16
        %v6303 = vrot.slane %v6301, 5
        %v6304 = vsel %vm992, %v6299, %v6303
        %v6305 = vshrl.u32 %v4905, 16
        %v6307 = vrot.slane %v6305, 4
        %v6308 = vor.u32 %v6307, %v6303
        %v6309 = vrot.slane %v6308, 4
        %v6311 = vshll.u32 %v4906, 16
        %v6313 = vrot.slane %v6311, 5
        %v6314 = vsel %vm992, %v6309, %v6313
        %v6315 = vunpack.c.l.b16 %v4920
        %v6316 = vunpack.c.l.b16 %v4930
        %v6317 = vunpack.c.l.b16 %v4940
        %v6318 = vunpack.c.l.b16 %v4950
        %v6319 = vunpack.c.l.b16 %v4964
        %v6320 = vunpack.c.l.b16 %v4974
        %v6321 = vunpack.c.l.b16 %v4984
        %v6322 = vunpack.c.l.b16 %v4994
        %v6323 = vunpack.c.l.b16 %v5008
        %v6324 = vunpack.c.l.b16 %v5018
        %v6325 = vunpack.c.l.b16 %v5028
        %v6326 = vunpack.c.l.b16 %v5038
        %v6327 = vunpack.c.l.b16 %v5052
        %v6328 = vunpack.c.l.b16 %v5062
        %v6329 = vunpack.c.l.b16 %v5072
        %v6330 = vunpack.c.l.b16 %v5082
        %v6331 = vunpack.c.l.b16 %v5096
        %v6332 = vunpack.c.l.b16 %v5106
        %v6333 = vunpack.c.l.b16 %v5116
        %v6334 = vunpack.c.l.b16 %v5126
        %v6335 = vunpack.c.l.b16 %v5140
        %v6336 = vunpack.c.l.b16 %v5150
        %v6337 = vunpack.c.l.b16 %v5160
        %v6338 = vunpack.c.l.b16 %v5170
        %v6339 = vunpack.c.l.b16 %v5184
        %v6340 = vunpack.c.l.b16 %v5194
        %v6341 = vunpack.c.l.b16 %v5204
        %v6342 = vunpack.c.l.b16 %v5214
        %v6343 = vunpack.c.l.b16 %v5228
        %v6344 = vunpack.c.l.b16 %v5238
        %v6345 = vunpack.c.l.b16 %v5248
        %v6346 = vunpack.c.l.b16 %v5258
        %v6347 = vunpack.c.l.b16 %v5272
        %v6348 = vunpack.c.l.b16 %v5282
        %v6349 = vunpack.c.l.b16 %v5292
        %v6350 = vunpack.c.l.b16 %v5302
        %v6351 = vunpack.c.l.b16 %v5316
        %v6352 = vunpack.c.l.b16 %v5326
        %v6353 = vunpack.c.l.b16 %v5336
        %v6354 = vunpack.c.l.b16 %v5346
        %v6355 = vunpack.c.l.b16 %v5360
        %v6356 = vunpack.c.l.b16 %v5370
        %v6357 = vunpack.c.l.b16 %v5380
        %v6358 = vunpack.c.l.b16 %v5390
        %v6359 = vunpack.c.l.b16 %v5404
        %v6360 = vunpack.c.l.b16 %v5414
        %v6361 = vunpack.c.l.b16 %v5424
        %v6362 = vunpack.c.l.b16 %v5434
        %v6363 = vunpack.c.l.b16 %v5448
        %v6364 = vunpack.c.l.b16 %v5458
        %v6365 = vunpack.c.l.b16 %v5468
        %v6366 = vunpack.c.l.b16 %v5478
        %v6367 = vunpack.c.l.b16 %v5492
        %v6368 = vunpack.c.l.b16 %v5502
        %v6369 = vunpack.c.l.b16 %v5512
        %v6370 = vunpack.c.l.b16 %v5522
        %v6371 = vunpack.c.l.b16 %v5536
        %v6372 = vunpack.c.l.b16 %v5546
        %v6373 = vunpack.c.l.b16 %v5556
        %v6374 = vunpack.c.l.b16 %v5566
        %v6375 = vunpack.c.l.b16 %v5580
        %v6376 = vunpack.c.l.b16 %v5590
        %v6377 = vunpack.c.l.b16 %v5600
        %v6378 = vunpack.c.l.b16 %v5610
        %v6379 = vunpack.c.l.b16 %v5624
        %v6380 = vunpack.c.l.b16 %v5634
        %v6381 = vunpack.c.l.b16 %v5644
        %v6382 = vunpack.c.l.b16 %v5654
        %v6383 = vunpack.c.l.b16 %v5668
        %v6384 = vunpack.c.l.b16 %v5678
        %v6385 = vunpack.c.l.b16 %v5688
        %v6386 = vunpack.c.l.b16 %v5698
        %v6387 = vunpack.c.l.b16 %v5712
        %v6388 = vunpack.c.l.b16 %v5722
        %v6389 = vunpack.c.l.b16 %v5732
        %v6390 = vunpack.c.l.b16 %v5742
        %v6391 = vunpack.c.l.b16 %v5756
        %v6392 = vunpack.c.l.b16 %v5766
        %v6393 = vunpack.c.l.b16 %v5776
        %v6394 = vunpack.c.l.b16 %v5786
        %v6395 = vunpack.c.l.b16 %v5800
        %v6396 = vunpack.c.l.b16 %v5810
        %v6397 = vunpack.c.l.b16 %v5820
        %v6398 = vunpack.c.l.b16 %v5830
        %v6399 = vunpack.c.l.b16 %v5844
        %v6400 = vunpack.c.l.b16 %v5854
        %v6401 = vunpack.c.l.b16 %v5864
        %v6402 = vunpack.c.l.b16 %v5874
        %v6403 = vunpack.c.l.b16 %v5888
        %v6404 = vunpack.c.l.b16 %v5898
        %v6405 = vunpack.c.l.b16 %v5908
        %v6406 = vunpack.c.l.b16 %v5918
        %v6407 = vunpack.c.l.b16 %v5932
        %v6408 = vunpack.c.l.b16 %v5942
        %v6409 = vunpack.c.l.b16 %v5952
        %v6410 = vunpack.c.l.b16 %v5962
        %v6411 = vunpack.c.l.b16 %v5976
        %v6412 = vunpack.c.l.b16 %v5986
        %v6413 = vunpack.c.l.b16 %v5996
        %v6414 = vunpack.c.l.b16 %v6006
        %v6415 = vunpack.c.l.b16 %v6020
        %v6416 = vunpack.c.l.b16 %v6030
        %v6417 = vunpack.c.l.b16 %v6040
        %v6418 = vunpack.c.l.b16 %v6050
        %v6419 = vunpack.c.l.b16 %v6064
        %v6420 = vunpack.c.l.b16 %v6074
        %v6421 = vunpack.c.l.b16 %v6084
        %v6422 = vunpack.c.l.b16 %v6094
        %v6423 = vunpack.c.l.b16 %v6108
        %v6424 = vunpack.c.l.b16 %v6118
        %v6425 = vunpack.c.l.b16 %v6128
        %v6426 = vunpack.c.l.b16 %v6138
        %v6427 = vunpack.c.l.b16 %v6152
        %v6428 = vunpack.c.l.b16 %v6162
        %v6429 = vunpack.c.l.b16 %v6172
        %v6430 = vunpack.c.l.b16 %v6182
        %v6431 = vunpack.c.l.b16 %v6196
        %v6432 = vunpack.c.l.b16 %v6206
        %v6433 = vunpack.c.l.b16 %v6216
        %v6434 = vunpack.c.l.b16 %v6226
        %v6435 = vunpack.c.l.b16 %v6240
        %v6436 = vunpack.c.l.b16 %v6250
        %v6437 = vunpack.c.l.b16 %v6260
        %v6438 = vunpack.c.l.b16 %v6270
        %v6439 = vunpack.c.l.b16 %v6284
        %v6440 = vunpack.c.l.b16 %v6294
        %v6441 = vunpack.c.l.b16 %v6304
        %v6442 = vunpack.c.l.b16 %v6314
        %v6443 = vpack.c.b16 %v6316, %v6315
        %v6444 = vpack.c.b16 %v6318, %v6317
        %v6445 = vpack.c.b16 %v6320, %v6319
        %v6446 = vpack.c.b16 %v6322, %v6321
        %v6447 = vpack.c.b16 %v6324, %v6323
        %v6448 = vpack.c.b16 %v6326, %v6325
        %v6449 = vpack.c.b16 %v6328, %v6327
        %v6450 = vpack.c.b16 %v6330, %v6329
        %v6451 = vpack.c.b16 %v6332, %v6331
        %v6452 = vpack.c.b16 %v6334, %v6333
        %v6453 = vpack.c.b16 %v6336, %v6335
        %v6454 = vpack.c.b16 %v6338, %v6337
        %v6455 = vpack.c.b16 %v6340, %v6339
        %v6456 = vpack.c.b16 %v6342, %v6341
        %v6457 = vpack.c.b16 %v6344, %v6343
        %v6458 = vpack.c.b16 %v6346, %v6345
        %v6459 = vpack.c.b16 %v6348, %v6347
        %v6460 = vpack.c.b16 %v6350, %v6349
        %v6461 = vpack.c.b16 %v6352, %v6351
        %v6462 = vpack.c.b16 %v6354, %v6353
        %v6463 = vpack.c.b16 %v6356, %v6355
        %v6464 = vpack.c.b16 %v6358, %v6357
        %v6465 = vpack.c.b16 %v6360, %v6359
        %v6466 = vpack.c.b16 %v6362, %v6361
        %v6467 = vpack.c.b16 %v6364, %v6363
        %v6468 = vpack.c.b16 %v6366, %v6365
        %v6469 = vpack.c.b16 %v6368, %v6367
        %v6470 = vpack.c.b16 %v6370, %v6369
        %v6471 = vpack.c.b16 %v6372, %v6371
        %v6472 = vpack.c.b16 %v6374, %v6373
        %v6473 = vpack.c.b16 %v6376, %v6375
        %v6474 = vpack.c.b16 %v6378, %v6377
        %v6475 = vpack.c.b16 %v6380, %v6379
        %v6476 = vpack.c.b16 %v6382, %v6381
        %v6477 = vpack.c.b16 %v6384, %v6383
        %v6478 = vpack.c.b16 %v6386, %v6385
        %v6479 = vpack.c.b16 %v6388, %v6387
        %v6480 = vpack.c.b16 %v6390, %v6389
        %v6481 = vpack.c.b16 %v6392, %v6391
        %v6482 = vpack.c.b16 %v6394, %v6393
        %v6483 = vpack.c.b16 %v6396, %v6395
        %v6484 = vpack.c.b16 %v6398, %v6397
        %v6485 = vpack.c.b16 %v6400, %v6399
        %v6486 = vpack.c.b16 %v6402, %v6401
        %v6487 = vpack.c.b16 %v6404, %v6403
        %v6488 = vpack.c.b16 %v6406, %v6405
        %v6489 = vpack.c.b16 %v6408, %v6407
        %v6490 = vpack.c.b16 %v6410, %v6409
        %v6491 = vpack.c.b16 %v6412, %v6411
        %v6492 = vpack.c.b16 %v6414, %v6413
        %v6493 = vpack.c.b16 %v6416, %v6415
        %v6494 = vpack.c.b16 %v6418, %v6417
        %v6495 = vpack.c.b16 %v6420, %v6419
        %v6496 = vpack.c.b16 %v6422, %v6421
        %v6497 = vpack.c.b16 %v6424, %v6423
        %v6498 = vpack.c.b16 %v6426, %v6425
        %v6499 = vpack.c.b16 %v6428, %v6427
        %v6500 = vpack.c.b16 %v6430, %v6429
        %v6501 = vpack.c.b16 %v6432, %v6431
        %v6502 = vpack.c.b16 %v6434, %v6433
        %v6503 = vpack.c.b16 %v6436, %v6435
        %v6504 = vpack.c.b16 %v6438, %v6437
        %v6505 = vpack.c.b16 %v6440, %v6439
        %v6506 = vpack.c.b16 %v6442, %v6441
        %6507 = vrot.lane.b32.xlu0 %v6443, 16
        %v6508 = vpop.permute.xlu0 %6507
        %6509 = vrot.lane.b32.xlu0 %v6444, 16
        %v6510 = vpop.permute.xlu0 %6509
        %6511 = vrot.lane.b32.xlu0 %v6445, 16
        %v6512 = vpop.permute.xlu0 %6511
        %6513 = vrot.lane.b32.xlu0 %v6446, 16
        %v6514 = vpop.permute.xlu0 %6513
        %6515 = vrot.lane.b32.xlu0 %v6447, 16
        %v6516 = vpop.permute.xlu0 %6515
        %6517 = vrot.lane.b32.xlu0 %v6448, 16
        %v6518 = vpop.permute.xlu0 %6517
        %6519 = vrot.lane.b32.xlu0 %v6449, 16
        %v6520 = vpop.permute.xlu0 %6519
        %6521 = vrot.lane.b32.xlu0 %v6450, 16
        %v6522 = vpop.permute.xlu0 %6521
        %6523 = vrot.lane.b32.xlu0 %v6451, 16
        %v6524 = vpop.permute.xlu0 %6523
        %6525 = vrot.lane.b32.xlu0 %v6452, 16
        %v6526 = vpop.permute.xlu0 %6525
        %6527 = vrot.lane.b32.xlu0 %v6453, 16
        %v6528 = vpop.permute.xlu0 %6527
        %6529 = vrot.lane.b32.xlu0 %v6454, 16
        %v6530 = vpop.permute.xlu0 %6529
        %6531 = vrot.lane.b32.xlu0 %v6455, 16
        %v6532 = vpop.permute.xlu0 %6531
        %6533 = vrot.lane.b32.xlu0 %v6456, 16
        %v6534 = vpop.permute.xlu0 %6533
        %6535 = vrot.lane.b32.xlu0 %v6457, 16
        %v6536 = vpop.permute.xlu0 %6535
        %6537 = vrot.lane.b32.xlu0 %v6458, 16
        %v6538 = vpop.permute.xlu0 %6537
        %6539 = vrot.lane.b32.xlu0 %v6459, 16
        %v6540 = vpop.permute.xlu0 %6539
        %6541 = vrot.lane.b32.xlu0 %v6460, 16
        %v6542 = vpop.permute.xlu0 %6541
        %6543 = vrot.lane.b32.xlu0 %v6461, 16
        %v6544 = vpop.permute.xlu0 %6543
        %6545 = vrot.lane.b32.xlu0 %v6462, 16
        %v6546 = vpop.permute.xlu0 %6545
        %6547 = vrot.lane.b32.xlu0 %v6463, 16
        %v6548 = vpop.permute.xlu0 %6547
        %6549 = vrot.lane.b32.xlu0 %v6464, 16
        %v6550 = vpop.permute.xlu0 %6549
        %6551 = vrot.lane.b32.xlu0 %v6465, 16
        %v6552 = vpop.permute.xlu0 %6551
        %6553 = vrot.lane.b32.xlu0 %v6466, 16
        %v6554 = vpop.permute.xlu0 %6553
        %6555 = vrot.lane.b32.xlu0 %v6467, 16
        %v6556 = vpop.permute.xlu0 %6555
        %6557 = vrot.lane.b32.xlu0 %v6468, 16
        %v6558 = vpop.permute.xlu0 %6557
        %6559 = vrot.lane.b32.xlu0 %v6469, 16
        %v6560 = vpop.permute.xlu0 %6559
        %6561 = vrot.lane.b32.xlu0 %v6470, 16
        %v6562 = vpop.permute.xlu0 %6561
        %6563 = vrot.lane.b32.xlu0 %v6471, 16
        %v6564 = vpop.permute.xlu0 %6563
        %6565 = vrot.lane.b32.xlu0 %v6472, 16
        %v6566 = vpop.permute.xlu0 %6565
        %6567 = vrot.lane.b32.xlu0 %v6473, 16
        %v6568 = vpop.permute.xlu0 %6567
        %6569 = vrot.lane.b32.xlu0 %v6474, 16
        %v6570 = vpop.permute.xlu0 %6569
        %6571 = vrot.lane.b32.xlu0 %v6475, 16
        %v6572 = vpop.permute.xlu0 %6571
        %6573 = vrot.lane.b32.xlu0 %v6476, 16
        %v6574 = vpop.permute.xlu0 %6573
        %6575 = vrot.lane.b32.xlu0 %v6477, 16
        %v6576 = vpop.permute.xlu0 %6575
        %6577 = vrot.lane.b32.xlu0 %v6478, 16
        %v6578 = vpop.permute.xlu0 %6577
        %6579 = vrot.lane.b32.xlu0 %v6479, 16
        %v6580 = vpop.permute.xlu0 %6579
        %6581 = vrot.lane.b32.xlu0 %v6480, 16
        %v6582 = vpop.permute.xlu0 %6581
        %6583 = vrot.lane.b32.xlu0 %v6481, 16
        %v6584 = vpop.permute.xlu0 %6583
        %6585 = vrot.lane.b32.xlu0 %v6482, 16
        %v6586 = vpop.permute.xlu0 %6585
        %6587 = vrot.lane.b32.xlu0 %v6483, 16
        %v6588 = vpop.permute.xlu0 %6587
        %6589 = vrot.lane.b32.xlu0 %v6484, 16
        %v6590 = vpop.permute.xlu0 %6589
        %6591 = vrot.lane.b32.xlu0 %v6485, 16
        %v6592 = vpop.permute.xlu0 %6591
        %6593 = vrot.lane.b32.xlu0 %v6486, 16
        %v6594 = vpop.permute.xlu0 %6593
        %6595 = vrot.lane.b32.xlu0 %v6487, 16
        %v6596 = vpop.permute.xlu0 %6595
        %6597 = vrot.lane.b32.xlu0 %v6488, 16
        %v6598 = vpop.permute.xlu0 %6597
        %6599 = vrot.lane.b32.xlu0 %v6489, 16
        %v6600 = vpop.permute.xlu0 %6599
        %6601 = vrot.lane.b32.xlu0 %v6490, 16
        %v6602 = vpop.permute.xlu0 %6601
        %6603 = vrot.lane.b32.xlu0 %v6491, 16
        %v6604 = vpop.permute.xlu0 %6603
        %6605 = vrot.lane.b32.xlu0 %v6492, 16
        %v6606 = vpop.permute.xlu0 %6605
        %6607 = vrot.lane.b32.xlu0 %v6493, 16
        %v6608 = vpop.permute.xlu0 %6607
        %6609 = vrot.lane.b32.xlu0 %v6494, 16
        %v6610 = vpop.permute.xlu0 %6609
        %6611 = vrot.lane.b32.xlu0 %v6495, 16
        %v6612 = vpop.permute.xlu0 %6611
        %6613 = vrot.lane.b32.xlu0 %v6496, 16
        %v6614 = vpop.permute.xlu0 %6613
        %6615 = vrot.lane.b32.xlu0 %v6497, 16
        %v6616 = vpop.permute.xlu0 %6615
        %6617 = vrot.lane.b32.xlu0 %v6498, 16
        %v6618 = vpop.permute.xlu0 %6617
        %6619 = vrot.lane.b32.xlu0 %v6499, 16
        %v6620 = vpop.permute.xlu0 %6619
        %6621 = vrot.lane.b32.xlu0 %v6500, 16
        %v6622 = vpop.permute.xlu0 %6621
        %6623 = vrot.lane.b32.xlu0 %v6501, 16
        %v6624 = vpop.permute.xlu0 %6623
        %6625 = vrot.lane.b32.xlu0 %v6502, 16
        %v6626 = vpop.permute.xlu0 %6625
        %6627 = vrot.lane.b32.xlu0 %v6503, 16
        %v6628 = vpop.permute.xlu0 %6627
        %6629 = vrot.lane.b32.xlu0 %v6504, 16
        %v6630 = vpop.permute.xlu0 %6629
        %6631 = vrot.lane.b32.xlu0 %v6505, 16
        %v6632 = vpop.permute.xlu0 %6631
        %6633 = vrot.lane.b32.xlu0 %v6506, 16
        %v6634 = vpop.permute.xlu0 %6633
        %vm6699 = vcmask 162944
        %6700 = vst.msk [vmem:[#allocation2] sm:$0xff] %vm6699, %v6508
        %6701 = vst.msk [vmem:[#allocation2 + $0x8] sm:$0xff] %vm6699, %v6510
        %6702 = vst.msk [vmem:[#allocation2 + $0x10] sm:$0xff] %vm6699, %v6512
        %6703 = vst.msk [vmem:[#allocation2 + $0x18] sm:$0xff] %vm6699, %v6514
        %6704 = vst.msk [vmem:[#allocation2 + $0x20] sm:$0xff] %vm6699, %v6516
        %6705 = vst.msk [vmem:[#allocation2 + $0x28] sm:$0xff] %vm6699, %v6518
        %6706 = vst.msk [vmem:[#allocation2 + $0x30] sm:$0xff] %vm6699, %v6520
        %6707 = vst.msk [vmem:[#allocation2 + $0x38] sm:$0xff] %vm6699, %v6522
        %6708 = vst.msk [vmem:[#allocation2 + $0x40] sm:$0xff] %vm6699, %v6524
        %6709 = vst.msk [vmem:[#allocation2 + $0x48] sm:$0xff] %vm6699, %v6526
        %6710 = vst.msk [vmem:[#allocation2 + $0x50] sm:$0xff] %vm6699, %v6528
        %6711 = vst.msk [vmem:[#allocation2 + $0x58] sm:$0xff] %vm6699, %v6530
        %6712 = vst.msk [vmem:[#allocation2 + $0x60] sm:$0xff] %vm6699, %v6532
        %6713 = vst.msk [vmem:[#allocation2 + $0x68] sm:$0xff] %vm6699, %v6534
        %6714 = vst.msk [vmem:[#allocation2 + $0x70] sm:$0xff] %vm6699, %v6536
        %6715 = vst.msk [vmem:[#allocation2 + $0x78] sm:$0xff] %vm6699, %v6538
        %6716 = vst.msk [vmem:[#allocation2 + $0x80] sm:$0xff] %vm6699, %v6540
        %6717 = vst.msk [vmem:[#allocation2 + $0x88] sm:$0xff] %vm6699, %v6542
        %6718 = vst.msk [vmem:[#allocation2 + $0x90] sm:$0xff] %vm6699, %v6544
        %6719 = vst.msk [vmem:[#allocation2 + $0x98] sm:$0xff] %vm6699, %v6546
        %6720 = vst.msk [vmem:[#allocation2 + $0xa0] sm:$0xff] %vm6699, %v6548
        %6721 = vst.msk [vmem:[#allocation2 + $0xa8] sm:$0xff] %vm6699, %v6550
        %6722 = vst.msk [vmem:[#allocation2 + $0xb0] sm:$0xff] %vm6699, %v6552
        %6723 = vst.msk [vmem:[#allocation2 + $0xb8] sm:$0xff] %vm6699, %v6554
        %6724 = vst.msk [vmem:[#allocation2 + $0xc0] sm:$0xff] %vm6699, %v6556
        %6725 = vst.msk [vmem:[#allocation2 + $0xc8] sm:$0xff] %vm6699, %v6558
        %6726 = vst.msk [vmem:[#allocation2 + $0xd0] sm:$0xff] %vm6699, %v6560
        %6727 = vst.msk [vmem:[#allocation2 + $0xd8] sm:$0xff] %vm6699, %v6562
        %6728 = vst.msk [vmem:[#allocation2 + $0xe0] sm:$0xff] %vm6699, %v6564
        %6729 = vst.msk [vmem:[#allocation2 + $0xe8] sm:$0xff] %vm6699, %v6566
        %6730 = vst.msk [vmem:[#allocation2 + $0xf0] sm:$0xff] %vm6699, %v6568
        %6731 = vst.msk [vmem:[#allocation2 + $0xf8] sm:$0xff] %vm6699, %v6570
        %6732 = vst.msk [vmem:[#allocation2 + $0x100] sm:$0xff] %vm6699, %v6572
        %6733 = vst.msk [vmem:[#allocation2 + $0x108] sm:$0xff] %vm6699, %v6574
        %6734 = vst.msk [vmem:[#allocation2 + $0x110] sm:$0xff] %vm6699, %v6576
        %6735 = vst.msk [vmem:[#allocation2 + $0x118] sm:$0xff] %vm6699, %v6578
        %6736 = vst.msk [vmem:[#allocation2 + $0x120] sm:$0xff] %vm6699, %v6580
        %6737 = vst.msk [vmem:[#allocation2 + $0x128] sm:$0xff] %vm6699, %v6582
        %6738 = vst.msk [vmem:[#allocation2 + $0x130] sm:$0xff] %vm6699, %v6584
        %6739 = vst.msk [vmem:[#allocation2 + $0x138] sm:$0xff] %vm6699, %v6586
        %6740 = vst.msk [vmem:[#allocation2 + $0x140] sm:$0xff] %vm6699, %v6588
        %6741 = vst.msk [vmem:[#allocation2 + $0x148] sm:$0xff] %vm6699, %v6590
        %6742 = vst.msk [vmem:[#allocation2 + $0x150] sm:$0xff] %vm6699, %v6592
        %6743 = vst.msk [vmem:[#allocation2 + $0x158] sm:$0xff] %vm6699, %v6594
        %6744 = vst.msk [vmem:[#allocation2 + $0x160] sm:$0xff] %vm6699, %v6596
        %6745 = vst.msk [vmem:[#allocation2 + $0x168] sm:$0xff] %vm6699, %v6598
        %6746 = vst.msk [vmem:[#allocation2 + $0x170] sm:$0xff] %vm6699, %v6600
        %6747 = vst.msk [vmem:[#allocation2 + $0x178] sm:$0xff] %vm6699, %v6602
        %6748 = vst.msk [vmem:[#allocation2 + $0x180] sm:$0xff] %vm6699, %v6604
        %6749 = vst.msk [vmem:[#allocation2 + $0x188] sm:$0xff] %vm6699, %v6606
        %6750 = vst.msk [vmem:[#allocation2 + $0x190] sm:$0xff] %vm6699, %v6608
        %6751 = vst.msk [vmem:[#allocation2 + $0x198] sm:$0xff] %vm6699, %v6610
        %6752 = vst.msk [vmem:[#allocation2 + $0x1a0] sm:$0xff] %vm6699, %v6612
        %6753 = vst.msk [vmem:[#allocation2 + $0x1a8] sm:$0xff] %vm6699, %v6614
        %6754 = vst.msk [vmem:[#allocation2 + $0x1b0] sm:$0xff] %vm6699, %v6616
        %6755 = vst.msk [vmem:[#allocation2 + $0x1b8] sm:$0xff] %vm6699, %v6618
        %6756 = vst.msk [vmem:[#allocation2 + $0x1c0] sm:$0xff] %vm6699, %v6620
        %6757 = vst.msk [vmem:[#allocation2 + $0x1c8] sm:$0xff] %vm6699, %v6622
        %6758 = vst.msk [vmem:[#allocation2 + $0x1d0] sm:$0xff] %vm6699, %v6624
        %6759 = vst.msk [vmem:[#allocation2 + $0x1d8] sm:$0xff] %vm6699, %v6626
        %6760 = vst.msk [vmem:[#allocation2 + $0x1e0] sm:$0xff] %vm6699, %v6628
        %6761 = vst.msk [vmem:[#allocation2 + $0x1e8] sm:$0xff] %vm6699, %v6630
        %6762 = vst.msk [vmem:[#allocation2 + $0x1f0] sm:$0xff] %vm6699, %v6632
        %6763 = vst.msk [vmem:[#allocation2 + $0x1f8] sm:$0xff] %vm6699, %v6634
        %v6764 = vld [vmem:[%s4041] sm:$0xe]
        %v6765 = vld [vmem:[%s4041 + $0x4] sm:$0xf]
        %v6766 = vld [vmem:[%s4041 + $0x8] sm:$0xf]
        %v6767 = vld [vmem:[%s4041 + $0xc] sm:$0xf]
        %v6768 = vld [vmem:[%s4041 + $0x10] sm:$0x1]
        %v6769 = vld [vmem:[%s4041 + $0x14] sm:$0xe]
        %v6770 = vld [vmem:[%s4041 + $0x18] sm:$0xf]
        %v6771 = vld [vmem:[%s4041 + $0x1c] sm:$0xf]
        %v6772 = vld [vmem:[%s4041 + $0x20] sm:$0xf]
        %v6773 = vld [vmem:[%s4041 + $0x24] sm:$0x1]
        %v6774 = vld [vmem:[%s4041 + $0x28] sm:$0xe]
        %v6775 = vld [vmem:[%s4041 + $0x2c] sm:$0xf]
        %v6776 = vld [vmem:[%s4041 + $0x30] sm:$0xf]
        %v6777 = vld [vmem:[%s4041 + $0x34] sm:$0xf]
        %v6778 = vld [vmem:[%s4041 + $0x38] sm:$0x1]
        %v6779 = vld [vmem:[%s4041 + $0x3c] sm:$0xe]
        %v6780 = vld [vmem:[%s4041 + $0x40] sm:$0xf]
        %v6781 = vld [vmem:[%s4041 + $0x44] sm:$0xf]
        %v6782 = vld [vmem:[%s4041 + $0x48] sm:$0xf]
        %v6783 = vld [vmem:[%s4041 + $0x4c] sm:$0x1]
        %v6784 = vld [vmem:[%s4041 + $0x50] sm:$0xe]
        %v6785 = vld [vmem:[%s4041 + $0x54] sm:$0xf]
        %v6786 = vld [vmem:[%s4041 + $0x58] sm:$0xf]
        %v6787 = vld [vmem:[%s4041 + $0x5c] sm:$0xf]
        %v6788 = vld [vmem:[%s4041 + $0x60] sm:$0x1]
        %v6789 = vld [vmem:[%s4041 + $0x64] sm:$0xe]
        %v6790 = vld [vmem:[%s4041 + $0x68] sm:$0xf]
        %v6791 = vld [vmem:[%s4041 + $0x6c] sm:$0xf]
        %v6792 = vld [vmem:[%s4041 + $0x70] sm:$0xf]
        %v6793 = vld [vmem:[%s4041 + $0x74] sm:$0x1]
        %v6794 = vld [vmem:[%s4041 + $0x78] sm:$0xe]
        %v6795 = vld [vmem:[%s4041 + $0x7c] sm:$0xf]
        %v6796 = vld [vmem:[%s4041 + $0x80] sm:$0xf]
        %v6797 = vld [vmem:[%s4041 + $0x84] sm:$0xf]
        %v6798 = vld [vmem:[%s4041 + $0x88] sm:$0x1]
        %v6799 = vld [vmem:[%s4041 + $0x8c] sm:$0xe]
        %v6800 = vld [vmem:[%s4041 + $0x90] sm:$0xf]
        %v6801 = vld [vmem:[%s4041 + $0x94] sm:$0xf]
        %v6802 = vld [vmem:[%s4041 + $0x98] sm:$0xf]
        %v6803 = vld [vmem:[%s4041 + $0x9c] sm:$0x1]
        %v6804 = vld [vmem:[%s4041 + $0xa0] sm:$0xe]
        %v6805 = vld [vmem:[%s4041 + $0xa4] sm:$0xf]
        %v6806 = vld [vmem:[%s4041 + $0xa8] sm:$0xf]
        %v6807 = vld [vmem:[%s4041 + $0xac] sm:$0xf]
        %v6808 = vld [vmem:[%s4041 + $0xb0] sm:$0x1]
        %v6809 = vld [vmem:[%s4041 + $0xb4] sm:$0xe]
        %v6810 = vld [vmem:[%s4041 + $0xb8] sm:$0xf]
        %v6811 = vld [vmem:[%s4041 + $0xbc] sm:$0xf]
        %v6812 = vld [vmem:[%s4041 + $0xc0] sm:$0xf]
        %v6813 = vld [vmem:[%s4041 + $0xc4] sm:$0x1]
        %v6814 = vld [vmem:[%s4041 + $0xc8] sm:$0xe]
        %v6815 = vld [vmem:[%s4041 + $0xcc] sm:$0xf]
        %v6816 = vld [vmem:[%s4041 + $0xd0] sm:$0xf]
        %v6817 = vld [vmem:[%s4041 + $0xd4] sm:$0xf]
        %v6818 = vld [vmem:[%s4041 + $0xd8] sm:$0x1]
        %v6819 = vld [vmem:[%s4041 + $0xdc] sm:$0xe]
        %v6820 = vld [vmem:[%s4041 + $0xe0] sm:$0xf]
        %v6821 = vld [vmem:[%s4041 + $0xe4] sm:$0xf]
        %v6822 = vld [vmem:[%s4041 + $0xe8] sm:$0xf]
        %v6823 = vld [vmem:[%s4041 + $0xec] sm:$0x1]
        %v6824 = vld [vmem:[%s4041 + $0xf0] sm:$0xe]
        %v6825 = vld [vmem:[%s4041 + $0xf4] sm:$0xf]
        %v6826 = vld [vmem:[%s4041 + $0xf8] sm:$0xf]
        %v6827 = vld [vmem:[%s4041 + $0xfc] sm:$0xf]
        %v6828 = vld [vmem:[%s4041 + $0x100] sm:$0x1]
        %v6829 = vld [vmem:[%s4041 + $0x104] sm:$0xe]
        %v6830 = vld [vmem:[%s4041 + $0x108] sm:$0xf]
        %v6831 = vld [vmem:[%s4041 + $0x10c] sm:$0xf]
        %v6832 = vld [vmem:[%s4041 + $0x110] sm:$0xf]
        %v6833 = vld [vmem:[%s4041 + $0x114] sm:$0x1]
        %v6834 = vld [vmem:[%s4041 + $0x118] sm:$0xe]
        %v6835 = vld [vmem:[%s4041 + $0x11c] sm:$0xf]
        %v6836 = vld [vmem:[%s4041 + $0x120] sm:$0xf]
        %v6837 = vld [vmem:[%s4041 + $0x124] sm:$0xf]
        %v6838 = vld [vmem:[%s4041 + $0x128] sm:$0x1]
        %v6839 = vld [vmem:[%s4041 + $0x12c] sm:$0xe]
        %v6840 = vld [vmem:[%s4041 + $0x130] sm:$0xf]
        %v6841 = vld [vmem:[%s4041 + $0x134] sm:$0xf]
        %v6842 = vld [vmem:[%s4041 + $0x138] sm:$0xf]
        %v6843 = vld [vmem:[%s4041 + $0x13c] sm:$0x1]
        %v6844 = vld [vmem:[%s4041 + $0x140] sm:$0xe]
        %v6845 = vld [vmem:[%s4041 + $0x144] sm:$0xf]
        %v6846 = vld [vmem:[%s4041 + $0x148] sm:$0xf]
        %v6847 = vld [vmem:[%s4041 + $0x14c] sm:$0xf]
        %v6848 = vld [vmem:[%s4041 + $0x150] sm:$0x1]
        %v6849 = vld [vmem:[%s4041 + $0x154] sm:$0xe]
        %v6850 = vld [vmem:[%s4041 + $0x158] sm:$0xf]
        %v6851 = vld [vmem:[%s4041 + $0x15c] sm:$0xf]
        %v6852 = vld [vmem:[%s4041 + $0x160] sm:$0xf]
        %v6853 = vld [vmem:[%s4041 + $0x164] sm:$0x1]
        %v6854 = vld [vmem:[%s4041 + $0x168] sm:$0xe]
        %v6855 = vld [vmem:[%s4041 + $0x16c] sm:$0xf]
        %v6856 = vld [vmem:[%s4041 + $0x170] sm:$0xf]
        %v6857 = vld [vmem:[%s4041 + $0x174] sm:$0xf]
        %v6858 = vld [vmem:[%s4041 + $0x178] sm:$0x1]
        %v6859 = vld [vmem:[%s4041 + $0x17c] sm:$0xe]
        %v6860 = vld [vmem:[%s4041 + $0x180] sm:$0xf]
        %v6861 = vld [vmem:[%s4041 + $0x184] sm:$0xf]
        %v6862 = vld [vmem:[%s4041 + $0x188] sm:$0xf]
        %v6863 = vld [vmem:[%s4041 + $0x18c] sm:$0x1]
        %v6864 = vld [vmem:[%s4041 + $0x190] sm:$0xe]
        %v6865 = vld [vmem:[%s4041 + $0x194] sm:$0xf]
        %v6866 = vld [vmem:[%s4041 + $0x198] sm:$0xf]
        %v6867 = vld [vmem:[%s4041 + $0x19c] sm:$0xf]
        %v6868 = vld [vmem:[%s4041 + $0x1a0] sm:$0x1]
        %v6869 = vld [vmem:[%s4041 + $0x1a4] sm:$0xe]
        %v6870 = vld [vmem:[%s4041 + $0x1a8] sm:$0xf]
        %v6871 = vld [vmem:[%s4041 + $0x1ac] sm:$0xf]
        %v6872 = vld [vmem:[%s4041 + $0x1b0] sm:$0xf]
        %v6873 = vld [vmem:[%s4041 + $0x1b4] sm:$0x1]
        %v6874 = vld [vmem:[%s4041 + $0x1b8] sm:$0xe]
        %v6875 = vld [vmem:[%s4041 + $0x1bc] sm:$0xf]
        %v6876 = vld [vmem:[%s4041 + $0x1c0] sm:$0xf]
        %v6877 = vld [vmem:[%s4041 + $0x1c4] sm:$0xf]
        %v6878 = vld [vmem:[%s4041 + $0x1c8] sm:$0x1]
        %v6879 = vld [vmem:[%s4041 + $0x1cc] sm:$0xe]
        %v6880 = vld [vmem:[%s4041 + $0x1d0] sm:$0xf]
        %v6881 = vld [vmem:[%s4041 + $0x1d4] sm:$0xf]
        %v6882 = vld [vmem:[%s4041 + $0x1d8] sm:$0xf]
        %v6883 = vld [vmem:[%s4041 + $0x1dc] sm:$0x1]
        %v6884 = vld [vmem:[%s4041 + $0x1e0] sm:$0xe]
        %v6885 = vld [vmem:[%s4041 + $0x1e4] sm:$0xf]
        %v6886 = vld [vmem:[%s4041 + $0x1e8] sm:$0xf]
        %v6887 = vld [vmem:[%s4041 + $0x1ec] sm:$0xf]
        %v6888 = vld [vmem:[%s4041 + $0x1f0] sm:$0x1]
        %v6889 = vld [vmem:[%s4041 + $0x1f4] sm:$0xe]
        %v6890 = vld [vmem:[%s4041 + $0x1f8] sm:$0xf]
        %v6891 = vld [vmem:[%s4041 + $0x1fc] sm:$0xf]
        %v6892 = vld [vmem:[%s4041 + $0x200] sm:$0xf]
        %v6893 = vld [vmem:[%s4041 + $0x204] sm:$0x1]
        %v6894 = vld [vmem:[%s4041 + $0x208] sm:$0xe]
        %v6895 = vld [vmem:[%s4041 + $0x20c] sm:$0xf]
        %v6896 = vld [vmem:[%s4041 + $0x210] sm:$0xf]
        %v6897 = vld [vmem:[%s4041 + $0x214] sm:$0xf]
        %v6898 = vld [vmem:[%s4041 + $0x218] sm:$0x1]
        %v6899 = vld [vmem:[%s4041 + $0x21c] sm:$0xe]
        %v6900 = vld [vmem:[%s4041 + $0x220] sm:$0xf]
        %v6901 = vld [vmem:[%s4041 + $0x224] sm:$0xf]
        %v6902 = vld [vmem:[%s4041 + $0x228] sm:$0xf]
        %v6903 = vld [vmem:[%s4041 + $0x22c] sm:$0x1]
        %v6904 = vld [vmem:[%s4041 + $0x230] sm:$0xe]
        %v6905 = vld [vmem:[%s4041 + $0x234] sm:$0xf]
        %v6906 = vld [vmem:[%s4041 + $0x238] sm:$0xf]
        %v6907 = vld [vmem:[%s4041 + $0x23c] sm:$0xf]
        %v6908 = vld [vmem:[%s4041 + $0x240] sm:$0x1]
        %v6909 = vld [vmem:[%s4041 + $0x244] sm:$0xe]
        %v6910 = vld [vmem:[%s4041 + $0x248] sm:$0xf]
        %v6911 = vld [vmem:[%s4041 + $0x24c] sm:$0xf]
        %v6912 = vld [vmem:[%s4041 + $0x250] sm:$0xf]
        %v6913 = vld [vmem:[%s4041 + $0x254] sm:$0x1]
        %v6914 = vld [vmem:[%s4041 + $0x258] sm:$0xe]
        %v6915 = vld [vmem:[%s4041 + $0x25c] sm:$0xf]
        %v6916 = vld [vmem:[%s4041 + $0x260] sm:$0xf]
        %v6917 = vld [vmem:[%s4041 + $0x264] sm:$0xf]
        %v6918 = vld [vmem:[%s4041 + $0x268] sm:$0x1]
        %v6919 = vld [vmem:[%s4041 + $0x26c] sm:$0xe]
        %v6920 = vld [vmem:[%s4041 + $0x270] sm:$0xf]
        %v6921 = vld [vmem:[%s4041 + $0x274] sm:$0xf]
        %v6922 = vld [vmem:[%s4041 + $0x278] sm:$0xf]
        %v6923 = vld [vmem:[%s4041 + $0x27c] sm:$0x1]
        %v7084 = vrot.slane %v6764, 5
        %v7085 = vrot.slane %v7084, 4
        %v7086 = vrot.slane %v6765, 5
        %v7087 = vsel %vm3172, %v7085, %v7086
        %v7088 = vrot.slane %v7086, 4
        %v7089 = vrot.slane %v6766, 5
        %v7090 = vsel %vm3172, %v7088, %v7089
        %v7091 = vrot.slane %v7089, 4
        %v7092 = vrot.slane %v6767, 5
        %v7093 = vsel %vm3172, %v7091, %v7092
        %v7094 = vrot.slane %v7092, 4
        %v7095 = vrot.slane %v6768, 5
        %v7096 = vsel %vm3172, %v7094, %v7095
        %v7097 = vrot.slane %v6769, 5
        %v7098 = vrot.slane %v7097, 4
        %v7099 = vrot.slane %v6770, 5
        %v7100 = vsel %vm3172, %v7098, %v7099
        %v7101 = vrot.slane %v7099, 4
        %v7102 = vrot.slane %v6771, 5
        %v7103 = vsel %vm3172, %v7101, %v7102
        %v7104 = vrot.slane %v7102, 4
        %v7105 = vrot.slane %v6772, 5
        %v7106 = vsel %vm3172, %v7104, %v7105
        %v7107 = vrot.slane %v7105, 4
        %v7108 = vrot.slane %v6773, 5
        %v7109 = vsel %vm3172, %v7107, %v7108
        %v7110 = vrot.slane %v6774, 5
        %v7111 = vrot.slane %v7110, 4
        %v7112 = vrot.slane %v6775, 5
        %v7113 = vsel %vm3172, %v7111, %v7112
        %v7114 = vrot.slane %v7112, 4
        %v7115 = vrot.slane %v6776, 5
        %v7116 = vsel %vm3172, %v7114, %v7115
        %v7117 = vrot.slane %v7115, 4
        %v7118 = vrot.slane %v6777, 5
        %v7119 = vsel %vm3172, %v7117, %v7118
        %v7120 = vrot.slane %v7118, 4
        %v7121 = vrot.slane %v6778, 5
        %v7122 = vsel %vm3172, %v7120, %v7121
        %v7123 = vrot.slane %v6779, 5
        %v7124 = vrot.slane %v7123, 4
        %v7125 = vrot.slane %v6780, 5
        %v7126 = vsel %vm3172, %v7124, %v7125
        %v7127 = vrot.slane %v7125, 4
        %v7128 = vrot.slane %v6781, 5
        %v7129 = vsel %vm3172, %v7127, %v7128
        %v7130 = vrot.slane %v7128, 4
        %v7131 = vrot.slane %v6782, 5
        %v7132 = vsel %vm3172, %v7130, %v7131
        %v7133 = vrot.slane %v7131, 4
        %v7134 = vrot.slane %v6783, 5
        %v7135 = vsel %vm3172, %v7133, %v7134
        %v7136 = vrot.slane %v6784, 5
        %v7137 = vrot.slane %v7136, 4
        %v7138 = vrot.slane %v6785, 5
        %v7139 = vsel %vm3172, %v7137, %v7138
        %v7140 = vrot.slane %v7138, 4
        %v7141 = vrot.slane %v6786, 5
        %v7142 = vsel %vm3172, %v7140, %v7141
        %v7143 = vrot.slane %v7141, 4
        %v7144 = vrot.slane %v6787, 5
        %v7145 = vsel %vm3172, %v7143, %v7144
        %v7146 = vrot.slane %v7144, 4
        %v7147 = vrot.slane %v6788, 5
        %v7148 = vsel %vm3172, %v7146, %v7147
        %v7149 = vrot.slane %v6789, 5
        %v7150 = vrot.slane %v7149, 4
        %v7151 = vrot.slane %v6790, 5
        %v7152 = vsel %vm3172, %v7150, %v7151
        %v7153 = vrot.slane %v7151, 4
        %v7154 = vrot.slane %v6791, 5
        %v7155 = vsel %vm3172, %v7153, %v7154
        %v7156 = vrot.slane %v7154, 4
        %v7157 = vrot.slane %v6792, 5
        %v7158 = vsel %vm3172, %v7156, %v7157
        %v7159 = vrot.slane %v7157, 4
        %v7160 = vrot.slane %v6793, 5
        %v7161 = vsel %vm3172, %v7159, %v7160
        %v7162 = vrot.slane %v6794, 5
        %v7163 = vrot.slane %v7162, 4
        %v7164 = vrot.slane %v6795, 5
        %v7165 = vsel %vm3172, %v7163, %v7164
        %v7166 = vrot.slane %v7164, 4
        %v7167 = vrot.slane %v6796, 5
        %v7168 = vsel %vm3172, %v7166, %v7167
        %v7169 = vrot.slane %v7167, 4
        %v7170 = vrot.slane %v6797, 5
        %v7171 = vsel %vm3172, %v7169, %v7170
        %v7172 = vrot.slane %v7170, 4
        %v7173 = vrot.slane %v6798, 5
        %v7174 = vsel %vm3172, %v7172, %v7173
        %v7175 = vrot.slane %v6799, 5
        %v7176 = vrot.slane %v7175, 4
        %v7177 = vrot.slane %v6800, 5
        %v7178 = vsel %vm3172, %v7176, %v7177
        %v7179 = vrot.slane %v7177, 4
        %v7180 = vrot.slane %v6801, 5
        %v7181 = vsel %vm3172, %v7179, %v7180
        %v7182 = vrot.slane %v7180, 4
        %v7183 = vrot.slane %v6802, 5
        %v7184 = vsel %vm3172, %v7182, %v7183
        %v7185 = vrot.slane %v7183, 4
        %v7186 = vrot.slane %v6803, 5
        %v7187 = vsel %vm3172, %v7185, %v7186
        %v7188 = vrot.slane %v6804, 5
        %v7189 = vrot.slane %v7188, 4
        %v7190 = vrot.slane %v6805, 5
        %v7191 = vsel %vm3172, %v7189, %v7190
        %v7192 = vrot.slane %v7190, 4
        %v7193 = vrot.slane %v6806, 5
        %v7194 = vsel %vm3172, %v7192, %v7193
        %v7195 = vrot.slane %v7193, 4
        %v7196 = vrot.slane %v6807, 5
        %v7197 = vsel %vm3172, %v7195, %v7196
        %v7198 = vrot.slane %v7196, 4
        %v7199 = vrot.slane %v6808, 5
        %v7200 = vsel %vm3172, %v7198, %v7199
        %v7201 = vrot.slane %v6809, 5
        %v7202 = vrot.slane %v7201, 4
        %v7203 = vrot.slane %v6810, 5
        %v7204 = vsel %vm3172, %v7202, %v7203
        %v7205 = vrot.slane %v7203, 4
        %v7206 = vrot.slane %v6811, 5
        %v7207 = vsel %vm3172, %v7205, %v7206
        %v7208 = vrot.slane %v7206, 4
        %v7209 = vrot.slane %v6812, 5
        %v7210 = vsel %vm3172, %v7208, %v7209
        %v7211 = vrot.slane %v7209, 4
        %v7212 = vrot.slane %v6813, 5
        %v7213 = vsel %vm3172, %v7211, %v7212
        %v7214 = vrot.slane %v6814, 5
        %v7215 = vrot.slane %v7214, 4
        %v7216 = vrot.slane %v6815, 5
        %v7217 = vsel %vm3172, %v7215, %v7216
        %v7218 = vrot.slane %v7216, 4
        %v7219 = vrot.slane %v6816, 5
        %v7220 = vsel %vm3172, %v7218, %v7219
        %v7221 = vrot.slane %v7219, 4
        %v7222 = vrot.slane %v6817, 5
        %v7223 = vsel %vm3172, %v7221, %v7222
        %v7224 = vrot.slane %v7222, 4
        %v7225 = vrot.slane %v6818, 5
        %v7226 = vsel %vm3172, %v7224, %v7225
        %v7227 = vrot.slane %v6819, 5
        %v7228 = vrot.slane %v7227, 4
        %v7229 = vrot.slane %v6820, 5
        %v7230 = vsel %vm3172, %v7228, %v7229
        %v7231 = vrot.slane %v7229, 4
        %v7232 = vrot.slane %v6821, 5
        %v7233 = vsel %vm3172, %v7231, %v7232
        %v7234 = vrot.slane %v7232, 4
        %v7235 = vrot.slane %v6822, 5
        %v7236 = vsel %vm3172, %v7234, %v7235
        %v7237 = vrot.slane %v7235, 4
        %v7238 = vrot.slane %v6823, 5
        %v7239 = vsel %vm3172, %v7237, %v7238
        %v7240 = vrot.slane %v6824, 5
        %v7241 = vrot.slane %v7240, 4
        %v7242 = vrot.slane %v6825, 5
        %v7243 = vsel %vm3172, %v7241, %v7242
        %v7244 = vrot.slane %v7242, 4
        %v7245 = vrot.slane %v6826, 5
        %v7246 = vsel %vm3172, %v7244, %v7245
        %v7247 = vrot.slane %v7245, 4
        %v7248 = vrot.slane %v6827, 5
        %v7249 = vsel %vm3172, %v7247, %v7248
        %v7250 = vrot.slane %v7248, 4
        %v7251 = vrot.slane %v6828, 5
        %v7252 = vsel %vm3172, %v7250, %v7251
        %v7253 = vrot.slane %v6829, 5
        %v7254 = vrot.slane %v7253, 4
        %v7255 = vrot.slane %v6830, 5
        %v7256 = vsel %vm3172, %v7254, %v7255
        %v7257 = vrot.slane %v7255, 4
        %v7258 = vrot.slane %v6831, 5
        %v7259 = vsel %vm3172, %v7257, %v7258
        %v7260 = vrot.slane %v7258, 4
        %v7261 = vrot.slane %v6832, 5
        %v7262 = vsel %vm3172, %v7260, %v7261
        %v7263 = vrot.slane %v7261, 4
        %v7264 = vrot.slane %v6833, 5
        %v7265 = vsel %vm3172, %v7263, %v7264
        %v7266 = vrot.slane %v6834, 5
        %v7267 = vrot.slane %v7266, 4
        %v7268 = vrot.slane %v6835, 5
        %v7269 = vsel %vm3172, %v7267, %v7268
        %v7270 = vrot.slane %v7268, 4
        %v7271 = vrot.slane %v6836, 5
        %v7272 = vsel %vm3172, %v7270, %v7271
        %v7273 = vrot.slane %v7271, 4
        %v7274 = vrot.slane %v6837, 5
        %v7275 = vsel %vm3172, %v7273, %v7274
        %v7276 = vrot.slane %v7274, 4
        %v7277 = vrot.slane %v6838, 5
        %v7278 = vsel %vm3172, %v7276, %v7277
        %v7279 = vrot.slane %v6839, 5
        %v7280 = vrot.slane %v7279, 4
        %v7281 = vrot.slane %v6840, 5
        %v7282 = vsel %vm3172, %v7280, %v7281
        %v7283 = vrot.slane %v7281, 4
        %v7284 = vrot.slane %v6841, 5
        %v7285 = vsel %vm3172, %v7283, %v7284
        %v7286 = vrot.slane %v7284, 4
        %v7287 = vrot.slane %v6842, 5
        %v7288 = vsel %vm3172, %v7286, %v7287
        %v7289 = vrot.slane %v7287, 4
        %v7290 = vrot.slane %v6843, 5
        %v7291 = vsel %vm3172, %v7289, %v7290
        %v7292 = vrot.slane %v6844, 5
        %v7293 = vrot.slane %v7292, 4
        %v7294 = vrot.slane %v6845, 5
        %v7295 = vsel %vm3172, %v7293, %v7294
        %v7296 = vrot.slane %v7294, 4
        %v7297 = vrot.slane %v6846, 5
        %v7298 = vsel %vm3172, %v7296, %v7297
        %v7299 = vrot.slane %v7297, 4
        %v7300 = vrot.slane %v6847, 5
        %v7301 = vsel %vm3172, %v7299, %v7300
        %v7302 = vrot.slane %v7300, 4
        %v7303 = vrot.slane %v6848, 5
        %v7304 = vsel %vm3172, %v7302, %v7303
        %v7305 = vrot.slane %v6849, 5
        %v7306 = vrot.slane %v7305, 4
        %v7307 = vrot.slane %v6850, 5
        %v7308 = vsel %vm3172, %v7306, %v7307
        %v7309 = vrot.slane %v7307, 4
        %v7310 = vrot.slane %v6851, 5
        %v7311 = vsel %vm3172, %v7309, %v7310
        %v7312 = vrot.slane %v7310, 4
        %v7313 = vrot.slane %v6852, 5
        %v7314 = vsel %vm3172, %v7312, %v7313
        %v7315 = vrot.slane %v7313, 4
        %v7316 = vrot.slane %v6853, 5
        %v7317 = vsel %vm3172, %v7315, %v7316
        %v7318 = vrot.slane %v6854, 5
        %v7319 = vrot.slane %v7318, 4
        %v7320 = vrot.slane %v6855, 5
        %v7321 = vsel %vm3172, %v7319, %v7320
        %v7322 = vrot.slane %v7320, 4
        %v7323 = vrot.slane %v6856, 5
        %v7324 = vsel %vm3172, %v7322, %v7323
        %v7325 = vrot.slane %v7323, 4
        %v7326 = vrot.slane %v6857, 5
        %v7327 = vsel %vm3172, %v7325, %v7326
        %v7328 = vrot.slane %v7326, 4
        %v7329 = vrot.slane %v6858, 5
        %v7330 = vsel %vm3172, %v7328, %v7329
        %v7331 = vrot.slane %v6859, 5
        %v7332 = vrot.slane %v7331, 4
        %v7333 = vrot.slane %v6860, 5
        %v7334 = vsel %vm3172, %v7332, %v7333
        %v7335 = vrot.slane %v7333, 4
        %v7336 = vrot.slane %v6861, 5
        %v7337 = vsel %vm3172, %v7335, %v7336
        %v7338 = vrot.slane %v7336, 4
        %v7339 = vrot.slane %v6862, 5
        %v7340 = vsel %vm3172, %v7338, %v7339
        %v7341 = vrot.slane %v7339, 4
        %v7342 = vrot.slane %v6863, 5
        %v7343 = vsel %vm3172, %v7341, %v7342
        %v7344 = vrot.slane %v6864, 5
        %v7345 = vrot.slane %v7344, 4
        %v7346 = vrot.slane %v6865, 5
        %v7347 = vsel %vm3172, %v7345, %v7346
        %v7348 = vrot.slane %v7346, 4
        %v7349 = vrot.slane %v6866, 5
        %v7350 = vsel %vm3172, %v7348, %v7349
        %v7351 = vrot.slane %v7349, 4
        %v7352 = vrot.slane %v6867, 5
        %v7353 = vsel %vm3172, %v7351, %v7352
        %v7354 = vrot.slane %v7352, 4
        %v7355 = vrot.slane %v6868, 5
        %v7356 = vsel %vm3172, %v7354, %v7355
        %v7357 = vrot.slane %v6869, 5
        %v7358 = vrot.slane %v7357, 4
        %v7359 = vrot.slane %v6870, 5
        %v7360 = vsel %vm3172, %v7358, %v7359
        %v7361 = vrot.slane %v7359, 4
        %v7362 = vrot.slane %v6871, 5
        %v7363 = vsel %vm3172, %v7361, %v7362
        %v7364 = vrot.slane %v7362, 4
        %v7365 = vrot.slane %v6872, 5
        %v7366 = vsel %vm3172, %v7364, %v7365
        %v7367 = vrot.slane %v7365, 4
        %v7368 = vrot.slane %v6873, 5
        %v7369 = vsel %vm3172, %v7367, %v7368
        %v7370 = vrot.slane %v6874, 5
        %v7371 = vrot.slane %v7370, 4
        %v7372 = vrot.slane %v6875, 5
        %v7373 = vsel %vm3172, %v7371, %v7372
        %v7374 = vrot.slane %v7372, 4
        %v7375 = vrot.slane %v6876, 5
        %v7376 = vsel %vm3172, %v7374, %v7375
        %v7377 = vrot.slane %v7375, 4
        %v7378 = vrot.slane %v6877, 5
        %v7379 = vsel %vm3172, %v7377, %v7378
        %v7380 = vrot.slane %v7378, 4
        %v7381 = vrot.slane %v6878, 5
        %v7382 = vsel %vm3172, %v7380, %v7381
        %v7383 = vrot.slane %v6879, 5
        %v7384 = vrot.slane %v7383, 4
        %v7385 = vrot.slane %v6880, 5
        %v7386 = vsel %vm3172, %v7384, %v7385
        %v7387 = vrot.slane %v7385, 4
        %v7388 = vrot.slane %v6881, 5
        %v7389 = vsel %vm3172, %v7387, %v7388
        %v7390 = vrot.slane %v7388, 4
        %v7391 = vrot.slane %v6882, 5
        %v7392 = vsel %vm3172, %v7390, %v7391
        %v7393 = vrot.slane %v7391, 4
        %v7394 = vrot.slane %v6883, 5
        %v7395 = vsel %vm3172, %v7393, %v7394
        %v7396 = vrot.slane %v6884, 5
        %v7397 = vrot.slane %v7396, 4
        %v7398 = vrot.slane %v6885, 5
        %v7399 = vsel %vm3172, %v7397, %v7398
        %v7400 = vrot.slane %v7398, 4
        %v7401 = vrot.slane %v6886, 5
        %v7402 = vsel %vm3172, %v7400, %v7401
        %v7403 = vrot.slane %v7401, 4
        %v7404 = vrot.slane %v6887, 5
        %v7405 = vsel %vm3172, %v7403, %v7404
        %v7406 = vrot.slane %v7404, 4
        %v7407 = vrot.slane %v6888, 5
        %v7408 = vsel %vm3172, %v7406, %v7407
        %v7409 = vrot.slane %v6889, 5
        %v7410 = vrot.slane %v7409, 4
        %v7411 = vrot.slane %v6890, 5
        %v7412 = vsel %vm3172, %v7410, %v7411
        %v7413 = vrot.slane %v7411, 4
        %v7414 = vrot.slane %v6891, 5
        %v7415 = vsel %vm3172, %v7413, %v7414
        %v7416 = vrot.slane %v7414, 4
        %v7417 = vrot.slane %v6892, 5
        %v7418 = vsel %vm3172, %v7416, %v7417
        %v7419 = vrot.slane %v7417, 4
        %v7420 = vrot.slane %v6893, 5
        %v7421 = vsel %vm3172, %v7419, %v7420
        %v7422 = vrot.slane %v6894, 5
        %v7423 = vrot.slane %v7422, 4
        %v7424 = vrot.slane %v6895, 5
        %v7425 = vsel %vm3172, %v7423, %v7424
        %v7426 = vrot.slane %v7424, 4
        %v7427 = vrot.slane %v6896, 5
        %v7428 = vsel %vm3172, %v7426, %v7427
        %v7429 = vrot.slane %v7427, 4
        %v7430 = vrot.slane %v6897, 5
        %v7431 = vsel %vm3172, %v7429, %v7430
        %v7432 = vrot.slane %v7430, 4
        %v7433 = vrot.slane %v6898, 5
        %v7434 = vsel %vm3172, %v7432, %v7433
        %v7435 = vrot.slane %v6899, 5
        %v7436 = vrot.slane %v7435, 4
        %v7437 = vrot.slane %v6900, 5
        %v7438 = vsel %vm3172, %v7436, %v7437
        %v7439 = vrot.slane %v7437, 4
        %v7440 = vrot.slane %v6901, 5
        %v7441 = vsel %vm3172, %v7439, %v7440
        %v7442 = vrot.slane %v7440, 4
        %v7443 = vrot.slane %v6902, 5
        %v7444 = vsel %vm3172, %v7442, %v7443
        %v7445 = vrot.slane %v7443, 4
        %v7446 = vrot.slane %v6903, 5
        %v7447 = vsel %vm3172, %v7445, %v7446
        %v7448 = vrot.slane %v6904, 5
        %v7449 = vrot.slane %v7448, 4
        %v7450 = vrot.slane %v6905, 5
        %v7451 = vsel %vm3172, %v7449, %v7450
        %v7452 = vrot.slane %v7450, 4
        %v7453 = vrot.slane %v6906, 5
        %v7454 = vsel %vm3172, %v7452, %v7453
        %v7455 = vrot.slane %v7453, 4
        %v7456 = vrot.slane %v6907, 5
        %v7457 = vsel %vm3172, %v7455, %v7456
        %v7458 = vrot.slane %v7456, 4
        %v7459 = vrot.slane %v6908, 5
        %v7460 = vsel %vm3172, %v7458, %v7459
        %v7461 = vrot.slane %v6909, 5
        %v7462 = vrot.slane %v7461, 4
        %v7463 = vrot.slane %v6910, 5
        %v7464 = vsel %vm3172, %v7462, %v7463
        %v7465 = vrot.slane %v7463, 4
        %v7466 = vrot.slane %v6911, 5
        %v7467 = vsel %vm3172, %v7465, %v7466
        %v7468 = vrot.slane %v7466, 4
        %v7469 = vrot.slane %v6912, 5
        %v7470 = vsel %vm3172, %v7468, %v7469
        %v7471 = vrot.slane %v7469, 4
        %v7472 = vrot.slane %v6913, 5
        %v7473 = vsel %vm3172, %v7471, %v7472
        %v7474 = vrot.slane %v6914, 5
        %v7475 = vrot.slane %v7474, 4
        %v7476 = vrot.slane %v6915, 5
        %v7477 = vsel %vm3172, %v7475, %v7476
        %v7478 = vrot.slane %v7476, 4
        %v7479 = vrot.slane %v6916, 5
        %v7480 = vsel %vm3172, %v7478, %v7479
        %v7481 = vrot.slane %v7479, 4
        %v7482 = vrot.slane %v6917, 5
        %v7483 = vsel %vm3172, %v7481, %v7482
        %v7484 = vrot.slane %v7482, 4
        %v7485 = vrot.slane %v6918, 5
        %v7486 = vsel %vm3172, %v7484, %v7485
        %v7487 = vrot.slane %v6919, 5
        %v7488 = vrot.slane %v7487, 4
        %v7489 = vrot.slane %v6920, 5
        %v7490 = vsel %vm3172, %v7488, %v7489
        %v7491 = vrot.slane %v7489, 4
        %v7492 = vrot.slane %v6921, 5
        %v7493 = vsel %vm3172, %v7491, %v7492
        %v7494 = vrot.slane %v7492, 4
        %v7495 = vrot.slane %v6922, 5
        %v7496 = vsel %vm3172, %v7494, %v7495
        %v7497 = vrot.slane %v7495, 4
        %v7498 = vrot.slane %v6923, 5
        %v7499 = vsel %vm3172, %v7497, %v7498
        %v7500 = vunpack.c.l.b16 %v7087
        %v7501 = vunpack.c.l.b16 %v7090
        %v7502 = vunpack.c.l.b16 %v7093
        %v7503 = vunpack.c.l.b16 %v7096
        %v7504 = vunpack.c.l.b16 %v7100
        %v7505 = vunpack.c.l.b16 %v7103
        %v7506 = vunpack.c.l.b16 %v7106
        %v7507 = vunpack.c.l.b16 %v7109
        %v7508 = vunpack.c.l.b16 %v7113
        %v7509 = vunpack.c.l.b16 %v7116
        %v7510 = vunpack.c.l.b16 %v7119
        %v7511 = vunpack.c.l.b16 %v7122
        %v7512 = vunpack.c.l.b16 %v7126
        %v7513 = vunpack.c.l.b16 %v7129
        %v7514 = vunpack.c.l.b16 %v7132
        %v7515 = vunpack.c.l.b16 %v7135
        %v7516 = vunpack.c.l.b16 %v7139
        %v7517 = vunpack.c.l.b16 %v7142
        %v7518 = vunpack.c.l.b16 %v7145
        %v7519 = vunpack.c.l.b16 %v7148
        %v7520 = vunpack.c.l.b16 %v7152
        %v7521 = vunpack.c.l.b16 %v7155
        %v7522 = vunpack.c.l.b16 %v7158
        %v7523 = vunpack.c.l.b16 %v7161
        %v7524 = vunpack.c.l.b16 %v7165
        %v7525 = vunpack.c.l.b16 %v7168
        %v7526 = vunpack.c.l.b16 %v7171
        %v7527 = vunpack.c.l.b16 %v7174
        %v7528 = vunpack.c.l.b16 %v7178
        %v7529 = vunpack.c.l.b16 %v7181
        %v7530 = vunpack.c.l.b16 %v7184
        %v7531 = vunpack.c.l.b16 %v7187
        %v7532 = vunpack.c.l.b16 %v7191
        %v7533 = vunpack.c.l.b16 %v7194
        %v7534 = vunpack.c.l.b16 %v7197
        %v7535 = vunpack.c.l.b16 %v7200
        %v7536 = vunpack.c.l.b16 %v7204
        %v7537 = vunpack.c.l.b16 %v7207
        %v7538 = vunpack.c.l.b16 %v7210
        %v7539 = vunpack.c.l.b16 %v7213
        %v7540 = vunpack.c.l.b16 %v7217
        %v7541 = vunpack.c.l.b16 %v7220
        %v7542 = vunpack.c.l.b16 %v7223
        %v7543 = vunpack.c.l.b16 %v7226
        %v7544 = vunpack.c.l.b16 %v7230
        %v7545 = vunpack.c.l.b16 %v7233
        %v7546 = vunpack.c.l.b16 %v7236
        %v7547 = vunpack.c.l.b16 %v7239
        %v7548 = vunpack.c.l.b16 %v7243
        %v7549 = vunpack.c.l.b16 %v7246
        %v7550 = vunpack.c.l.b16 %v7249
        %v7551 = vunpack.c.l.b16 %v7252
        %v7552 = vunpack.c.l.b16 %v7256
        %v7553 = vunpack.c.l.b16 %v7259
        %v7554 = vunpack.c.l.b16 %v7262
        %v7555 = vunpack.c.l.b16 %v7265
        %v7556 = vunpack.c.l.b16 %v7269
        %v7557 = vunpack.c.l.b16 %v7272
        %v7558 = vunpack.c.l.b16 %v7275
        %v7559 = vunpack.c.l.b16 %v7278
        %v7560 = vunpack.c.l.b16 %v7282
        %v7561 = vunpack.c.l.b16 %v7285
        %v7562 = vunpack.c.l.b16 %v7288
        %v7563 = vunpack.c.l.b16 %v7291
        %v7564 = vunpack.c.l.b16 %v7295
        %v7565 = vunpack.c.l.b16 %v7298
        %v7566 = vunpack.c.l.b16 %v7301
        %v7567 = vunpack.c.l.b16 %v7304
        %v7568 = vunpack.c.l.b16 %v7308
        %v7569 = vunpack.c.l.b16 %v7311
        %v7570 = vunpack.c.l.b16 %v7314
        %v7571 = vunpack.c.l.b16 %v7317
        %v7572 = vunpack.c.l.b16 %v7321
        %v7573 = vunpack.c.l.b16 %v7324
        %v7574 = vunpack.c.l.b16 %v7327
        %v7575 = vunpack.c.l.b16 %v7330
        %v7576 = vunpack.c.l.b16 %v7334
        %v7577 = vunpack.c.l.b16 %v7337
        %v7578 = vunpack.c.l.b16 %v7340
        %v7579 = vunpack.c.l.b16 %v7343
        %v7580 = vunpack.c.l.b16 %v7347
        %v7581 = vunpack.c.l.b16 %v7350
        %v7582 = vunpack.c.l.b16 %v7353
        %v7583 = vunpack.c.l.b16 %v7356
        %v7584 = vunpack.c.l.b16 %v7360
        %v7585 = vunpack.c.l.b16 %v7363
        %v7586 = vunpack.c.l.b16 %v7366
        %v7587 = vunpack.c.l.b16 %v7369
        %v7588 = vunpack.c.l.b16 %v7373
        %v7589 = vunpack.c.l.b16 %v7376
        %v7590 = vunpack.c.l.b16 %v7379
        %v7591 = vunpack.c.l.b16 %v7382
        %v7592 = vunpack.c.l.b16 %v7386
        %v7593 = vunpack.c.l.b16 %v7389
        %v7594 = vunpack.c.l.b16 %v7392
        %v7595 = vunpack.c.l.b16 %v7395
        %v7596 = vunpack.c.l.b16 %v7399
        %v7597 = vunpack.c.l.b16 %v7402
        %v7598 = vunpack.c.l.b16 %v7405
        %v7599 = vunpack.c.l.b16 %v7408
        %v7600 = vunpack.c.l.b16 %v7412
        %v7601 = vunpack.c.l.b16 %v7415
        %v7602 = vunpack.c.l.b16 %v7418
        %v7603 = vunpack.c.l.b16 %v7421
        %v7604 = vunpack.c.l.b16 %v7425
        %v7605 = vunpack.c.l.b16 %v7428
        %v7606 = vunpack.c.l.b16 %v7431
        %v7607 = vunpack.c.l.b16 %v7434
        %v7608 = vunpack.c.l.b16 %v7438
        %v7609 = vunpack.c.l.b16 %v7441
        %v7610 = vunpack.c.l.b16 %v7444
        %v7611 = vunpack.c.l.b16 %v7447
        %v7612 = vunpack.c.l.b16 %v7451
        %v7613 = vunpack.c.l.b16 %v7454
        %v7614 = vunpack.c.l.b16 %v7457
        %v7615 = vunpack.c.l.b16 %v7460
        %v7616 = vunpack.c.l.b16 %v7464
        %v7617 = vunpack.c.l.b16 %v7467
        %v7618 = vunpack.c.l.b16 %v7470
        %v7619 = vunpack.c.l.b16 %v7473
        %v7620 = vunpack.c.l.b16 %v7477
        %v7621 = vunpack.c.l.b16 %v7480
        %v7622 = vunpack.c.l.b16 %v7483
        %v7623 = vunpack.c.l.b16 %v7486
        %v7624 = vunpack.c.l.b16 %v7490
        %v7625 = vunpack.c.l.b16 %v7493
        %v7626 = vunpack.c.l.b16 %v7496
        %v7627 = vunpack.c.l.b16 %v7499
        %v7628 = vpack.c.b16 %v7501, %v7500
        %v7629 = vpack.c.b16 %v7503, %v7502
        %v7630 = vpack.c.b16 %v7505, %v7504
        %v7631 = vpack.c.b16 %v7507, %v7506
        %v7632 = vpack.c.b16 %v7509, %v7508
        %v7633 = vpack.c.b16 %v7511, %v7510
        %v7634 = vpack.c.b16 %v7513, %v7512
        %v7635 = vpack.c.b16 %v7515, %v7514
        %v7636 = vpack.c.b16 %v7517, %v7516
        %v7637 = vpack.c.b16 %v7519, %v7518
        %v7638 = vpack.c.b16 %v7521, %v7520
        %v7639 = vpack.c.b16 %v7523, %v7522
        %v7640 = vpack.c.b16 %v7525, %v7524
        %v7641 = vpack.c.b16 %v7527, %v7526
        %v7642 = vpack.c.b16 %v7529, %v7528
        %v7643 = vpack.c.b16 %v7531, %v7530
        %v7644 = vpack.c.b16 %v7533, %v7532
        %v7645 = vpack.c.b16 %v7535, %v7534
        %v7646 = vpack.c.b16 %v7537, %v7536
        %v7647 = vpack.c.b16 %v7539, %v7538
        %v7648 = vpack.c.b16 %v7541, %v7540
        %v7649 = vpack.c.b16 %v7543, %v7542
        %v7650 = vpack.c.b16 %v7545, %v7544
        %v7651 = vpack.c.b16 %v7547, %v7546
        %v7652 = vpack.c.b16 %v7549, %v7548
        %v7653 = vpack.c.b16 %v7551, %v7550
        %v7654 = vpack.c.b16 %v7553, %v7552
        %v7655 = vpack.c.b16 %v7555, %v7554
        %v7656 = vpack.c.b16 %v7557, %v7556
        %v7657 = vpack.c.b16 %v7559, %v7558
        %v7658 = vpack.c.b16 %v7561, %v7560
        %v7659 = vpack.c.b16 %v7563, %v7562
        %v7660 = vpack.c.b16 %v7565, %v7564
        %v7661 = vpack.c.b16 %v7567, %v7566
        %v7662 = vpack.c.b16 %v7569, %v7568
        %v7663 = vpack.c.b16 %v7571, %v7570
        %v7664 = vpack.c.b16 %v7573, %v7572
        %v7665 = vpack.c.b16 %v7575, %v7574
        %v7666 = vpack.c.b16 %v7577, %v7576
        %v7667 = vpack.c.b16 %v7579, %v7578
        %v7668 = vpack.c.b16 %v7581, %v7580
        %v7669 = vpack.c.b16 %v7583, %v7582
        %v7670 = vpack.c.b16 %v7585, %v7584
        %v7671 = vpack.c.b16 %v7587, %v7586
        %v7672 = vpack.c.b16 %v7589, %v7588
        %v7673 = vpack.c.b16 %v7591, %v7590
        %v7674 = vpack.c.b16 %v7593, %v7592
        %v7675 = vpack.c.b16 %v7595, %v7594
        %v7676 = vpack.c.b16 %v7597, %v7596
        %v7677 = vpack.c.b16 %v7599, %v7598
        %v7678 = vpack.c.b16 %v7601, %v7600
        %v7679 = vpack.c.b16 %v7603, %v7602
        %v7680 = vpack.c.b16 %v7605, %v7604
        %v7681 = vpack.c.b16 %v7607, %v7606
        %v7682 = vpack.c.b16 %v7609, %v7608
        %v7683 = vpack.c.b16 %v7611, %v7610
        %v7684 = vpack.c.b16 %v7613, %v7612
        %v7685 = vpack.c.b16 %v7615, %v7614
        %v7686 = vpack.c.b16 %v7617, %v7616
        %v7687 = vpack.c.b16 %v7619, %v7618
        %v7688 = vpack.c.b16 %v7621, %v7620
        %v7689 = vpack.c.b16 %v7623, %v7622
        %v7690 = vpack.c.b16 %v7625, %v7624
        %v7691 = vpack.c.b16 %v7627, %v7626
        %7692 = vrot.lane.b32.xlu0 %v7628, 20
        %v7693 = vpop.permute.xlu0 %7692
        %7694 = vrot.lane.b32.xlu0 %v7629, 20
        %v7695 = vpop.permute.xlu0 %7694
        %7696 = vrot.lane.b32.xlu0 %v7630, 20
        %v7697 = vpop.permute.xlu0 %7696
        %7698 = vrot.lane.b32.xlu0 %v7631, 20
        %v7699 = vpop.permute.xlu0 %7698
        %7700 = vrot.lane.b32.xlu0 %v7632, 20
        %v7701 = vpop.permute.xlu0 %7700
        %7702 = vrot.lane.b32.xlu0 %v7633, 20
        %v7703 = vpop.permute.xlu0 %7702
        %7704 = vrot.lane.b32.xlu0 %v7634, 20
        %v7705 = vpop.permute.xlu0 %7704
        %7706 = vrot.lane.b32.xlu0 %v7635, 20
        %v7707 = vpop.permute.xlu0 %7706
        %7708 = vrot.lane.b32.xlu0 %v7636, 20
        %v7709 = vpop.permute.xlu0 %7708
        %7710 = vrot.lane.b32.xlu0 %v7637, 20
        %v7711 = vpop.permute.xlu0 %7710
        %7712 = vrot.lane.b32.xlu0 %v7638, 20
        %v7713 = vpop.permute.xlu0 %7712
        %7714 = vrot.lane.b32.xlu0 %v7639, 20
        %v7715 = vpop.permute.xlu0 %7714
        %7716 = vrot.lane.b32.xlu0 %v7640, 20
        %v7717 = vpop.permute.xlu0 %7716
        %7718 = vrot.lane.b32.xlu0 %v7641, 20
        %v7719 = vpop.permute.xlu0 %7718
        %7720 = vrot.lane.b32.xlu0 %v7642, 20
        %v7721 = vpop.permute.xlu0 %7720
        %7722 = vrot.lane.b32.xlu0 %v7643, 20
        %v7723 = vpop.permute.xlu0 %7722
        %7724 = vrot.lane.b32.xlu0 %v7644, 20
        %v7725 = vpop.permute.xlu0 %7724
        %7726 = vrot.lane.b32.xlu0 %v7645, 20
        %v7727 = vpop.permute.xlu0 %7726
        %7728 = vrot.lane.b32.xlu0 %v7646, 20
        %v7729 = vpop.permute.xlu0 %7728
        %7730 = vrot.lane.b32.xlu0 %v7647, 20
        %v7731 = vpop.permute.xlu0 %7730
        %7732 = vrot.lane.b32.xlu0 %v7648, 20
        %v7733 = vpop.permute.xlu0 %7732
        %7734 = vrot.lane.b32.xlu0 %v7649, 20
        %v7735 = vpop.permute.xlu0 %7734
        %7736 = vrot.lane.b32.xlu0 %v7650, 20
        %v7737 = vpop.permute.xlu0 %7736
        %7738 = vrot.lane.b32.xlu0 %v7651, 20
        %v7739 = vpop.permute.xlu0 %7738
        %7740 = vrot.lane.b32.xlu0 %v7652, 20
        %v7741 = vpop.permute.xlu0 %7740
        %7742 = vrot.lane.b32.xlu0 %v7653, 20
        %v7743 = vpop.permute.xlu0 %7742
        %7744 = vrot.lane.b32.xlu0 %v7654, 20
        %v7745 = vpop.permute.xlu0 %7744
        %7746 = vrot.lane.b32.xlu0 %v7655, 20
        %v7747 = vpop.permute.xlu0 %7746
        %7748 = vrot.lane.b32.xlu0 %v7656, 20
        %v7749 = vpop.permute.xlu0 %7748
        %7750 = vrot.lane.b32.xlu0 %v7657, 20
        %v7751 = vpop.permute.xlu0 %7750
        %7752 = vrot.lane.b32.xlu0 %v7658, 20
        %v7753 = vpop.permute.xlu0 %7752
        %7754 = vrot.lane.b32.xlu0 %v7659, 20
        %v7755 = vpop.permute.xlu0 %7754
        %7756 = vrot.lane.b32.xlu0 %v7660, 20
        %v7757 = vpop.permute.xlu0 %7756
        %7758 = vrot.lane.b32.xlu0 %v7661, 20
        %v7759 = vpop.permute.xlu0 %7758
        %7760 = vrot.lane.b32.xlu0 %v7662, 20
        %v7761 = vpop.permute.xlu0 %7760
        %7762 = vrot.lane.b32.xlu0 %v7663, 20
        %v7763 = vpop.permute.xlu0 %7762
        %7764 = vrot.lane.b32.xlu0 %v7664, 20
        %v7765 = vpop.permute.xlu0 %7764
        %7766 = vrot.lane.b32.xlu0 %v7665, 20
        %v7767 = vpop.permute.xlu0 %7766
        %7768 = vrot.lane.b32.xlu0 %v7666, 20
        %v7769 = vpop.permute.xlu0 %7768
        %7770 = vrot.lane.b32.xlu0 %v7667, 20
        %v7771 = vpop.permute.xlu0 %7770
        %7772 = vrot.lane.b32.xlu0 %v7668, 20
        %v7773 = vpop.permute.xlu0 %7772
        %7774 = vrot.lane.b32.xlu0 %v7669, 20
        %v7775 = vpop.permute.xlu0 %7774
        %7776 = vrot.lane.b32.xlu0 %v7670, 20
        %v7777 = vpop.permute.xlu0 %7776
        %7778 = vrot.lane.b32.xlu0 %v7671, 20
        %v7779 = vpop.permute.xlu0 %7778
        %7780 = vrot.lane.b32.xlu0 %v7672, 20
        %v7781 = vpop.permute.xlu0 %7780
        %7782 = vrot.lane.b32.xlu0 %v7673, 20
        %v7783 = vpop.permute.xlu0 %7782
        %7784 = vrot.lane.b32.xlu0 %v7674, 20
        %v7785 = vpop.permute.xlu0 %7784
        %7786 = vrot.lane.b32.xlu0 %v7675, 20
        %v7787 = vpop.permute.xlu0 %7786
        %7788 = vrot.lane.b32.xlu0 %v7676, 20
        %v7789 = vpop.permute.xlu0 %7788
        %7790 = vrot.lane.b32.xlu0 %v7677, 20
        %v7791 = vpop.permute.xlu0 %7790
        %7792 = vrot.lane.b32.xlu0 %v7678, 20
        %v7793 = vpop.permute.xlu0 %7792
        %7794 = vrot.lane.b32.xlu0 %v7679, 20
        %v7795 = vpop.permute.xlu0 %7794
        %7796 = vrot.lane.b32.xlu0 %v7680, 20
        %v7797 = vpop.permute.xlu0 %7796
        %7798 = vrot.lane.b32.xlu0 %v7681, 20
        %v7799 = vpop.permute.xlu0 %7798
        %7800 = vrot.lane.b32.xlu0 %v7682, 20
        %v7801 = vpop.permute.xlu0 %7800
        %7802 = vrot.lane.b32.xlu0 %v7683, 20
        %v7803 = vpop.permute.xlu0 %7802
        %7804 = vrot.lane.b32.xlu0 %v7684, 20
        %v7805 = vpop.permute.xlu0 %7804
        %7806 = vrot.lane.b32.xlu0 %v7685, 20
        %v7807 = vpop.permute.xlu0 %7806
        %7808 = vrot.lane.b32.xlu0 %v7686, 20
        %v7809 = vpop.permute.xlu0 %7808
        %7810 = vrot.lane.b32.xlu0 %v7687, 20
        %v7811 = vpop.permute.xlu0 %7810
        %7812 = vrot.lane.b32.xlu0 %v7688, 20
        %v7813 = vpop.permute.xlu0 %7812
        %7814 = vrot.lane.b32.xlu0 %v7689, 20
        %v7815 = vpop.permute.xlu0 %7814
        %7816 = vrot.lane.b32.xlu0 %v7690, 20
        %v7817 = vpop.permute.xlu0 %7816
        %7818 = vrot.lane.b32.xlu0 %v7691, 20
        %v7819 = vpop.permute.xlu0 %7818
        %vm7884 = vcmask 195744
        %7885 = vst.msk [vmem:[#allocation2] sm:$0xff] %vm7884, %v7693
        %7886 = vst.msk [vmem:[#allocation2 + $0x8] sm:$0xff] %vm7884, %v7695
        %7887 = vst.msk [vmem:[#allocation2 + $0x10] sm:$0xff] %vm7884, %v7697
        %7888 = vst.msk [vmem:[#allocation2 + $0x18] sm:$0xff] %vm7884, %v7699
        %7889 = vst.msk [vmem:[#allocation2 + $0x20] sm:$0xff] %vm7884, %v7701
        %7890 = vst.msk [vmem:[#allocation2 + $0x28] sm:$0xff] %vm7884, %v7703
        %7891 = vst.msk [vmem:[#allocation2 + $0x30] sm:$0xff] %vm7884, %v7705
        %7892 = vst.msk [vmem:[#allocation2 + $0x38] sm:$0xff] %vm7884, %v7707
        %7893 = vst.msk [vmem:[#allocation2 + $0x40] sm:$0xff] %vm7884, %v7709
        %7894 = vst.msk [vmem:[#allocation2 + $0x48] sm:$0xff] %vm7884, %v7711
        %7895 = vst.msk [vmem:[#allocation2 + $0x50] sm:$0xff] %vm7884, %v7713
        %7896 = vst.msk [vmem:[#allocation2 + $0x58] sm:$0xff] %vm7884, %v7715
        %7897 = vst.msk [vmem:[#allocation2 + $0x60] sm:$0xff] %vm7884, %v7717
        %7898 = vst.msk [vmem:[#allocation2 + $0x68] sm:$0xff] %vm7884, %v7719
        %7899 = vst.msk [vmem:[#allocation2 + $0x70] sm:$0xff] %vm7884, %v7721
        %7900 = vst.msk [vmem:[#allocation2 + $0x78] sm:$0xff] %vm7884, %v7723
        %7901 = vst.msk [vmem:[#allocation2 + $0x80] sm:$0xff] %vm7884, %v7725
        %7902 = vst.msk [vmem:[#allocation2 + $0x88] sm:$0xff] %vm7884, %v7727
        %7903 = vst.msk [vmem:[#allocation2 + $0x90] sm:$0xff] %vm7884, %v7729
        %7904 = vst.msk [vmem:[#allocation2 + $0x98] sm:$0xff] %vm7884, %v7731
        %7905 = vst.msk [vmem:[#allocation2 + $0xa0] sm:$0xff] %vm7884, %v7733
        %7906 = vst.msk [vmem:[#allocation2 + $0xa8] sm:$0xff] %vm7884, %v7735
        %7907 = vst.msk [vmem:[#allocation2 + $0xb0] sm:$0xff] %vm7884, %v7737
        %7908 = vst.msk [vmem:[#allocation2 + $0xb8] sm:$0xff] %vm7884, %v7739
        %7909 = vst.msk [vmem:[#allocation2 + $0xc0] sm:$0xff] %vm7884, %v7741
        %7910 = vst.msk [vmem:[#allocation2 + $0xc8] sm:$0xff] %vm7884, %v7743
        %7911 = vst.msk [vmem:[#allocation2 + $0xd0] sm:$0xff] %vm7884, %v7745
        %7912 = vst.msk [vmem:[#allocation2 + $0xd8] sm:$0xff] %vm7884, %v7747
        %7913 = vst.msk [vmem:[#allocation2 + $0xe0] sm:$0xff] %vm7884, %v7749
        %7914 = vst.msk [vmem:[#allocation2 + $0xe8] sm:$0xff] %vm7884, %v7751
        %7915 = vst.msk [vmem:[#allocation2 + $0xf0] sm:$0xff] %vm7884, %v7753
        %7916 = vst.msk [vmem:[#allocation2 + $0xf8] sm:$0xff] %vm7884, %v7755
        %7917 = vst.msk [vmem:[#allocation2 + $0x100] sm:$0xff] %vm7884, %v7757
        %7918 = vst.msk [vmem:[#allocation2 + $0x108] sm:$0xff] %vm7884, %v7759
        %7919 = vst.msk [vmem:[#allocation2 + $0x110] sm:$0xff] %vm7884, %v7761
        %7920 = vst.msk [vmem:[#allocation2 + $0x118] sm:$0xff] %vm7884, %v7763
        %7921 = vst.msk [vmem:[#allocation2 + $0x120] sm:$0xff] %vm7884, %v7765
        %7922 = vst.msk [vmem:[#allocation2 + $0x128] sm:$0xff] %vm7884, %v7767
        %7923 = vst.msk [vmem:[#allocation2 + $0x130] sm:$0xff] %vm7884, %v7769
        %7924 = vst.msk [vmem:[#allocation2 + $0x138] sm:$0xff] %vm7884, %v7771
        %7925 = vst.msk [vmem:[#allocation2 + $0x140] sm:$0xff] %vm7884, %v7773
        %7926 = vst.msk [vmem:[#allocation2 + $0x148] sm:$0xff] %vm7884, %v7775
        %7927 = vst.msk [vmem:[#allocation2 + $0x150] sm:$0xff] %vm7884, %v7777
        %7928 = vst.msk [vmem:[#allocation2 + $0x158] sm:$0xff] %vm7884, %v7779
        %7929 = vst.msk [vmem:[#allocation2 + $0x160] sm:$0xff] %vm7884, %v7781
        %7930 = vst.msk [vmem:[#allocation2 + $0x168] sm:$0xff] %vm7884, %v7783
        %7931 = vst.msk [vmem:[#allocation2 + $0x170] sm:$0xff] %vm7884, %v7785
        %7932 = vst.msk [vmem:[#allocation2 + $0x178] sm:$0xff] %vm7884, %v7787
        %7933 = vst.msk [vmem:[#allocation2 + $0x180] sm:$0xff] %vm7884, %v7789
        %7934 = vst.msk [vmem:[#allocation2 + $0x188] sm:$0xff] %vm7884, %v7791
        %7935 = vst.msk [vmem:[#allocation2 + $0x190] sm:$0xff] %vm7884, %v7793
        %7936 = vst.msk [vmem:[#allocation2 + $0x198] sm:$0xff] %vm7884, %v7795
        %7937 = vst.msk [vmem:[#allocation2 + $0x1a0] sm:$0xff] %vm7884, %v7797
        %7938 = vst.msk [vmem:[#allocation2 + $0x1a8] sm:$0xff] %vm7884, %v7799
        %7939 = vst.msk [vmem:[#allocation2 + $0x1b0] sm:$0xff] %vm7884, %v7801
        %7940 = vst.msk [vmem:[#allocation2 + $0x1b8] sm:$0xff] %vm7884, %v7803
        %7941 = vst.msk [vmem:[#allocation2 + $0x1c0] sm:$0xff] %vm7884, %v7805
        %7942 = vst.msk [vmem:[#allocation2 + $0x1c8] sm:$0xff] %vm7884, %v7807
        %7943 = vst.msk [vmem:[#allocation2 + $0x1d0] sm:$0xff] %vm7884, %v7809
        %7944 = vst.msk [vmem:[#allocation2 + $0x1d8] sm:$0xff] %vm7884, %v7811
        %7945 = vst.msk [vmem:[#allocation2 + $0x1e0] sm:$0xff] %vm7884, %v7813
        %7946 = vst.msk [vmem:[#allocation2 + $0x1e8] sm:$0xff] %vm7884, %v7815
        %7947 = vst.msk [vmem:[#allocation2 + $0x1f0] sm:$0xff] %vm7884, %v7817
        %7948 = vst.msk [vmem:[#allocation2 + $0x1f8] sm:$0xff] %vm7884, %v7819
        %s7949 = sadd.s32 %s249, 2
        %s7950 = smul.u32 %s7949, 5
        %s7951 = smul.addr %s7950, 4
        %s7952 = scalar_lea.vmem %s232, %s7951
        %v7953 = vld [vmem:[%s7952] sm:$0xf]
        %v7954 = vld [vmem:[%s7952 + $0x4] sm:$0xf]
        %v7955 = vld [vmem:[%s7952 + $0x8] sm:$0xf]
        %v7956 = vld [vmem:[%s7952 + $0xc] sm:$0xf]
        %v7957 = vld [vmem:[%s7952 + $0x14] sm:$0xf]
        %v7958 = vld [vmem:[%s7952 + $0x18] sm:$0xf]
        %v7959 = vld [vmem:[%s7952 + $0x1c] sm:$0xf]
        %v7960 = vld [vmem:[%s7952 + $0x20] sm:$0xf]
        %v7961 = vld [vmem:[%s7952 + $0x28] sm:$0xf]
        %v7962 = vld [vmem:[%s7952 + $0x2c] sm:$0xf]
        %v7963 = vld [vmem:[%s7952 + $0x30] sm:$0xf]
        %v7964 = vld [vmem:[%s7952 + $0x34] sm:$0xf]
        %v7965 = vld [vmem:[%s7952 + $0x3c] sm:$0xf]
        %v7966 = vld [vmem:[%s7952 + $0x40] sm:$0xf]
        %v7967 = vld [vmem:[%s7952 + $0x44] sm:$0xf]
        %v7968 = vld [vmem:[%s7952 + $0x48] sm:$0xf]
        %v7969 = vld [vmem:[%s7952 + $0x50] sm:$0xf]
        %v7970 = vld [vmem:[%s7952 + $0x54] sm:$0xf]
        %v7971 = vld [vmem:[%s7952 + $0x58] sm:$0xf]
        %v7972 = vld [vmem:[%s7952 + $0x5c] sm:$0xf]
        %v7973 = vld [vmem:[%s7952 + $0x64] sm:$0xf]
        %v7974 = vld [vmem:[%s7952 + $0x68] sm:$0xf]
        %v7975 = vld [vmem:[%s7952 + $0x6c] sm:$0xf]
        %v7976 = vld [vmem:[%s7952 + $0x70] sm:$0xf]
        %v7977 = vld [vmem:[%s7952 + $0x78] sm:$0xf]
        %v7978 = vld [vmem:[%s7952 + $0x7c] sm:$0xf]
        %v7979 = vld [vmem:[%s7952 + $0x80] sm:$0xf]
        %v7980 = vld [vmem:[%s7952 + $0x84] sm:$0xf]
        %v7981 = vld [vmem:[%s7952 + $0x8c] sm:$0xf]
        %v7982 = vld [vmem:[%s7952 + $0x90] sm:$0xf]
        %v7983 = vld [vmem:[%s7952 + $0x94] sm:$0xf]
        %v7984 = vld [vmem:[%s7952 + $0x98] sm:$0xf]
        %v7985 = vld [vmem:[%s7952 + $0xa0] sm:$0xf]
        %v7986 = vld [vmem:[%s7952 + $0xa4] sm:$0xf]
        %v7987 = vld [vmem:[%s7952 + $0xa8] sm:$0xf]
        %v7988 = vld [vmem:[%s7952 + $0xac] sm:$0xf]
        %v7989 = vld [vmem:[%s7952 + $0xb4] sm:$0xf]
        %v7990 = vld [vmem:[%s7952 + $0xb8] sm:$0xf]
        %v7991 = vld [vmem:[%s7952 + $0xbc] sm:$0xf]
        %v7992 = vld [vmem:[%s7952 + $0xc0] sm:$0xf]
        %v7993 = vld [vmem:[%s7952 + $0xc8] sm:$0xf]
        %v7994 = vld [vmem:[%s7952 + $0xcc] sm:$0xf]
        %v7995 = vld [vmem:[%s7952 + $0xd0] sm:$0xf]
        %v7996 = vld [vmem:[%s7952 + $0xd4] sm:$0xf]
        %v7997 = vld [vmem:[%s7952 + $0xdc] sm:$0xf]
        %v7998 = vld [vmem:[%s7952 + $0xe0] sm:$0xf]
        %v7999 = vld [vmem:[%s7952 + $0xe4] sm:$0xf]
        %v8000 = vld [vmem:[%s7952 + $0xe8] sm:$0xf]
        %v8001 = vld [vmem:[%s7952 + $0xf0] sm:$0xf]
        %v8002 = vld [vmem:[%s7952 + $0xf4] sm:$0xf]
        %v8003 = vld [vmem:[%s7952 + $0xf8] sm:$0xf]
        %v8004 = vld [vmem:[%s7952 + $0xfc] sm:$0xf]
        %v8005 = vld [vmem:[%s7952 + $0x104] sm:$0xf]
        %v8006 = vld [vmem:[%s7952 + $0x108] sm:$0xf]
        %v8007 = vld [vmem:[%s7952 + $0x10c] sm:$0xf]
        %v8008 = vld [vmem:[%s7952 + $0x110] sm:$0xf]
        %v8009 = vld [vmem:[%s7952 + $0x118] sm:$0xf]
        %v8010 = vld [vmem:[%s7952 + $0x11c] sm:$0xf]
        %v8011 = vld [vmem:[%s7952 + $0x120] sm:$0xf]
        %v8012 = vld [vmem:[%s7952 + $0x124] sm:$0xf]
        %v8013 = vld [vmem:[%s7952 + $0x12c] sm:$0xf]
        %v8014 = vld [vmem:[%s7952 + $0x130] sm:$0xf]
        %v8015 = vld [vmem:[%s7952 + $0x134] sm:$0xf]
        %v8016 = vld [vmem:[%s7952 + $0x138] sm:$0xf]
        %v8017 = vld [vmem:[%s7952 + $0x140] sm:$0xf]
        %v8018 = vld [vmem:[%s7952 + $0x144] sm:$0xf]
        %v8019 = vld [vmem:[%s7952 + $0x148] sm:$0xf]
        %v8020 = vld [vmem:[%s7952 + $0x14c] sm:$0xf]
        %v8021 = vld [vmem:[%s7952 + $0x154] sm:$0xf]
        %v8022 = vld [vmem:[%s7952 + $0x158] sm:$0xf]
        %v8023 = vld [vmem:[%s7952 + $0x15c] sm:$0xf]
        %v8024 = vld [vmem:[%s7952 + $0x160] sm:$0xf]
        %v8025 = vld [vmem:[%s7952 + $0x168] sm:$0xf]
        %v8026 = vld [vmem:[%s7952 + $0x16c] sm:$0xf]
        %v8027 = vld [vmem:[%s7952 + $0x170] sm:$0xf]
        %v8028 = vld [vmem:[%s7952 + $0x174] sm:$0xf]
        %v8029 = vld [vmem:[%s7952 + $0x17c] sm:$0xf]
        %v8030 = vld [vmem:[%s7952 + $0x180] sm:$0xf]
        %v8031 = vld [vmem:[%s7952 + $0x184] sm:$0xf]
        %v8032 = vld [vmem:[%s7952 + $0x188] sm:$0xf]
        %v8033 = vld [vmem:[%s7952 + $0x190] sm:$0xf]
        %v8034 = vld [vmem:[%s7952 + $0x194] sm:$0xf]
        %v8035 = vld [vmem:[%s7952 + $0x198] sm:$0xf]
        %v8036 = vld [vmem:[%s7952 + $0x19c] sm:$0xf]
        %v8037 = vld [vmem:[%s7952 + $0x1a4] sm:$0xf]
        %v8038 = vld [vmem:[%s7952 + $0x1a8] sm:$0xf]
        %v8039 = vld [vmem:[%s7952 + $0x1ac] sm:$0xf]
        %v8040 = vld [vmem:[%s7952 + $0x1b0] sm:$0xf]
        %v8041 = vld [vmem:[%s7952 + $0x1b8] sm:$0xf]
        %v8042 = vld [vmem:[%s7952 + $0x1bc] sm:$0xf]
        %v8043 = vld [vmem:[%s7952 + $0x1c0] sm:$0xf]
        %v8044 = vld [vmem:[%s7952 + $0x1c4] sm:$0xf]
        %v8045 = vld [vmem:[%s7952 + $0x1cc] sm:$0xf]
        %v8046 = vld [vmem:[%s7952 + $0x1d0] sm:$0xf]
        %v8047 = vld [vmem:[%s7952 + $0x1d4] sm:$0xf]
        %v8048 = vld [vmem:[%s7952 + $0x1d8] sm:$0xf]
        %v8049 = vld [vmem:[%s7952 + $0x1e0] sm:$0xf]
        %v8050 = vld [vmem:[%s7952 + $0x1e4] sm:$0xf]
        %v8051 = vld [vmem:[%s7952 + $0x1e8] sm:$0xf]
        %v8052 = vld [vmem:[%s7952 + $0x1ec] sm:$0xf]
        %v8053 = vld [vmem:[%s7952 + $0x1f4] sm:$0xf]
        %v8054 = vld [vmem:[%s7952 + $0x1f8] sm:$0xf]
        %v8055 = vld [vmem:[%s7952 + $0x1fc] sm:$0xf]
        %v8056 = vld [vmem:[%s7952 + $0x200] sm:$0xf]
        %v8057 = vld [vmem:[%s7952 + $0x208] sm:$0xf]
        %v8058 = vld [vmem:[%s7952 + $0x20c] sm:$0xf]
        %v8059 = vld [vmem:[%s7952 + $0x210] sm:$0xf]
        %v8060 = vld [vmem:[%s7952 + $0x214] sm:$0xf]
        %v8061 = vld [vmem:[%s7952 + $0x21c] sm:$0xf]
        %v8062 = vld [vmem:[%s7952 + $0x220] sm:$0xf]
        %v8063 = vld [vmem:[%s7952 + $0x224] sm:$0xf]
        %v8064 = vld [vmem:[%s7952 + $0x228] sm:$0xf]
        %v8065 = vld [vmem:[%s7952 + $0x230] sm:$0xf]
        %v8066 = vld [vmem:[%s7952 + $0x234] sm:$0xf]
        %v8067 = vld [vmem:[%s7952 + $0x238] sm:$0xf]
        %v8068 = vld [vmem:[%s7952 + $0x23c] sm:$0xf]
        %v8069 = vld [vmem:[%s7952 + $0x244] sm:$0xf]
        %v8070 = vld [vmem:[%s7952 + $0x248] sm:$0xf]
        %v8071 = vld [vmem:[%s7952 + $0x24c] sm:$0xf]
        %v8072 = vld [vmem:[%s7952 + $0x250] sm:$0xf]
        %v8073 = vld [vmem:[%s7952 + $0x258] sm:$0xf]
        %v8074 = vld [vmem:[%s7952 + $0x25c] sm:$0xf]
        %v8075 = vld [vmem:[%s7952 + $0x260] sm:$0xf]
        %v8076 = vld [vmem:[%s7952 + $0x264] sm:$0xf]
        %v8077 = vld [vmem:[%s7952 + $0x26c] sm:$0xf]
        %v8078 = vld [vmem:[%s7952 + $0x270] sm:$0xf]
        %v8079 = vld [vmem:[%s7952 + $0x274] sm:$0xf]
        %v8080 = vld [vmem:[%s7952 + $0x278] sm:$0xf]
        %v8209 = vunpack.c.l.b16 %v7953
        %v8210 = vunpack.c.l.b16 %v7954
        %v8211 = vunpack.c.l.b16 %v7955
        %v8212 = vunpack.c.l.b16 %v7956
        %v8213 = vunpack.c.l.b16 %v7957
        %v8214 = vunpack.c.l.b16 %v7958
        %v8215 = vunpack.c.l.b16 %v7959
        %v8216 = vunpack.c.l.b16 %v7960
        %v8217 = vunpack.c.l.b16 %v7961
        %v8218 = vunpack.c.l.b16 %v7962
        %v8219 = vunpack.c.l.b16 %v7963
        %v8220 = vunpack.c.l.b16 %v7964
        %v8221 = vunpack.c.l.b16 %v7965
        %v8222 = vunpack.c.l.b16 %v7966
        %v8223 = vunpack.c.l.b16 %v7967
        %v8224 = vunpack.c.l.b16 %v7968
        %v8225 = vunpack.c.l.b16 %v7969
        %v8226 = vunpack.c.l.b16 %v7970
        %v8227 = vunpack.c.l.b16 %v7971
        %v8228 = vunpack.c.l.b16 %v7972
        %v8229 = vunpack.c.l.b16 %v7973
        %v8230 = vunpack.c.l.b16 %v7974
        %v8231 = vunpack.c.l.b16 %v7975
        %v8232 = vunpack.c.l.b16 %v7976
        %v8233 = vunpack.c.l.b16 %v7977
        %v8234 = vunpack.c.l.b16 %v7978
        %v8235 = vunpack.c.l.b16 %v7979
        %v8236 = vunpack.c.l.b16 %v7980
        %v8237 = vunpack.c.l.b16 %v7981
        %v8238 = vunpack.c.l.b16 %v7982
        %v8239 = vunpack.c.l.b16 %v7983
        %v8240 = vunpack.c.l.b16 %v7984
        %v8241 = vunpack.c.l.b16 %v7985
        %v8242 = vunpack.c.l.b16 %v7986
        %v8243 = vunpack.c.l.b16 %v7987
        %v8244 = vunpack.c.l.b16 %v7988
        %v8245 = vunpack.c.l.b16 %v7989
        %v8246 = vunpack.c.l.b16 %v7990
        %v8247 = vunpack.c.l.b16 %v7991
        %v8248 = vunpack.c.l.b16 %v7992
        %v8249 = vunpack.c.l.b16 %v7993
        %v8250 = vunpack.c.l.b16 %v7994
        %v8251 = vunpack.c.l.b16 %v7995
        %v8252 = vunpack.c.l.b16 %v7996
        %v8253 = vunpack.c.l.b16 %v7997
        %v8254 = vunpack.c.l.b16 %v7998
        %v8255 = vunpack.c.l.b16 %v7999
        %v8256 = vunpack.c.l.b16 %v8000
        %v8257 = vunpack.c.l.b16 %v8001
        %v8258 = vunpack.c.l.b16 %v8002
        %v8259 = vunpack.c.l.b16 %v8003
        %v8260 = vunpack.c.l.b16 %v8004
        %v8261 = vunpack.c.l.b16 %v8005
        %v8262 = vunpack.c.l.b16 %v8006
        %v8263 = vunpack.c.l.b16 %v8007
        %v8264 = vunpack.c.l.b16 %v8008
        %v8265 = vunpack.c.l.b16 %v8009
        %v8266 = vunpack.c.l.b16 %v8010
        %v8267 = vunpack.c.l.b16 %v8011
        %v8268 = vunpack.c.l.b16 %v8012
        %v8269 = vunpack.c.l.b16 %v8013
        %v8270 = vunpack.c.l.b16 %v8014
        %v8271 = vunpack.c.l.b16 %v8015
        %v8272 = vunpack.c.l.b16 %v8016
        %v8273 = vunpack.c.l.b16 %v8017
        %v8274 = vunpack.c.l.b16 %v8018
        %v8275 = vunpack.c.l.b16 %v8019
        %v8276 = vunpack.c.l.b16 %v8020
        %v8277 = vunpack.c.l.b16 %v8021
        %v8278 = vunpack.c.l.b16 %v8022
        %v8279 = vunpack.c.l.b16 %v8023
        %v8280 = vunpack.c.l.b16 %v8024
        %v8281 = vunpack.c.l.b16 %v8025
        %v8282 = vunpack.c.l.b16 %v8026
        %v8283 = vunpack.c.l.b16 %v8027
        %v8284 = vunpack.c.l.b16 %v8028
        %v8285 = vunpack.c.l.b16 %v8029
        %v8286 = vunpack.c.l.b16 %v8030
        %v8287 = vunpack.c.l.b16 %v8031
        %v8288 = vunpack.c.l.b16 %v8032
        %v8289 = vunpack.c.l.b16 %v8033
        %v8290 = vunpack.c.l.b16 %v8034
        %v8291 = vunpack.c.l.b16 %v8035
        %v8292 = vunpack.c.l.b16 %v8036
        %v8293 = vunpack.c.l.b16 %v8037
        %v8294 = vunpack.c.l.b16 %v8038
        %v8295 = vunpack.c.l.b16 %v8039
        %v8296 = vunpack.c.l.b16 %v8040
        %v8297 = vunpack.c.l.b16 %v8041
        %v8298 = vunpack.c.l.b16 %v8042
        %v8299 = vunpack.c.l.b16 %v8043
        %v8300 = vunpack.c.l.b16 %v8044
        %v8301 = vunpack.c.l.b16 %v8045
        %v8302 = vunpack.c.l.b16 %v8046
        %v8303 = vunpack.c.l.b16 %v8047
        %v8304 = vunpack.c.l.b16 %v8048
        %v8305 = vunpack.c.l.b16 %v8049
        %v8306 = vunpack.c.l.b16 %v8050
        %v8307 = vunpack.c.l.b16 %v8051
        %v8308 = vunpack.c.l.b16 %v8052
        %v8309 = vunpack.c.l.b16 %v8053
        %v8310 = vunpack.c.l.b16 %v8054
        %v8311 = vunpack.c.l.b16 %v8055
        %v8312 = vunpack.c.l.b16 %v8056
        %v8313 = vunpack.c.l.b16 %v8057
        %v8314 = vunpack.c.l.b16 %v8058
        %v8315 = vunpack.c.l.b16 %v8059
        %v8316 = vunpack.c.l.b16 %v8060
        %v8317 = vunpack.c.l.b16 %v8061
        %v8318 = vunpack.c.l.b16 %v8062
        %v8319 = vunpack.c.l.b16 %v8063
        %v8320 = vunpack.c.l.b16 %v8064
        %v8321 = vunpack.c.l.b16 %v8065
        %v8322 = vunpack.c.l.b16 %v8066
        %v8323 = vunpack.c.l.b16 %v8067
        %v8324 = vunpack.c.l.b16 %v8068
        %v8325 = vunpack.c.l.b16 %v8069
        %v8326 = vunpack.c.l.b16 %v8070
        %v8327 = vunpack.c.l.b16 %v8071
        %v8328 = vunpack.c.l.b16 %v8072
        %v8329 = vunpack.c.l.b16 %v8073
        %v8330 = vunpack.c.l.b16 %v8074
        %v8331 = vunpack.c.l.b16 %v8075
        %v8332 = vunpack.c.l.b16 %v8076
        %v8333 = vunpack.c.l.b16 %v8077
        %v8334 = vunpack.c.l.b16 %v8078
        %v8335 = vunpack.c.l.b16 %v8079
        %v8336 = vunpack.c.l.b16 %v8080
        %v8337 = vpack.c.b16 %v8210, %v8209
        %v8338 = vpack.c.b16 %v8212, %v8211
        %v8339 = vpack.c.b16 %v8214, %v8213
        %v8340 = vpack.c.b16 %v8216, %v8215
        %v8341 = vpack.c.b16 %v8218, %v8217
        %v8342 = vpack.c.b16 %v8220, %v8219
        %v8343 = vpack.c.b16 %v8222, %v8221
        %v8344 = vpack.c.b16 %v8224, %v8223
        %v8345 = vpack.c.b16 %v8226, %v8225
        %v8346 = vpack.c.b16 %v8228, %v8227
        %v8347 = vpack.c.b16 %v8230, %v8229
        %v8348 = vpack.c.b16 %v8232, %v8231
        %v8349 = vpack.c.b16 %v8234, %v8233
        %v8350 = vpack.c.b16 %v8236, %v8235
        %v8351 = vpack.c.b16 %v8238, %v8237
        %v8352 = vpack.c.b16 %v8240, %v8239
        %v8353 = vpack.c.b16 %v8242, %v8241
        %v8354 = vpack.c.b16 %v8244, %v8243
        %v8355 = vpack.c.b16 %v8246, %v8245
        %v8356 = vpack.c.b16 %v8248, %v8247
        %v8357 = vpack.c.b16 %v8250, %v8249
        %v8358 = vpack.c.b16 %v8252, %v8251
        %v8359 = vpack.c.b16 %v8254, %v8253
        %v8360 = vpack.c.b16 %v8256, %v8255
        %v8361 = vpack.c.b16 %v8258, %v8257
        %v8362 = vpack.c.b16 %v8260, %v8259
        %v8363 = vpack.c.b16 %v8262, %v8261
        %v8364 = vpack.c.b16 %v8264, %v8263
        %v8365 = vpack.c.b16 %v8266, %v8265
        %v8366 = vpack.c.b16 %v8268, %v8267
        %v8367 = vpack.c.b16 %v8270, %v8269
        %v8368 = vpack.c.b16 %v8272, %v8271
        %v8369 = vpack.c.b16 %v8274, %v8273
        %v8370 = vpack.c.b16 %v8276, %v8275
        %v8371 = vpack.c.b16 %v8278, %v8277
        %v8372 = vpack.c.b16 %v8280, %v8279
        %v8373 = vpack.c.b16 %v8282, %v8281
        %v8374 = vpack.c.b16 %v8284, %v8283
        %v8375 = vpack.c.b16 %v8286, %v8285
        %v8376 = vpack.c.b16 %v8288, %v8287
        %v8377 = vpack.c.b16 %v8290, %v8289
        %v8378 = vpack.c.b16 %v8292, %v8291
        %v8379 = vpack.c.b16 %v8294, %v8293
        %v8380 = vpack.c.b16 %v8296, %v8295
        %v8381 = vpack.c.b16 %v8298, %v8297
        %v8382 = vpack.c.b16 %v8300, %v8299
        %v8383 = vpack.c.b16 %v8302, %v8301
        %v8384 = vpack.c.b16 %v8304, %v8303
        %v8385 = vpack.c.b16 %v8306, %v8305
        %v8386 = vpack.c.b16 %v8308, %v8307
        %v8387 = vpack.c.b16 %v8310, %v8309
        %v8388 = vpack.c.b16 %v8312, %v8311
        %v8389 = vpack.c.b16 %v8314, %v8313
        %v8390 = vpack.c.b16 %v8316, %v8315
        %v8391 = vpack.c.b16 %v8318, %v8317
        %v8392 = vpack.c.b16 %v8320, %v8319
        %v8393 = vpack.c.b16 %v8322, %v8321
        %v8394 = vpack.c.b16 %v8324, %v8323
        %v8395 = vpack.c.b16 %v8326, %v8325
        %v8396 = vpack.c.b16 %v8328, %v8327
        %v8397 = vpack.c.b16 %v8330, %v8329
        %v8398 = vpack.c.b16 %v8332, %v8331
        %v8399 = vpack.c.b16 %v8334, %v8333
        %v8400 = vpack.c.b16 %v8336, %v8335
        %8401 = vrot.lane.b32.xlu0 %v8337, 24
        %v8402 = vpop.permute.xlu0 %8401
        %8403 = vrot.lane.b32.xlu0 %v8338, 24
        %v8404 = vpop.permute.xlu0 %8403
        %8405 = vrot.lane.b32.xlu0 %v8339, 24
        %v8406 = vpop.permute.xlu0 %8405
        %8407 = vrot.lane.b32.xlu0 %v8340, 24
        %v8408 = vpop.permute.xlu0 %8407
        %8409 = vrot.lane.b32.xlu0 %v8341, 24
        %v8410 = vpop.permute.xlu0 %8409
        %8411 = vrot.lane.b32.xlu0 %v8342, 24
        %v8412 = vpop.permute.xlu0 %8411
        %8413 = vrot.lane.b32.xlu0 %v8343, 24
        %v8414 = vpop.permute.xlu0 %8413
        %8415 = vrot.lane.b32.xlu0 %v8344, 24
        %v8416 = vpop.permute.xlu0 %8415
        %8417 = vrot.lane.b32.xlu0 %v8345, 24
        %v8418 = vpop.permute.xlu0 %8417
        %8419 = vrot.lane.b32.xlu0 %v8346, 24
        %v8420 = vpop.permute.xlu0 %8419
        %8421 = vrot.lane.b32.xlu0 %v8347, 24
        %v8422 = vpop.permute.xlu0 %8421
        %8423 = vrot.lane.b32.xlu0 %v8348, 24
        %v8424 = vpop.permute.xlu0 %8423
        %8425 = vrot.lane.b32.xlu0 %v8349, 24
        %v8426 = vpop.permute.xlu0 %8425
        %8427 = vrot.lane.b32.xlu0 %v8350, 24
        %v8428 = vpop.permute.xlu0 %8427
        %8429 = vrot.lane.b32.xlu0 %v8351, 24
        %v8430 = vpop.permute.xlu0 %8429
        %8431 = vrot.lane.b32.xlu0 %v8352, 24
        %v8432 = vpop.permute.xlu0 %8431
        %8433 = vrot.lane.b32.xlu0 %v8353, 24
        %v8434 = vpop.permute.xlu0 %8433
        %8435 = vrot.lane.b32.xlu0 %v8354, 24
        %v8436 = vpop.permute.xlu0 %8435
        %8437 = vrot.lane.b32.xlu0 %v8355, 24
        %v8438 = vpop.permute.xlu0 %8437
        %8439 = vrot.lane.b32.xlu0 %v8356, 24
        %v8440 = vpop.permute.xlu0 %8439
        %8441 = vrot.lane.b32.xlu0 %v8357, 24
        %v8442 = vpop.permute.xlu0 %8441
        %8443 = vrot.lane.b32.xlu0 %v8358, 24
        %v8444 = vpop.permute.xlu0 %8443
        %8445 = vrot.lane.b32.xlu0 %v8359, 24
        %v8446 = vpop.permute.xlu0 %8445
        %8447 = vrot.lane.b32.xlu0 %v8360, 24
        %v8448 = vpop.permute.xlu0 %8447
        %8449 = vrot.lane.b32.xlu0 %v8361, 24
        %v8450 = vpop.permute.xlu0 %8449
        %8451 = vrot.lane.b32.xlu0 %v8362, 24
        %v8452 = vpop.permute.xlu0 %8451
        %8453 = vrot.lane.b32.xlu0 %v8363, 24
        %v8454 = vpop.permute.xlu0 %8453
        %8455 = vrot.lane.b32.xlu0 %v8364, 24
        %v8456 = vpop.permute.xlu0 %8455
        %8457 = vrot.lane.b32.xlu0 %v8365, 24
        %v8458 = vpop.permute.xlu0 %8457
        %8459 = vrot.lane.b32.xlu0 %v8366, 24
        %v8460 = vpop.permute.xlu0 %8459
        %8461 = vrot.lane.b32.xlu0 %v8367, 24
        %v8462 = vpop.permute.xlu0 %8461
        %8463 = vrot.lane.b32.xlu0 %v8368, 24
        %v8464 = vpop.permute.xlu0 %8463
        %8465 = vrot.lane.b32.xlu0 %v8369, 24
        %v8466 = vpop.permute.xlu0 %8465
        %8467 = vrot.lane.b32.xlu0 %v8370, 24
        %v8468 = vpop.permute.xlu0 %8467
        %8469 = vrot.lane.b32.xlu0 %v8371, 24
        %v8470 = vpop.permute.xlu0 %8469
        %8471 = vrot.lane.b32.xlu0 %v8372, 24
        %v8472 = vpop.permute.xlu0 %8471
        %8473 = vrot.lane.b32.xlu0 %v8373, 24
        %v8474 = vpop.permute.xlu0 %8473
        %8475 = vrot.lane.b32.xlu0 %v8374, 24
        %v8476 = vpop.permute.xlu0 %8475
        %8477 = vrot.lane.b32.xlu0 %v8375, 24
        %v8478 = vpop.permute.xlu0 %8477
        %8479 = vrot.lane.b32.xlu0 %v8376, 24
        %v8480 = vpop.permute.xlu0 %8479
        %8481 = vrot.lane.b32.xlu0 %v8377, 24
        %v8482 = vpop.permute.xlu0 %8481
        %8483 = vrot.lane.b32.xlu0 %v8378, 24
        %v8484 = vpop.permute.xlu0 %8483
        %8485 = vrot.lane.b32.xlu0 %v8379, 24
        %v8486 = vpop.permute.xlu0 %8485
        %8487 = vrot.lane.b32.xlu0 %v8380, 24
        %v8488 = vpop.permute.xlu0 %8487
        %8489 = vrot.lane.b32.xlu0 %v8381, 24
        %v8490 = vpop.permute.xlu0 %8489
        %8491 = vrot.lane.b32.xlu0 %v8382, 24
        %v8492 = vpop.permute.xlu0 %8491
        %8493 = vrot.lane.b32.xlu0 %v8383, 24
        %v8494 = vpop.permute.xlu0 %8493
        %8495 = vrot.lane.b32.xlu0 %v8384, 24
        %v8496 = vpop.permute.xlu0 %8495
        %8497 = vrot.lane.b32.xlu0 %v8385, 24
        %v8498 = vpop.permute.xlu0 %8497
        %8499 = vrot.lane.b32.xlu0 %v8386, 24
        %v8500 = vpop.permute.xlu0 %8499
        %8501 = vrot.lane.b32.xlu0 %v8387, 24
        %v8502 = vpop.permute.xlu0 %8501
        %8503 = vrot.lane.b32.xlu0 %v8388, 24
        %v8504 = vpop.permute.xlu0 %8503
        %8505 = vrot.lane.b32.xlu0 %v8389, 24
        %v8506 = vpop.permute.xlu0 %8505
        %8507 = vrot.lane.b32.xlu0 %v8390, 24
        %v8508 = vpop.permute.xlu0 %8507
        %8509 = vrot.lane.b32.xlu0 %v8391, 24
        %v8510 = vpop.permute.xlu0 %8509
        %8511 = vrot.lane.b32.xlu0 %v8392, 24
        %v8512 = vpop.permute.xlu0 %8511
        %8513 = vrot.lane.b32.xlu0 %v8393, 24
        %v8514 = vpop.permute.xlu0 %8513
        %8515 = vrot.lane.b32.xlu0 %v8394, 24
        %v8516 = vpop.permute.xlu0 %8515
        %8517 = vrot.lane.b32.xlu0 %v8395, 24
        %v8518 = vpop.permute.xlu0 %8517
        %8519 = vrot.lane.b32.xlu0 %v8396, 24
        %v8520 = vpop.permute.xlu0 %8519
        %8521 = vrot.lane.b32.xlu0 %v8397, 24
        %v8522 = vpop.permute.xlu0 %8521
        %8523 = vrot.lane.b32.xlu0 %v8398, 24
        %v8524 = vpop.permute.xlu0 %8523
        %8525 = vrot.lane.b32.xlu0 %v8399, 24
        %v8526 = vpop.permute.xlu0 %8525
        %8527 = vrot.lane.b32.xlu0 %v8400, 24
        %v8528 = vpop.permute.xlu0 %8527
        %vm8593 = vcmask 228544
        %8594 = vst.msk [vmem:[#allocation2] sm:$0xff] %vm8593, %v8402
        %8595 = vst.msk [vmem:[#allocation2 + $0x8] sm:$0xff] %vm8593, %v8404
        %8596 = vst.msk [vmem:[#allocation2 + $0x10] sm:$0xff] %vm8593, %v8406
        %8597 = vst.msk [vmem:[#allocation2 + $0x18] sm:$0xff] %vm8593, %v8408
        %8598 = vst.msk [vmem:[#allocation2 + $0x20] sm:$0xff] %vm8593, %v8410
        %8599 = vst.msk [vmem:[#allocation2 + $0x28] sm:$0xff] %vm8593, %v8412
        %8600 = vst.msk [vmem:[#allocation2 + $0x30] sm:$0xff] %vm8593, %v8414
        %8601 = vst.msk [vmem:[#allocation2 + $0x38] sm:$0xff] %vm8593, %v8416
        %8602 = vst.msk [vmem:[#allocation2 + $0x40] sm:$0xff] %vm8593, %v8418
        %8603 = vst.msk [vmem:[#allocation2 + $0x48] sm:$0xff] %vm8593, %v8420
        %8604 = vst.msk [vmem:[#allocation2 + $0x50] sm:$0xff] %vm8593, %v8422
        %8605 = vst.msk [vmem:[#allocation2 + $0x58] sm:$0xff] %vm8593, %v8424
        %8606 = vst.msk [vmem:[#allocation2 + $0x60] sm:$0xff] %vm8593, %v8426
        %8607 = vst.msk [vmem:[#allocation2 + $0x68] sm:$0xff] %vm8593, %v8428
        %8608 = vst.msk [vmem:[#allocation2 + $0x70] sm:$0xff] %vm8593, %v8430
        %8609 = vst.msk [vmem:[#allocation2 + $0x78] sm:$0xff] %vm8593, %v8432
        %8610 = vst.msk [vmem:[#allocation2 + $0x80] sm:$0xff] %vm8593, %v8434
        %8611 = vst.msk [vmem:[#allocation2 + $0x88] sm:$0xff] %vm8593, %v8436
        %8612 = vst.msk [vmem:[#allocation2 + $0x90] sm:$0xff] %vm8593, %v8438
        %8613 = vst.msk [vmem:[#allocation2 + $0x98] sm:$0xff] %vm8593, %v8440
        %8614 = vst.msk [vmem:[#allocation2 + $0xa0] sm:$0xff] %vm8593, %v8442
        %8615 = vst.msk [vmem:[#allocation2 + $0xa8] sm:$0xff] %vm8593, %v8444
        %8616 = vst.msk [vmem:[#allocation2 + $0xb0] sm:$0xff] %vm8593, %v8446
        %8617 = vst.msk [vmem:[#allocation2 + $0xb8] sm:$0xff] %vm8593, %v8448
        %8618 = vst.msk [vmem:[#allocation2 + $0xc0] sm:$0xff] %vm8593, %v8450
        %8619 = vst.msk [vmem:[#allocation2 + $0xc8] sm:$0xff] %vm8593, %v8452
        %8620 = vst.msk [vmem:[#allocation2 + $0xd0] sm:$0xff] %vm8593, %v8454
        %8621 = vst.msk [vmem:[#allocation2 + $0xd8] sm:$0xff] %vm8593, %v8456
        %8622 = vst.msk [vmem:[#allocation2 + $0xe0] sm:$0xff] %vm8593, %v8458
        %8623 = vst.msk [vmem:[#allocation2 + $0xe8] sm:$0xff] %vm8593, %v8460
        %8624 = vst.msk [vmem:[#allocation2 + $0xf0] sm:$0xff] %vm8593, %v8462
        %8625 = vst.msk [vmem:[#allocation2 + $0xf8] sm:$0xff] %vm8593, %v8464
        %8626 = vst.msk [vmem:[#allocation2 + $0x100] sm:$0xff] %vm8593, %v8466
        %8627 = vst.msk [vmem:[#allocation2 + $0x108] sm:$0xff] %vm8593, %v8468
        %8628 = vst.msk [vmem:[#allocation2 + $0x110] sm:$0xff] %vm8593, %v8470
        %8629 = vst.msk [vmem:[#allocation2 + $0x118] sm:$0xff] %vm8593, %v8472
        %8630 = vst.msk [vmem:[#allocation2 + $0x120] sm:$0xff] %vm8593, %v8474
        %8631 = vst.msk [vmem:[#allocation2 + $0x128] sm:$0xff] %vm8593, %v8476
        %8632 = vst.msk [vmem:[#allocation2 + $0x130] sm:$0xff] %vm8593, %v8478
        %8633 = vst.msk [vmem:[#allocation2 + $0x138] sm:$0xff] %vm8593, %v8480
        %8634 = vst.msk [vmem:[#allocation2 + $0x140] sm:$0xff] %vm8593, %v8482
        %8635 = vst.msk [vmem:[#allocation2 + $0x148] sm:$0xff] %vm8593, %v8484
        %8636 = vst.msk [vmem:[#allocation2 + $0x150] sm:$0xff] %vm8593, %v8486
        %8637 = vst.msk [vmem:[#allocation2 + $0x158] sm:$0xff] %vm8593, %v8488
        %8638 = vst.msk [vmem:[#allocation2 + $0x160] sm:$0xff] %vm8593, %v8490
        %8639 = vst.msk [vmem:[#allocation2 + $0x168] sm:$0xff] %vm8593, %v8492
        %8640 = vst.msk [vmem:[#allocation2 + $0x170] sm:$0xff] %vm8593, %v8494
        %8641 = vst.msk [vmem:[#allocation2 + $0x178] sm:$0xff] %vm8593, %v8496
        %8642 = vst.msk [vmem:[#allocation2 + $0x180] sm:$0xff] %vm8593, %v8498
        %8643 = vst.msk [vmem:[#allocation2 + $0x188] sm:$0xff] %vm8593, %v8500
        %8644 = vst.msk [vmem:[#allocation2 + $0x190] sm:$0xff] %vm8593, %v8502
        %8645 = vst.msk [vmem:[#allocation2 + $0x198] sm:$0xff] %vm8593, %v8504
        %8646 = vst.msk [vmem:[#allocation2 + $0x1a0] sm:$0xff] %vm8593, %v8506
        %8647 = vst.msk [vmem:[#allocation2 + $0x1a8] sm:$0xff] %vm8593, %v8508
        %8648 = vst.msk [vmem:[#allocation2 + $0x1b0] sm:$0xff] %vm8593, %v8510
        %8649 = vst.msk [vmem:[#allocation2 + $0x1b8] sm:$0xff] %vm8593, %v8512
        %8650 = vst.msk [vmem:[#allocation2 + $0x1c0] sm:$0xff] %vm8593, %v8514
        %8651 = vst.msk [vmem:[#allocation2 + $0x1c8] sm:$0xff] %vm8593, %v8516
        %8652 = vst.msk [vmem:[#allocation2 + $0x1d0] sm:$0xff] %vm8593, %v8518
        %8653 = vst.msk [vmem:[#allocation2 + $0x1d8] sm:$0xff] %vm8593, %v8520
        %8654 = vst.msk [vmem:[#allocation2 + $0x1e0] sm:$0xff] %vm8593, %v8522
        %8655 = vst.msk [vmem:[#allocation2 + $0x1e8] sm:$0xff] %vm8593, %v8524
        %8656 = vst.msk [vmem:[#allocation2 + $0x1f0] sm:$0xff] %vm8593, %v8526
        %8657 = vst.msk [vmem:[#allocation2 + $0x1f8] sm:$0xff] %vm8593, %v8528
        %v8658 = vld [vmem:[%s7952] sm:$0xf]
        %v8659 = vld [vmem:[%s7952 + $0x4] sm:$0xf]
        %v8660 = vld [vmem:[%s7952 + $0x8] sm:$0xf]
        %v8661 = vld [vmem:[%s7952 + $0xc] sm:$0xf]
        %v8662 = vld [vmem:[%s7952 + $0x10] sm:$0x1]
        %v8663 = vld [vmem:[%s7952 + $0x14] sm:$0xf]
        %v8664 = vld [vmem:[%s7952 + $0x18] sm:$0xf]
        %v8665 = vld [vmem:[%s7952 + $0x1c] sm:$0xf]
        %v8666 = vld [vmem:[%s7952 + $0x20] sm:$0xf]
        %v8667 = vld [vmem:[%s7952 + $0x24] sm:$0x1]
        %v8668 = vld [vmem:[%s7952 + $0x28] sm:$0xf]
        %v8669 = vld [vmem:[%s7952 + $0x2c] sm:$0xf]
        %v8670 = vld [vmem:[%s7952 + $0x30] sm:$0xf]
        %v8671 = vld [vmem:[%s7952 + $0x34] sm:$0xf]
        %v8672 = vld [vmem:[%s7952 + $0x38] sm:$0x1]
        %v8673 = vld [vmem:[%s7952 + $0x3c] sm:$0xf]
        %v8674 = vld [vmem:[%s7952 + $0x40] sm:$0xf]
        %v8675 = vld [vmem:[%s7952 + $0x44] sm:$0xf]
        %v8676 = vld [vmem:[%s7952 + $0x48] sm:$0xf]
        %v8677 = vld [vmem:[%s7952 + $0x4c] sm:$0x1]
        %v8678 = vld [vmem:[%s7952 + $0x50] sm:$0xf]
        %v8679 = vld [vmem:[%s7952 + $0x54] sm:$0xf]
        %v8680 = vld [vmem:[%s7952 + $0x58] sm:$0xf]
        %v8681 = vld [vmem:[%s7952 + $0x5c] sm:$0xf]
        %v8682 = vld [vmem:[%s7952 + $0x60] sm:$0x1]
        %v8683 = vld [vmem:[%s7952 + $0x64] sm:$0xf]
        %v8684 = vld [vmem:[%s7952 + $0x68] sm:$0xf]
        %v8685 = vld [vmem:[%s7952 + $0x6c] sm:$0xf]
        %v8686 = vld [vmem:[%s7952 + $0x70] sm:$0xf]
        %v8687 = vld [vmem:[%s7952 + $0x74] sm:$0x1]
        %v8688 = vld [vmem:[%s7952 + $0x78] sm:$0xf]
        %v8689 = vld [vmem:[%s7952 + $0x7c] sm:$0xf]
        %v8690 = vld [vmem:[%s7952 + $0x80] sm:$0xf]
        %v8691 = vld [vmem:[%s7952 + $0x84] sm:$0xf]
        %v8692 = vld [vmem:[%s7952 + $0x88] sm:$0x1]
        %v8693 = vld [vmem:[%s7952 + $0x8c] sm:$0xf]
        %v8694 = vld [vmem:[%s7952 + $0x90] sm:$0xf]
        %v8695 = vld [vmem:[%s7952 + $0x94] sm:$0xf]
        %v8696 = vld [vmem:[%s7952 + $0x98] sm:$0xf]
        %v8697 = vld [vmem:[%s7952 + $0x9c] sm:$0x1]
        %v8698 = vld [vmem:[%s7952 + $0xa0] sm:$0xf]
        %v8699 = vld [vmem:[%s7952 + $0xa4] sm:$0xf]
        %v8700 = vld [vmem:[%s7952 + $0xa8] sm:$0xf]
        %v8701 = vld [vmem:[%s7952 + $0xac] sm:$0xf]
        %v8702 = vld [vmem:[%s7952 + $0xb0] sm:$0x1]
        %v8703 = vld [vmem:[%s7952 + $0xb4] sm:$0xf]
        %v8704 = vld [vmem:[%s7952 + $0xb8] sm:$0xf]
        %v8705 = vld [vmem:[%s7952 + $0xbc] sm:$0xf]
        %v8706 = vld [vmem:[%s7952 + $0xc0] sm:$0xf]
        %v8707 = vld [vmem:[%s7952 + $0xc4] sm:$0x1]
        %v8708 = vld [vmem:[%s7952 + $0xc8] sm:$0xf]
        %v8709 = vld [vmem:[%s7952 + $0xcc] sm:$0xf]
        %v8710 = vld [vmem:[%s7952 + $0xd0] sm:$0xf]
        %v8711 = vld [vmem:[%s7952 + $0xd4] sm:$0xf]
        %v8712 = vld [vmem:[%s7952 + $0xd8] sm:$0x1]
        %v8713 = vld [vmem:[%s7952 + $0xdc] sm:$0xf]
        %v8714 = vld [vmem:[%s7952 + $0xe0] sm:$0xf]
        %v8715 = vld [vmem:[%s7952 + $0xe4] sm:$0xf]
        %v8716 = vld [vmem:[%s7952 + $0xe8] sm:$0xf]
        %v8717 = vld [vmem:[%s7952 + $0xec] sm:$0x1]
        %v8718 = vld [vmem:[%s7952 + $0xf0] sm:$0xf]
        %v8719 = vld [vmem:[%s7952 + $0xf4] sm:$0xf]
        %v8720 = vld [vmem:[%s7952 + $0xf8] sm:$0xf]
        %v8721 = vld [vmem:[%s7952 + $0xfc] sm:$0xf]
        %v8722 = vld [vmem:[%s7952 + $0x100] sm:$0x1]
        %v8723 = vld [vmem:[%s7952 + $0x104] sm:$0xf]
        %v8724 = vld [vmem:[%s7952 + $0x108] sm:$0xf]
        %v8725 = vld [vmem:[%s7952 + $0x10c] sm:$0xf]
        %v8726 = vld [vmem:[%s7952 + $0x110] sm:$0xf]
        %v8727 = vld [vmem:[%s7952 + $0x114] sm:$0x1]
        %v8728 = vld [vmem:[%s7952 + $0x118] sm:$0xf]
        %v8729 = vld [vmem:[%s7952 + $0x11c] sm:$0xf]
        %v8730 = vld [vmem:[%s7952 + $0x120] sm:$0xf]
        %v8731 = vld [vmem:[%s7952 + $0x124] sm:$0xf]
        %v8732 = vld [vmem:[%s7952 + $0x128] sm:$0x1]
        %v8733 = vld [vmem:[%s7952 + $0x12c] sm:$0xf]
        %v8734 = vld [vmem:[%s7952 + $0x130] sm:$0xf]
        %v8735 = vld [vmem:[%s7952 + $0x134] sm:$0xf]
        %v8736 = vld [vmem:[%s7952 + $0x138] sm:$0xf]
        %v8737 = vld [vmem:[%s7952 + $0x13c] sm:$0x1]
        %v8738 = vld [vmem:[%s7952 + $0x140] sm:$0xf]
        %v8739 = vld [vmem:[%s7952 + $0x144] sm:$0xf]
        %v8740 = vld [vmem:[%s7952 + $0x148] sm:$0xf]
        %v8741 = vld [vmem:[%s7952 + $0x14c] sm:$0xf]
        %v8742 = vld [vmem:[%s7952 + $0x150] sm:$0x1]
        %v8743 = vld [vmem:[%s7952 + $0x154] sm:$0xf]
        %v8744 = vld [vmem:[%s7952 + $0x158] sm:$0xf]
        %v8745 = vld [vmem:[%s7952 + $0x15c] sm:$0xf]
        %v8746 = vld [vmem:[%s7952 + $0x160] sm:$0xf]
        %v8747 = vld [vmem:[%s7952 + $0x164] sm:$0x1]
        %v8748 = vld [vmem:[%s7952 + $0x168] sm:$0xf]
        %v8749 = vld [vmem:[%s7952 + $0x16c] sm:$0xf]
        %v8750 = vld [vmem:[%s7952 + $0x170] sm:$0xf]
        %v8751 = vld [vmem:[%s7952 + $0x174] sm:$0xf]
        %v8752 = vld [vmem:[%s7952 + $0x178] sm:$0x1]
        %v8753 = vld [vmem:[%s7952 + $0x17c] sm:$0xf]
        %v8754 = vld [vmem:[%s7952 + $0x180] sm:$0xf]
        %v8755 = vld [vmem:[%s7952 + $0x184] sm:$0xf]
        %v8756 = vld [vmem:[%s7952 + $0x188] sm:$0xf]
        %v8757 = vld [vmem:[%s7952 + $0x18c] sm:$0x1]
        %v8758 = vld [vmem:[%s7952 + $0x190] sm:$0xf]
        %v8759 = vld [vmem:[%s7952 + $0x194] sm:$0xf]
        %v8760 = vld [vmem:[%s7952 + $0x198] sm:$0xf]
        %v8761 = vld [vmem:[%s7952 + $0x19c] sm:$0xf]
        %v8762 = vld [vmem:[%s7952 + $0x1a0] sm:$0x1]
        %v8763 = vld [vmem:[%s7952 + $0x1a4] sm:$0xf]
        %v8764 = vld [vmem:[%s7952 + $0x1a8] sm:$0xf]
        %v8765 = vld [vmem:[%s7952 + $0x1ac] sm:$0xf]
        %v8766 = vld [vmem:[%s7952 + $0x1b0] sm:$0xf]
        %v8767 = vld [vmem:[%s7952 + $0x1b4] sm:$0x1]
        %v8768 = vld [vmem:[%s7952 + $0x1b8] sm:$0xf]
        %v8769 = vld [vmem:[%s7952 + $0x1bc] sm:$0xf]
        %v8770 = vld [vmem:[%s7952 + $0x1c0] sm:$0xf]
        %v8771 = vld [vmem:[%s7952 + $0x1c4] sm:$0xf]
        %v8772 = vld [vmem:[%s7952 + $0x1c8] sm:$0x1]
        %v8773 = vld [vmem:[%s7952 + $0x1cc] sm:$0xf]
        %v8774 = vld [vmem:[%s7952 + $0x1d0] sm:$0xf]
        %v8775 = vld [vmem:[%s7952 + $0x1d4] sm:$0xf]
        %v8776 = vld [vmem:[%s7952 + $0x1d8] sm:$0xf]
        %v8777 = vld [vmem:[%s7952 + $0x1dc] sm:$0x1]
        %v8778 = vld [vmem:[%s7952 + $0x1e0] sm:$0xf]
        %v8779 = vld [vmem:[%s7952 + $0x1e4] sm:$0xf]
        %v8780 = vld [vmem:[%s7952 + $0x1e8] sm:$0xf]
        %v8781 = vld [vmem:[%s7952 + $0x1ec] sm:$0xf]
        %v8782 = vld [vmem:[%s7952 + $0x1f0] sm:$0x1]
        %v8783 = vld [vmem:[%s7952 + $0x1f4] sm:$0xf]
        %v8784 = vld [vmem:[%s7952 + $0x1f8] sm:$0xf]
        %v8785 = vld [vmem:[%s7952 + $0x1fc] sm:$0xf]
        %v8786 = vld [vmem:[%s7952 + $0x200] sm:$0xf]
        %v8787 = vld [vmem:[%s7952 + $0x204] sm:$0x1]
        %v8788 = vld [vmem:[%s7952 + $0x208] sm:$0xf]
        %v8789 = vld [vmem:[%s7952 + $0x20c] sm:$0xf]
        %v8790 = vld [vmem:[%s7952 + $0x210] sm:$0xf]
        %v8791 = vld [vmem:[%s7952 + $0x214] sm:$0xf]
        %v8792 = vld [vmem:[%s7952 + $0x218] sm:$0x1]
        %v8793 = vld [vmem:[%s7952 + $0x21c] sm:$0xf]
        %v8794 = vld [vmem:[%s7952 + $0x220] sm:$0xf]
        %v8795 = vld [vmem:[%s7952 + $0x224] sm:$0xf]
        %v8796 = vld [vmem:[%s7952 + $0x228] sm:$0xf]
        %v8797 = vld [vmem:[%s7952 + $0x22c] sm:$0x1]
        %v8798 = vld [vmem:[%s7952 + $0x230] sm:$0xf]
        %v8799 = vld [vmem:[%s7952 + $0x234] sm:$0xf]
        %v8800 = vld [vmem:[%s7952 + $0x238] sm:$0xf]
        %v8801 = vld [vmem:[%s7952 + $0x23c] sm:$0xf]
        %v8802 = vld [vmem:[%s7952 + $0x240] sm:$0x1]
        %v8803 = vld [vmem:[%s7952 + $0x244] sm:$0xf]
        %v8804 = vld [vmem:[%s7952 + $0x248] sm:$0xf]
        %v8805 = vld [vmem:[%s7952 + $0x24c] sm:$0xf]
        %v8806 = vld [vmem:[%s7952 + $0x250] sm:$0xf]
        %v8807 = vld [vmem:[%s7952 + $0x254] sm:$0x1]
        %v8808 = vld [vmem:[%s7952 + $0x258] sm:$0xf]
        %v8809 = vld [vmem:[%s7952 + $0x25c] sm:$0xf]
        %v8810 = vld [vmem:[%s7952 + $0x260] sm:$0xf]
        %v8811 = vld [vmem:[%s7952 + $0x264] sm:$0xf]
        %v8812 = vld [vmem:[%s7952 + $0x268] sm:$0x1]
        %v8813 = vld [vmem:[%s7952 + $0x26c] sm:$0xf]
        %v8814 = vld [vmem:[%s7952 + $0x270] sm:$0xf]
        %v8815 = vld [vmem:[%s7952 + $0x274] sm:$0xf]
        %v8816 = vld [vmem:[%s7952 + $0x278] sm:$0xf]
        %v8817 = vld [vmem:[%s7952 + $0x27c] sm:$0x1]
        %v8819 = vshrl.u32 %v8658, 16
        %v8821 = vrot.slane %v8819, 4
        %v8822 = vshll.u32 %v8658, 16
        %v8824 = vrot.slane %v8822, 5
        %v8825 = vor.u32 %v8821, %v8824
        %v8826 = vrot.slane %v8825, 4
        %v8828 = vshll.u32 %v8659, 16
        %v8830 = vrot.slane %v8828, 5
        %v8831 = vsel %vm992, %v8826, %v8830
        %v8832 = vshrl.u32 %v8659, 16
        %v8834 = vrot.slane %v8832, 4
        %v8835 = vor.u32 %v8834, %v8830
        %v8836 = vrot.slane %v8835, 4
        %v8838 = vshll.u32 %v8660, 16
        %v8840 = vrot.slane %v8838, 5
        %v8841 = vsel %vm992, %v8836, %v8840
        %v8842 = vshrl.u32 %v8660, 16
        %v8844 = vrot.slane %v8842, 4
        %v8845 = vor.u32 %v8844, %v8840
        %v8846 = vrot.slane %v8845, 4
        %v8848 = vshll.u32 %v8661, 16
        %v8850 = vrot.slane %v8848, 5
        %v8851 = vsel %vm992, %v8846, %v8850
        %v8852 = vshrl.u32 %v8661, 16
        %v8854 = vrot.slane %v8852, 4
        %v8855 = vor.u32 %v8854, %v8850
        %v8856 = vrot.slane %v8855, 4
        %v8858 = vshll.u32 %v8662, 16
        %v8860 = vrot.slane %v8858, 5
        %v8861 = vsel %vm992, %v8856, %v8860
        %v8863 = vshrl.u32 %v8663, 16
        %v8865 = vrot.slane %v8863, 4
        %v8866 = vshll.u32 %v8663, 16
        %v8868 = vrot.slane %v8866, 5
        %v8869 = vor.u32 %v8865, %v8868
        %v8870 = vrot.slane %v8869, 4
        %v8872 = vshll.u32 %v8664, 16
        %v8874 = vrot.slane %v8872, 5
        %v8875 = vsel %vm992, %v8870, %v8874
        %v8876 = vshrl.u32 %v8664, 16
        %v8878 = vrot.slane %v8876, 4
        %v8879 = vor.u32 %v8878, %v8874
        %v8880 = vrot.slane %v8879, 4
        %v8882 = vshll.u32 %v8665, 16
        %v8884 = vrot.slane %v8882, 5
        %v8885 = vsel %vm992, %v8880, %v8884
        %v8886 = vshrl.u32 %v8665, 16
        %v8888 = vrot.slane %v8886, 4
        %v8889 = vor.u32 %v8888, %v8884
        %v8890 = vrot.slane %v8889, 4
        %v8892 = vshll.u32 %v8666, 16
        %v8894 = vrot.slane %v8892, 5
        %v8895 = vsel %vm992, %v8890, %v8894
        %v8896 = vshrl.u32 %v8666, 16
        %v8898 = vrot.slane %v8896, 4
        %v8899 = vor.u32 %v8898, %v8894
        %v8900 = vrot.slane %v8899, 4
        %v8902 = vshll.u32 %v8667, 16
        %v8904 = vrot.slane %v8902, 5
        %v8905 = vsel %vm992, %v8900, %v8904
        %v8907 = vshrl.u32 %v8668, 16
        %v8909 = vrot.slane %v8907, 4
        %v8910 = vshll.u32 %v8668, 16
        %v8912 = vrot.slane %v8910, 5
        %v8913 = vor.u32 %v8909, %v8912
        %v8914 = vrot.slane %v8913, 4
        %v8916 = vshll.u32 %v8669, 16
        %v8918 = vrot.slane %v8916, 5
        %v8919 = vsel %vm992, %v8914, %v8918
        %v8920 = vshrl.u32 %v8669, 16
        %v8922 = vrot.slane %v8920, 4
        %v8923 = vor.u32 %v8922, %v8918
        %v8924 = vrot.slane %v8923, 4
        %v8926 = vshll.u32 %v8670, 16
        %v8928 = vrot.slane %v8926, 5
        %v8929 = vsel %vm992, %v8924, %v8928
        %v8930 = vshrl.u32 %v8670, 16
        %v8932 = vrot.slane %v8930, 4
        %v8933 = vor.u32 %v8932, %v8928
        %v8934 = vrot.slane %v8933, 4
        %v8936 = vshll.u32 %v8671, 16
        %v8938 = vrot.slane %v8936, 5
        %v8939 = vsel %vm992, %v8934, %v8938
        %v8940 = vshrl.u32 %v8671, 16
        %v8942 = vrot.slane %v8940, 4
        %v8943 = vor.u32 %v8942, %v8938
        %v8944 = vrot.slane %v8943, 4
        %v8946 = vshll.u32 %v8672, 16
        %v8948 = vrot.slane %v8946, 5
        %v8949 = vsel %vm992, %v8944, %v8948
        %v8951 = vshrl.u32 %v8673, 16
        %v8953 = vrot.slane %v8951, 4
        %v8954 = vshll.u32 %v8673, 16
        %v8956 = vrot.slane %v8954, 5
        %v8957 = vor.u32 %v8953, %v8956
        %v8958 = vrot.slane %v8957, 4
        %v8960 = vshll.u32 %v8674, 16
        %v8962 = vrot.slane %v8960, 5
        %v8963 = vsel %vm992, %v8958, %v8962
        %v8964 = vshrl.u32 %v8674, 16
        %v8966 = vrot.slane %v8964, 4
        %v8967 = vor.u32 %v8966, %v8962
        %v8968 = vrot.slane %v8967, 4
        %v8970 = vshll.u32 %v8675, 16
        %v8972 = vrot.slane %v8970, 5
        %v8973 = vsel %vm992, %v8968, %v8972
        %v8974 = vshrl.u32 %v8675, 16
        %v8976 = vrot.slane %v8974, 4
        %v8977 = vor.u32 %v8976, %v8972
        %v8978 = vrot.slane %v8977, 4
        %v8980 = vshll.u32 %v8676, 16
        %v8982 = vrot.slane %v8980, 5
        %v8983 = vsel %vm992, %v8978, %v8982
        %v8984 = vshrl.u32 %v8676, 16
        %v8986 = vrot.slane %v8984, 4
        %v8987 = vor.u32 %v8986, %v8982
        %v8988 = vrot.slane %v8987, 4
        %v8990 = vshll.u32 %v8677, 16
        %v8992 = vrot.slane %v8990, 5
        %v8993 = vsel %vm992, %v8988, %v8992
        %v8995 = vshrl.u32 %v8678, 16
        %v8997 = vrot.slane %v8995, 4
        %v8998 = vshll.u32 %v8678, 16
        %v9000 = vrot.slane %v8998, 5
        %v9001 = vor.u32 %v8997, %v9000
        %v9002 = vrot.slane %v9001, 4
        %v9004 = vshll.u32 %v8679, 16
        %v9006 = vrot.slane %v9004, 5
        %v9007 = vsel %vm992, %v9002, %v9006
        %v9008 = vshrl.u32 %v8679, 16
        %v9010 = vrot.slane %v9008, 4
        %v9011 = vor.u32 %v9010, %v9006
        %v9012 = vrot.slane %v9011, 4
        %v9014 = vshll.u32 %v8680, 16
        %v9016 = vrot.slane %v9014, 5
        %v9017 = vsel %vm992, %v9012, %v9016
        %v9018 = vshrl.u32 %v8680, 16
        %v9020 = vrot.slane %v9018, 4
        %v9021 = vor.u32 %v9020, %v9016
        %v9022 = vrot.slane %v9021, 4
        %v9024 = vshll.u32 %v8681, 16
        %v9026 = vrot.slane %v9024, 5
        %v9027 = vsel %vm992, %v9022, %v9026
        %v9028 = vshrl.u32 %v8681, 16
        %v9030 = vrot.slane %v9028, 4
        %v9031 = vor.u32 %v9030, %v9026
        %v9032 = vrot.slane %v9031, 4
        %v9034 = vshll.u32 %v8682, 16
        %v9036 = vrot.slane %v9034, 5
        %v9037 = vsel %vm992, %v9032, %v9036
        %v9039 = vshrl.u32 %v8683, 16
        %v9041 = vrot.slane %v9039, 4
        %v9042 = vshll.u32 %v8683, 16
        %v9044 = vrot.slane %v9042, 5
        %v9045 = vor.u32 %v9041, %v9044
        %v9046 = vrot.slane %v9045, 4
        %v9048 = vshll.u32 %v8684, 16
        %v9050 = vrot.slane %v9048, 5
        %v9051 = vsel %vm992, %v9046, %v9050
        %v9052 = vshrl.u32 %v8684, 16
        %v9054 = vrot.slane %v9052, 4
        %v9055 = vor.u32 %v9054, %v9050
        %v9056 = vrot.slane %v9055, 4
        %v9058 = vshll.u32 %v8685, 16
        %v9060 = vrot.slane %v9058, 5
        %v9061 = vsel %vm992, %v9056, %v9060
        %v9062 = vshrl.u32 %v8685, 16
        %v9064 = vrot.slane %v9062, 4
        %v9065 = vor.u32 %v9064, %v9060
        %v9066 = vrot.slane %v9065, 4
        %v9068 = vshll.u32 %v8686, 16
        %v9070 = vrot.slane %v9068, 5
        %v9071 = vsel %vm992, %v9066, %v9070
        %v9072 = vshrl.u32 %v8686, 16
        %v9074 = vrot.slane %v9072, 4
        %v9075 = vor.u32 %v9074, %v9070
        %v9076 = vrot.slane %v9075, 4
        %v9078 = vshll.u32 %v8687, 16
        %v9080 = vrot.slane %v9078, 5
        %v9081 = vsel %vm992, %v9076, %v9080
        %v9083 = vshrl.u32 %v8688, 16
        %v9085 = vrot.slane %v9083, 4
        %v9086 = vshll.u32 %v8688, 16
        %v9088 = vrot.slane %v9086, 5
        %v9089 = vor.u32 %v9085, %v9088
        %v9090 = vrot.slane %v9089, 4
        %v9092 = vshll.u32 %v8689, 16
        %v9094 = vrot.slane %v9092, 5
        %v9095 = vsel %vm992, %v9090, %v9094
        %v9096 = vshrl.u32 %v8689, 16
        %v9098 = vrot.slane %v9096, 4
        %v9099 = vor.u32 %v9098, %v9094
        %v9100 = vrot.slane %v9099, 4
        %v9102 = vshll.u32 %v8690, 16
        %v9104 = vrot.slane %v9102, 5
        %v9105 = vsel %vm992, %v9100, %v9104
        %v9106 = vshrl.u32 %v8690, 16
        %v9108 = vrot.slane %v9106, 4
        %v9109 = vor.u32 %v9108, %v9104
        %v9110 = vrot.slane %v9109, 4
        %v9112 = vshll.u32 %v8691, 16
        %v9114 = vrot.slane %v9112, 5
        %v9115 = vsel %vm992, %v9110, %v9114
        %v9116 = vshrl.u32 %v8691, 16
        %v9118 = vrot.slane %v9116, 4
        %v9119 = vor.u32 %v9118, %v9114
        %v9120 = vrot.slane %v9119, 4
        %v9122 = vshll.u32 %v8692, 16
        %v9124 = vrot.slane %v9122, 5
        %v9125 = vsel %vm992, %v9120, %v9124
        %v9127 = vshrl.u32 %v8693, 16
        %v9129 = vrot.slane %v9127, 4
        %v9130 = vshll.u32 %v8693, 16
        %v9132 = vrot.slane %v9130, 5
        %v9133 = vor.u32 %v9129, %v9132
        %v9134 = vrot.slane %v9133, 4
        %v9136 = vshll.u32 %v8694, 16
        %v9138 = vrot.slane %v9136, 5
        %v9139 = vsel %vm992, %v9134, %v9138
        %v9140 = vshrl.u32 %v8694, 16
        %v9142 = vrot.slane %v9140, 4
        %v9143 = vor.u32 %v9142, %v9138
        %v9144 = vrot.slane %v9143, 4
        %v9146 = vshll.u32 %v8695, 16
        %v9148 = vrot.slane %v9146, 5
        %v9149 = vsel %vm992, %v9144, %v9148
        %v9150 = vshrl.u32 %v8695, 16
        %v9152 = vrot.slane %v9150, 4
        %v9153 = vor.u32 %v9152, %v9148
        %v9154 = vrot.slane %v9153, 4
        %v9156 = vshll.u32 %v8696, 16
        %v9158 = vrot.slane %v9156, 5
        %v9159 = vsel %vm992, %v9154, %v9158
        %v9160 = vshrl.u32 %v8696, 16
        %v9162 = vrot.slane %v9160, 4
        %v9163 = vor.u32 %v9162, %v9158
        %v9164 = vrot.slane %v9163, 4
        %v9166 = vshll.u32 %v8697, 16
        %v9168 = vrot.slane %v9166, 5
        %v9169 = vsel %vm992, %v9164, %v9168
        %v9171 = vshrl.u32 %v8698, 16
        %v9173 = vrot.slane %v9171, 4
        %v9174 = vshll.u32 %v8698, 16
        %v9176 = vrot.slane %v9174, 5
        %v9177 = vor.u32 %v9173, %v9176
        %v9178 = vrot.slane %v9177, 4
        %v9180 = vshll.u32 %v8699, 16
        %v9182 = vrot.slane %v9180, 5
        %v9183 = vsel %vm992, %v9178, %v9182
        %v9184 = vshrl.u32 %v8699, 16
        %v9186 = vrot.slane %v9184, 4
        %v9187 = vor.u32 %v9186, %v9182
        %v9188 = vrot.slane %v9187, 4
        %v9190 = vshll.u32 %v8700, 16
        %v9192 = vrot.slane %v9190, 5
        %v9193 = vsel %vm992, %v9188, %v9192
        %v9194 = vshrl.u32 %v8700, 16
        %v9196 = vrot.slane %v9194, 4
        %v9197 = vor.u32 %v9196, %v9192
        %v9198 = vrot.slane %v9197, 4
        %v9200 = vshll.u32 %v8701, 16
        %v9202 = vrot.slane %v9200, 5
        %v9203 = vsel %vm992, %v9198, %v9202
        %v9204 = vshrl.u32 %v8701, 16
        %v9206 = vrot.slane %v9204, 4
        %v9207 = vor.u32 %v9206, %v9202
        %v9208 = vrot.slane %v9207, 4
        %v9210 = vshll.u32 %v8702, 16
        %v9212 = vrot.slane %v9210, 5
        %v9213 = vsel %vm992, %v9208, %v9212
        %v9215 = vshrl.u32 %v8703, 16
        %v9217 = vrot.slane %v9215, 4
        %v9218 = vshll.u32 %v8703, 16
        %v9220 = vrot.slane %v9218, 5
        %v9221 = vor.u32 %v9217, %v9220
        %v9222 = vrot.slane %v9221, 4
        %v9224 = vshll.u32 %v8704, 16
        %v9226 = vrot.slane %v9224, 5
        %v9227 = vsel %vm992, %v9222, %v9226
        %v9228 = vshrl.u32 %v8704, 16
        %v9230 = vrot.slane %v9228, 4
        %v9231 = vor.u32 %v9230, %v9226
        %v9232 = vrot.slane %v9231, 4
        %v9234 = vshll.u32 %v8705, 16
        %v9236 = vrot.slane %v9234, 5
        %v9237 = vsel %vm992, %v9232, %v9236
        %v9238 = vshrl.u32 %v8705, 16
        %v9240 = vrot.slane %v9238, 4
        %v9241 = vor.u32 %v9240, %v9236
        %v9242 = vrot.slane %v9241, 4
        %v9244 = vshll.u32 %v8706, 16
        %v9246 = vrot.slane %v9244, 5
        %v9247 = vsel %vm992, %v9242, %v9246
        %v9248 = vshrl.u32 %v8706, 16
        %v9250 = vrot.slane %v9248, 4
        %v9251 = vor.u32 %v9250, %v9246
        %v9252 = vrot.slane %v9251, 4
        %v9254 = vshll.u32 %v8707, 16
        %v9256 = vrot.slane %v9254, 5
        %v9257 = vsel %vm992, %v9252, %v9256
        %v9259 = vshrl.u32 %v8708, 16
        %v9261 = vrot.slane %v9259, 4
        %v9262 = vshll.u32 %v8708, 16
        %v9264 = vrot.slane %v9262, 5
        %v9265 = vor.u32 %v9261, %v9264
        %v9266 = vrot.slane %v9265, 4
        %v9268 = vshll.u32 %v8709, 16
        %v9270 = vrot.slane %v9268, 5
        %v9271 = vsel %vm992, %v9266, %v9270
        %v9272 = vshrl.u32 %v8709, 16
        %v9274 = vrot.slane %v9272, 4
        %v9275 = vor.u32 %v9274, %v9270
        %v9276 = vrot.slane %v9275, 4
        %v9278 = vshll.u32 %v8710, 16
        %v9280 = vrot.slane %v9278, 5
        %v9281 = vsel %vm992, %v9276, %v9280
        %v9282 = vshrl.u32 %v8710, 16
        %v9284 = vrot.slane %v9282, 4
        %v9285 = vor.u32 %v9284, %v9280
        %v9286 = vrot.slane %v9285, 4
        %v9288 = vshll.u32 %v8711, 16
        %v9290 = vrot.slane %v9288, 5
        %v9291 = vsel %vm992, %v9286, %v9290
        %v9292 = vshrl.u32 %v8711, 16
        %v9294 = vrot.slane %v9292, 4
        %v9295 = vor.u32 %v9294, %v9290
        %v9296 = vrot.slane %v9295, 4
        %v9298 = vshll.u32 %v8712, 16
        %v9300 = vrot.slane %v9298, 5
        %v9301 = vsel %vm992, %v9296, %v9300
        %v9303 = vshrl.u32 %v8713, 16
        %v9305 = vrot.slane %v9303, 4
        %v9306 = vshll.u32 %v8713, 16
        %v9308 = vrot.slane %v9306, 5
        %v9309 = vor.u32 %v9305, %v9308
        %v9310 = vrot.slane %v9309, 4
        %v9312 = vshll.u32 %v8714, 16
        %v9314 = vrot.slane %v9312, 5
        %v9315 = vsel %vm992, %v9310, %v9314
        %v9316 = vshrl.u32 %v8714, 16
        %v9318 = vrot.slane %v9316, 4
        %v9319 = vor.u32 %v9318, %v9314
        %v9320 = vrot.slane %v9319, 4
        %v9322 = vshll.u32 %v8715, 16
        %v9324 = vrot.slane %v9322, 5
        %v9325 = vsel %vm992, %v9320, %v9324
        %v9326 = vshrl.u32 %v8715, 16
        %v9328 = vrot.slane %v9326, 4
        %v9329 = vor.u32 %v9328, %v9324
        %v9330 = vrot.slane %v9329, 4
        %v9332 = vshll.u32 %v8716, 16
        %v9334 = vrot.slane %v9332, 5
        %v9335 = vsel %vm992, %v9330, %v9334
        %v9336 = vshrl.u32 %v8716, 16
        %v9338 = vrot.slane %v9336, 4
        %v9339 = vor.u32 %v9338, %v9334
        %v9340 = vrot.slane %v9339, 4
        %v9342 = vshll.u32 %v8717, 16
        %v9344 = vrot.slane %v9342, 5
        %v9345 = vsel %vm992, %v9340, %v9344
        %v9347 = vshrl.u32 %v8718, 16
        %v9349 = vrot.slane %v9347, 4
        %v9350 = vshll.u32 %v8718, 16
        %v9352 = vrot.slane %v9350, 5
        %v9353 = vor.u32 %v9349, %v9352
        %v9354 = vrot.slane %v9353, 4
        %v9356 = vshll.u32 %v8719, 16
        %v9358 = vrot.slane %v9356, 5
        %v9359 = vsel %vm992, %v9354, %v9358
        %v9360 = vshrl.u32 %v8719, 16
        %v9362 = vrot.slane %v9360, 4
        %v9363 = vor.u32 %v9362, %v9358
        %v9364 = vrot.slane %v9363, 4
        %v9366 = vshll.u32 %v8720, 16
        %v9368 = vrot.slane %v9366, 5
        %v9369 = vsel %vm992, %v9364, %v9368
        %v9370 = vshrl.u32 %v8720, 16
        %v9372 = vrot.slane %v9370, 4
        %v9373 = vor.u32 %v9372, %v9368
        %v9374 = vrot.slane %v9373, 4
        %v9376 = vshll.u32 %v8721, 16
        %v9378 = vrot.slane %v9376, 5
        %v9379 = vsel %vm992, %v9374, %v9378
        %v9380 = vshrl.u32 %v8721, 16
        %v9382 = vrot.slane %v9380, 4
        %v9383 = vor.u32 %v9382, %v9378
        %v9384 = vrot.slane %v9383, 4
        %v9386 = vshll.u32 %v8722, 16
        %v9388 = vrot.slane %v9386, 5
        %v9389 = vsel %vm992, %v9384, %v9388
        %v9391 = vshrl.u32 %v8723, 16
        %v9393 = vrot.slane %v9391, 4
        %v9394 = vshll.u32 %v8723, 16
        %v9396 = vrot.slane %v9394, 5
        %v9397 = vor.u32 %v9393, %v9396
        %v9398 = vrot.slane %v9397, 4
        %v9400 = vshll.u32 %v8724, 16
        %v9402 = vrot.slane %v9400, 5
        %v9403 = vsel %vm992, %v9398, %v9402
        %v9404 = vshrl.u32 %v8724, 16
        %v9406 = vrot.slane %v9404, 4
        %v9407 = vor.u32 %v9406, %v9402
        %v9408 = vrot.slane %v9407, 4
        %v9410 = vshll.u32 %v8725, 16
        %v9412 = vrot.slane %v9410, 5
        %v9413 = vsel %vm992, %v9408, %v9412
        %v9414 = vshrl.u32 %v8725, 16
        %v9416 = vrot.slane %v9414, 4
        %v9417 = vor.u32 %v9416, %v9412
        %v9418 = vrot.slane %v9417, 4
        %v9420 = vshll.u32 %v8726, 16
        %v9422 = vrot.slane %v9420, 5
        %v9423 = vsel %vm992, %v9418, %v9422
        %v9424 = vshrl.u32 %v8726, 16
        %v9426 = vrot.slane %v9424, 4
        %v9427 = vor.u32 %v9426, %v9422
        %v9428 = vrot.slane %v9427, 4
        %v9430 = vshll.u32 %v8727, 16
        %v9432 = vrot.slane %v9430, 5
        %v9433 = vsel %vm992, %v9428, %v9432
        %v9435 = vshrl.u32 %v8728, 16
        %v9437 = vrot.slane %v9435, 4
        %v9438 = vshll.u32 %v8728, 16
        %v9440 = vrot.slane %v9438, 5
        %v9441 = vor.u32 %v9437, %v9440
        %v9442 = vrot.slane %v9441, 4
        %v9444 = vshll.u32 %v8729, 16
        %v9446 = vrot.slane %v9444, 5
        %v9447 = vsel %vm992, %v9442, %v9446
        %v9448 = vshrl.u32 %v8729, 16
        %v9450 = vrot.slane %v9448, 4
        %v9451 = vor.u32 %v9450, %v9446
        %v9452 = vrot.slane %v9451, 4
        %v9454 = vshll.u32 %v8730, 16
        %v9456 = vrot.slane %v9454, 5
        %v9457 = vsel %vm992, %v9452, %v9456
        %v9458 = vshrl.u32 %v8730, 16
        %v9460 = vrot.slane %v9458, 4
        %v9461 = vor.u32 %v9460, %v9456
        %v9462 = vrot.slane %v9461, 4
        %v9464 = vshll.u32 %v8731, 16
        %v9466 = vrot.slane %v9464, 5
        %v9467 = vsel %vm992, %v9462, %v9466
        %v9468 = vshrl.u32 %v8731, 16
        %v9470 = vrot.slane %v9468, 4
        %v9471 = vor.u32 %v9470, %v9466
        %v9472 = vrot.slane %v9471, 4
        %v9474 = vshll.u32 %v8732, 16
        %v9476 = vrot.slane %v9474, 5
        %v9477 = vsel %vm992, %v9472, %v9476
        %v9479 = vshrl.u32 %v8733, 16
        %v9481 = vrot.slane %v9479, 4
        %v9482 = vshll.u32 %v8733, 16
        %v9484 = vrot.slane %v9482, 5
        %v9485 = vor.u32 %v9481, %v9484
        %v9486 = vrot.slane %v9485, 4
        %v9488 = vshll.u32 %v8734, 16
        %v9490 = vrot.slane %v9488, 5
        %v9491 = vsel %vm992, %v9486, %v9490
        %v9492 = vshrl.u32 %v8734, 16
        %v9494 = vrot.slane %v9492, 4
        %v9495 = vor.u32 %v9494, %v9490
        %v9496 = vrot.slane %v9495, 4
        %v9498 = vshll.u32 %v8735, 16
        %v9500 = vrot.slane %v9498, 5
        %v9501 = vsel %vm992, %v9496, %v9500
        %v9502 = vshrl.u32 %v8735, 16
        %v9504 = vrot.slane %v9502, 4
        %v9505 = vor.u32 %v9504, %v9500
        %v9506 = vrot.slane %v9505, 4
        %v9508 = vshll.u32 %v8736, 16
        %v9510 = vrot.slane %v9508, 5
        %v9511 = vsel %vm992, %v9506, %v9510
        %v9512 = vshrl.u32 %v8736, 16
        %v9514 = vrot.slane %v9512, 4
        %v9515 = vor.u32 %v9514, %v9510
        %v9516 = vrot.slane %v9515, 4
        %v9518 = vshll.u32 %v8737, 16
        %v9520 = vrot.slane %v9518, 5
        %v9521 = vsel %vm992, %v9516, %v9520
        %v9523 = vshrl.u32 %v8738, 16
        %v9525 = vrot.slane %v9523, 4
        %v9526 = vshll.u32 %v8738, 16
        %v9528 = vrot.slane %v9526, 5
        %v9529 = vor.u32 %v9525, %v9528
        %v9530 = vrot.slane %v9529, 4
        %v9532 = vshll.u32 %v8739, 16
        %v9534 = vrot.slane %v9532, 5
        %v9535 = vsel %vm992, %v9530, %v9534
        %v9536 = vshrl.u32 %v8739, 16
        %v9538 = vrot.slane %v9536, 4
        %v9539 = vor.u32 %v9538, %v9534
        %v9540 = vrot.slane %v9539, 4
        %v9542 = vshll.u32 %v8740, 16
        %v9544 = vrot.slane %v9542, 5
        %v9545 = vsel %vm992, %v9540, %v9544
        %v9546 = vshrl.u32 %v8740, 16
        %v9548 = vrot.slane %v9546, 4
        %v9549 = vor.u32 %v9548, %v9544
        %v9550 = vrot.slane %v9549, 4
        %v9552 = vshll.u32 %v8741, 16
        %v9554 = vrot.slane %v9552, 5
        %v9555 = vsel %vm992, %v9550, %v9554
        %v9556 = vshrl.u32 %v8741, 16
        %v9558 = vrot.slane %v9556, 4
        %v9559 = vor.u32 %v9558, %v9554
        %v9560 = vrot.slane %v9559, 4
        %v9562 = vshll.u32 %v8742, 16
        %v9564 = vrot.slane %v9562, 5
        %v9565 = vsel %vm992, %v9560, %v9564
        %v9567 = vshrl.u32 %v8743, 16
        %v9569 = vrot.slane %v9567, 4
        %v9570 = vshll.u32 %v8743, 16
        %v9572 = vrot.slane %v9570, 5
        %v9573 = vor.u32 %v9569, %v9572
        %v9574 = vrot.slane %v9573, 4
        %v9576 = vshll.u32 %v8744, 16
        %v9578 = vrot.slane %v9576, 5
        %v9579 = vsel %vm992, %v9574, %v9578
        %v9580 = vshrl.u32 %v8744, 16
        %v9582 = vrot.slane %v9580, 4
        %v9583 = vor.u32 %v9582, %v9578
        %v9584 = vrot.slane %v9583, 4
        %v9586 = vshll.u32 %v8745, 16
        %v9588 = vrot.slane %v9586, 5
        %v9589 = vsel %vm992, %v9584, %v9588
        %v9590 = vshrl.u32 %v8745, 16
        %v9592 = vrot.slane %v9590, 4
        %v9593 = vor.u32 %v9592, %v9588
        %v9594 = vrot.slane %v9593, 4
        %v9596 = vshll.u32 %v8746, 16
        %v9598 = vrot.slane %v9596, 5
        %v9599 = vsel %vm992, %v9594, %v9598
        %v9600 = vshrl.u32 %v8746, 16
        %v9602 = vrot.slane %v9600, 4
        %v9603 = vor.u32 %v9602, %v9598
        %v9604 = vrot.slane %v9603, 4
        %v9606 = vshll.u32 %v8747, 16
        %v9608 = vrot.slane %v9606, 5
        %v9609 = vsel %vm992, %v9604, %v9608
        %v9611 = vshrl.u32 %v8748, 16
        %v9613 = vrot.slane %v9611, 4
        %v9614 = vshll.u32 %v8748, 16
        %v9616 = vrot.slane %v9614, 5
        %v9617 = vor.u32 %v9613, %v9616
        %v9618 = vrot.slane %v9617, 4
        %v9620 = vshll.u32 %v8749, 16
        %v9622 = vrot.slane %v9620, 5
        %v9623 = vsel %vm992, %v9618, %v9622
        %v9624 = vshrl.u32 %v8749, 16
        %v9626 = vrot.slane %v9624, 4
        %v9627 = vor.u32 %v9626, %v9622
        %v9628 = vrot.slane %v9627, 4
        %v9630 = vshll.u32 %v8750, 16
        %v9632 = vrot.slane %v9630, 5
        %v9633 = vsel %vm992, %v9628, %v9632
        %v9634 = vshrl.u32 %v8750, 16
        %v9636 = vrot.slane %v9634, 4
        %v9637 = vor.u32 %v9636, %v9632
        %v9638 = vrot.slane %v9637, 4
        %v9640 = vshll.u32 %v8751, 16
        %v9642 = vrot.slane %v9640, 5
        %v9643 = vsel %vm992, %v9638, %v9642
        %v9644 = vshrl.u32 %v8751, 16
        %v9646 = vrot.slane %v9644, 4
        %v9647 = vor.u32 %v9646, %v9642
        %v9648 = vrot.slane %v9647, 4
        %v9650 = vshll.u32 %v8752, 16
        %v9652 = vrot.slane %v9650, 5
        %v9653 = vsel %vm992, %v9648, %v9652
        %v9655 = vshrl.u32 %v8753, 16
        %v9657 = vrot.slane %v9655, 4
        %v9658 = vshll.u32 %v8753, 16
        %v9660 = vrot.slane %v9658, 5
        %v9661 = vor.u32 %v9657, %v9660
        %v9662 = vrot.slane %v9661, 4
        %v9664 = vshll.u32 %v8754, 16
        %v9666 = vrot.slane %v9664, 5
        %v9667 = vsel %vm992, %v9662, %v9666
        %v9668 = vshrl.u32 %v8754, 16
        %v9670 = vrot.slane %v9668, 4
        %v9671 = vor.u32 %v9670, %v9666
        %v9672 = vrot.slane %v9671, 4
        %v9674 = vshll.u32 %v8755, 16
        %v9676 = vrot.slane %v9674, 5
        %v9677 = vsel %vm992, %v9672, %v9676
        %v9678 = vshrl.u32 %v8755, 16
        %v9680 = vrot.slane %v9678, 4
        %v9681 = vor.u32 %v9680, %v9676
        %v9682 = vrot.slane %v9681, 4
        %v9684 = vshll.u32 %v8756, 16
        %v9686 = vrot.slane %v9684, 5
        %v9687 = vsel %vm992, %v9682, %v9686
        %v9688 = vshrl.u32 %v8756, 16
        %v9690 = vrot.slane %v9688, 4
        %v9691 = vor.u32 %v9690, %v9686
        %v9692 = vrot.slane %v9691, 4
        %v9694 = vshll.u32 %v8757, 16
        %v9696 = vrot.slane %v9694, 5
        %v9697 = vsel %vm992, %v9692, %v9696
        %v9699 = vshrl.u32 %v8758, 16
        %v9701 = vrot.slane %v9699, 4
        %v9702 = vshll.u32 %v8758, 16
        %v9704 = vrot.slane %v9702, 5
        %v9705 = vor.u32 %v9701, %v9704
        %v9706 = vrot.slane %v9705, 4
        %v9708 = vshll.u32 %v8759, 16
        %v9710 = vrot.slane %v9708, 5
        %v9711 = vsel %vm992, %v9706, %v9710
        %v9712 = vshrl.u32 %v8759, 16
        %v9714 = vrot.slane %v9712, 4
        %v9715 = vor.u32 %v9714, %v9710
        %v9716 = vrot.slane %v9715, 4
        %v9718 = vshll.u32 %v8760, 16
        %v9720 = vrot.slane %v9718, 5
        %v9721 = vsel %vm992, %v9716, %v9720
        %v9722 = vshrl.u32 %v8760, 16
        %v9724 = vrot.slane %v9722, 4
        %v9725 = vor.u32 %v9724, %v9720
        %v9726 = vrot.slane %v9725, 4
        %v9728 = vshll.u32 %v8761, 16
        %v9730 = vrot.slane %v9728, 5
        %v9731 = vsel %vm992, %v9726, %v9730
        %v9732 = vshrl.u32 %v8761, 16
        %v9734 = vrot.slane %v9732, 4
        %v9735 = vor.u32 %v9734, %v9730
        %v9736 = vrot.slane %v9735, 4
        %v9738 = vshll.u32 %v8762, 16
        %v9740 = vrot.slane %v9738, 5
        %v9741 = vsel %vm992, %v9736, %v9740
        %v9743 = vshrl.u32 %v8763, 16
        %v9745 = vrot.slane %v9743, 4
        %v9746 = vshll.u32 %v8763, 16
        %v9748 = vrot.slane %v9746, 5
        %v9749 = vor.u32 %v9745, %v9748
        %v9750 = vrot.slane %v9749, 4
        %v9752 = vshll.u32 %v8764, 16
        %v9754 = vrot.slane %v9752, 5
        %v9755 = vsel %vm992, %v9750, %v9754
        %v9756 = vshrl.u32 %v8764, 16
        %v9758 = vrot.slane %v9756, 4
        %v9759 = vor.u32 %v9758, %v9754
        %v9760 = vrot.slane %v9759, 4
        %v9762 = vshll.u32 %v8765, 16
        %v9764 = vrot.slane %v9762, 5
        %v9765 = vsel %vm992, %v9760, %v9764
        %v9766 = vshrl.u32 %v8765, 16
        %v9768 = vrot.slane %v9766, 4
        %v9769 = vor.u32 %v9768, %v9764
        %v9770 = vrot.slane %v9769, 4
        %v9772 = vshll.u32 %v8766, 16
        %v9774 = vrot.slane %v9772, 5
        %v9775 = vsel %vm992, %v9770, %v9774
        %v9776 = vshrl.u32 %v8766, 16
        %v9778 = vrot.slane %v9776, 4
        %v9779 = vor.u32 %v9778, %v9774
        %v9780 = vrot.slane %v9779, 4
        %v9782 = vshll.u32 %v8767, 16
        %v9784 = vrot.slane %v9782, 5
        %v9785 = vsel %vm992, %v9780, %v9784
        %v9787 = vshrl.u32 %v8768, 16
        %v9789 = vrot.slane %v9787, 4
        %v9790 = vshll.u32 %v8768, 16
        %v9792 = vrot.slane %v9790, 5
        %v9793 = vor.u32 %v9789, %v9792
        %v9794 = vrot.slane %v9793, 4
        %v9796 = vshll.u32 %v8769, 16
        %v9798 = vrot.slane %v9796, 5
        %v9799 = vsel %vm992, %v9794, %v9798
        %v9800 = vshrl.u32 %v8769, 16
        %v9802 = vrot.slane %v9800, 4
        %v9803 = vor.u32 %v9802, %v9798
        %v9804 = vrot.slane %v9803, 4
        %v9806 = vshll.u32 %v8770, 16
        %v9808 = vrot.slane %v9806, 5
        %v9809 = vsel %vm992, %v9804, %v9808
        %v9810 = vshrl.u32 %v8770, 16
        %v9812 = vrot.slane %v9810, 4
        %v9813 = vor.u32 %v9812, %v9808
        %v9814 = vrot.slane %v9813, 4
        %v9816 = vshll.u32 %v8771, 16
        %v9818 = vrot.slane %v9816, 5
        %v9819 = vsel %vm992, %v9814, %v9818
        %v9820 = vshrl.u32 %v8771, 16
        %v9822 = vrot.slane %v9820, 4
        %v9823 = vor.u32 %v9822, %v9818
        %v9824 = vrot.slane %v9823, 4
        %v9826 = vshll.u32 %v8772, 16
        %v9828 = vrot.slane %v9826, 5
        %v9829 = vsel %vm992, %v9824, %v9828
        %v9831 = vshrl.u32 %v8773, 16
        %v9833 = vrot.slane %v9831, 4
        %v9834 = vshll.u32 %v8773, 16
        %v9836 = vrot.slane %v9834, 5
        %v9837 = vor.u32 %v9833, %v9836
        %v9838 = vrot.slane %v9837, 4
        %v9840 = vshll.u32 %v8774, 16
        %v9842 = vrot.slane %v9840, 5
        %v9843 = vsel %vm992, %v9838, %v9842
        %v9844 = vshrl.u32 %v8774, 16
        %v9846 = vrot.slane %v9844, 4
        %v9847 = vor.u32 %v9846, %v9842
        %v9848 = vrot.slane %v9847, 4
        %v9850 = vshll.u32 %v8775, 16
        %v9852 = vrot.slane %v9850, 5
        %v9853 = vsel %vm992, %v9848, %v9852
        %v9854 = vshrl.u32 %v8775, 16
        %v9856 = vrot.slane %v9854, 4
        %v9857 = vor.u32 %v9856, %v9852
        %v9858 = vrot.slane %v9857, 4
        %v9860 = vshll.u32 %v8776, 16
        %v9862 = vrot.slane %v9860, 5
        %v9863 = vsel %vm992, %v9858, %v9862
        %v9864 = vshrl.u32 %v8776, 16
        %v9866 = vrot.slane %v9864, 4
        %v9867 = vor.u32 %v9866, %v9862
        %v9868 = vrot.slane %v9867, 4
        %v9870 = vshll.u32 %v8777, 16
        %v9872 = vrot.slane %v9870, 5
        %v9873 = vsel %vm992, %v9868, %v9872
        %v9875 = vshrl.u32 %v8778, 16
        %v9877 = vrot.slane %v9875, 4
        %v9878 = vshll.u32 %v8778, 16
        %v9880 = vrot.slane %v9878, 5
        %v9881 = vor.u32 %v9877, %v9880
        %v9882 = vrot.slane %v9881, 4
        %v9884 = vshll.u32 %v8779, 16
        %v9886 = vrot.slane %v9884, 5
        %v9887 = vsel %vm992, %v9882, %v9886
        %v9888 = vshrl.u32 %v8779, 16
        %v9890 = vrot.slane %v9888, 4
        %v9891 = vor.u32 %v9890, %v9886
        %v9892 = vrot.slane %v9891, 4
        %v9894 = vshll.u32 %v8780, 16
        %v9896 = vrot.slane %v9894, 5
        %v9897 = vsel %vm992, %v9892, %v9896
        %v9898 = vshrl.u32 %v8780, 16
        %v9900 = vrot.slane %v9898, 4
        %v9901 = vor.u32 %v9900, %v9896
        %v9902 = vrot.slane %v9901, 4
        %v9904 = vshll.u32 %v8781, 16
        %v9906 = vrot.slane %v9904, 5
        %v9907 = vsel %vm992, %v9902, %v9906
        %v9908 = vshrl.u32 %v8781, 16
        %v9910 = vrot.slane %v9908, 4
        %v9911 = vor.u32 %v9910, %v9906
        %v9912 = vrot.slane %v9911, 4
        %v9914 = vshll.u32 %v8782, 16
        %v9916 = vrot.slane %v9914, 5
        %v9917 = vsel %vm992, %v9912, %v9916
        %v9919 = vshrl.u32 %v8783, 16
        %v9921 = vrot.slane %v9919, 4
        %v9922 = vshll.u32 %v8783, 16
        %v9924 = vrot.slane %v9922, 5
        %v9925 = vor.u32 %v9921, %v9924
        %v9926 = vrot.slane %v9925, 4
        %v9928 = vshll.u32 %v8784, 16
        %v9930 = vrot.slane %v9928, 5
        %v9931 = vsel %vm992, %v9926, %v9930
        %v9932 = vshrl.u32 %v8784, 16
        %v9934 = vrot.slane %v9932, 4
        %v9935 = vor.u32 %v9934, %v9930
        %v9936 = vrot.slane %v9935, 4
        %v9938 = vshll.u32 %v8785, 16
        %v9940 = vrot.slane %v9938, 5
        %v9941 = vsel %vm992, %v9936, %v9940
        %v9942 = vshrl.u32 %v8785, 16
        %v9944 = vrot.slane %v9942, 4
        %v9945 = vor.u32 %v9944, %v9940
        %v9946 = vrot.slane %v9945, 4
        %v9948 = vshll.u32 %v8786, 16
        %v9950 = vrot.slane %v9948, 5
        %v9951 = vsel %vm992, %v9946, %v9950
        %v9952 = vshrl.u32 %v8786, 16
        %v9954 = vrot.slane %v9952, 4
        %v9955 = vor.u32 %v9954, %v9950
        %v9956 = vrot.slane %v9955, 4
        %v9958 = vshll.u32 %v8787, 16
        %v9960 = vrot.slane %v9958, 5
        %v9961 = vsel %vm992, %v9956, %v9960
        %v9963 = vshrl.u32 %v8788, 16
        %v9965 = vrot.slane %v9963, 4
        %v9966 = vshll.u32 %v8788, 16
        %v9968 = vrot.slane %v9966, 5
        %v9969 = vor.u32 %v9965, %v9968
        %v9970 = vrot.slane %v9969, 4
        %v9972 = vshll.u32 %v8789, 16
        %v9974 = vrot.slane %v9972, 5
        %v9975 = vsel %vm992, %v9970, %v9974
        %v9976 = vshrl.u32 %v8789, 16
        %v9978 = vrot.slane %v9976, 4
        %v9979 = vor.u32 %v9978, %v9974
        %v9980 = vrot.slane %v9979, 4
        %v9982 = vshll.u32 %v8790, 16
        %v9984 = vrot.slane %v9982, 5
        %v9985 = vsel %vm992, %v9980, %v9984
        %v9986 = vshrl.u32 %v8790, 16
        %v9988 = vrot.slane %v9986, 4
        %v9989 = vor.u32 %v9988, %v9984
        %v9990 = vrot.slane %v9989, 4
        %v9992 = vshll.u32 %v8791, 16
        %v9994 = vrot.slane %v9992, 5
        %v9995 = vsel %vm992, %v9990, %v9994
        %v9996 = vshrl.u32 %v8791, 16
        %v9998 = vrot.slane %v9996, 4
        %v9999 = vor.u32 %v9998, %v9994
        %v10000 = vrot.slane %v9999, 4
        %v10002 = vshll.u32 %v8792, 16
        %v10004 = vrot.slane %v10002, 5
        %v10005 = vsel %vm992, %v10000, %v10004
        %v10007 = vshrl.u32 %v8793, 16
        %v10009 = vrot.slane %v10007, 4
        %v10010 = vshll.u32 %v8793, 16
        %v10012 = vrot.slane %v10010, 5
        %v10013 = vor.u32 %v10009, %v10012
        %v10014 = vrot.slane %v10013, 4
        %v10016 = vshll.u32 %v8794, 16
        %v10018 = vrot.slane %v10016, 5
        %v10019 = vsel %vm992, %v10014, %v10018
        %v10020 = vshrl.u32 %v8794, 16
        %v10022 = vrot.slane %v10020, 4
        %v10023 = vor.u32 %v10022, %v10018
        %v10024 = vrot.slane %v10023, 4
        %v10026 = vshll.u32 %v8795, 16
        %v10028 = vrot.slane %v10026, 5
        %v10029 = vsel %vm992, %v10024, %v10028
        %v10030 = vshrl.u32 %v8795, 16
        %v10032 = vrot.slane %v10030, 4
        %v10033 = vor.u32 %v10032, %v10028
        %v10034 = vrot.slane %v10033, 4
        %v10036 = vshll.u32 %v8796, 16
        %v10038 = vrot.slane %v10036, 5
        %v10039 = vsel %vm992, %v10034, %v10038
        %v10040 = vshrl.u32 %v8796, 16
        %v10042 = vrot.slane %v10040, 4
        %v10043 = vor.u32 %v10042, %v10038
        %v10044 = vrot.slane %v10043, 4
        %v10046 = vshll.u32 %v8797, 16
        %v10048 = vrot.slane %v10046, 5
        %v10049 = vsel %vm992, %v10044, %v10048
        %v10051 = vshrl.u32 %v8798, 16
        %v10053 = vrot.slane %v10051, 4
        %v10054 = vshll.u32 %v8798, 16
        %v10056 = vrot.slane %v10054, 5
        %v10057 = vor.u32 %v10053, %v10056
        %v10058 = vrot.slane %v10057, 4
        %v10060 = vshll.u32 %v8799, 16
        %v10062 = vrot.slane %v10060, 5
        %v10063 = vsel %vm992, %v10058, %v10062
        %v10064 = vshrl.u32 %v8799, 16
        %v10066 = vrot.slane %v10064, 4
        %v10067 = vor.u32 %v10066, %v10062
        %v10068 = vrot.slane %v10067, 4
        %v10070 = vshll.u32 %v8800, 16
        %v10072 = vrot.slane %v10070, 5
        %v10073 = vsel %vm992, %v10068, %v10072
        %v10074 = vshrl.u32 %v8800, 16
        %v10076 = vrot.slane %v10074, 4
        %v10077 = vor.u32 %v10076, %v10072
        %v10078 = vrot.slane %v10077, 4
        %v10080 = vshll.u32 %v8801, 16
        %v10082 = vrot.slane %v10080, 5
        %v10083 = vsel %vm992, %v10078, %v10082
        %v10084 = vshrl.u32 %v8801, 16
        %v10086 = vrot.slane %v10084, 4
        %v10087 = vor.u32 %v10086, %v10082
        %v10088 = vrot.slane %v10087, 4
        %v10090 = vshll.u32 %v8802, 16
        %v10092 = vrot.slane %v10090, 5
        %v10093 = vsel %vm992, %v10088, %v10092
        %v10095 = vshrl.u32 %v8803, 16
        %v10097 = vrot.slane %v10095, 4
        %v10098 = vshll.u32 %v8803, 16
        %v10100 = vrot.slane %v10098, 5
        %v10101 = vor.u32 %v10097, %v10100
        %v10102 = vrot.slane %v10101, 4
        %v10104 = vshll.u32 %v8804, 16
        %v10106 = vrot.slane %v10104, 5
        %v10107 = vsel %vm992, %v10102, %v10106
        %v10108 = vshrl.u32 %v8804, 16
        %v10110 = vrot.slane %v10108, 4
        %v10111 = vor.u32 %v10110, %v10106
        %v10112 = vrot.slane %v10111, 4
        %v10114 = vshll.u32 %v8805, 16
        %v10116 = vrot.slane %v10114, 5
        %v10117 = vsel %vm992, %v10112, %v10116
        %v10118 = vshrl.u32 %v8805, 16
        %v10120 = vrot.slane %v10118, 4
        %v10121 = vor.u32 %v10120, %v10116
        %v10122 = vrot.slane %v10121, 4
        %v10124 = vshll.u32 %v8806, 16
        %v10126 = vrot.slane %v10124, 5
        %v10127 = vsel %vm992, %v10122, %v10126
        %v10128 = vshrl.u32 %v8806, 16
        %v10130 = vrot.slane %v10128, 4
        %v10131 = vor.u32 %v10130, %v10126
        %v10132 = vrot.slane %v10131, 4
        %v10134 = vshll.u32 %v8807, 16
        %v10136 = vrot.slane %v10134, 5
        %v10137 = vsel %vm992, %v10132, %v10136
        %v10139 = vshrl.u32 %v8808, 16
        %v10141 = vrot.slane %v10139, 4
        %v10142 = vshll.u32 %v8808, 16
        %v10144 = vrot.slane %v10142, 5
        %v10145 = vor.u32 %v10141, %v10144
        %v10146 = vrot.slane %v10145, 4
        %v10148 = vshll.u32 %v8809, 16
        %v10150 = vrot.slane %v10148, 5
        %v10151 = vsel %vm992, %v10146, %v10150
        %v10152 = vshrl.u32 %v8809, 16
        %v10154 = vrot.slane %v10152, 4
        %v10155 = vor.u32 %v10154, %v10150
        %v10156 = vrot.slane %v10155, 4
        %v10158 = vshll.u32 %v8810, 16
        %v10160 = vrot.slane %v10158, 5
        %v10161 = vsel %vm992, %v10156, %v10160
        %v10162 = vshrl.u32 %v8810, 16
        %v10164 = vrot.slane %v10162, 4
        %v10165 = vor.u32 %v10164, %v10160
        %v10166 = vrot.slane %v10165, 4
        %v10168 = vshll.u32 %v8811, 16
        %v10170 = vrot.slane %v10168, 5
        %v10171 = vsel %vm992, %v10166, %v10170
        %v10172 = vshrl.u32 %v8811, 16
        %v10174 = vrot.slane %v10172, 4
        %v10175 = vor.u32 %v10174, %v10170
        %v10176 = vrot.slane %v10175, 4
        %v10178 = vshll.u32 %v8812, 16
        %v10180 = vrot.slane %v10178, 5
        %v10181 = vsel %vm992, %v10176, %v10180
        %v10183 = vshrl.u32 %v8813, 16
        %v10185 = vrot.slane %v10183, 4
        %v10186 = vshll.u32 %v8813, 16
        %v10188 = vrot.slane %v10186, 5
        %v10189 = vor.u32 %v10185, %v10188
        %v10190 = vrot.slane %v10189, 4
        %v10192 = vshll.u32 %v8814, 16
        %v10194 = vrot.slane %v10192, 5
        %v10195 = vsel %vm992, %v10190, %v10194
        %v10196 = vshrl.u32 %v8814, 16
        %v10198 = vrot.slane %v10196, 4
        %v10199 = vor.u32 %v10198, %v10194
        %v10200 = vrot.slane %v10199, 4
        %v10202 = vshll.u32 %v8815, 16
        %v10204 = vrot.slane %v10202, 5
        %v10205 = vsel %vm992, %v10200, %v10204
        %v10206 = vshrl.u32 %v8815, 16
        %v10208 = vrot.slane %v10206, 4
        %v10209 = vor.u32 %v10208, %v10204
        %v10210 = vrot.slane %v10209, 4
        %v10212 = vshll.u32 %v8816, 16
        %v10214 = vrot.slane %v10212, 5
        %v10215 = vsel %vm992, %v10210, %v10214
        %v10216 = vshrl.u32 %v8816, 16
        %v10218 = vrot.slane %v10216, 4
        %v10219 = vor.u32 %v10218, %v10214
        %v10220 = vrot.slane %v10219, 4
        %v10222 = vshll.u32 %v8817, 16
        %v10224 = vrot.slane %v10222, 5
        %v10225 = vsel %vm992, %v10220, %v10224
        %v10226 = vunpack.c.l.b16 %v8831
        %v10227 = vunpack.c.l.b16 %v8841
        %v10228 = vunpack.c.l.b16 %v8851
        %v10229 = vunpack.c.l.b16 %v8861
        %v10230 = vunpack.c.l.b16 %v8875
        %v10231 = vunpack.c.l.b16 %v8885
        %v10232 = vunpack.c.l.b16 %v8895
        %v10233 = vunpack.c.l.b16 %v8905
        %v10234 = vunpack.c.l.b16 %v8919
        %v10235 = vunpack.c.l.b16 %v8929
        %v10236 = vunpack.c.l.b16 %v8939
        %v10237 = vunpack.c.l.b16 %v8949
        %v10238 = vunpack.c.l.b16 %v8963
        %v10239 = vunpack.c.l.b16 %v8973
        %v10240 = vunpack.c.l.b16 %v8983
        %v10241 = vunpack.c.l.b16 %v8993
        %v10242 = vunpack.c.l.b16 %v9007
        %v10243 = vunpack.c.l.b16 %v9017
        %v10244 = vunpack.c.l.b16 %v9027
        %v10245 = vunpack.c.l.b16 %v9037
        %v10246 = vunpack.c.l.b16 %v9051
        %v10247 = vunpack.c.l.b16 %v9061
        %v10248 = vunpack.c.l.b16 %v9071
        %v10249 = vunpack.c.l.b16 %v9081
        %v10250 = vunpack.c.l.b16 %v9095
        %v10251 = vunpack.c.l.b16 %v9105
        %v10252 = vunpack.c.l.b16 %v9115
        %v10253 = vunpack.c.l.b16 %v9125
        %v10254 = vunpack.c.l.b16 %v9139
        %v10255 = vunpack.c.l.b16 %v9149
        %v10256 = vunpack.c.l.b16 %v9159
        %v10257 = vunpack.c.l.b16 %v9169
        %v10258 = vunpack.c.l.b16 %v9183
        %v10259 = vunpack.c.l.b16 %v9193
        %v10260 = vunpack.c.l.b16 %v9203
        %v10261 = vunpack.c.l.b16 %v9213
        %v10262 = vunpack.c.l.b16 %v9227
        %v10263 = vunpack.c.l.b16 %v9237
        %v10264 = vunpack.c.l.b16 %v9247
        %v10265 = vunpack.c.l.b16 %v9257
        %v10266 = vunpack.c.l.b16 %v9271
        %v10267 = vunpack.c.l.b16 %v9281
        %v10268 = vunpack.c.l.b16 %v9291
        %v10269 = vunpack.c.l.b16 %v9301
        %v10270 = vunpack.c.l.b16 %v9315
        %v10271 = vunpack.c.l.b16 %v9325
        %v10272 = vunpack.c.l.b16 %v9335
        %v10273 = vunpack.c.l.b16 %v9345
        %v10274 = vunpack.c.l.b16 %v9359
        %v10275 = vunpack.c.l.b16 %v9369
        %v10276 = vunpack.c.l.b16 %v9379
        %v10277 = vunpack.c.l.b16 %v9389
        %v10278 = vunpack.c.l.b16 %v9403
        %v10279 = vunpack.c.l.b16 %v9413
        %v10280 = vunpack.c.l.b16 %v9423
        %v10281 = vunpack.c.l.b16 %v9433
        %v10282 = vunpack.c.l.b16 %v9447
        %v10283 = vunpack.c.l.b16 %v9457
        %v10284 = vunpack.c.l.b16 %v9467
        %v10285 = vunpack.c.l.b16 %v9477
        %v10286 = vunpack.c.l.b16 %v9491
        %v10287 = vunpack.c.l.b16 %v9501
        %v10288 = vunpack.c.l.b16 %v9511
        %v10289 = vunpack.c.l.b16 %v9521
        %v10290 = vunpack.c.l.b16 %v9535
        %v10291 = vunpack.c.l.b16 %v9545
        %v10292 = vunpack.c.l.b16 %v9555
        %v10293 = vunpack.c.l.b16 %v9565
        %v10294 = vunpack.c.l.b16 %v9579
        %v10295 = vunpack.c.l.b16 %v9589
        %v10296 = vunpack.c.l.b16 %v9599
        %v10297 = vunpack.c.l.b16 %v9609
        %v10298 = vunpack.c.l.b16 %v9623
        %v10299 = vunpack.c.l.b16 %v9633
        %v10300 = vunpack.c.l.b16 %v9643
        %v10301 = vunpack.c.l.b16 %v9653
        %v10302 = vunpack.c.l.b16 %v9667
        %v10303 = vunpack.c.l.b16 %v9677
        %v10304 = vunpack.c.l.b16 %v9687
        %v10305 = vunpack.c.l.b16 %v9697
        %v10306 = vunpack.c.l.b16 %v9711
        %v10307 = vunpack.c.l.b16 %v9721
        %v10308 = vunpack.c.l.b16 %v9731
        %v10309 = vunpack.c.l.b16 %v9741
        %v10310 = vunpack.c.l.b16 %v9755
        %v10311 = vunpack.c.l.b16 %v9765
        %v10312 = vunpack.c.l.b16 %v9775
        %v10313 = vunpack.c.l.b16 %v9785
        %v10314 = vunpack.c.l.b16 %v9799
        %v10315 = vunpack.c.l.b16 %v9809
        %v10316 = vunpack.c.l.b16 %v9819
        %v10317 = vunpack.c.l.b16 %v9829
        %v10318 = vunpack.c.l.b16 %v9843
        %v10319 = vunpack.c.l.b16 %v9853
        %v10320 = vunpack.c.l.b16 %v9863
        %v10321 = vunpack.c.l.b16 %v9873
        %v10322 = vunpack.c.l.b16 %v9887
        %v10323 = vunpack.c.l.b16 %v9897
        %v10324 = vunpack.c.l.b16 %v9907
        %v10325 = vunpack.c.l.b16 %v9917
        %v10326 = vunpack.c.l.b16 %v9931
        %v10327 = vunpack.c.l.b16 %v9941
        %v10328 = vunpack.c.l.b16 %v9951
        %v10329 = vunpack.c.l.b16 %v9961
        %v10330 = vunpack.c.l.b16 %v9975
        %v10331 = vunpack.c.l.b16 %v9985
        %v10332 = vunpack.c.l.b16 %v9995
        %v10333 = vunpack.c.l.b16 %v10005
        %v10334 = vunpack.c.l.b16 %v10019
        %v10335 = vunpack.c.l.b16 %v10029
        %v10336 = vunpack.c.l.b16 %v10039
        %v10337 = vunpack.c.l.b16 %v10049
        %v10338 = vunpack.c.l.b16 %v10063
        %v10339 = vunpack.c.l.b16 %v10073
        %v10340 = vunpack.c.l.b16 %v10083
        %v10341 = vunpack.c.l.b16 %v10093
        %v10342 = vunpack.c.l.b16 %v10107
        %v10343 = vunpack.c.l.b16 %v10117
        %v10344 = vunpack.c.l.b16 %v10127
        %v10345 = vunpack.c.l.b16 %v10137
        %v10346 = vunpack.c.l.b16 %v10151
        %v10347 = vunpack.c.l.b16 %v10161
        %v10348 = vunpack.c.l.b16 %v10171
        %v10349 = vunpack.c.l.b16 %v10181
        %v10350 = vunpack.c.l.b16 %v10195
        %v10351 = vunpack.c.l.b16 %v10205
        %v10352 = vunpack.c.l.b16 %v10215
        %v10353 = vunpack.c.l.b16 %v10225
        %v10354 = vpack.c.b16 %v10227, %v10226
        %v10355 = vpack.c.b16 %v10229, %v10228
        %v10356 = vpack.c.b16 %v10231, %v10230
        %v10357 = vpack.c.b16 %v10233, %v10232
        %v10358 = vpack.c.b16 %v10235, %v10234
        %v10359 = vpack.c.b16 %v10237, %v10236
        %v10360 = vpack.c.b16 %v10239, %v10238
        %v10361 = vpack.c.b16 %v10241, %v10240
        %v10362 = vpack.c.b16 %v10243, %v10242
        %v10363 = vpack.c.b16 %v10245, %v10244
        %v10364 = vpack.c.b16 %v10247, %v10246
        %v10365 = vpack.c.b16 %v10249, %v10248
        %v10366 = vpack.c.b16 %v10251, %v10250
        %v10367 = vpack.c.b16 %v10253, %v10252
        %v10368 = vpack.c.b16 %v10255, %v10254
        %v10369 = vpack.c.b16 %v10257, %v10256
        %v10370 = vpack.c.b16 %v10259, %v10258
        %v10371 = vpack.c.b16 %v10261, %v10260
        %v10372 = vpack.c.b16 %v10263, %v10262
        %v10373 = vpack.c.b16 %v10265, %v10264
        %v10374 = vpack.c.b16 %v10267, %v10266
        %v10375 = vpack.c.b16 %v10269, %v10268
        %v10376 = vpack.c.b16 %v10271, %v10270
        %v10377 = vpack.c.b16 %v10273, %v10272
        %v10378 = vpack.c.b16 %v10275, %v10274
        %v10379 = vpack.c.b16 %v10277, %v10276
        %v10380 = vpack.c.b16 %v10279, %v10278
        %v10381 = vpack.c.b16 %v10281, %v10280
        %v10382 = vpack.c.b16 %v10283, %v10282
        %v10383 = vpack.c.b16 %v10285, %v10284
        %v10384 = vpack.c.b16 %v10287, %v10286
        %v10385 = vpack.c.b16 %v10289, %v10288
        %v10386 = vpack.c.b16 %v10291, %v10290
        %v10387 = vpack.c.b16 %v10293, %v10292
        %v10388 = vpack.c.b16 %v10295, %v10294
        %v10389 = vpack.c.b16 %v10297, %v10296
        %v10390 = vpack.c.b16 %v10299, %v10298
        %v10391 = vpack.c.b16 %v10301, %v10300
        %v10392 = vpack.c.b16 %v10303, %v10302
        %v10393 = vpack.c.b16 %v10305, %v10304
        %v10394 = vpack.c.b16 %v10307, %v10306
        %v10395 = vpack.c.b16 %v10309, %v10308
        %v10396 = vpack.c.b16 %v10311, %v10310
        %v10397 = vpack.c.b16 %v10313, %v10312
        %v10398 = vpack.c.b16 %v10315, %v10314
        %v10399 = vpack.c.b16 %v10317, %v10316
        %v10400 = vpack.c.b16 %v10319, %v10318
        %v10401 = vpack.c.b16 %v10321, %v10320
        %v10402 = vpack.c.b16 %v10323, %v10322
        %v10403 = vpack.c.b16 %v10325, %v10324
        %v10404 = vpack.c.b16 %v10327, %v10326
        %v10405 = vpack.c.b16 %v10329, %v10328
        %v10406 = vpack.c.b16 %v10331, %v10330
        %v10407 = vpack.c.b16 %v10333, %v10332
        %v10408 = vpack.c.b16 %v10335, %v10334
        %v10409 = vpack.c.b16 %v10337, %v10336
        %v10410 = vpack.c.b16 %v10339, %v10338
        %v10411 = vpack.c.b16 %v10341, %v10340
        %v10412 = vpack.c.b16 %v10343, %v10342
        %v10413 = vpack.c.b16 %v10345, %v10344
        %v10414 = vpack.c.b16 %v10347, %v10346
        %v10415 = vpack.c.b16 %v10349, %v10348
        %v10416 = vpack.c.b16 %v10351, %v10350
        %v10417 = vpack.c.b16 %v10353, %v10352
        %10418 = vrot.lane.b32.xlu0 %v10354, 28
        %v10419 = vpop.permute.xlu0 %10418
        %10420 = vrot.lane.b32.xlu0 %v10355, 28
        %v10421 = vpop.permute.xlu0 %10420
        %10422 = vrot.lane.b32.xlu0 %v10356, 28
        %v10423 = vpop.permute.xlu0 %10422
        %10424 = vrot.lane.b32.xlu0 %v10357, 28
        %v10425 = vpop.permute.xlu0 %10424
        %10426 = vrot.lane.b32.xlu0 %v10358, 28
        %v10427 = vpop.permute.xlu0 %10426
        %10428 = vrot.lane.b32.xlu0 %v10359, 28
        %v10429 = vpop.permute.xlu0 %10428
        %10430 = vrot.lane.b32.xlu0 %v10360, 28
        %v10431 = vpop.permute.xlu0 %10430
        %10432 = vrot.lane.b32.xlu0 %v10361, 28
        %v10433 = vpop.permute.xlu0 %10432
        %10434 = vrot.lane.b32.xlu0 %v10362, 28
        %v10435 = vpop.permute.xlu0 %10434
        %10436 = vrot.lane.b32.xlu0 %v10363, 28
        %v10437 = vpop.permute.xlu0 %10436
        %10438 = vrot.lane.b32.xlu0 %v10364, 28
        %v10439 = vpop.permute.xlu0 %10438
        %10440 = vrot.lane.b32.xlu0 %v10365, 28
        %v10441 = vpop.permute.xlu0 %10440
        %10442 = vrot.lane.b32.xlu0 %v10366, 28
        %v10443 = vpop.permute.xlu0 %10442
        %10444 = vrot.lane.b32.xlu0 %v10367, 28
        %v10445 = vpop.permute.xlu0 %10444
        %10446 = vrot.lane.b32.xlu0 %v10368, 28
        %v10447 = vpop.permute.xlu0 %10446
        %10448 = vrot.lane.b32.xlu0 %v10369, 28
        %v10449 = vpop.permute.xlu0 %10448
        %10450 = vrot.lane.b32.xlu0 %v10370, 28
        %v10451 = vpop.permute.xlu0 %10450
        %10452 = vrot.lane.b32.xlu0 %v10371, 28
        %v10453 = vpop.permute.xlu0 %10452
        %10454 = vrot.lane.b32.xlu0 %v10372, 28
        %v10455 = vpop.permute.xlu0 %10454
        %10456 = vrot.lane.b32.xlu0 %v10373, 28
        %v10457 = vpop.permute.xlu0 %10456
        %10458 = vrot.lane.b32.xlu0 %v10374, 28
        %v10459 = vpop.permute.xlu0 %10458
        %10460 = vrot.lane.b32.xlu0 %v10375, 28
        %v10461 = vpop.permute.xlu0 %10460
        %10462 = vrot.lane.b32.xlu0 %v10376, 28
        %v10463 = vpop.permute.xlu0 %10462
        %10464 = vrot.lane.b32.xlu0 %v10377, 28
        %v10465 = vpop.permute.xlu0 %10464
        %10466 = vrot.lane.b32.xlu0 %v10378, 28
        %v10467 = vpop.permute.xlu0 %10466
        %10468 = vrot.lane.b32.xlu0 %v10379, 28
        %v10469 = vpop.permute.xlu0 %10468
        %10470 = vrot.lane.b32.xlu0 %v10380, 28
        %v10471 = vpop.permute.xlu0 %10470
        %10472 = vrot.lane.b32.xlu0 %v10381, 28
        %v10473 = vpop.permute.xlu0 %10472
        %10474 = vrot.lane.b32.xlu0 %v10382, 28
        %v10475 = vpop.permute.xlu0 %10474
        %10476 = vrot.lane.b32.xlu0 %v10383, 28
        %v10477 = vpop.permute.xlu0 %10476
        %10478 = vrot.lane.b32.xlu0 %v10384, 28
        %v10479 = vpop.permute.xlu0 %10478
        %10480 = vrot.lane.b32.xlu0 %v10385, 28
        %v10481 = vpop.permute.xlu0 %10480
        %10482 = vrot.lane.b32.xlu0 %v10386, 28
        %v10483 = vpop.permute.xlu0 %10482
        %10484 = vrot.lane.b32.xlu0 %v10387, 28
        %v10485 = vpop.permute.xlu0 %10484
        %10486 = vrot.lane.b32.xlu0 %v10388, 28
        %v10487 = vpop.permute.xlu0 %10486
        %10488 = vrot.lane.b32.xlu0 %v10389, 28
        %v10489 = vpop.permute.xlu0 %10488
        %10490 = vrot.lane.b32.xlu0 %v10390, 28
        %v10491 = vpop.permute.xlu0 %10490
        %10492 = vrot.lane.b32.xlu0 %v10391, 28
        %v10493 = vpop.permute.xlu0 %10492
        %10494 = vrot.lane.b32.xlu0 %v10392, 28
        %v10495 = vpop.permute.xlu0 %10494
        %10496 = vrot.lane.b32.xlu0 %v10393, 28
        %v10497 = vpop.permute.xlu0 %10496
        %10498 = vrot.lane.b32.xlu0 %v10394, 28
        %v10499 = vpop.permute.xlu0 %10498
        %10500 = vrot.lane.b32.xlu0 %v10395, 28
        %v10501 = vpop.permute.xlu0 %10500
        %10502 = vrot.lane.b32.xlu0 %v10396, 28
        %v10503 = vpop.permute.xlu0 %10502
        %10504 = vrot.lane.b32.xlu0 %v10397, 28
        %v10505 = vpop.permute.xlu0 %10504
        %10506 = vrot.lane.b32.xlu0 %v10398, 28
        %v10507 = vpop.permute.xlu0 %10506
        %10508 = vrot.lane.b32.xlu0 %v10399, 28
        %v10509 = vpop.permute.xlu0 %10508
        %10510 = vrot.lane.b32.xlu0 %v10400, 28
        %v10511 = vpop.permute.xlu0 %10510
        %10512 = vrot.lane.b32.xlu0 %v10401, 28
        %v10513 = vpop.permute.xlu0 %10512
        %10514 = vrot.lane.b32.xlu0 %v10402, 28
        %v10515 = vpop.permute.xlu0 %10514
        %10516 = vrot.lane.b32.xlu0 %v10403, 28
        %v10517 = vpop.permute.xlu0 %10516
        %10518 = vrot.lane.b32.xlu0 %v10404, 28
        %v10519 = vpop.permute.xlu0 %10518
        %10520 = vrot.lane.b32.xlu0 %v10405, 28
        %v10521 = vpop.permute.xlu0 %10520
        %10522 = vrot.lane.b32.xlu0 %v10406, 28
        %v10523 = vpop.permute.xlu0 %10522
        %10524 = vrot.lane.b32.xlu0 %v10407, 28
        %v10525 = vpop.permute.xlu0 %10524
        %10526 = vrot.lane.b32.xlu0 %v10408, 28
        %v10527 = vpop.permute.xlu0 %10526
        %10528 = vrot.lane.b32.xlu0 %v10409, 28
        %v10529 = vpop.permute.xlu0 %10528
        %10530 = vrot.lane.b32.xlu0 %v10410, 28
        %v10531 = vpop.permute.xlu0 %10530
        %10532 = vrot.lane.b32.xlu0 %v10411, 28
        %v10533 = vpop.permute.xlu0 %10532
        %10534 = vrot.lane.b32.xlu0 %v10412, 28
        %v10535 = vpop.permute.xlu0 %10534
        %10536 = vrot.lane.b32.xlu0 %v10413, 28
        %v10537 = vpop.permute.xlu0 %10536
        %10538 = vrot.lane.b32.xlu0 %v10414, 28
        %v10539 = vpop.permute.xlu0 %10538
        %10540 = vrot.lane.b32.xlu0 %v10415, 28
        %v10541 = vpop.permute.xlu0 %10540
        %10542 = vrot.lane.b32.xlu0 %v10416, 28
        %v10543 = vpop.permute.xlu0 %10542
        %10544 = vrot.lane.b32.xlu0 %v10417, 28
        %v10545 = vpop.permute.xlu0 %10544
        %vm10610 = vcmask 261344
        %10611 = vst.msk [vmem:[#allocation2] sm:$0xff] %vm10610, %v10419
        %10612 = vst.msk [vmem:[#allocation2 + $0x8] sm:$0xff] %vm10610, %v10421
        %10613 = vst.msk [vmem:[#allocation2 + $0x10] sm:$0xff] %vm10610, %v10423
        %10614 = vst.msk [vmem:[#allocation2 + $0x18] sm:$0xff] %vm10610, %v10425
        %10615 = vst.msk [vmem:[#allocation2 + $0x20] sm:$0xff] %vm10610, %v10427
        %10616 = vst.msk [vmem:[#allocation2 + $0x28] sm:$0xff] %vm10610, %v10429
        %10617 = vst.msk [vmem:[#allocation2 + $0x30] sm:$0xff] %vm10610, %v10431
        %10618 = vst.msk [vmem:[#allocation2 + $0x38] sm:$0xff] %vm10610, %v10433
        %10619 = vst.msk [vmem:[#allocation2 + $0x40] sm:$0xff] %vm10610, %v10435
        %10620 = vst.msk [vmem:[#allocation2 + $0x48] sm:$0xff] %vm10610, %v10437
        %10621 = vst.msk [vmem:[#allocation2 + $0x50] sm:$0xff] %vm10610, %v10439
        %10622 = vst.msk [vmem:[#allocation2 + $0x58] sm:$0xff] %vm10610, %v10441
        %10623 = vst.msk [vmem:[#allocation2 + $0x60] sm:$0xff] %vm10610, %v10443
        %10624 = vst.msk [vmem:[#allocation2 + $0x68] sm:$0xff] %vm10610, %v10445
        %10625 = vst.msk [vmem:[#allocation2 + $0x70] sm:$0xff] %vm10610, %v10447
        %10626 = vst.msk [vmem:[#allocation2 + $0x78] sm:$0xff] %vm10610, %v10449
        %10627 = vst.msk [vmem:[#allocation2 + $0x80] sm:$0xff] %vm10610, %v10451
        %10628 = vst.msk [vmem:[#allocation2 + $0x88] sm:$0xff] %vm10610, %v10453
        %10629 = vst.msk [vmem:[#allocation2 + $0x90] sm:$0xff] %vm10610, %v10455
        %10630 = vst.msk [vmem:[#allocation2 + $0x98] sm:$0xff] %vm10610, %v10457
        %10631 = vst.msk [vmem:[#allocation2 + $0xa0] sm:$0xff] %vm10610, %v10459
        %10632 = vst.msk [vmem:[#allocation2 + $0xa8] sm:$0xff] %vm10610, %v10461
        %10633 = vst.msk [vmem:[#allocation2 + $0xb0] sm:$0xff] %vm10610, %v10463
        %10634 = vst.msk [vmem:[#allocation2 + $0xb8] sm:$0xff] %vm10610, %v10465
        %10635 = vst.msk [vmem:[#allocation2 + $0xc0] sm:$0xff] %vm10610, %v10467
        %10636 = vst.msk [vmem:[#allocation2 + $0xc8] sm:$0xff] %vm10610, %v10469
        %10637 = vst.msk [vmem:[#allocation2 + $0xd0] sm:$0xff] %vm10610, %v10471
        %10638 = vst.msk [vmem:[#allocation2 + $0xd8] sm:$0xff] %vm10610, %v10473
        %10639 = vst.msk [vmem:[#allocation2 + $0xe0] sm:$0xff] %vm10610, %v10475
        %10640 = vst.msk [vmem:[#allocation2 + $0xe8] sm:$0xff] %vm10610, %v10477
        %10641 = vst.msk [vmem:[#allocation2 + $0xf0] sm:$0xff] %vm10610, %v10479
        %10642 = vst.msk [vmem:[#allocation2 + $0xf8] sm:$0xff] %vm10610, %v10481
        %10643 = vst.msk [vmem:[#allocation2 + $0x100] sm:$0xff] %vm10610, %v10483
        %10644 = vst.msk [vmem:[#allocation2 + $0x108] sm:$0xff] %vm10610, %v10485
        %10645 = vst.msk [vmem:[#allocation2 + $0x110] sm:$0xff] %vm10610, %v10487
        %10646 = vst.msk [vmem:[#allocation2 + $0x118] sm:$0xff] %vm10610, %v10489
        %10647 = vst.msk [vmem:[#allocation2 + $0x120] sm:$0xff] %vm10610, %v10491
        %10648 = vst.msk [vmem:[#allocation2 + $0x128] sm:$0xff] %vm10610, %v10493
        %10649 = vst.msk [vmem:[#allocation2 + $0x130] sm:$0xff] %vm10610, %v10495
        %10650 = vst.msk [vmem:[#allocation2 + $0x138] sm:$0xff] %vm10610, %v10497
        %10651 = vst.msk [vmem:[#allocation2 + $0x140] sm:$0xff] %vm10610, %v10499
        %10652 = vst.msk [vmem:[#allocation2 + $0x148] sm:$0xff] %vm10610, %v10501
        %10653 = vst.msk [vmem:[#allocation2 + $0x150] sm:$0xff] %vm10610, %v10503
        %10654 = vst.msk [vmem:[#allocation2 + $0x158] sm:$0xff] %vm10610, %v10505
        %10655 = vst.msk [vmem:[#allocation2 + $0x160] sm:$0xff] %vm10610, %v10507
        %10656 = vst.msk [vmem:[#allocation2 + $0x168] sm:$0xff] %vm10610, %v10509
        %10657 = vst.msk [vmem:[#allocation2 + $0x170] sm:$0xff] %vm10610, %v10511
        %10658 = vst.msk [vmem:[#allocation2 + $0x178] sm:$0xff] %vm10610, %v10513
        %10659 = vst.msk [vmem:[#allocation2 + $0x180] sm:$0xff] %vm10610, %v10515
        %10660 = vst.msk [vmem:[#allocation2 + $0x188] sm:$0xff] %vm10610, %v10517
        %10661 = vst.msk [vmem:[#allocation2 + $0x190] sm:$0xff] %vm10610, %v10519
        %10662 = vst.msk [vmem:[#allocation2 + $0x198] sm:$0xff] %vm10610, %v10521
        %10663 = vst.msk [vmem:[#allocation2 + $0x1a0] sm:$0xff] %vm10610, %v10523
        %10664 = vst.msk [vmem:[#allocation2 + $0x1a8] sm:$0xff] %vm10610, %v10525
        %10665 = vst.msk [vmem:[#allocation2 + $0x1b0] sm:$0xff] %vm10610, %v10527
        %10666 = vst.msk [vmem:[#allocation2 + $0x1b8] sm:$0xff] %vm10610, %v10529
        %10667 = vst.msk [vmem:[#allocation2 + $0x1c0] sm:$0xff] %vm10610, %v10531
        %10668 = vst.msk [vmem:[#allocation2 + $0x1c8] sm:$0xff] %vm10610, %v10533
        %10669 = vst.msk [vmem:[#allocation2 + $0x1d0] sm:$0xff] %vm10610, %v10535
        %10670 = vst.msk [vmem:[#allocation2 + $0x1d8] sm:$0xff] %vm10610, %v10537
        %10671 = vst.msk [vmem:[#allocation2 + $0x1e0] sm:$0xff] %vm10610, %v10539
        %10672 = vst.msk [vmem:[#allocation2 + $0x1e8] sm:$0xff] %vm10610, %v10541
        %10673 = vst.msk [vmem:[#allocation2 + $0x1f0] sm:$0xff] %vm10610, %v10543
        %10674 = vst.msk [vmem:[#allocation2 + $0x1f8] sm:$0xff] %vm10610, %v10545
        %v10675 = vld [vmem:[%s7952] sm:$0xe]
        %v10676 = vld [vmem:[%s7952 + $0x4] sm:$0xf]
        %v10677 = vld [vmem:[%s7952 + $0x8] sm:$0xf]
        %v10678 = vld [vmem:[%s7952 + $0xc] sm:$0xf]
        %v10679 = vld [vmem:[%s7952 + $0x10] sm:$0x1]
        %v10680 = vld [vmem:[%s7952 + $0x14] sm:$0xe]
        %v10681 = vld [vmem:[%s7952 + $0x18] sm:$0xf]
        %v10682 = vld [vmem:[%s7952 + $0x1c] sm:$0xf]
        %v10683 = vld [vmem:[%s7952 + $0x20] sm:$0xf]
        %v10684 = vld [vmem:[%s7952 + $0x24] sm:$0x1]
        %v10685 = vld [vmem:[%s7952 + $0x28] sm:$0xe]
        %v10686 = vld [vmem:[%s7952 + $0x2c] sm:$0xf]
        %v10687 = vld [vmem:[%s7952 + $0x30] sm:$0xf]
        %v10688 = vld [vmem:[%s7952 + $0x34] sm:$0xf]
        %v10689 = vld [vmem:[%s7952 + $0x38] sm:$0x1]
        %v10690 = vld [vmem:[%s7952 + $0x3c] sm:$0xe]
        %v10691 = vld [vmem:[%s7952 + $0x40] sm:$0xf]
        %v10692 = vld [vmem:[%s7952 + $0x44] sm:$0xf]
        %v10693 = vld [vmem:[%s7952 + $0x48] sm:$0xf]
        %v10694 = vld [vmem:[%s7952 + $0x4c] sm:$0x1]
        %v10695 = vld [vmem:[%s7952 + $0x50] sm:$0xe]
        %v10696 = vld [vmem:[%s7952 + $0x54] sm:$0xf]
        %v10697 = vld [vmem:[%s7952 + $0x58] sm:$0xf]
        %v10698 = vld [vmem:[%s7952 + $0x5c] sm:$0xf]
        %v10699 = vld [vmem:[%s7952 + $0x60] sm:$0x1]
        %v10700 = vld [vmem:[%s7952 + $0x64] sm:$0xe]
        %v10701 = vld [vmem:[%s7952 + $0x68] sm:$0xf]
        %v10702 = vld [vmem:[%s7952 + $0x6c] sm:$0xf]
        %v10703 = vld [vmem:[%s7952 + $0x70] sm:$0xf]
        %v10704 = vld [vmem:[%s7952 + $0x74] sm:$0x1]
        %v10705 = vld [vmem:[%s7952 + $0x78] sm:$0xe]
        %v10706 = vld [vmem:[%s7952 + $0x7c] sm:$0xf]
        %v10707 = vld [vmem:[%s7952 + $0x80] sm:$0xf]
        %v10708 = vld [vmem:[%s7952 + $0x84] sm:$0xf]
        %v10709 = vld [vmem:[%s7952 + $0x88] sm:$0x1]
        %v10710 = vld [vmem:[%s7952 + $0x8c] sm:$0xe]
        %v10711 = vld [vmem:[%s7952 + $0x90] sm:$0xf]
        %v10712 = vld [vmem:[%s7952 + $0x94] sm:$0xf]
        %v10713 = vld [vmem:[%s7952 + $0x98] sm:$0xf]
        %v10714 = vld [vmem:[%s7952 + $0x9c] sm:$0x1]
        %v10715 = vld [vmem:[%s7952 + $0xa0] sm:$0xe]
        %v10716 = vld [vmem:[%s7952 + $0xa4] sm:$0xf]
        %v10717 = vld [vmem:[%s7952 + $0xa8] sm:$0xf]
        %v10718 = vld [vmem:[%s7952 + $0xac] sm:$0xf]
        %v10719 = vld [vmem:[%s7952 + $0xb0] sm:$0x1]
        %v10720 = vld [vmem:[%s7952 + $0xb4] sm:$0xe]
        %v10721 = vld [vmem:[%s7952 + $0xb8] sm:$0xf]
        %v10722 = vld [vmem:[%s7952 + $0xbc] sm:$0xf]
        %v10723 = vld [vmem:[%s7952 + $0xc0] sm:$0xf]
        %v10724 = vld [vmem:[%s7952 + $0xc4] sm:$0x1]
        %v10725 = vld [vmem:[%s7952 + $0xc8] sm:$0xe]
        %v10726 = vld [vmem:[%s7952 + $0xcc] sm:$0xf]
        %v10727 = vld [vmem:[%s7952 + $0xd0] sm:$0xf]
        %v10728 = vld [vmem:[%s7952 + $0xd4] sm:$0xf]
        %v10729 = vld [vmem:[%s7952 + $0xd8] sm:$0x1]
        %v10730 = vld [vmem:[%s7952 + $0xdc] sm:$0xe]
        %v10731 = vld [vmem:[%s7952 + $0xe0] sm:$0xf]
        %v10732 = vld [vmem:[%s7952 + $0xe4] sm:$0xf]
        %v10733 = vld [vmem:[%s7952 + $0xe8] sm:$0xf]
        %v10734 = vld [vmem:[%s7952 + $0xec] sm:$0x1]
        %v10735 = vld [vmem:[%s7952 + $0xf0] sm:$0xe]
        %v10736 = vld [vmem:[%s7952 + $0xf4] sm:$0xf]
        %v10737 = vld [vmem:[%s7952 + $0xf8] sm:$0xf]
        %v10738 = vld [vmem:[%s7952 + $0xfc] sm:$0xf]
        %v10739 = vld [vmem:[%s7952 + $0x100] sm:$0x1]
        %v10740 = vld [vmem:[%s7952 + $0x104] sm:$0xe]
        %v10741 = vld [vmem:[%s7952 + $0x108] sm:$0xf]
        %v10742 = vld [vmem:[%s7952 + $0x10c] sm:$0xf]
        %v10743 = vld [vmem:[%s7952 + $0x110] sm:$0xf]
        %v10744 = vld [vmem:[%s7952 + $0x114] sm:$0x1]
        %v10745 = vld [vmem:[%s7952 + $0x118] sm:$0xe]
        %v10746 = vld [vmem:[%s7952 + $0x11c] sm:$0xf]
        %v10747 = vld [vmem:[%s7952 + $0x120] sm:$0xf]
        %v10748 = vld [vmem:[%s7952 + $0x124] sm:$0xf]
        %v10749 = vld [vmem:[%s7952 + $0x128] sm:$0x1]
        %v10750 = vld [vmem:[%s7952 + $0x12c] sm:$0xe]
        %v10751 = vld [vmem:[%s7952 + $0x130] sm:$0xf]
        %v10752 = vld [vmem:[%s7952 + $0x134] sm:$0xf]
        %v10753 = vld [vmem:[%s7952 + $0x138] sm:$0xf]
        %v10754 = vld [vmem:[%s7952 + $0x13c] sm:$0x1]
        %v10755 = vld [vmem:[%s7952 + $0x140] sm:$0xe]
        %v10756 = vld [vmem:[%s7952 + $0x144] sm:$0xf]
        %v10757 = vld [vmem:[%s7952 + $0x148] sm:$0xf]
        %v10758 = vld [vmem:[%s7952 + $0x14c] sm:$0xf]
        %v10759 = vld [vmem:[%s7952 + $0x150] sm:$0x1]
        %v10760 = vld [vmem:[%s7952 + $0x154] sm:$0xe]
        %v10761 = vld [vmem:[%s7952 + $0x158] sm:$0xf]
        %v10762 = vld [vmem:[%s7952 + $0x15c] sm:$0xf]
        %v10763 = vld [vmem:[%s7952 + $0x160] sm:$0xf]
        %v10764 = vld [vmem:[%s7952 + $0x164] sm:$0x1]
        %v10765 = vld [vmem:[%s7952 + $0x168] sm:$0xe]
        %v10766 = vld [vmem:[%s7952 + $0x16c] sm:$0xf]
        %v10767 = vld [vmem:[%s7952 + $0x170] sm:$0xf]
        %v10768 = vld [vmem:[%s7952 + $0x174] sm:$0xf]
        %v10769 = vld [vmem:[%s7952 + $0x178] sm:$0x1]
        %v10770 = vld [vmem:[%s7952 + $0x17c] sm:$0xe]
        %v10771 = vld [vmem:[%s7952 + $0x180] sm:$0xf]
        %v10772 = vld [vmem:[%s7952 + $0x184] sm:$0xf]
        %v10773 = vld [vmem:[%s7952 + $0x188] sm:$0xf]
        %v10774 = vld [vmem:[%s7952 + $0x18c] sm:$0x1]
        %v10775 = vld [vmem:[%s7952 + $0x190] sm:$0xe]
        %v10776 = vld [vmem:[%s7952 + $0x194] sm:$0xf]
        %v10777 = vld [vmem:[%s7952 + $0x198] sm:$0xf]
        %v10778 = vld [vmem:[%s7952 + $0x19c] sm:$0xf]
        %v10779 = vld [vmem:[%s7952 + $0x1a0] sm:$0x1]
        %v10780 = vld [vmem:[%s7952 + $0x1a4] sm:$0xe]
        %v10781 = vld [vmem:[%s7952 + $0x1a8] sm:$0xf]
        %v10782 = vld [vmem:[%s7952 + $0x1ac] sm:$0xf]
        %v10783 = vld [vmem:[%s7952 + $0x1b0] sm:$0xf]
        %v10784 = vld [vmem:[%s7952 + $0x1b4] sm:$0x1]
        %v10785 = vld [vmem:[%s7952 + $0x1b8] sm:$0xe]
        %v10786 = vld [vmem:[%s7952 + $0x1bc] sm:$0xf]
        %v10787 = vld [vmem:[%s7952 + $0x1c0] sm:$0xf]
        %v10788 = vld [vmem:[%s7952 + $0x1c4] sm:$0xf]
        %v10789 = vld [vmem:[%s7952 + $0x1c8] sm:$0x1]
        %v10790 = vld [vmem:[%s7952 + $0x1cc] sm:$0xe]
        %v10791 = vld [vmem:[%s7952 + $0x1d0] sm:$0xf]
        %v10792 = vld [vmem:[%s7952 + $0x1d4] sm:$0xf]
        %v10793 = vld [vmem:[%s7952 + $0x1d8] sm:$0xf]
        %v10794 = vld [vmem:[%s7952 + $0x1dc] sm:$0x1]
        %v10795 = vld [vmem:[%s7952 + $0x1e0] sm:$0xe]
        %v10796 = vld [vmem:[%s7952 + $0x1e4] sm:$0xf]
        %v10797 = vld [vmem:[%s7952 + $0x1e8] sm:$0xf]
        %v10798 = vld [vmem:[%s7952 + $0x1ec] sm:$0xf]
        %v10799 = vld [vmem:[%s7952 + $0x1f0] sm:$0x1]
        %v10800 = vld [vmem:[%s7952 + $0x1f4] sm:$0xe]
        %v10801 = vld [vmem:[%s7952 + $0x1f8] sm:$0xf]
        %v10802 = vld [vmem:[%s7952 + $0x1fc] sm:$0xf]
        %v10803 = vld [vmem:[%s7952 + $0x200] sm:$0xf]
        %v10804 = vld [vmem:[%s7952 + $0x204] sm:$0x1]
        %v10805 = vld [vmem:[%s7952 + $0x208] sm:$0xe]
        %v10806 = vld [vmem:[%s7952 + $0x20c] sm:$0xf]
        %v10807 = vld [vmem:[%s7952 + $0x210] sm:$0xf]
        %v10808 = vld [vmem:[%s7952 + $0x214] sm:$0xf]
        %v10809 = vld [vmem:[%s7952 + $0x218] sm:$0x1]
        %v10810 = vld [vmem:[%s7952 + $0x21c] sm:$0xe]
        %v10811 = vld [vmem:[%s7952 + $0x220] sm:$0xf]
        %v10812 = vld [vmem:[%s7952 + $0x224] sm:$0xf]
        %v10813 = vld [vmem:[%s7952 + $0x228] sm:$0xf]
        %v10814 = vld [vmem:[%s7952 + $0x22c] sm:$0x1]
        %v10815 = vld [vmem:[%s7952 + $0x230] sm:$0xe]
        %v10816 = vld [vmem:[%s7952 + $0x234] sm:$0xf]
        %v10817 = vld [vmem:[%s7952 + $0x238] sm:$0xf]
        %v10818 = vld [vmem:[%s7952 + $0x23c] sm:$0xf]
        %v10819 = vld [vmem:[%s7952 + $0x240] sm:$0x1]
        %v10820 = vld [vmem:[%s7952 + $0x244] sm:$0xe]
        %v10821 = vld [vmem:[%s7952 + $0x248] sm:$0xf]
        %v10822 = vld [vmem:[%s7952 + $0x24c] sm:$0xf]
        %v10823 = vld [vmem:[%s7952 + $0x250] sm:$0xf]
        %v10824 = vld [vmem:[%s7952 + $0x254] sm:$0x1]
        %v10825 = vld [vmem:[%s7952 + $0x258] sm:$0xe]
        %v10826 = vld [vmem:[%s7952 + $0x25c] sm:$0xf]
        %v10827 = vld [vmem:[%s7952 + $0x260] sm:$0xf]
        %v10828 = vld [vmem:[%s7952 + $0x264] sm:$0xf]
        %v10829 = vld [vmem:[%s7952 + $0x268] sm:$0x1]
        %v10830 = vld [vmem:[%s7952 + $0x26c] sm:$0xe]
        %v10831 = vld [vmem:[%s7952 + $0x270] sm:$0xf]
        %v10832 = vld [vmem:[%s7952 + $0x274] sm:$0xf]
        %v10833 = vld [vmem:[%s7952 + $0x278] sm:$0xf]
        %v10834 = vld [vmem:[%s7952 + $0x27c] sm:$0x1]
        %v10995 = vrot.slane %v10675, 5
        %v10996 = vrot.slane %v10995, 4
        %v10997 = vrot.slane %v10676, 5
        %v10998 = vsel %vm3172, %v10996, %v10997
        %v10999 = vrot.slane %v10997, 4
        %v11000 = vrot.slane %v10677, 5
        %v11001 = vsel %vm3172, %v10999, %v11000
        %v11002 = vrot.slane %v11000, 4
        %v11003 = vrot.slane %v10678, 5
        %v11004 = vsel %vm3172, %v11002, %v11003
        %v11005 = vrot.slane %v11003, 4
        %v11006 = vrot.slane %v10679, 5
        %v11007 = vsel %vm3172, %v11005, %v11006
        %v11008 = vrot.slane %v10680, 5
        %v11009 = vrot.slane %v11008, 4
        %v11010 = vrot.slane %v10681, 5
        %v11011 = vsel %vm3172, %v11009, %v11010
        %v11012 = vrot.slane %v11010, 4
        %v11013 = vrot.slane %v10682, 5
        %v11014 = vsel %vm3172, %v11012, %v11013
        %v11015 = vrot.slane %v11013, 4
        %v11016 = vrot.slane %v10683, 5
        %v11017 = vsel %vm3172, %v11015, %v11016
        %v11018 = vrot.slane %v11016, 4
        %v11019 = vrot.slane %v10684, 5
        %v11020 = vsel %vm3172, %v11018, %v11019
        %v11021 = vrot.slane %v10685, 5
        %v11022 = vrot.slane %v11021, 4
        %v11023 = vrot.slane %v10686, 5
        %v11024 = vsel %vm3172, %v11022, %v11023
        %v11025 = vrot.slane %v11023, 4
        %v11026 = vrot.slane %v10687, 5
        %v11027 = vsel %vm3172, %v11025, %v11026
        %v11028 = vrot.slane %v11026, 4
        %v11029 = vrot.slane %v10688, 5
        %v11030 = vsel %vm3172, %v11028, %v11029
        %v11031 = vrot.slane %v11029, 4
        %v11032 = vrot.slane %v10689, 5
        %v11033 = vsel %vm3172, %v11031, %v11032
        %v11034 = vrot.slane %v10690, 5
        %v11035 = vrot.slane %v11034, 4
        %v11036 = vrot.slane %v10691, 5
        %v11037 = vsel %vm3172, %v11035, %v11036
        %v11038 = vrot.slane %v11036, 4
        %v11039 = vrot.slane %v10692, 5
        %v11040 = vsel %vm3172, %v11038, %v11039
        %v11041 = vrot.slane %v11039, 4
        %v11042 = vrot.slane %v10693, 5
        %v11043 = vsel %vm3172, %v11041, %v11042
        %v11044 = vrot.slane %v11042, 4
        %v11045 = vrot.slane %v10694, 5
        %v11046 = vsel %vm3172, %v11044, %v11045
        %v11047 = vrot.slane %v10695, 5
        %v11048 = vrot.slane %v11047, 4
        %v11049 = vrot.slane %v10696, 5
        %v11050 = vsel %vm3172, %v11048, %v11049
        %v11051 = vrot.slane %v11049, 4
        %v11052 = vrot.slane %v10697, 5
        %v11053 = vsel %vm3172, %v11051, %v11052
        %v11054 = vrot.slane %v11052, 4
        %v11055 = vrot.slane %v10698, 5
        %v11056 = vsel %vm3172, %v11054, %v11055
        %v11057 = vrot.slane %v11055, 4
        %v11058 = vrot.slane %v10699, 5
        %v11059 = vsel %vm3172, %v11057, %v11058
        %v11060 = vrot.slane %v10700, 5
        %v11061 = vrot.slane %v11060, 4
        %v11062 = vrot.slane %v10701, 5
        %v11063 = vsel %vm3172, %v11061, %v11062
        %v11064 = vrot.slane %v11062, 4
        %v11065 = vrot.slane %v10702, 5
        %v11066 = vsel %vm3172, %v11064, %v11065
        %v11067 = vrot.slane %v11065, 4
        %v11068 = vrot.slane %v10703, 5
        %v11069 = vsel %vm3172, %v11067, %v11068
        %v11070 = vrot.slane %v11068, 4
        %v11071 = vrot.slane %v10704, 5
        %v11072 = vsel %vm3172, %v11070, %v11071
        %v11073 = vrot.slane %v10705, 5
        %v11074 = vrot.slane %v11073, 4
        %v11075 = vrot.slane %v10706, 5
        %v11076 = vsel %vm3172, %v11074, %v11075
        %v11077 = vrot.slane %v11075, 4
        %v11078 = vrot.slane %v10707, 5
        %v11079 = vsel %vm3172, %v11077, %v11078
        %v11080 = vrot.slane %v11078, 4
        %v11081 = vrot.slane %v10708, 5
        %v11082 = vsel %vm3172, %v11080, %v11081
        %v11083 = vrot.slane %v11081, 4
        %v11084 = vrot.slane %v10709, 5
        %v11085 = vsel %vm3172, %v11083, %v11084
        %v11086 = vrot.slane %v10710, 5
        %v11087 = vrot.slane %v11086, 4
        %v11088 = vrot.slane %v10711, 5
        %v11089 = vsel %vm3172, %v11087, %v11088
        %v11090 = vrot.slane %v11088, 4
        %v11091 = vrot.slane %v10712, 5
        %v11092 = vsel %vm3172, %v11090, %v11091
        %v11093 = vrot.slane %v11091, 4
        %v11094 = vrot.slane %v10713, 5
        %v11095 = vsel %vm3172, %v11093, %v11094
        %v11096 = vrot.slane %v11094, 4
        %v11097 = vrot.slane %v10714, 5
        %v11098 = vsel %vm3172, %v11096, %v11097
        %v11099 = vrot.slane %v10715, 5
        %v11100 = vrot.slane %v11099, 4
        %v11101 = vrot.slane %v10716, 5
        %v11102 = vsel %vm3172, %v11100, %v11101
        %v11103 = vrot.slane %v11101, 4
        %v11104 = vrot.slane %v10717, 5
        %v11105 = vsel %vm3172, %v11103, %v11104
        %v11106 = vrot.slane %v11104, 4
        %v11107 = vrot.slane %v10718, 5
        %v11108 = vsel %vm3172, %v11106, %v11107
        %v11109 = vrot.slane %v11107, 4
        %v11110 = vrot.slane %v10719, 5
        %v11111 = vsel %vm3172, %v11109, %v11110
        %v11112 = vrot.slane %v10720, 5
        %v11113 = vrot.slane %v11112, 4
        %v11114 = vrot.slane %v10721, 5
        %v11115 = vsel %vm3172, %v11113, %v11114
        %v11116 = vrot.slane %v11114, 4
        %v11117 = vrot.slane %v10722, 5
        %v11118 = vsel %vm3172, %v11116, %v11117
        %v11119 = vrot.slane %v11117, 4
        %v11120 = vrot.slane %v10723, 5
        %v11121 = vsel %vm3172, %v11119, %v11120
        %v11122 = vrot.slane %v11120, 4
        %v11123 = vrot.slane %v10724, 5
        %v11124 = vsel %vm3172, %v11122, %v11123
        %v11125 = vrot.slane %v10725, 5
        %v11126 = vrot.slane %v11125, 4
        %v11127 = vrot.slane %v10726, 5
        %v11128 = vsel %vm3172, %v11126, %v11127
        %v11129 = vrot.slane %v11127, 4
        %v11130 = vrot.slane %v10727, 5
        %v11131 = vsel %vm3172, %v11129, %v11130
        %v11132 = vrot.slane %v11130, 4
        %v11133 = vrot.slane %v10728, 5
        %v11134 = vsel %vm3172, %v11132, %v11133
        %v11135 = vrot.slane %v11133, 4
        %v11136 = vrot.slane %v10729, 5
        %v11137 = vsel %vm3172, %v11135, %v11136
        %v11138 = vrot.slane %v10730, 5
        %v11139 = vrot.slane %v11138, 4
        %v11140 = vrot.slane %v10731, 5
        %v11141 = vsel %vm3172, %v11139, %v11140
        %v11142 = vrot.slane %v11140, 4
        %v11143 = vrot.slane %v10732, 5
        %v11144 = vsel %vm3172, %v11142, %v11143
        %v11145 = vrot.slane %v11143, 4
        %v11146 = vrot.slane %v10733, 5
        %v11147 = vsel %vm3172, %v11145, %v11146
        %v11148 = vrot.slane %v11146, 4
        %v11149 = vrot.slane %v10734, 5
        %v11150 = vsel %vm3172, %v11148, %v11149
        %v11151 = vrot.slane %v10735, 5
        %v11152 = vrot.slane %v11151, 4
        %v11153 = vrot.slane %v10736, 5
        %v11154 = vsel %vm3172, %v11152, %v11153
        %v11155 = vrot.slane %v11153, 4
        %v11156 = vrot.slane %v10737, 5
        %v11157 = vsel %vm3172, %v11155, %v11156
        %v11158 = vrot.slane %v11156, 4
        %v11159 = vrot.slane %v10738, 5
        %v11160 = vsel %vm3172, %v11158, %v11159
        %v11161 = vrot.slane %v11159, 4
        %v11162 = vrot.slane %v10739, 5
        %v11163 = vsel %vm3172, %v11161, %v11162
        %v11164 = vrot.slane %v10740, 5
        %v11165 = vrot.slane %v11164, 4
        %v11166 = vrot.slane %v10741, 5
        %v11167 = vsel %vm3172, %v11165, %v11166
        %v11168 = vrot.slane %v11166, 4
        %v11169 = vrot.slane %v10742, 5
        %v11170 = vsel %vm3172, %v11168, %v11169
        %v11171 = vrot.slane %v11169, 4
        %v11172 = vrot.slane %v10743, 5
        %v11173 = vsel %vm3172, %v11171, %v11172
        %v11174 = vrot.slane %v11172, 4
        %v11175 = vrot.slane %v10744, 5
        %v11176 = vsel %vm3172, %v11174, %v11175
        %v11177 = vrot.slane %v10745, 5
        %v11178 = vrot.slane %v11177, 4
        %v11179 = vrot.slane %v10746, 5
        %v11180 = vsel %vm3172, %v11178, %v11179
        %v11181 = vrot.slane %v11179, 4
        %v11182 = vrot.slane %v10747, 5
        %v11183 = vsel %vm3172, %v11181, %v11182
        %v11184 = vrot.slane %v11182, 4
        %v11185 = vrot.slane %v10748, 5
        %v11186 = vsel %vm3172, %v11184, %v11185
        %v11187 = vrot.slane %v11185, 4
        %v11188 = vrot.slane %v10749, 5
        %v11189 = vsel %vm3172, %v11187, %v11188
        %v11190 = vrot.slane %v10750, 5
        %v11191 = vrot.slane %v11190, 4
        %v11192 = vrot.slane %v10751, 5
        %v11193 = vsel %vm3172, %v11191, %v11192
        %v11194 = vrot.slane %v11192, 4
        %v11195 = vrot.slane %v10752, 5
        %v11196 = vsel %vm3172, %v11194, %v11195
        %v11197 = vrot.slane %v11195, 4
        %v11198 = vrot.slane %v10753, 5
        %v11199 = vsel %vm3172, %v11197, %v11198
        %v11200 = vrot.slane %v11198, 4
        %v11201 = vrot.slane %v10754, 5
        %v11202 = vsel %vm3172, %v11200, %v11201
        %v11203 = vrot.slane %v10755, 5
        %v11204 = vrot.slane %v11203, 4
        %v11205 = vrot.slane %v10756, 5
        %v11206 = vsel %vm3172, %v11204, %v11205
        %v11207 = vrot.slane %v11205, 4
        %v11208 = vrot.slane %v10757, 5
        %v11209 = vsel %vm3172, %v11207, %v11208
        %v11210 = vrot.slane %v11208, 4
        %v11211 = vrot.slane %v10758, 5
        %v11212 = vsel %vm3172, %v11210, %v11211
        %v11213 = vrot.slane %v11211, 4
        %v11214 = vrot.slane %v10759, 5
        %v11215 = vsel %vm3172, %v11213, %v11214
        %v11216 = vrot.slane %v10760, 5
        %v11217 = vrot.slane %v11216, 4
        %v11218 = vrot.slane %v10761, 5
        %v11219 = vsel %vm3172, %v11217, %v11218
        %v11220 = vrot.slane %v11218, 4
        %v11221 = vrot.slane %v10762, 5
        %v11222 = vsel %vm3172, %v11220, %v11221
        %v11223 = vrot.slane %v11221, 4
        %v11224 = vrot.slane %v10763, 5
        %v11225 = vsel %vm3172, %v11223, %v11224
        %v11226 = vrot.slane %v11224, 4
        %v11227 = vrot.slane %v10764, 5
        %v11228 = vsel %vm3172, %v11226, %v11227
        %v11229 = vrot.slane %v10765, 5
        %v11230 = vrot.slane %v11229, 4
        %v11231 = vrot.slane %v10766, 5
        %v11232 = vsel %vm3172, %v11230, %v11231
        %v11233 = vrot.slane %v11231, 4
        %v11234 = vrot.slane %v10767, 5
        %v11235 = vsel %vm3172, %v11233, %v11234
        %v11236 = vrot.slane %v11234, 4
        %v11237 = vrot.slane %v10768, 5
        %v11238 = vsel %vm3172, %v11236, %v11237
        %v11239 = vrot.slane %v11237, 4
        %v11240 = vrot.slane %v10769, 5
        %v11241 = vsel %vm3172, %v11239, %v11240
        %v11242 = vrot.slane %v10770, 5
        %v11243 = vrot.slane %v11242, 4
        %v11244 = vrot.slane %v10771, 5
        %v11245 = vsel %vm3172, %v11243, %v11244
        %v11246 = vrot.slane %v11244, 4
        %v11247 = vrot.slane %v10772, 5
        %v11248 = vsel %vm3172, %v11246, %v11247
        %v11249 = vrot.slane %v11247, 4
        %v11250 = vrot.slane %v10773, 5
        %v11251 = vsel %vm3172, %v11249, %v11250
        %v11252 = vrot.slane %v11250, 4
        %v11253 = vrot.slane %v10774, 5
        %v11254 = vsel %vm3172, %v11252, %v11253
        %v11255 = vrot.slane %v10775, 5
        %v11256 = vrot.slane %v11255, 4
        %v11257 = vrot.slane %v10776, 5
        %v11258 = vsel %vm3172, %v11256, %v11257
        %v11259 = vrot.slane %v11257, 4
        %v11260 = vrot.slane %v10777, 5
        %v11261 = vsel %vm3172, %v11259, %v11260
        %v11262 = vrot.slane %v11260, 4
        %v11263 = vrot.slane %v10778, 5
        %v11264 = vsel %vm3172, %v11262, %v11263
        %v11265 = vrot.slane %v11263, 4
        %v11266 = vrot.slane %v10779, 5
        %v11267 = vsel %vm3172, %v11265, %v11266
        %v11268 = vrot.slane %v10780, 5
        %v11269 = vrot.slane %v11268, 4
        %v11270 = vrot.slane %v10781, 5
        %v11271 = vsel %vm3172, %v11269, %v11270
        %v11272 = vrot.slane %v11270, 4
        %v11273 = vrot.slane %v10782, 5
        %v11274 = vsel %vm3172, %v11272, %v11273
        %v11275 = vrot.slane %v11273, 4
        %v11276 = vrot.slane %v10783, 5
        %v11277 = vsel %vm3172, %v11275, %v11276
        %v11278 = vrot.slane %v11276, 4
        %v11279 = vrot.slane %v10784, 5
        %v11280 = vsel %vm3172, %v11278, %v11279
        %v11281 = vrot.slane %v10785, 5
        %v11282 = vrot.slane %v11281, 4
        %v11283 = vrot.slane %v10786, 5
        %v11284 = vsel %vm3172, %v11282, %v11283
        %v11285 = vrot.slane %v11283, 4
        %v11286 = vrot.slane %v10787, 5
        %v11287 = vsel %vm3172, %v11285, %v11286
        %v11288 = vrot.slane %v11286, 4
        %v11289 = vrot.slane %v10788, 5
        %v11290 = vsel %vm3172, %v11288, %v11289
        %v11291 = vrot.slane %v11289, 4
        %v11292 = vrot.slane %v10789, 5
        %v11293 = vsel %vm3172, %v11291, %v11292
        %v11294 = vrot.slane %v10790, 5
        %v11295 = vrot.slane %v11294, 4
        %v11296 = vrot.slane %v10791, 5
        %v11297 = vsel %vm3172, %v11295, %v11296
        %v11298 = vrot.slane %v11296, 4
        %v11299 = vrot.slane %v10792, 5
        %v11300 = vsel %vm3172, %v11298, %v11299
        %v11301 = vrot.slane %v11299, 4
        %v11302 = vrot.slane %v10793, 5
        %v11303 = vsel %vm3172, %v11301, %v11302
        %v11304 = vrot.slane %v11302, 4
        %v11305 = vrot.slane %v10794, 5
        %v11306 = vsel %vm3172, %v11304, %v11305
        %v11307 = vrot.slane %v10795, 5
        %v11308 = vrot.slane %v11307, 4
        %v11309 = vrot.slane %v10796, 5
        %v11310 = vsel %vm3172, %v11308, %v11309
        %v11311 = vrot.slane %v11309, 4
        %v11312 = vrot.slane %v10797, 5
        %v11313 = vsel %vm3172, %v11311, %v11312
        %v11314 = vrot.slane %v11312, 4
        %v11315 = vrot.slane %v10798, 5
        %v11316 = vsel %vm3172, %v11314, %v11315
        %v11317 = vrot.slane %v11315, 4
        %v11318 = vrot.slane %v10799, 5
        %v11319 = vsel %vm3172, %v11317, %v11318
        %v11320 = vrot.slane %v10800, 5
        %v11321 = vrot.slane %v11320, 4
        %v11322 = vrot.slane %v10801, 5
        %v11323 = vsel %vm3172, %v11321, %v11322
        %v11324 = vrot.slane %v11322, 4
        %v11325 = vrot.slane %v10802, 5
        %v11326 = vsel %vm3172, %v11324, %v11325
        %v11327 = vrot.slane %v11325, 4
        %v11328 = vrot.slane %v10803, 5
        %v11329 = vsel %vm3172, %v11327, %v11328
        %v11330 = vrot.slane %v11328, 4
        %v11331 = vrot.slane %v10804, 5
        %v11332 = vsel %vm3172, %v11330, %v11331
        %v11333 = vrot.slane %v10805, 5
        %v11334 = vrot.slane %v11333, 4
        %v11335 = vrot.slane %v10806, 5
        %v11336 = vsel %vm3172, %v11334, %v11335
        %v11337 = vrot.slane %v11335, 4
        %v11338 = vrot.slane %v10807, 5
        %v11339 = vsel %vm3172, %v11337, %v11338
        %v11340 = vrot.slane %v11338, 4
        %v11341 = vrot.slane %v10808, 5
        %v11342 = vsel %vm3172, %v11340, %v11341
        %v11343 = vrot.slane %v11341, 4
        %v11344 = vrot.slane %v10809, 5
        %v11345 = vsel %vm3172, %v11343, %v11344
        %v11346 = vrot.slane %v10810, 5
        %v11347 = vrot.slane %v11346, 4
        %v11348 = vrot.slane %v10811, 5
        %v11349 = vsel %vm3172, %v11347, %v11348
        %v11350 = vrot.slane %v11348, 4
        %v11351 = vrot.slane %v10812, 5
        %v11352 = vsel %vm3172, %v11350, %v11351
        %v11353 = vrot.slane %v11351, 4
        %v11354 = vrot.slane %v10813, 5
        %v11355 = vsel %vm3172, %v11353, %v11354
        %v11356 = vrot.slane %v11354, 4
        %v11357 = vrot.slane %v10814, 5
        %v11358 = vsel %vm3172, %v11356, %v11357
        %v11359 = vrot.slane %v10815, 5
        %v11360 = vrot.slane %v11359, 4
        %v11361 = vrot.slane %v10816, 5
        %v11362 = vsel %vm3172, %v11360, %v11361
        %v11363 = vrot.slane %v11361, 4
        %v11364 = vrot.slane %v10817, 5
        %v11365 = vsel %vm3172, %v11363, %v11364
        %v11366 = vrot.slane %v11364, 4
        %v11367 = vrot.slane %v10818, 5
        %v11368 = vsel %vm3172, %v11366, %v11367
        %v11369 = vrot.slane %v11367, 4
        %v11370 = vrot.slane %v10819, 5
        %v11371 = vsel %vm3172, %v11369, %v11370
        %v11372 = vrot.slane %v10820, 5
        %v11373 = vrot.slane %v11372, 4
        %v11374 = vrot.slane %v10821, 5
        %v11375 = vsel %vm3172, %v11373, %v11374
        %v11376 = vrot.slane %v11374, 4
        %v11377 = vrot.slane %v10822, 5
        %v11378 = vsel %vm3172, %v11376, %v11377
        %v11379 = vrot.slane %v11377, 4
        %v11380 = vrot.slane %v10823, 5
        %v11381 = vsel %vm3172, %v11379, %v11380
        %v11382 = vrot.slane %v11380, 4
        %v11383 = vrot.slane %v10824, 5
        %v11384 = vsel %vm3172, %v11382, %v11383
        %v11385 = vrot.slane %v10825, 5
        %v11386 = vrot.slane %v11385, 4
        %v11387 = vrot.slane %v10826, 5
        %v11388 = vsel %vm3172, %v11386, %v11387
        %v11389 = vrot.slane %v11387, 4
        %v11390 = vrot.slane %v10827, 5
        %v11391 = vsel %vm3172, %v11389, %v11390
        %v11392 = vrot.slane %v11390, 4
        %v11393 = vrot.slane %v10828, 5
        %v11394 = vsel %vm3172, %v11392, %v11393
        %v11395 = vrot.slane %v11393, 4
        %v11396 = vrot.slane %v10829, 5
        %v11397 = vsel %vm3172, %v11395, %v11396
        %v11398 = vrot.slane %v10830, 5
        %v11399 = vrot.slane %v11398, 4
        %v11400 = vrot.slane %v10831, 5
        %v11401 = vsel %vm3172, %v11399, %v11400
        %v11402 = vrot.slane %v11400, 4
        %v11403 = vrot.slane %v10832, 5
        %v11404 = vsel %vm3172, %v11402, %v11403
        %v11405 = vrot.slane %v11403, 4
        %v11406 = vrot.slane %v10833, 5
        %v11407 = vsel %vm3172, %v11405, %v11406
        %v11408 = vrot.slane %v11406, 4
        %v11409 = vrot.slane %v10834, 5
        %v11410 = vsel %vm3172, %v11408, %v11409
        %v11411 = vunpack.c.l.b16 %v10998
        %v11412 = vunpack.c.l.b16 %v11001
        %v11413 = vunpack.c.l.b16 %v11004
        %v11414 = vunpack.c.l.b16 %v11007
        %v11415 = vunpack.c.l.b16 %v11011
        %v11416 = vunpack.c.l.b16 %v11014
        %v11417 = vunpack.c.l.b16 %v11017
        %v11418 = vunpack.c.l.b16 %v11020
        %v11419 = vunpack.c.l.b16 %v11024
        %v11420 = vunpack.c.l.b16 %v11027
        %v11421 = vunpack.c.l.b16 %v11030
        %v11422 = vunpack.c.l.b16 %v11033
        %v11423 = vunpack.c.l.b16 %v11037
        %v11424 = vunpack.c.l.b16 %v11040
        %v11425 = vunpack.c.l.b16 %v11043
        %v11426 = vunpack.c.l.b16 %v11046
        %v11427 = vunpack.c.l.b16 %v11050
        %v11428 = vunpack.c.l.b16 %v11053
        %v11429 = vunpack.c.l.b16 %v11056
        %v11430 = vunpack.c.l.b16 %v11059
        %v11431 = vunpack.c.l.b16 %v11063
        %v11432 = vunpack.c.l.b16 %v11066
        %v11433 = vunpack.c.l.b16 %v11069
        %v11434 = vunpack.c.l.b16 %v11072
        %v11435 = vunpack.c.l.b16 %v11076
        %v11436 = vunpack.c.l.b16 %v11079
        %v11437 = vunpack.c.l.b16 %v11082
        %v11438 = vunpack.c.l.b16 %v11085
        %v11439 = vunpack.c.l.b16 %v11089
        %v11440 = vunpack.c.l.b16 %v11092
        %v11441 = vunpack.c.l.b16 %v11095
        %v11442 = vunpack.c.l.b16 %v11098
        %v11443 = vunpack.c.l.b16 %v11102
        %v11444 = vunpack.c.l.b16 %v11105
        %v11445 = vunpack.c.l.b16 %v11108
        %v11446 = vunpack.c.l.b16 %v11111
        %v11447 = vunpack.c.l.b16 %v11115
        %v11448 = vunpack.c.l.b16 %v11118
        %v11449 = vunpack.c.l.b16 %v11121
        %v11450 = vunpack.c.l.b16 %v11124
        %v11451 = vunpack.c.l.b16 %v11128
        %v11452 = vunpack.c.l.b16 %v11131
        %v11453 = vunpack.c.l.b16 %v11134
        %v11454 = vunpack.c.l.b16 %v11137
        %v11455 = vunpack.c.l.b16 %v11141
        %v11456 = vunpack.c.l.b16 %v11144
        %v11457 = vunpack.c.l.b16 %v11147
        %v11458 = vunpack.c.l.b16 %v11150
        %v11459 = vunpack.c.l.b16 %v11154
        %v11460 = vunpack.c.l.b16 %v11157
        %v11461 = vunpack.c.l.b16 %v11160
        %v11462 = vunpack.c.l.b16 %v11163
        %v11463 = vunpack.c.l.b16 %v11167
        %v11464 = vunpack.c.l.b16 %v11170
        %v11465 = vunpack.c.l.b16 %v11173
        %v11466 = vunpack.c.l.b16 %v11176
        %v11467 = vunpack.c.l.b16 %v11180
        %v11468 = vunpack.c.l.b16 %v11183
        %v11469 = vunpack.c.l.b16 %v11186
        %v11470 = vunpack.c.l.b16 %v11189
        %v11471 = vunpack.c.l.b16 %v11193
        %v11472 = vunpack.c.l.b16 %v11196
        %v11473 = vunpack.c.l.b16 %v11199
        %v11474 = vunpack.c.l.b16 %v11202
        %v11475 = vunpack.c.l.b16 %v11206
        %v11476 = vunpack.c.l.b16 %v11209
        %v11477 = vunpack.c.l.b16 %v11212
        %v11478 = vunpack.c.l.b16 %v11215
        %v11479 = vunpack.c.l.b16 %v11219
        %v11480 = vunpack.c.l.b16 %v11222
        %v11481 = vunpack.c.l.b16 %v11225
        %v11482 = vunpack.c.l.b16 %v11228
        %v11483 = vunpack.c.l.b16 %v11232
        %v11484 = vunpack.c.l.b16 %v11235
        %v11485 = vunpack.c.l.b16 %v11238
        %v11486 = vunpack.c.l.b16 %v11241
        %v11487 = vunpack.c.l.b16 %v11245
        %v11488 = vunpack.c.l.b16 %v11248
        %v11489 = vunpack.c.l.b16 %v11251
        %v11490 = vunpack.c.l.b16 %v11254
        %v11491 = vunpack.c.l.b16 %v11258
        %v11492 = vunpack.c.l.b16 %v11261
        %v11493 = vunpack.c.l.b16 %v11264
        %v11494 = vunpack.c.l.b16 %v11267
        %v11495 = vunpack.c.l.b16 %v11271
        %v11496 = vunpack.c.l.b16 %v11274
        %v11497 = vunpack.c.l.b16 %v11277
        %v11498 = vunpack.c.l.b16 %v11280
        %v11499 = vunpack.c.l.b16 %v11284
        %v11500 = vunpack.c.l.b16 %v11287
        %v11501 = vunpack.c.l.b16 %v11290
        %v11502 = vunpack.c.l.b16 %v11293
        %v11503 = vunpack.c.l.b16 %v11297
        %v11504 = vunpack.c.l.b16 %v11300
        %v11505 = vunpack.c.l.b16 %v11303
        %v11506 = vunpack.c.l.b16 %v11306
        %v11507 = vunpack.c.l.b16 %v11310
        %v11508 = vunpack.c.l.b16 %v11313
        %v11509 = vunpack.c.l.b16 %v11316
        %v11510 = vunpack.c.l.b16 %v11319
        %v11511 = vunpack.c.l.b16 %v11323
        %v11512 = vunpack.c.l.b16 %v11326
        %v11513 = vunpack.c.l.b16 %v11329
        %v11514 = vunpack.c.l.b16 %v11332
        %v11515 = vunpack.c.l.b16 %v11336
        %v11516 = vunpack.c.l.b16 %v11339
        %v11517 = vunpack.c.l.b16 %v11342
        %v11518 = vunpack.c.l.b16 %v11345
        %v11519 = vunpack.c.l.b16 %v11349
        %v11520 = vunpack.c.l.b16 %v11352
        %v11521 = vunpack.c.l.b16 %v11355
        %v11522 = vunpack.c.l.b16 %v11358
        %v11523 = vunpack.c.l.b16 %v11362
        %v11524 = vunpack.c.l.b16 %v11365
        %v11525 = vunpack.c.l.b16 %v11368
        %v11526 = vunpack.c.l.b16 %v11371
        %v11527 = vunpack.c.l.b16 %v11375
        %v11528 = vunpack.c.l.b16 %v11378
        %v11529 = vunpack.c.l.b16 %v11381
        %v11530 = vunpack.c.l.b16 %v11384
        %v11531 = vunpack.c.l.b16 %v11388
        %v11532 = vunpack.c.l.b16 %v11391
        %v11533 = vunpack.c.l.b16 %v11394
        %v11534 = vunpack.c.l.b16 %v11397
        %v11535 = vunpack.c.l.b16 %v11401
        %v11536 = vunpack.c.l.b16 %v11404
        %v11537 = vunpack.c.l.b16 %v11407
        %v11538 = vunpack.c.l.b16 %v11410
        %v11539 = vpack.c.b16 %v11412, %v11411
        %v11540 = vpack.c.b16 %v11414, %v11413
        %v11541 = vpack.c.b16 %v11416, %v11415
        %v11542 = vpack.c.b16 %v11418, %v11417
        %v11543 = vpack.c.b16 %v11420, %v11419
        %v11544 = vpack.c.b16 %v11422, %v11421
        %v11545 = vpack.c.b16 %v11424, %v11423
        %v11546 = vpack.c.b16 %v11426, %v11425
        %v11547 = vpack.c.b16 %v11428, %v11427
        %v11548 = vpack.c.b16 %v11430, %v11429
        %v11549 = vpack.c.b16 %v11432, %v11431
        %v11550 = vpack.c.b16 %v11434, %v11433
        %v11551 = vpack.c.b16 %v11436, %v11435
        %v11552 = vpack.c.b16 %v11438, %v11437
        %v11553 = vpack.c.b16 %v11440, %v11439
        %v11554 = vpack.c.b16 %v11442, %v11441
        %v11555 = vpack.c.b16 %v11444, %v11443
        %v11556 = vpack.c.b16 %v11446, %v11445
        %v11557 = vpack.c.b16 %v11448, %v11447
        %v11558 = vpack.c.b16 %v11450, %v11449
        %v11559 = vpack.c.b16 %v11452, %v11451
        %v11560 = vpack.c.b16 %v11454, %v11453
        %v11561 = vpack.c.b16 %v11456, %v11455
        %v11562 = vpack.c.b16 %v11458, %v11457
        %v11563 = vpack.c.b16 %v11460, %v11459
        %v11564 = vpack.c.b16 %v11462, %v11461
        %v11565 = vpack.c.b16 %v11464, %v11463
        %v11566 = vpack.c.b16 %v11466, %v11465
        %v11567 = vpack.c.b16 %v11468, %v11467
        %v11568 = vpack.c.b16 %v11470, %v11469
        %v11569 = vpack.c.b16 %v11472, %v11471
        %v11570 = vpack.c.b16 %v11474, %v11473
        %v11571 = vpack.c.b16 %v11476, %v11475
        %v11572 = vpack.c.b16 %v11478, %v11477
        %v11573 = vpack.c.b16 %v11480, %v11479
        %v11574 = vpack.c.b16 %v11482, %v11481
        %v11575 = vpack.c.b16 %v11484, %v11483
        %v11576 = vpack.c.b16 %v11486, %v11485
        %v11577 = vpack.c.b16 %v11488, %v11487
        %v11578 = vpack.c.b16 %v11490, %v11489
        %v11579 = vpack.c.b16 %v11492, %v11491
        %v11580 = vpack.c.b16 %v11494, %v11493
        %v11581 = vpack.c.b16 %v11496, %v11495
        %v11582 = vpack.c.b16 %v11498, %v11497
        %v11583 = vpack.c.b16 %v11500, %v11499
        %v11584 = vpack.c.b16 %v11502, %v11501
        %v11585 = vpack.c.b16 %v11504, %v11503
        %v11586 = vpack.c.b16 %v11506, %v11505
        %v11587 = vpack.c.b16 %v11508, %v11507
        %v11588 = vpack.c.b16 %v11510, %v11509
        %v11589 = vpack.c.b16 %v11512, %v11511
        %v11590 = vpack.c.b16 %v11514, %v11513
        %v11591 = vpack.c.b16 %v11516, %v11515
        %v11592 = vpack.c.b16 %v11518, %v11517
        %v11593 = vpack.c.b16 %v11520, %v11519
        %v11594 = vpack.c.b16 %v11522, %v11521
        %v11595 = vpack.c.b16 %v11524, %v11523
        %v11596 = vpack.c.b16 %v11526, %v11525
        %v11597 = vpack.c.b16 %v11528, %v11527
        %v11598 = vpack.c.b16 %v11530, %v11529
        %v11599 = vpack.c.b16 %v11532, %v11531
        %v11600 = vpack.c.b16 %v11534, %v11533
        %v11601 = vpack.c.b16 %v11536, %v11535
        %v11602 = vpack.c.b16 %v11538, %v11537
        %11603 = vrot.lane.b32.xlu0 %v11539, 32
        %v11604 = vpop.permute.xlu0 %11603
        %11605 = vrot.lane.b32.xlu0 %v11540, 32
        %v11606 = vpop.permute.xlu0 %11605
        %11607 = vrot.lane.b32.xlu0 %v11541, 32
        %v11608 = vpop.permute.xlu0 %11607
        %11609 = vrot.lane.b32.xlu0 %v11542, 32
        %v11610 = vpop.permute.xlu0 %11609
        %11611 = vrot.lane.b32.xlu0 %v11543, 32
        %v11612 = vpop.permute.xlu0 %11611
        %11613 = vrot.lane.b32.xlu0 %v11544, 32
        %v11614 = vpop.permute.xlu0 %11613
        %11615 = vrot.lane.b32.xlu0 %v11545, 32
        %v11616 = vpop.permute.xlu0 %11615
        %11617 = vrot.lane.b32.xlu0 %v11546, 32
        %v11618 = vpop.permute.xlu0 %11617
        %11619 = vrot.lane.b32.xlu0 %v11547, 32
        %v11620 = vpop.permute.xlu0 %11619
        %11621 = vrot.lane.b32.xlu0 %v11548, 32
        %v11622 = vpop.permute.xlu0 %11621
        %11623 = vrot.lane.b32.xlu0 %v11549, 32
        %v11624 = vpop.permute.xlu0 %11623
        %11625 = vrot.lane.b32.xlu0 %v11550, 32
        %v11626 = vpop.permute.xlu0 %11625
        %11627 = vrot.lane.b32.xlu0 %v11551, 32
        %v11628 = vpop.permute.xlu0 %11627
        %11629 = vrot.lane.b32.xlu0 %v11552, 32
        %v11630 = vpop.permute.xlu0 %11629
        %11631 = vrot.lane.b32.xlu0 %v11553, 32
        %v11632 = vpop.permute.xlu0 %11631
        %11633 = vrot.lane.b32.xlu0 %v11554, 32
        %v11634 = vpop.permute.xlu0 %11633
        %11635 = vrot.lane.b32.xlu0 %v11555, 32
        %v11636 = vpop.permute.xlu0 %11635
        %11637 = vrot.lane.b32.xlu0 %v11556, 32
        %v11638 = vpop.permute.xlu0 %11637
        %11639 = vrot.lane.b32.xlu0 %v11557, 32
        %v11640 = vpop.permute.xlu0 %11639
        %11641 = vrot.lane.b32.xlu0 %v11558, 32
        %v11642 = vpop.permute.xlu0 %11641
        %11643 = vrot.lane.b32.xlu0 %v11559, 32
        %v11644 = vpop.permute.xlu0 %11643
        %11645 = vrot.lane.b32.xlu0 %v11560, 32
        %v11646 = vpop.permute.xlu0 %11645
        %11647 = vrot.lane.b32.xlu0 %v11561, 32
        %v11648 = vpop.permute.xlu0 %11647
        %11649 = vrot.lane.b32.xlu0 %v11562, 32
        %v11650 = vpop.permute.xlu0 %11649
        %11651 = vrot.lane.b32.xlu0 %v11563, 32
        %v11652 = vpop.permute.xlu0 %11651
        %11653 = vrot.lane.b32.xlu0 %v11564, 32
        %v11654 = vpop.permute.xlu0 %11653
        %11655 = vrot.lane.b32.xlu0 %v11565, 32
        %v11656 = vpop.permute.xlu0 %11655
        %11657 = vrot.lane.b32.xlu0 %v11566, 32
        %v11658 = vpop.permute.xlu0 %11657
        %11659 = vrot.lane.b32.xlu0 %v11567, 32
        %v11660 = vpop.permute.xlu0 %11659
        %11661 = vrot.lane.b32.xlu0 %v11568, 32
        %v11662 = vpop.permute.xlu0 %11661
        %11663 = vrot.lane.b32.xlu0 %v11569, 32
        %v11664 = vpop.permute.xlu0 %11663
        %11665 = vrot.lane.b32.xlu0 %v11570, 32
        %v11666 = vpop.permute.xlu0 %11665
        %11667 = vrot.lane.b32.xlu0 %v11571, 32
        %v11668 = vpop.permute.xlu0 %11667
        %11669 = vrot.lane.b32.xlu0 %v11572, 32
        %v11670 = vpop.permute.xlu0 %11669
        %11671 = vrot.lane.b32.xlu0 %v11573, 32
        %v11672 = vpop.permute.xlu0 %11671
        %11673 = vrot.lane.b32.xlu0 %v11574, 32
        %v11674 = vpop.permute.xlu0 %11673
        %11675 = vrot.lane.b32.xlu0 %v11575, 32
        %v11676 = vpop.permute.xlu0 %11675
        %11677 = vrot.lane.b32.xlu0 %v11576, 32
        %v11678 = vpop.permute.xlu0 %11677
        %11679 = vrot.lane.b32.xlu0 %v11577, 32
        %v11680 = vpop.permute.xlu0 %11679
        %11681 = vrot.lane.b32.xlu0 %v11578, 32
        %v11682 = vpop.permute.xlu0 %11681
        %11683 = vrot.lane.b32.xlu0 %v11579, 32
        %v11684 = vpop.permute.xlu0 %11683
        %11685 = vrot.lane.b32.xlu0 %v11580, 32
        %v11686 = vpop.permute.xlu0 %11685
        %11687 = vrot.lane.b32.xlu0 %v11581, 32
        %v11688 = vpop.permute.xlu0 %11687
        %11689 = vrot.lane.b32.xlu0 %v11582, 32
        %v11690 = vpop.permute.xlu0 %11689
        %11691 = vrot.lane.b32.xlu0 %v11583, 32
        %v11692 = vpop.permute.xlu0 %11691
        %11693 = vrot.lane.b32.xlu0 %v11584, 32
        %v11694 = vpop.permute.xlu0 %11693
        %11695 = vrot.lane.b32.xlu0 %v11585, 32
        %v11696 = vpop.permute.xlu0 %11695
        %11697 = vrot.lane.b32.xlu0 %v11586, 32
        %v11698 = vpop.permute.xlu0 %11697
        %11699 = vrot.lane.b32.xlu0 %v11587, 32
        %v11700 = vpop.permute.xlu0 %11699
        %11701 = vrot.lane.b32.xlu0 %v11588, 32
        %v11702 = vpop.permute.xlu0 %11701
        %11703 = vrot.lane.b32.xlu0 %v11589, 32
        %v11704 = vpop.permute.xlu0 %11703
        %11705 = vrot.lane.b32.xlu0 %v11590, 32
        %v11706 = vpop.permute.xlu0 %11705
        %11707 = vrot.lane.b32.xlu0 %v11591, 32
        %v11708 = vpop.permute.xlu0 %11707
        %11709 = vrot.lane.b32.xlu0 %v11592, 32
        %v11710 = vpop.permute.xlu0 %11709
        %11711 = vrot.lane.b32.xlu0 %v11593, 32
        %v11712 = vpop.permute.xlu0 %11711
        %11713 = vrot.lane.b32.xlu0 %v11594, 32
        %v11714 = vpop.permute.xlu0 %11713
        %11715 = vrot.lane.b32.xlu0 %v11595, 32
        %v11716 = vpop.permute.xlu0 %11715
        %11717 = vrot.lane.b32.xlu0 %v11596, 32
        %v11718 = vpop.permute.xlu0 %11717
        %11719 = vrot.lane.b32.xlu0 %v11597, 32
        %v11720 = vpop.permute.xlu0 %11719
        %11721 = vrot.lane.b32.xlu0 %v11598, 32
        %v11722 = vpop.permute.xlu0 %11721
        %11723 = vrot.lane.b32.xlu0 %v11599, 32
        %v11724 = vpop.permute.xlu0 %11723
        %11725 = vrot.lane.b32.xlu0 %v11600, 32
        %v11726 = vpop.permute.xlu0 %11725
        %11727 = vrot.lane.b32.xlu0 %v11601, 32
        %v11728 = vpop.permute.xlu0 %11727
        %11729 = vrot.lane.b32.xlu0 %v11602, 32
        %v11730 = vpop.permute.xlu0 %11729
        %vm11795 = vcmask 294144
        %11796 = vst.msk [vmem:[#allocation2] sm:$0xff] %vm11795, %v11604
        %11797 = vst.msk [vmem:[#allocation2 + $0x8] sm:$0xff] %vm11795, %v11606
        %11798 = vst.msk [vmem:[#allocation2 + $0x10] sm:$0xff] %vm11795, %v11608
        %11799 = vst.msk [vmem:[#allocation2 + $0x18] sm:$0xff] %vm11795, %v11610
        %11800 = vst.msk [vmem:[#allocation2 + $0x20] sm:$0xff] %vm11795, %v11612
        %11801 = vst.msk [vmem:[#allocation2 + $0x28] sm:$0xff] %vm11795, %v11614
        %11802 = vst.msk [vmem:[#allocation2 + $0x30] sm:$0xff] %vm11795, %v11616
        %11803 = vst.msk [vmem:[#allocation2 + $0x38] sm:$0xff] %vm11795, %v11618
        %11804 = vst.msk [vmem:[#allocation2 + $0x40] sm:$0xff] %vm11795, %v11620
        %11805 = vst.msk [vmem:[#allocation2 + $0x48] sm:$0xff] %vm11795, %v11622
        %11806 = vst.msk [vmem:[#allocation2 + $0x50] sm:$0xff] %vm11795, %v11624
        %11807 = vst.msk [vmem:[#allocation2 + $0x58] sm:$0xff] %vm11795, %v11626
        %11808 = vst.msk [vmem:[#allocation2 + $0x60] sm:$0xff] %vm11795, %v11628
        %11809 = vst.msk [vmem:[#allocation2 + $0x68] sm:$0xff] %vm11795, %v11630
        %11810 = vst.msk [vmem:[#allocation2 + $0x70] sm:$0xff] %vm11795, %v11632
        %11811 = vst.msk [vmem:[#allocation2 + $0x78] sm:$0xff] %vm11795, %v11634
        %11812 = vst.msk [vmem:[#allocation2 + $0x80] sm:$0xff] %vm11795, %v11636
        %11813 = vst.msk [vmem:[#allocation2 + $0x88] sm:$0xff] %vm11795, %v11638
        %11814 = vst.msk [vmem:[#allocation2 + $0x90] sm:$0xff] %vm11795, %v11640
        %11815 = vst.msk [vmem:[#allocation2 + $0x98] sm:$0xff] %vm11795, %v11642
        %11816 = vst.msk [vmem:[#allocation2 + $0xa0] sm:$0xff] %vm11795, %v11644
        %11817 = vst.msk [vmem:[#allocation2 + $0xa8] sm:$0xff] %vm11795, %v11646
        %11818 = vst.msk [vmem:[#allocation2 + $0xb0] sm:$0xff] %vm11795, %v11648
        %11819 = vst.msk [vmem:[#allocation2 + $0xb8] sm:$0xff] %vm11795, %v11650
        %11820 = vst.msk [vmem:[#allocation2 + $0xc0] sm:$0xff] %vm11795, %v11652
        %11821 = vst.msk [vmem:[#allocation2 + $0xc8] sm:$0xff] %vm11795, %v11654
        %11822 = vst.msk [vmem:[#allocation2 + $0xd0] sm:$0xff] %vm11795, %v11656
        %11823 = vst.msk [vmem:[#allocation2 + $0xd8] sm:$0xff] %vm11795, %v11658
        %11824 = vst.msk [vmem:[#allocation2 + $0xe0] sm:$0xff] %vm11795, %v11660
        %11825 = vst.msk [vmem:[#allocation2 + $0xe8] sm:$0xff] %vm11795, %v11662
        %11826 = vst.msk [vmem:[#allocation2 + $0xf0] sm:$0xff] %vm11795, %v11664
        %11827 = vst.msk [vmem:[#allocation2 + $0xf8] sm:$0xff] %vm11795, %v11666
        %11828 = vst.msk [vmem:[#allocation2 + $0x100] sm:$0xff] %vm11795, %v11668
        %11829 = vst.msk [vmem:[#allocation2 + $0x108] sm:$0xff] %vm11795, %v11670
        %11830 = vst.msk [vmem:[#allocation2 + $0x110] sm:$0xff] %vm11795, %v11672
        %11831 = vst.msk [vmem:[#allocation2 + $0x118] sm:$0xff] %vm11795, %v11674
        %11832 = vst.msk [vmem:[#allocation2 + $0x120] sm:$0xff] %vm11795, %v11676
        %11833 = vst.msk [vmem:[#allocation2 + $0x128] sm:$0xff] %vm11795, %v11678
        %11834 = vst.msk [vmem:[#allocation2 + $0x130] sm:$0xff] %vm11795, %v11680
        %11835 = vst.msk [vmem:[#allocation2 + $0x138] sm:$0xff] %vm11795, %v11682
        %11836 = vst.msk [vmem:[#allocation2 + $0x140] sm:$0xff] %vm11795, %v11684
        %11837 = vst.msk [vmem:[#allocation2 + $0x148] sm:$0xff] %vm11795, %v11686
        %11838 = vst.msk [vmem:[#allocation2 + $0x150] sm:$0xff] %vm11795, %v11688
        %11839 = vst.msk [vmem:[#allocation2 + $0x158] sm:$0xff] %vm11795, %v11690
        %11840 = vst.msk [vmem:[#allocation2 + $0x160] sm:$0xff] %vm11795, %v11692
        %11841 = vst.msk [vmem:[#allocation2 + $0x168] sm:$0xff] %vm11795, %v11694
        %11842 = vst.msk [vmem:[#allocation2 + $0x170] sm:$0xff] %vm11795, %v11696
        %11843 = vst.msk [vmem:[#allocation2 + $0x178] sm:$0xff] %vm11795, %v11698
        %11844 = vst.msk [vmem:[#allocation2 + $0x180] sm:$0xff] %vm11795, %v11700
        %11845 = vst.msk [vmem:[#allocation2 + $0x188] sm:$0xff] %vm11795, %v11702
        %11846 = vst.msk [vmem:[#allocation2 + $0x190] sm:$0xff] %vm11795, %v11704
        %11847 = vst.msk [vmem:[#allocation2 + $0x198] sm:$0xff] %vm11795, %v11706
        %11848 = vst.msk [vmem:[#allocation2 + $0x1a0] sm:$0xff] %vm11795, %v11708
        %11849 = vst.msk [vmem:[#allocation2 + $0x1a8] sm:$0xff] %vm11795, %v11710
        %11850 = vst.msk [vmem:[#allocation2 + $0x1b0] sm:$0xff] %vm11795, %v11712
        %11851 = vst.msk [vmem:[#allocation2 + $0x1b8] sm:$0xff] %vm11795, %v11714
        %11852 = vst.msk [vmem:[#allocation2 + $0x1c0] sm:$0xff] %vm11795, %v11716
        %11853 = vst.msk [vmem:[#allocation2 + $0x1c8] sm:$0xff] %vm11795, %v11718
        %11854 = vst.msk [vmem:[#allocation2 + $0x1d0] sm:$0xff] %vm11795, %v11720
        %11855 = vst.msk [vmem:[#allocation2 + $0x1d8] sm:$0xff] %vm11795, %v11722
        %11856 = vst.msk [vmem:[#allocation2 + $0x1e0] sm:$0xff] %vm11795, %v11724
        %11857 = vst.msk [vmem:[#allocation2 + $0x1e8] sm:$0xff] %vm11795, %v11726
        %11858 = vst.msk [vmem:[#allocation2 + $0x1f0] sm:$0xff] %vm11795, %v11728
        %11859 = vst.msk [vmem:[#allocation2 + $0x1f8] sm:$0xff] %vm11795, %v11730
        %v11860 = vld [vmem:[%s1] sm:$0xf]
        %v11861 = vld [vmem:[#allocation2] sm:$0xff]
        %v11862 = vld [vmem:[#allocation2 + $0x8] sm:$0xff]
        %v11863 = vld [vmem:[#allocation2 + $0x10] sm:$0xff]
        %v11864 = vld [vmem:[#allocation2 + $0x18] sm:$0xff]
        %v11865 = vld [vmem:[#allocation2 + $0x20] sm:$0xff]
        %v11866 = vld [vmem:[#allocation2 + $0x28] sm:$0xff]
        %v11867 = vld [vmem:[#allocation2 + $0x30] sm:$0xff]
        %v11868 = vld [vmem:[#allocation2 + $0x38] sm:$0xff]
        %v11869 = vld [vmem:[#allocation2 + $0x40] sm:$0xff]
        %v11870 = vld [vmem:[#allocation2 + $0x48] sm:$0xff]
        %v11871 = vld [vmem:[#allocation2 + $0x50] sm:$0xff]
        %v11872 = vld [vmem:[#allocation2 + $0x58] sm:$0xff]
        %v11873 = vld [vmem:[#allocation2 + $0x60] sm:$0xff]
        %v11874 = vld [vmem:[#allocation2 + $0x68] sm:$0xff]
        %v11875 = vld [vmem:[#allocation2 + $0x70] sm:$0xff]
        %v11876 = vld [vmem:[#allocation2 + $0x78] sm:$0xff]
        %v11877 = vld [vmem:[#allocation2 + $0x80] sm:$0xff]
        %v11878 = vld [vmem:[#allocation2 + $0x88] sm:$0xff]
        %v11879 = vld [vmem:[#allocation2 + $0x90] sm:$0xff]
        %v11880 = vld [vmem:[#allocation2 + $0x98] sm:$0xff]
        %v11881 = vld [vmem:[#allocation2 + $0xa0] sm:$0xff]
        %v11882 = vld [vmem:[#allocation2 + $0xa8] sm:$0xff]
        %v11883 = vld [vmem:[#allocation2 + $0xb0] sm:$0xff]
        %v11884 = vld [vmem:[#allocation2 + $0xb8] sm:$0xff]
        %v11885 = vld [vmem:[#allocation2 + $0xc0] sm:$0xff]
        %v11886 = vld [vmem:[#allocation2 + $0xc8] sm:$0xff]
        %v11887 = vld [vmem:[#allocation2 + $0xd0] sm:$0xff]
        %v11888 = vld [vmem:[#allocation2 + $0xd8] sm:$0xff]
        %v11889 = vld [vmem:[#allocation2 + $0xe0] sm:$0xff]
        %v11890 = vld [vmem:[#allocation2 + $0xe8] sm:$0xff]
        %v11891 = vld [vmem:[#allocation2 + $0xf0] sm:$0xff]
        %v11892 = vld [vmem:[#allocation2 + $0xf8] sm:$0xff]
        %v11893 = vld [vmem:[#allocation2 + $0x100] sm:$0xff]
        %v11894 = vld [vmem:[#allocation2 + $0x108] sm:$0xff]
        %v11895 = vld [vmem:[#allocation2 + $0x110] sm:$0xff]
        %v11896 = vld [vmem:[#allocation2 + $0x118] sm:$0xff]
        %v11897 = vld [vmem:[#allocation2 + $0x120] sm:$0xff]
        %v11898 = vld [vmem:[#allocation2 + $0x128] sm:$0xff]
        %v11899 = vld [vmem:[#allocation2 + $0x130] sm:$0xff]
        %v11900 = vld [vmem:[#allocation2 + $0x138] sm:$0xff]
        %v11901 = vld [vmem:[#allocation2 + $0x140] sm:$0xff]
        %v11902 = vld [vmem:[#allocation2 + $0x148] sm:$0xff]
        %v11903 = vld [vmem:[#allocation2 + $0x150] sm:$0xff]
        %v11904 = vld [vmem:[#allocation2 + $0x158] sm:$0xff]
        %v11905 = vld [vmem:[#allocation2 + $0x160] sm:$0xff]
        %v11906 = vld [vmem:[#allocation2 + $0x168] sm:$0xff]
        %v11907 = vld [vmem:[#allocation2 + $0x170] sm:$0xff]
        %v11908 = vld [vmem:[#allocation2 + $0x178] sm:$0xff]
        %v11909 = vld [vmem:[#allocation2 + $0x180] sm:$0xff]
        %v11910 = vld [vmem:[#allocation2 + $0x188] sm:$0xff]
        %v11911 = vld [vmem:[#allocation2 + $0x190] sm:$0xff]
        %v11912 = vld [vmem:[#allocation2 + $0x198] sm:$0xff]
        %v11913 = vld [vmem:[#allocation2 + $0x1a0] sm:$0xff]
        %v11914 = vld [vmem:[#allocation2 + $0x1a8] sm:$0xff]
        %v11915 = vld [vmem:[#allocation2 + $0x1b0] sm:$0xff]
        %v11916 = vld [vmem:[#allocation2 + $0x1b8] sm:$0xff]
        %v11917 = vld [vmem:[#allocation2 + $0x1c0] sm:$0xff]
        %v11918 = vld [vmem:[#allocation2 + $0x1c8] sm:$0xff]
        %v11919 = vld [vmem:[#allocation2 + $0x1d0] sm:$0xff]
        %v11920 = vld [vmem:[#allocation2 + $0x1d8] sm:$0xff]
        %v11921 = vld [vmem:[#allocation2 + $0x1e0] sm:$0xff]
        %v11922 = vld [vmem:[#allocation2 + $0x1e8] sm:$0xff]
        %v11923 = vld [vmem:[#allocation2 + $0x1f0] sm:$0xff]
        %v11924 = vld [vmem:[#allocation2 + $0x1f8] sm:$0xff]
        %vm11925 = vcmask 293888
        %v11927 = vsel %vm11925, %v11860, 0
        %v11930 = vsel %vm11925, %v11861, 0
        %v11933 = vsel %vm11925, %v11862, 0
        %v11936 = vsel %vm11925, %v11863, 0
        %v11939 = vsel %vm11925, %v11864, 0
        %v11942 = vsel %vm11925, %v11865, 0
        %v11945 = vsel %vm11925, %v11866, 0
        %v11948 = vsel %vm11925, %v11867, 0
        %v11951 = vsel %vm11925, %v11868, 0
        %v11954 = vsel %vm11925, %v11869, 0
        %v11957 = vsel %vm11925, %v11870, 0
        %v11960 = vsel %vm11925, %v11871, 0
        %v11963 = vsel %vm11925, %v11872, 0
        %v11966 = vsel %vm11925, %v11873, 0
        %v11969 = vsel %vm11925, %v11874, 0
        %v11972 = vsel %vm11925, %v11875, 0
        %v11975 = vsel %vm11925, %v11876, 0
        %v11978 = vsel %vm11925, %v11877, 0
        %v11981 = vsel %vm11925, %v11878, 0
        %v11984 = vsel %vm11925, %v11879, 0
        %v11987 = vsel %vm11925, %v11880, 0
        %v11990 = vsel %vm11925, %v11881, 0
        %v11993 = vsel %vm11925, %v11882, 0
        %v11996 = vsel %vm11925, %v11883, 0
        %v11999 = vsel %vm11925, %v11884, 0
        %v12002 = vsel %vm11925, %v11885, 0
        %v12005 = vsel %vm11925, %v11886, 0
        %v12008 = vsel %vm11925, %v11887, 0
        %v12011 = vsel %vm11925, %v11888, 0
        %v12014 = vsel %vm11925, %v11889, 0
        %v12017 = vsel %vm11925, %v11890, 0
        %v12020 = vsel %vm11925, %v11891, 0
        %v12023 = vsel %vm11925, %v11892, 0
        %v12026 = vsel %vm11925, %v11893, 0
        %v12029 = vsel %vm11925, %v11894, 0
        %v12032 = vsel %vm11925, %v11895, 0
        %v12035 = vsel %vm11925, %v11896, 0
        %v12038 = vsel %vm11925, %v11897, 0
        %v12041 = vsel %vm11925, %v11898, 0
        %v12044 = vsel %vm11925, %v11899, 0
        %v12047 = vsel %vm11925, %v11900, 0
        %v12050 = vsel %vm11925, %v11901, 0
        %v12053 = vsel %vm11925, %v11902, 0
        %v12056 = vsel %vm11925, %v11903, 0
        %v12059 = vsel %vm11925, %v11904, 0
        %v12062 = vsel %vm11925, %v11905, 0
        %v12065 = vsel %vm11925, %v11906, 0
        %v12068 = vsel %vm11925, %v11907, 0
        %v12071 = vsel %vm11925, %v11908, 0
        %v12074 = vsel %vm11925, %v11909, 0
        %v12077 = vsel %vm11925, %v11910, 0
        %v12080 = vsel %vm11925, %v11911, 0
        %v12083 = vsel %vm11925, %v11912, 0
        %v12086 = vsel %vm11925, %v11913, 0
        %v12089 = vsel %vm11925, %v11914, 0
        %v12092 = vsel %vm11925, %v11915, 0
        %v12095 = vsel %vm11925, %v11916, 0
        %v12098 = vsel %vm11925, %v11917, 0
        %v12101 = vsel %vm11925, %v11918, 0
        %v12104 = vsel %vm11925, %v11919, 0
        %v12107 = vsel %vm11925, %v11920, 0
        %v12110 = vsel %vm11925, %v11921, 0
        %v12113 = vsel %vm11925, %v11922, 0
        %v12116 = vsel %vm11925, %v11923, 0
        %v12119 = vsel %vm11925, %v11924, 0
        %12121 = vmatprep.subr.bf16.mxu0 0
        %12122 = vmatpush1.bf16.xpose.msra.mxu0 %v11930
        %12123 = vmatprep.subr.bf16.mxu0 0
        %12124 = vmatpush1.bf16.xpose.msra.mxu0 %v11933
        %12125 = vmatprep.subr.bf16.mxu0 0
        %12126 = vmatpush1.bf16.xpose.msra.mxu0 %v11936
        %12127 = vmatprep.subr.bf16.mxu0 0
        %12128 = vmatpush1.bf16.xpose.msra.mxu0 %v11939
        %12129 = vmatprep.subr.bf16.mxu0 0
        %12130 = vmatpush1.bf16.xpose.msra.mxu0 %v11942
        %12131 = vmatprep.subr.bf16.mxu0 0
        %12132 = vmatpush1.bf16.xpose.msra.mxu0 %v11945
        %12133 = vmatprep.subr.bf16.mxu0 0
        %12134 = vmatpush1.bf16.xpose.msra.mxu0 %v11948
        %12135 = vmatprep.subr.bf16.mxu0 0
        %12136 = vmatpush1.bf16.xpose.msra.mxu0 %v11951
        %12137 = vmatprep.subr.bf16.mxu0 0
        %12138 = vmatpush1.bf16.xpose.msra.mxu0 %v11954
        %12139 = vmatprep.subr.bf16.mxu0 0
        %12140 = vmatpush1.bf16.xpose.msra.mxu0 %v11957
        %12141 = vmatprep.subr.bf16.mxu0 0
        %12142 = vmatpush1.bf16.xpose.msra.mxu0 %v11960
        %12143 = vmatprep.subr.bf16.mxu0 0
        %12144 = vmatpush1.bf16.xpose.msra.mxu0 %v11963
        %12145 = vmatprep.subr.bf16.mxu0 0
        %12146 = vmatpush1.bf16.xpose.msra.mxu0 %v11966
        %12147 = vmatprep.subr.bf16.mxu0 0
        %12148 = vmatpush1.bf16.xpose.msra.mxu0 %v11969
        %12149 = vmatprep.subr.bf16.mxu0 0
        %12150 = vmatpush1.bf16.xpose.msra.mxu0 %v11972
        %12151 = vmatprep.subr.bf16.mxu0 0
        %12152 = vmatpush1.bf16.xpose.msra.mxu0 %v11975
        %12153 = vmatprep.mubr.bf16.mxu0 0
        %12154 = vmatmul.mubr.bf16.gmra.mrb[0].mxu0 %v11927
        %v12155 = vpop.f32.mrb[0].mxu0
        %v12156 = vadd.f32 0.0, %v12155
        %v12157 = vpop.f32.mrb[0].mxu0
        %v12158 = vadd.f32 0.0, %v12157
        %v12159 = vpop.f32.mrb[0].mxu0
        %v12160 = vpop.f32.mrb[0].mxu0
        %12161 = vdwg.mxu0
        %12162 = vmatprep.subr.bf16.mxu0 0
        %12163 = vmatpush1.bf16.xpose.msra.mxu0 %v11978
        %12164 = vmatprep.subr.bf16.mxu0 0
        %12165 = vmatpush1.bf16.xpose.msra.mxu0 %v11981
        %12166 = vmatprep.subr.bf16.mxu0 0
        %12167 = vmatpush1.bf16.xpose.msra.mxu0 %v11984
        %12168 = vmatprep.subr.bf16.mxu0 0
        %12169 = vmatpush1.bf16.xpose.msra.mxu0 %v11987
        %12170 = vmatprep.subr.bf16.mxu0 0
        %12171 = vmatpush1.bf16.xpose.msra.mxu0 %v11990
        %12172 = vmatprep.subr.bf16.mxu0 0
        %12173 = vmatpush1.bf16.xpose.msra.mxu0 %v11993
        %12174 = vmatprep.subr.bf16.mxu0 0
        %12175 = vmatpush1.bf16.xpose.msra.mxu0 %v11996
        %12176 = vmatprep.subr.bf16.mxu0 0
        %12177 = vmatpush1.bf16.xpose.msra.mxu0 %v11999
        %12178 = vmatprep.subr.bf16.mxu0 0
        %12179 = vmatpush1.bf16.xpose.msra.mxu0 %v12002
        %12180 = vmatprep.subr.bf16.mxu0 0
        %12181 = vmatpush1.bf16.xpose.msra.mxu0 %v12005
        %12182 = vmatprep.subr.bf16.mxu0 0
        %12183 = vmatpush1.bf16.xpose.msra.mxu0 %v12008
        %12184 = vmatprep.subr.bf16.mxu0 0
        %12185 = vmatpush1.bf16.xpose.msra.mxu0 %v12011
        %12186 = vmatprep.subr.bf16.mxu0 0
        %12187 = vmatpush1.bf16.xpose.msra.mxu0 %v12014
        %12188 = vmatprep.subr.bf16.mxu0 0
        %12189 = vmatpush1.bf16.xpose.msra.mxu0 %v12017
        %12190 = vmatprep.subr.bf16.mxu0 0
        %12191 = vmatpush1.bf16.xpose.msra.mxu0 %v12020
        %12192 = vmatprep.subr.bf16.mxu0 0
        %12193 = vmatpush1.bf16.xpose.msra.mxu0 %v12023
        %12194 = vmatprep.mubr.bf16.mxu0 0
        %12195 = vmatmul.mubr.bf16.gmra.mrb[0].mxu0 %v11927
        %v12196 = vpop.f32.mrb[0].mxu0
        %v12197 = vadd.f32 0.0, %v12196
        %v12198 = vpop.f32.mrb[0].mxu0
        %v12199 = vadd.f32 0.0, %v12198
        %v12200 = vpop.f32.mrb[0].mxu0
        %v12201 = vpop.f32.mrb[0].mxu0
        %12202 = vdwg.mxu0
        %12203 = vmatprep.subr.bf16.mxu0 0
        %12204 = vmatpush1.bf16.xpose.msra.mxu0 %v12026
        %12205 = vmatprep.subr.bf16.mxu0 0
        %12206 = vmatpush1.bf16.xpose.msra.mxu0 %v12029
        %12207 = vmatprep.subr.bf16.mxu0 0
        %12208 = vmatpush1.bf16.xpose.msra.mxu0 %v12032
        %12209 = vmatprep.subr.bf16.mxu0 0
        %12210 = vmatpush1.bf16.xpose.msra.mxu0 %v12035
        %12211 = vmatprep.subr.bf16.mxu0 0
        %12212 = vmatpush1.bf16.xpose.msra.mxu0 %v12038
        %12213 = vmatprep.subr.bf16.mxu0 0
        %12214 = vmatpush1.bf16.xpose.msra.mxu0 %v12041
        %12215 = vmatprep.subr.bf16.mxu0 0
        %12216 = vmatpush1.bf16.xpose.msra.mxu0 %v12044
        %12217 = vmatprep.subr.bf16.mxu0 0
        %12218 = vmatpush1.bf16.xpose.msra.mxu0 %v12047
        %12219 = vmatprep.subr.bf16.mxu0 0
        %12220 = vmatpush1.bf16.xpose.msra.mxu0 %v12050
        %12221 = vmatprep.subr.bf16.mxu0 0
        %12222 = vmatpush1.bf16.xpose.msra.mxu0 %v12053
        %12223 = vmatprep.subr.bf16.mxu0 0
        %12224 = vmatpush1.bf16.xpose.msra.mxu0 %v12056
        %12225 = vmatprep.subr.bf16.mxu0 0
        %12226 = vmatpush1.bf16.xpose.msra.mxu0 %v12059
        %12227 = vmatprep.subr.bf16.mxu0 0
        %12228 = vmatpush1.bf16.xpose.msra.mxu0 %v12062
        %12229 = vmatprep.subr.bf16.mxu0 0
        %12230 = vmatpush1.bf16.xpose.msra.mxu0 %v12065
        %12231 = vmatprep.subr.bf16.mxu0 0
        %12232 = vmatpush1.bf16.xpose.msra.mxu0 %v12068
        %12233 = vmatprep.subr.bf16.mxu0 0
        %12234 = vmatpush1.bf16.xpose.msra.mxu0 %v12071
        %12235 = vmatprep.mubr.bf16.mxu0 0
        %12236 = vmatmul.mubr.bf16.gmra.mrb[0].mxu0 %v11927
        %v12237 = vpop.f32.mrb[0].mxu0
        %v12238 = vadd.f32 0.0, %v12237
        %v12239 = vpop.f32.mrb[0].mxu0
        %v12240 = vadd.f32 0.0, %v12239
        %v12241 = vpop.f32.mrb[0].mxu0
        %v12242 = vpop.f32.mrb[0].mxu0
        %12243 = vdwg.mxu0
        %12244 = vmatprep.subr.bf16.mxu0 0
        %12245 = vmatpush1.bf16.xpose.msra.mxu0 %v12074
        %12246 = vmatprep.subr.bf16.mxu0 0
        %12247 = vmatpush1.bf16.xpose.msra.mxu0 %v12077
        %12248 = vmatprep.subr.bf16.mxu0 0
        %12249 = vmatpush1.bf16.xpose.msra.mxu0 %v12080
        %12250 = vmatprep.subr.bf16.mxu0 0
        %12251 = vmatpush1.bf16.xpose.msra.mxu0 %v12083
        %12252 = vmatprep.subr.bf16.mxu0 0
        %12253 = vmatpush1.bf16.xpose.msra.mxu0 %v12086
        %12254 = vmatprep.subr.bf16.mxu0 0
        %12255 = vmatpush1.bf16.xpose.msra.mxu0 %v12089
        %12256 = vmatprep.subr.bf16.mxu0 0
        %12257 = vmatpush1.bf16.xpose.msra.mxu0 %v12092
        %12258 = vmatprep.subr.bf16.mxu0 0
        %12259 = vmatpush1.bf16.xpose.msra.mxu0 %v12095
        %12260 = vmatprep.subr.bf16.mxu0 0
        %12261 = vmatpush1.bf16.xpose.msra.mxu0 %v12098
        %12262 = vmatprep.subr.bf16.mxu0 0
        %12263 = vmatpush1.bf16.xpose.msra.mxu0 %v12101
        %12264 = vmatprep.subr.bf16.mxu0 0
        %12265 = vmatpush1.bf16.xpose.msra.mxu0 %v12104
        %12266 = vmatprep.subr.bf16.mxu0 0
        %12267 = vmatpush1.bf16.xpose.msra.mxu0 %v12107
        %12268 = vmatprep.subr.bf16.mxu0 0
        %12269 = vmatpush1.bf16.xpose.msra.mxu0 %v12110
        %12270 = vmatprep.subr.bf16.mxu0 0
        %12271 = vmatpush1.bf16.xpose.msra.mxu0 %v12113
        %12272 = vmatprep.subr.bf16.mxu0 0
        %12273 = vmatpush1.bf16.xpose.msra.mxu0 %v12116
        %12274 = vmatprep.subr.bf16.mxu0 0
        %12275 = vmatpush1.bf16.xpose.msra.mxu0 %v12119
        %12276 = vmatprep.mubr.bf16.mxu0 0
        %12277 = vmatmul.mubr.bf16.gmra.mrb[0].mxu0 %v11927
        %v12278 = vpop.f32.mrb[0].mxu0
        %v12279 = vadd.f32 0.0, %v12278
        %v12280 = vpop.f32.mrb[0].mxu0
        %v12281 = vadd.f32 0.0, %v12280
        %v12282 = vpop.f32.mrb[0].mxu0
        %v12283 = vpop.f32.mrb[0].mxu0
        %12284 = vdwg.mxu0
        %v12285 = vpack.c.bf16 %v12156, %v12156
        %v12286 = vpack.c.bf16 %v12158, %v12158
        %v12287 = vpack.c.bf16 %v12197, %v12197
        %v12288 = vpack.c.bf16 %v12199, %v12199
        %v12289 = vpack.c.bf16 %v12238, %v12238
        %v12290 = vpack.c.bf16 %v12240, %v12240
        %v12291 = vpack.c.bf16 %v12279, %v12279
        %v12292 = vpack.c.bf16 %v12281, %v12281
        %v12301 = vunpack.c.l.b16 %v12285
        %v12302 = vunpack.c.l.b16 %v12286
        %v12303 = vunpack.c.l.b16 %v12287
        %v12304 = vunpack.c.l.b16 %v12288
        %v12305 = vunpack.c.l.b16 %v12289
        %v12306 = vunpack.c.l.b16 %v12290
        %v12307 = vunpack.c.l.b16 %v12291
        %v12308 = vunpack.c.l.b16 %v12292
        %v12309 = vpack.c.b16 %v12302, %v12301
        %v12310 = vpack.c.b16 %v12304, %v12303
        %v12311 = vpack.c.b16 %v12306, %v12305
        %v12312 = vpack.c.b16 %v12308, %v12307
        %12317 = vst [vmem:[%s209] sm:$0xff] %v12309
        %12318 = vst [vmem:[%s209 + $0x8] sm:$0xff] %v12310
        %12319 = vst [vmem:[%s209 + $0x10] sm:$0xff] %v12311
        %12320 = vst [vmem:[%s209 + $0x18] sm:$0xff] %v12312
        %v12321 = vunpack.c.l.bf16 %v12285
        %v12322 = vunpack.c.l.bf16 %v12286
        %v12323 = vunpack.c.l.bf16 %v12287
        %v12324 = vunpack.c.l.bf16 %v12288
        %v12325 = vunpack.c.l.bf16 %v12289
        %v12326 = vunpack.c.l.bf16 %v12290
        %v12327 = vunpack.c.l.bf16 %v12291
        %v12328 = vunpack.c.l.bf16 %v12292
        %v12329 = vadd.f32 %v12321, %v12322
        %v12330 = vadd.f32 %v12329, %v12323
        %v12331 = vadd.f32 %v12330, %v12324
        %v12332 = vadd.f32 %v12331, %v12325
        %v12333 = vadd.f32 %v12332, %v12326
        %v12334 = vadd.f32 %v12333, %v12327
        %v12335 = vadd.f32 %v12334, %v12328
        %12336 = vadd.xlane.f32.xlu0 %v12335
        %v12337 = vpop.xlane.xlu0 %12336
        %vm12338 = vcmask 7168
        %12339 = vst.msk [vmem:[%s240] sm:$0xff] %vm12338, %v12337
        %v12340 = vmul.f32 %v12321, %v12321
        %v12341 = vmul.f32 %v12322, %v12322
        %v12342 = vmul.f32 %v12323, %v12323
        %v12343 = vmul.f32 %v12324, %v12324
        %v12344 = vmul.f32 %v12325, %v12325
        %v12345 = vmul.f32 %v12326, %v12326
        %v12346 = vmul.f32 %v12327, %v12327
        %v12347 = vmul.f32 %v12328, %v12328
        %v12348 = vadd.f32 %v12340, %v12341
        %v12349 = vadd.f32 %v12348, %v12342
        %v12350 = vadd.f32 %v12349, %v12343
        %v12351 = vadd.f32 %v12350, %v12344
        %v12352 = vadd.f32 %v12351, %v12345
        %v12353 = vadd.f32 %v12352, %v12346
        %v12354 = vadd.f32 %v12353, %v12347
        %12355 = vadd.xlane.f32.xlu0 %v12354
        %v12356 = vpop.xlane.xlu0 %12355
        %12357 = vst.msk [vmem:[%s247] sm:$0xff] %vm12338, %v12356
        %s12358 = sand.u32 %s88, 1
        %s12359 = scalar_lea.sflag [#allocation4], %s12358
        %s12360 = sand.u32 %s88, 1
        %s12361 = smul.addr %s12360, 32
        %s12362 = scalar_lea.vmem [#allocation3], %s12361
        %p12363 = scmp.lt.s32.totalorder %s23, 1
        %s12364 = scalar_select %p12363, %s23, 1
        %p12365 = scmp.lt.s32.totalorder %s24, 0
        %s12366 = scalar_select %p12365, %s24, 0
        %s12367 = sadd.s32 %s12366, %s12364
        %s12368 = smul.addr %s12367, 8
        %s12369 = scalar_lea.vmem %s3, %s12368
        %p12370 = scmp.lt.s32.totalorder %s23, 1
        %s12371 = scalar_select %p12370, %s23, 1
        %p12372 = scmp.lt.s32.totalorder %s24, 0
        %s12373 = scalar_select %p12372, %s24, 0
        %s12374 = sadd.s32 %s12373, %s12371
        %s12375 = smul.addr %s12374, 8
        %s12376 = scalar_lea.vmem %s4, %s12375
        // Predicated region
        $region29: #{tpu_custom_call.1} parent=27 // pred_check
          %p12377 = pneg %p98
        $region30: #{tpu_custom_call.1} parent=27 // pred_check_branch
          %12379 = sbr.rel (%p12377) target = $region32
        $region31: #{tpu_custom_call.1} parent=27 // pred_region
          %s12380 = smul.u32 8, %s24
          %s12382 = ssub.s32 512, 512
          %12383 = vsyncadd %s12359, %s12382
          %s12384 = smul.addr %s23, 8
          %s12385 = sadd.s32 %s12380, %s12384
          %s12386 = smul.addr %s12385, 64
          %s12387 = scalar_lea.hbm %s2, %s12386
          %s12389 = sshll.u32 %s12362, 4
          %s12390 = int_to_ptr.vmem [resolvable:$true] %s12389
          %12392 = dma.vmem_to_hbm [thread:$0]  %s12390, 512, %s12387, %s12359
        $region32: #{tpu_custom_call.1} parent=27 // pred_fallthru
          _
        // Predicated region
        $region33: #{tpu_custom_call.1} parent=27 // pred_check
          %p12393 = pneg %p126
        $region34: #{tpu_custom_call.1} parent=27 // pred_check_branch
          %12395 = sbr.rel (%p12393) target = $region36
        $region35: #{tpu_custom_call.1} parent=27 // pred_region
          _
        $region36: #{tpu_custom_call.1} parent=27 // pred_fallthru
          _
        // Predicated region
        $region37: #{tpu_custom_call.1} parent=27 // pred_check
          %p12396 = pneg %p154
        $region38: #{tpu_custom_call.1} parent=27 // pred_check_branch
          %12398 = sbr.rel (%p12396) target = $region40
        $region39: #{tpu_custom_call.1} parent=27 // pred_region
          _
        $region40: #{tpu_custom_call.1} parent=27 // pred_fallthru
          _
      $region28: #{tpu_custom_call.1} parent=5 // pred_fallthru
        _
      %p12399 = scmp.le.s32.totalorder 2, %s14
      // Predicated region
      $region41: #{tpu_custom_call.1} parent=5 // pred_check
        %p12400 = pneg %p12399
      $region42: #{tpu_custom_call.1} parent=5 // pred_check_branch
        %12402 = sbr.rel (%p12400) target = $region44
      $region43: #{tpu_custom_call.1} parent=5 // pred_region
        %s12403 = ssub.s32 %s14, 2
        // Predicated region
        $region45: #{tpu_custom_call.1} parent=43 // pred_check
          %p12404 = pneg %p104
        $region46: #{tpu_custom_call.1} parent=43 // pred_check_branch
          %12406 = sbr.rel (%p12404) target = $region48
        $region47: #{tpu_custom_call.1} parent=43 // pred_region
          %s12407 = sand.u32 %s89, 1
          %s12408 = scalar_lea.sflag [#allocation4], %s12407
          %s12409 = sand.u32 %s89, 1
          %s12410 = smul.addr %s12409, 32
          %s12411 = scalar_lea.vmem [#allocation3], %s12410
          %12412 = dma.done %s12408, 512
        $region48: #{tpu_custom_call.1} parent=43 // pred_fallthru
          _
        // Predicated region
        $region49: #{tpu_custom_call.1} parent=43 // pred_check
          %p12413 = pneg %p132
        $region50: #{tpu_custom_call.1} parent=43 // pred_check_branch
          %12415 = sbr.rel (%p12413) target = $region52
        $region51: #{tpu_custom_call.1} parent=43 // pred_region
          %p12416 = scmp.lt.s32.totalorder %s25, 1
          %s12417 = scalar_select %p12416, %s25, 1
          %p12418 = scmp.lt.s32.totalorder %s26, 0
          %s12419 = scalar_select %p12418, %s26, 0
          %s12420 = sadd.s32 %s12419, %s12417
          %s12421 = smul.addr %s12420, 8
          %s12422 = scalar_lea.vmem %s3, %s12421
        $region52: #{tpu_custom_call.1} parent=43 // pred_fallthru
          _
        // Predicated region
        $region53: #{tpu_custom_call.1} parent=43 // pred_check
          %p12423 = pneg %p160
        $region54: #{tpu_custom_call.1} parent=43 // pred_check_branch
          %12425 = sbr.rel (%p12423) target = $region56
        $region55: #{tpu_custom_call.1} parent=43 // pred_region
          %p12426 = scmp.lt.s32.totalorder %s25, 1
          %s12427 = scalar_select %p12426, %s25, 1
          %p12428 = scmp.lt.s32.totalorder %s26, 0
          %s12429 = scalar_select %p12428, %s26, 0
          %s12430 = sadd.s32 %s12429, %s12427
          %s12431 = smul.addr %s12430, 8
          %s12432 = scalar_lea.vmem %s4, %s12431
        $region56: #{tpu_custom_call.1} parent=43 // pred_fallthru
          _
      $region44: #{tpu_custom_call.1} parent=5 // pred_fallthru
        _
    $region6: #{tpu_custom_call.1} parent=1 // loop_footer
      %s18 = sadd.s32 1, %s14
    $region7: #{tpu_custom_call.1} parent=1 // loop_footer_branch
      %13 = sbr.rel target = $region3
    $region8: #{tpu_custom_call.1} parent=1 // loop_exit
      _
    %12433 = vsyncpa [#allocation4], 1
    %s12434 = scalar_lea.sflag [#allocation4], 1
    %12435 = vsyncpa %s12434, 1

</llo_original>
